<compile_context>
chip_gen: v6e
topology: v6e:2x2x1
jax: 0.10.0
libtpu: 0.0.40
codegen_flags: <defaults>
</compile_context>

<pallas_src>
import functools
import numpy as np
import jax
import jax.numpy as jnp
from jax.experimental import pallas as pl
from jax.experimental.pallas import tpu as pltpu


C0 = 8                                   # left halo width (sublane-aligned interior)
VMEM_LIMIT = 128 * 1024 * 1024           # raised scoped-VMEM budget (>= any default)


# ----------------------------------------------------------------------------
# helpers
# ----------------------------------------------------------------------------
def _round_up(x, m):
    return (x + m - 1) // m * m


def _pad_dims(H, W):
    """Per-image padded dims: 1 top halo row + 2 slack rows, C0 left halo cols."""
    return H + 3, _round_up(W + C0 + 1, 8)


def _full_spec(a):
    """Whole-array (un-tiled) BlockSpec for parameters."""
    return pl.BlockSpec(a.shape, lambda *_: (0,) * a.ndim)


def _conv3x3_flat(flat, w_ref, *, NB, PH, PW, H, W):
    """3x3 'same' conv over NB images packed into one zero-padded flat buffer.

    `flat` is ((NB*PH + 3) * PW, Cin); image n's interior occupies rows
    [n*PH + 1, n*PH + 1 + H) x cols [C0, C0 + W).  Each of the 9 taps is a
    contiguous row-slice (a shifted copy of all images), so the conv is 9 MXU
    matmuls; per-image halo rows keep images from bleeding into each other,
    and the garbage halo outputs are sliced away at the end."""
    L = NB * PH * PW
    acc = None
    for dy in range(3):
        for dx in range(3):
            off = dy * PW + (C0 - 1) + dx
            t = jnp.dot(flat[off:off + L, :], w_ref[dy, dx],
                        preferred_element_type=jnp.float32)
            acc = t if acc is None else acc + t
    return acc.reshape(NB, PH, PW, -1)[:, :H, :W, :]


def _conv1x1(x, w):
    """1x1 conv: (NB, H, W, Cin) @ (Cin, Cout) -> f32."""
    NB, H, W, cin = x.shape
    y = jnp.dot(x.reshape(NB * H * W, cin).astype(w.dtype), w,
                preferred_element_type=jnp.float32)
    return y.reshape(NB, H, W, -1)


def _write_interior(pad_ref, val, *, NB, PH, H, W):
    """Write (NB, H, W, C) f32 into the per-image interiors (sublane-aligned)."""
    v = val.astype(pad_ref.dtype)
    for n in range(NB):
        pad_ref[n * PH + 1:n * PH + 1 + H, C0:C0 + W, :] = v[n]


def _zero_halo(pad_ref, *, NB, PH, PW, H, W):
    """Zero only the halo border strips (interior is always fully rewritten)."""
    C = pad_ref.shape[-1]
    dt = pad_ref.dtype
    for n in range(NB):
        r0 = n * PH
        pad_ref[r0:r0 + 1, :, :] = jnp.zeros((1, PW, C), dt)
        pad_ref[r0 + 1 + H:r0 + PH, :, :] = jnp.zeros((PH - 1 - H, PW, C), dt)
        pad_ref[r0 + 1:r0 + 1 + H, :C0, :] = jnp.zeros((H, C0, C), dt)
        pad_ref[r0 + 1:r0 + 1 + H, C0 + W:, :] = jnp.zeros((H, PW - C0 - W, C), dt)
    pad_ref[NB * PH:, :, :] = jnp.zeros((pad_ref.shape[0] - NB * PH, PW, C), dt)


# ----------------------------------------------------------------------------
# Pallas kernels
# ----------------------------------------------------------------------------
def _gru_cell_kernel(x_ref, h0_ref, wxg_ref, whg_ref, woh_ref, bru_ref, bo_ref,
                     out_ref, h_ref, pad_ref):
    """One ConvGRU cell step for one sample; grid=(batch, time).

    NOTE: h_ref / pad_ref scratch is carried across grid steps.  This relies
    on the grid being (B outer [parallel], T inner [arbitrary]) so that every
    sample starts at t == 0 on its core and re-initializes the state there."""
    t = pl.program_id(1)
    H, W, Ch = h_ref.shape
    RT, PW, _ = pad_ref.shape
    PH = H + 3
    Cx = x_ref.shape[-1]

    @pl.when(t == 0)
    def _():
        h_ref[...] = h0_ref[0].astype(jnp.float32)
        pad_ref[...] = jnp.zeros_like(pad_ref)        # halo stays zero afterwards

    conv = functools.partial(_conv3x3_flat, NB=1, PH=PH, PW=PW, H=H, W=W)

    # x path: ONE fused conv for all three gates (Cout = 3*Ch)
    x_flat = x_ref[0].reshape(RT * PW, Cx)
    convx = conv(x_flat, wxg_ref)[0]                  # (H, W, 3*Ch) f32

    # h path: ONE fused conv for the r/u gates (Cout = 2*Ch)
    h = h_ref[...]
    pad_ref[1:H + 1, C0:C0 + W, :] = h.astype(pad_ref.dtype)
    convh = conv(pad_ref[...].reshape(RT * PW, Ch), whg_ref)[0]   # (H, W, 2*Ch)

    gates = jax.nn.sigmoid(convx[..., :2 * Ch] + convh + bru_ref[...])
    r = gates[..., :Ch]
    u = gates[..., Ch:]

    # candidate path: conv over the gated previous state
    pad_ref[1:H + 1, C0:C0 + W, :] = (r * h).astype(pad_ref.dtype)
    c = jax.nn.relu(convx[..., 2 * Ch:]
                    + conv(pad_ref[...].reshape(RT * PW, Ch), woh_ref)[0]
                    + bo_ref[...])

    out = u * h + (1.0 - u) * c
    h_ref[...] = out
    out_ref[0] = out.astype(out_ref.dtype)


def _gru1x1_gblock_kernel(x_ref, w1_ref, b1_ref,
                          s1_ref, t1_ref, wa_ref, ba_ref,
                          s2_ref, t2_ref, wb_ref, bb_ref,
                          out_ref, pad_ref):
    """SNConv 1x1 (Cc->Cl) followed by GBlock (Cl->Cl, identity shortcut);
    processes NB images per grid step."""
    NB, H, W, Cl = out_ref.shape
    PH = H + 3
    R, PW, _ = pad_ref.shape
    _zero_halo(pad_ref, NB=NB, PH=PH, PW=PW, H=H, W=W)
    conv = functools.partial(_conv3x3_flat, NB=NB, PH=PH, PW=PW, H=H, W=W)

    x = x_ref[...]
    y = _conv1x1(x, w1_ref[...]) + b1_ref[...]                    # (NB,H,W,Cl) f32

    z = jax.nn.relu(y * s1_ref[...] + t1_ref[...])                # BN1 + ReLU
    _write_interior(pad_ref, z, NB=NB, PH=PH, H=H, W=W)
    z = conv(pad_ref[...].reshape(R * PW, Cl), wa_ref) + ba_ref[...]
    z = jax.nn.relu(z * s2_ref[...] + t2_ref[...])                # BN2 + ReLU
    _write_interior(pad_ref, z, NB=NB, PH=PH, H=H, W=W)
    z = conv(pad_ref[...].reshape(R * PW, Cl), wb_ref) + bb_ref[...]

    out_ref[...] = (y + z).astype(out_ref.dtype)


def _up_gblock_body(x_ref, wsc_ref, bsc_ref, s1_ref, t1_ref, wa_ref, ba_ref,
                    s2_ref, t2_ref, wb_ref, bb_ref, pad_in_ref, pad_out_ref):
    """UpsampleGBlock body evaluated at the already-upsampled resolution."""
    NB, H, W, Cin = x_ref.shape
    Cup = wsc_ref.shape[-1]
    PH = H + 3
    R, PW, _ = pad_in_ref.shape
    _zero_halo(pad_in_ref, NB=NB, PH=PH, PW=PW, H=H, W=W)
    _zero_halo(pad_out_ref, NB=NB, PH=PH, PW=PW, H=H, W=W)
    conv = functools.partial(_conv3x3_flat, NB=NB, PH=PH, PW=PW, H=H, W=W)

    x = x_ref[...]
    sc = _conv1x1(x, wsc_ref[...]) + bsc_ref[...]                 # shortcut

    z = jax.nn.relu(x.astype(jnp.float32) * s1_ref[...] + t1_ref[...])  # BN1+ReLU
    _write_interior(pad_in_ref, z, NB=NB, PH=PH, H=H, W=W)
    z = conv(pad_in_ref[...].reshape(R * PW, Cin), wa_ref) + ba_ref[...]
    z = jax.nn.relu(z * s2_ref[...] + t2_ref[...])                      # BN2+ReLU
    _write_interior(pad_out_ref, z, NB=NB, PH=PH, H=H, W=W)
    z = conv(pad_out_ref[...].reshape(R * PW, Cup), wb_ref) + bb_ref[...]

    return sc + z                                                  # (NB,H,W,Cup) f32


def _up_gblock_kernel(x_ref, wsc_ref, bsc_ref, s1_ref, t1_ref, wa_ref, ba_ref,
                      s2_ref, t2_ref, wb_ref, bb_ref,
                      out_ref, pad_in_ref, pad_out_ref):
    y = _up_gblock_body(x_ref, wsc_ref, bsc_ref, s1_ref, t1_ref, wa_ref, ba_ref,
                        s2_ref, t2_ref, wb_ref, bb_ref, pad_in_ref, pad_out_ref)
    out_ref[...] = y.astype(out_ref.dtype)


def _up_gblock_head_kernel(x_ref, wsc_ref, bsc_ref, s1_ref, t1_ref, wa_ref, ba_ref,
                           s2_ref, t2_ref, wb_ref, bb_ref,
                           sh_ref, th_ref, wc_ref, bc_ref,
                           out_ref, pad_in_ref, pad_out_ref):
    """Last UpsampleGBlock with the final BN+ReLU+SNConv1x1 head fused in."""
    y = _up_gblock_body(x_ref, wsc_ref, bsc_ref, s1_ref, t1_ref, wa_ref, ba_ref,
                        s2_ref, t2_ref, wb_ref, bb_ref, pad_in_ref, pad_out_ref)
    z = jax.nn.relu(y * sh_ref[...] + th_ref[...])
    out_ref[...] = (_conv1x1(z, wc_ref[...]) + bc_ref[...]).astype(out_ref.dtype)


# ----------------------------------------------------------------------------
# pallas_call wrappers
# ----------------------------------------------------------------------------
def conv_gru_layer(x_seq, h0, p, T, B):
    """x_seq: (T*B, H, W, Cx) bf16 (t-major), h0: (B, H, W, Ch) bf16."""
    N, H, W, Cx = x_seq.shape
    Ch = h0.shape[-1]
    PH, PW = _pad_dims(H, W)
    RT = PH + 3
    xp = jnp.pad(x_seq, ((0, 0), (1, RT - H - 1), (C0, PW - W - C0), (0, 0)))
    plist = [p[k] for k in ("wxg", "whg", "woh", "bru", "bo")]
    in_specs = ([pl.BlockSpec((1, RT, PW, Cx), lambda b, t: (t * B + b, 0, 0, 0)),
                 pl.BlockSpec((1, H, W, Ch), lambda b, t: (b, 0, 0, 0))]
                + [_full_spec(a) for a in plist])
    out_spec = pl.BlockSpec((1, H, W, Ch), lambda b, t: (t * B + b, 0, 0, 0))
    return pl.pallas_call(
        _gru_cell_kernel,
        out_shape=jax.ShapeDtypeStruct((N, H, W, Ch), jnp.bfloat16),
        grid_spec=pltpu.PrefetchScalarGridSpec(
            num_scalar_prefetch=0,
            grid=(B, T),                               # B outer (parallel), T inner
            in_specs=in_specs,
            out_specs=out_spec,
            scratch_shapes=[pltpu.VMEM((H, W, Ch), jnp.float32),
                            pltpu.VMEM((RT, PW, Ch), jnp.bfloat16)]),
        compiler_params=pltpu.CompilerParams(
            dimension_semantics=("parallel", "arbitrary"),
            vmem_limit_bytes=VMEM_LIMIT),
    )(xp, h0, *plist)


def _batched_call(kernel, x, plist, cout, NB, scratch_channels,
                  out_dtype=jnp.bfloat16):
    N, H, W, Cin = x.shape
    assert N % NB == 0
    PH, PW = _pad_dims(H, W)
    R = NB * PH + 3
    in_specs = ([pl.BlockSpec((NB, H, W, Cin), lambda n: (n, 0, 0, 0))]
                + [_full_spec(a) for a in plist])
    out_spec = pl.BlockSpec((NB, H, W, cout), lambda n: (n, 0, 0, 0))
    scratch = [pltpu.VMEM((R, PW, c), jnp.bfloat16) for c in scratch_channels]
    return pl.pallas_call(
        kernel,
        out_shape=jax.ShapeDtypeStruct((N, H, W, cout), out_dtype),
        grid_spec=pltpu.PrefetchScalarGridSpec(
            num_scalar_prefetch=0,
            grid=(N // NB,),
            in_specs=in_specs,
            out_specs=out_spec,
            scratch_shapes=scratch),
        compiler_params=pltpu.CompilerParams(
            dimension_semantics=("parallel",),
            vmem_limit_bytes=VMEM_LIMIT),
    )(x, *plist)


def _pick_nb(N, H, W):
    """Batch several small images per grid step (amortize per-step overhead)."""
    cap = max(1, 4096 // (H * W))
    nb = 1
    for d in range(1, N + 1):
        if N % d == 0 and d <= cap:
            nb = d
    return nb


def gru1x1_gblock(x, p, NB):
    Cl = p["wa"].shape[-1]
    plist = [p[k] for k in ("w1", "b1", "s1", "t1", "wa", "ba",
                            "s2", "t2", "wb", "bb")]
    return _batched_call(_gru1x1_gblock_kernel, x, plist, Cl, NB, [Cl])


def up_gblock(xu, p, NB):
    Cin = xu.shape[-1]
    Cup = p["wsc"].shape[-1]
    plist = [p[k] for k in ("wsc", "bsc", "s1", "t1", "wa", "ba",
                            "s2", "t2", "wb", "bb")]
    return _batched_call(_up_gblock_kernel, xu, plist, Cup, NB, [Cin, Cup])


def up_gblock_head(xu, p, hp, NB):
    Cin = xu.shape[-1]
    Cup = p["wsc"].shape[-1]
    Co = hp["wc"].shape[-1]
    plist = ([p[k] for k in ("wsc", "bsc", "s1", "t1", "wa", "ba",
                             "s2", "t2", "wb", "bb")]
             + [hp[k] for k in ("s", "t", "wc", "bc")])
    return _batched_call(_up_gblock_head_kernel, xu, plist, Co, NB, [Cin, Cup])


# ----------------------------------------------------------------------------
# plain-JAX glue: upsample / pixel-shuffle (pure data movement)
# ----------------------------------------------------------------------------
def _upsample_nearest_2x(x):
    return jnp.repeat(jnp.repeat(x, 2, axis=1), 2, axis=2)


def _pixel_shuffle_nhwc(x, r):
    N, H, W, C = x.shape
    co = C // (r * r)
    x = x.reshape(N, H, W, co, r, r)
    x = x.transpose(0, 1, 4, 2, 5, 3)
    return x.reshape(N, H * r, W * r, co)


# ----------------------------------------------------------------------------
# deterministic parameter construction (synthetic, matching module shapes)
# ----------------------------------------------------------------------------
def _make_conv(key, cout, cin, k):
    kw, kb = jax.random.split(key)
    w = jax.random.normal(kw, (cout, cin, k, k), jnp.float32) / np.sqrt(cin * k * k)
    b = 0.05 * jax.random.normal(kb, (cout,), jnp.float32)
    # spectral normalization (torch-style power iteration on w.reshape(cout,-1))
    wm = w.reshape(cout, -1)
    u = jnp.ones((cout,), jnp.float32)
    for _ in range(15):
        v = wm.T @ u
        v = v / (jnp.linalg.norm(v) + 1e-12)
        u = wm @ v
        u = u / (jnp.linalg.norm(u) + 1e-12)
    sigma = u @ (wm @ v)
    return w / sigma, b


def _w3_to_hwio(w):          # (cout, cin, 3, 3) -> (3, 3, cin, cout)
    return jnp.transpose(w, (2, 3, 1, 0))


def _w1_to_mat(w):           # (cout, cin, 1, 1) -> (cin, cout)
    return jnp.transpose(w[:, :, 0, 0], (1, 0))


def _vec(b):
    return b.reshape(1, 1, -1)


def _make_bn(key, c, eps=1e-5):
    k1, k2, k3, k4 = jax.random.split(key, 4)
    gamma = 1.0 + 0.1 * jax.random.normal(k1, (c,), jnp.float32)
    beta = 0.1 * jax.random.normal(k2, (c,), jnp.float32)
    mean = 0.1 * jax.random.normal(k3, (c,), jnp.float32)
    var = jax.random.uniform(k4, (c,), jnp.float32, minval=0.5, maxval=1.5)
    scale = gamma / jnp.sqrt(var + eps)
    shift = beta - mean * scale
    return _vec(scale), _vec(shift)


def init_sampler_params(key, latent_channels, context_channels, output_channels):
    bf = jnp.bfloat16
    keys = jax.random.split(key, 6)
    layers = []
    for i in range(4):
        factor = 2 ** i
        cl, cc = latent_channels // factor, context_channels // factor
        lk = jax.random.split(keys[i], 13)
        # --- ConvGRU: conv over concat([x, h]); gate weights fused along Cout ---
        wx, wh, bs = [], [], []
        for j in range(3):                              # gates r, u, o
            w, b = _make_conv(lk[j], cc, cl + cc, 3)
            whwio = _w3_to_hwio(w)
            wx.append(whwio[:, :, :cl, :])
            wh.append(whwio[:, :, cl:, :])
            bs.append(_vec(b))
        gru = {"wxg": jnp.concatenate(wx, axis=-1).astype(bf),       # (3,3,cl,3cc)
               "whg": jnp.concatenate(wh[:2], axis=-1).astype(bf),   # (3,3,cc,2cc)
               "woh": wh[2].astype(bf),                               # (3,3,cc,cc)
               "bru": jnp.concatenate(bs[:2], axis=-1),               # (1,1,2cc)
               "bo": bs[2]}                                           # (1,1,cc)
        # --- gru_conv_1x1 + GBlock ---
        w1, b1 = _make_conv(lk[3], cl, cc, 1)
        wa, ba = _make_conv(lk[4], cl, cl, 3)
        wb, bb = _make_conv(lk[5], cl, cl, 3)
        s1, t1 = _make_bn(lk[6], cl)
        s2, t2 = _make_bn(lk[7], cl)
        blk = {"w1": _w1_to_mat(w1).astype(bf), "b1": _vec(b1), "s1": s1, "t1": t1,
               "wa": _w3_to_hwio(wa).astype(bf), "ba": _vec(ba), "s2": s2, "t2": t2,
               "wb": _w3_to_hwio(wb).astype(bf), "bb": _vec(bb)}
        # --- UpsampleGBlock ---
        co = cl // 2
        wsc, bsc = _make_conv(lk[8], co, cl, 1)
        wua, bua = _make_conv(lk[9], co, cl, 3)
        wub, bub = _make_conv(lk[10], co, co, 3)
        us1, ut1 = _make_bn(lk[11], cl)
        us2, ut2 = _make_bn(lk[12], co)
        upb = {"wsc": _w1_to_mat(wsc).astype(bf), "bsc": _vec(bsc),
               "s1": us1, "t1": ut1,
               "wa": _w3_to_hwio(wua).astype(bf), "ba": _vec(bua),
               "s2": us2, "t2": ut2,
               "wb": _w3_to_hwio(wub).astype(bf), "bb": _vec(bub)}
        layers.append({"gru": gru, "block": blk, "up": upb})

    c16 = latent_channels // 16
    hs, ht = _make_bn(keys[4], c16)
    wc, bc = _make_conv(keys[5], 4 * output_channels, c16, 1)
    head = {"s": hs, "t": ht, "wc": _w1_to_mat(wc).astype(bf), "bc": _vec(bc)}
    return {"layers": layers, "head": head}


# ----------------------------------------------------------------------------
# Sampler forward
# ----------------------------------------------------------------------------
def sampler_forward(conditioning_states_nchw, latent_dim_nchw, params, forecast_steps):
    T = forecast_steps
    B = conditioning_states_nchw[0].shape[0]

    # einops.repeat(latent_dim, 'b c h w -> (repeat b) c h w', repeat=B)
    latent = jnp.tile(latent_dim_nchw, (B, 1, 1, 1))
    to_nhwc = lambda a: jnp.transpose(a, (0, 2, 3, 1)).astype(jnp.bfloat16)
    latent = to_nhwc(latent)
    conds = [to_nhwc(c) for c in conditioning_states_nchw]

    # hidden_states = [latent_dim] * forecast_steps, stored t-major as (T*B, H, W, C)
    h = jnp.tile(latent[None], (T, 1, 1, 1, 1)).reshape(T * B, *latent.shape[1:])

    for i in range(4):
        lp = params["layers"][i]
        cond = conds[3 - i]                               # init hidden state
        h = conv_gru_layer(h, cond, lp["gru"], T, B)      # ConvGRU stack
        N, H, W, _ = h.shape
        h = gru1x1_gblock(h, lp["block"], _pick_nb(N, H, W))
        hu = _upsample_nearest_2x(h)                      # glue: nearest x2
        Nu, Hu, Wu, _ = hu.shape
        nbu = _pick_nb(Nu, Hu, Wu)
        if i < 3:
            h = up_gblock(hu, lp["up"], nbu)              # UpsampleGBlock
        else:                                             # last layer: fuse head
            h = up_gblock_head(hu, lp["up"], params["head"], nbu)

    y = _pixel_shuffle_nhwc(h.astype(jnp.float32), 2)     # glue: depth2space

    # back to PyTorch layout: torch.stack(..., dim=1) -> (B, T, C, H, W)
    N, Ho, Wo, Co = y.shape
    y = y.reshape(T, B, Ho, Wo, Co)
    return jnp.transpose(y, (1, 0, 4, 2, 3))


# ----------------------------------------------------------------------------
if __name__ == "__main__":
    key = jax.random.PRNGKey(0)
    forecast_steps = 2
    latent_channels = 32
    context_channels = 16
    output_channels = 1
    B = 2
    Hl = Wl = 8                       # latent / smallest conditioning spatial size

    kp, kc0, kc1, kc2, kc3, kl = jax.random.split(key, 6)
    params = init_sampler_params(kp, latent_channels, context_channels,
                                 output_channels)

    conditioning_states = [            # NCHW, ordered largest -> smallest spatially
        0.1 * jax.random.normal(kc0, (B, context_channels // 8, Hl * 8, Wl * 8), jnp.float32),
        0.1 * jax.random.normal(kc1, (B, context_channels // 4, Hl * 4, Wl * 4), jnp.float32),
        0.1 * jax.random.normal(kc2, (B, context_channels // 2, Hl * 2, Wl * 2), jnp.float32),
        0.1 * jax.random.normal(kc3, (B, context_channels, Hl, Wl), jnp.float32),
    ]
    latent_dim = 0.1 * jax.random.normal(kl, (1, latent_channels, Hl, Wl), jnp.float32)

    out = sampler_forward(conditioning_states, latent_dim, params, forecast_steps)
    out = jax.block_until_ready(out)

    expected = (B, forecast_steps, output_channels, Hl * 32, Wl * 32)
    assert out.shape == expected, (out.shape, expected)
    assert bool(jnp.all(jnp.isfinite(out)))
    print("KERNEL_OK")
</pallas_src>

<mosaic_0001>
module attributes {stable_mosaic.version = 11 : i64} {
  func.func @_gru_cell_kernel(%arg0: i32, %arg1: i32, %arg2: memref<1x14x24x32xbf16, #tpu.memory_space<vmem>>, %arg3: memref<1x8x8x16xbf16, #tpu.memory_space<vmem>>, %arg4: memref<3x3x32x48xbf16, #tpu.memory_space<vmem>>, %arg5: memref<3x3x16x32xbf16, #tpu.memory_space<vmem>>, %arg6: memref<3x3x16x16xbf16, #tpu.memory_space<vmem>>, %arg7: memref<1x1x32xf32, #tpu.memory_space<vmem>>, %arg8: memref<1x1x16xf32, #tpu.memory_space<vmem>>, %arg9: memref<1x8x8x16xbf16, #tpu.memory_space<vmem>>, %arg10: memref<8x8x16xf32, #tpu.memory_space<vmem>>, %arg11: memref<14x24x16xbf16, #tpu.memory_space<vmem>>) attributes {dimension_semantics = [#tpu.dimension_semantics<parallel>, #tpu.dimension_semantics<arbitrary>], iteration_bounds = array<i64: 2, 2>, scalar_prefetch = 0 : i64, scratch_operands = 2 : i64, tpu.core_type = #tpu.core_type<tc>, window_params = [{transform_indices = @transform_0, window_bounds = array<i64: 1, 14, 24, 32>}, {transform_indices = @transform_1, window_bounds = array<i64: 1, 8, 8, 16>}, {pipeline_mode = #tpu.pipeline_mode<synchronous>, transform_indices = @transform_2, window_bounds = array<i64: 3, 3, 32, 48>}, {pipeline_mode = #tpu.pipeline_mode<synchronous>, transform_indices = @transform_3, window_bounds = array<i64: 3, 3, 16, 32>}, {pipeline_mode = #tpu.pipeline_mode<synchronous>, transform_indices = @transform_4, window_bounds = array<i64: 3, 3, 16, 16>}, {pipeline_mode = #tpu.pipeline_mode<synchronous>, transform_indices = @transform_5, window_bounds = array<i64: 1, 1, 32>}, {pipeline_mode = #tpu.pipeline_mode<synchronous>, transform_indices = @transform_6, window_bounds = array<i64: 1, 1, 16>}, {transform_indices = @transform_7, window_bounds = array<i64: 1, 8, 8, 16>}]} {
    %c0_i32 = arith.constant 0 : i32
    %0 = arith.cmpi eq, %arg1, %c0_i32 : i32
    %1 = arith.extui %0 : i1 to i32
    %c0_i32_0 = arith.constant 0 : i32
    %2 = arith.cmpi ne, %1, %c0_i32_0 : i32
    scf.if %2 {
      %c0_166 = arith.constant 0 : index
      %c0_167 = arith.constant 0 : index
      %c0_168 = arith.constant 0 : index
      %c0_169 = arith.constant 0 : index
      %186 = vector.load %arg3[%c0_166, %c0_167, %c0_168, %c0_169] : memref<1x8x8x16xbf16, #tpu.memory_space<vmem>>, vector<1x8x8x16xbf16>
      %187 = vector.shape_cast %186 : vector<1x8x8x16xbf16> to vector<8x8x16xbf16>
      %188 = arith.extf %187 : vector<8x8x16xbf16> to vector<8x8x16xf32>
      %c0_170 = arith.constant 0 : index
      %c0_171 = arith.constant 0 : index
      %c0_172 = arith.constant 0 : index
      %189 = vector.load %arg10[%c0_170, %c0_171, %c0_172] : memref<8x8x16xf32, #tpu.memory_space<vmem>>, vector<8x8x16xf32>
      tpu.vector_store %arg10[%c0_170, %c0_171, %c0_172], %188 {strides = array<i32>} : memref<8x8x16xf32, #tpu.memory_space<vmem>>, vector<8x8x16xf32>,
      %cst_173 = arith.constant 0.000000e+00 : bf16
      %190 = vector.broadcast %cst_173 : bf16 to vector<14x24x16xbf16>
      %c0_174 = arith.constant 0 : index
      %c0_175 = arith.constant 0 : index
      %c0_176 = arith.constant 0 : index
      %191 = vector.load %arg11[%c0_174, %c0_175, %c0_176] : memref<14x24x16xbf16, #tpu.memory_space<vmem>>, vector<14x24x16xbf16>
      tpu.vector_store %arg11[%c0_174, %c0_175, %c0_176], %190 {strides = array<i32>} : memref<14x24x16xbf16, #tpu.memory_space<vmem>>, vector<14x24x16xbf16>,
    } else {
    }
    %c0 = arith.constant 0 : index
    %c0_1 = arith.constant 0 : index
    %c0_2 = arith.constant 0 : index
    %c0_3 = arith.constant 0 : index
    %3 = vector.load %arg2[%c0, %c0_1, %c0_2, %c0_3] : memref<1x14x24x32xbf16, #tpu.memory_space<vmem>>, vector<1x14x24x32xbf16>
    %4 = vector.shape_cast %3 : vector<1x14x24x32xbf16> to vector<14x24x32xbf16>
    %5 = vector.shape_cast %4 : vector<14x24x32xbf16> to vector<336x32xbf16>
    %6 = vector.extract_strided_slice %5 {offsets = [7, 0], sizes = [264, 32], strides = [1, 1]} : vector<336x32xbf16> to vector<264x32xbf16>
    %c0_4 = arith.constant 0 : index
    %c0_5 = arith.constant 0 : index
    %c0_6 = arith.constant 0 : index
    %c0_7 = arith.constant 0 : index
    %7 = vector.load %arg4[%c0_4, %c0_5, %c0_6, %c0_7] : memref<3x3x32x48xbf16, #tpu.memory_space<vmem>>, vector<1x1x32x48xbf16>
    %8 = vector.shape_cast %7 : vector<1x1x32x48xbf16> to vector<32x48xbf16>
    %cst = arith.constant dense<0.000000e+00> : vector<264x48xf32>
    %9 = tpu.matmul %6, %8, %cst {dimension_numbers = #tpu.dot_dimension_numbers<[1], [0], [0], [1], [0, 0, 1, 1], [], []>} : vector<264x32xbf16>, vector<32x48xbf16>, vector<264x48xf32> -> vector<264x48xf32>
    %10 = vector.extract_strided_slice %5 {offsets = [8, 0], sizes = [264, 32], strides = [1, 1]} : vector<336x32xbf16> to vector<264x32xbf16>
    %c0_8 = arith.constant 0 : index
    %c1 = arith.constant 1 : index
    %c0_9 = arith.constant 0 : index
    %c0_10 = arith.constant 0 : index
    %11 = vector.load %arg4[%c0_8, %c1, %c0_9, %c0_10] : memref<3x3x32x48xbf16, #tpu.memory_space<vmem>>, vector<1x1x32x48xbf16>
    %12 = vector.shape_cast %11 : vector<1x1x32x48xbf16> to vector<32x48xbf16>
    %cst_11 = arith.constant dense<0.000000e+00> : vector<264x48xf32>
    %13 = tpu.matmul %10, %12, %cst_11 {dimension_numbers = #tpu.dot_dimension_numbers<[1], [0], [0], [1], [0, 0, 1, 1], [], []>} : vector<264x32xbf16>, vector<32x48xbf16>, vector<264x48xf32> -> vector<264x48xf32>
    %14 = arith.addf %9, %13 : vector<264x48xf32>
    %15 = vector.extract_strided_slice %5 {offsets = [9, 0], sizes = [264, 32], strides = [1, 1]} : vector<336x32xbf16> to vector<264x32xbf16>
    %c0_12 = arith.constant 0 : index
    %c2 = arith.constant 2 : index
    %c0_13 = arith.constant 0 : index
    %c0_14 = arith.constant 0 : index
    %16 = vector.load %arg4[%c0_12, %c2, %c0_13, %c0_14] : memref<3x3x32x48xbf16, #tpu.memory_space<vmem>>, vector<1x1x32x48xbf16>
    %17 = vector.shape_cast %16 : vector<1x1x32x48xbf16> to vector<32x48xbf16>
    %cst_15 = arith.constant dense<0.000000e+00> : vector<264x48xf32>
    %18 = tpu.matmul %15, %17, %cst_15 {dimension_numbers = #tpu.dot_dimension_numbers<[1], [0], [0], [1], [0, 0, 1, 1], [], []>} : vector<264x32xbf16>, vector<32x48xbf16>, vector<264x48xf32> -> vector<264x48xf32>
    %19 = arith.addf %14, %18 : vector<264x48xf32>
    %20 = vector.extract_strided_slice %5 {offsets = [31, 0], sizes = [264, 32], strides = [1, 1]} : vector<336x32xbf16> to vector<264x32xbf16>
    %c1_16 = arith.constant 1 : index
    %c0_17 = arith.constant 0 : index
    %c0_18 = arith.constant 0 : index
    %c0_19 = arith.constant 0 : index
    %21 = vector.load %arg4[%c1_16, %c0_17, %c0_18, %c0_19] : memref<3x3x32x48xbf16, #tpu.memory_space<vmem>>, vector<1x1x32x48xbf16>
    %22 = vector.shape_cast %21 : vector<1x1x32x48xbf16> to vector<32x48xbf16>
    %cst_20 = arith.constant dense<0.000000e+00> : vector<264x48xf32>
    %23 = tpu.matmul %20, %22, %cst_20 {dimension_numbers = #tpu.dot_dimension_numbers<[1], [0], [0], [1], [0, 0, 1, 1], [], []>} : vector<264x32xbf16>, vector<32x48xbf16>, vector<264x48xf32> -> vector<264x48xf32>
    %24 = arith.addf %19, %23 : vector<264x48xf32>
    %25 = vector.extract_strided_slice %5 {offsets = [32, 0], sizes = [264, 32], strides = [1, 1]} : vector<336x32xbf16> to vector<264x32xbf16>
    %c1_21 = arith.constant 1 : index
    %c1_22 = arith.constant 1 : index
    %c0_23 = arith.constant 0 : index
    %c0_24 = arith.constant 0 : index
    %26 = vector.load %arg4[%c1_21, %c1_22, %c0_23, %c0_24] : memref<3x3x32x48xbf16, #tpu.memory_space<vmem>>, vector<1x1x32x48xbf16>
    %27 = vector.shape_cast %26 : vector<1x1x32x48xbf16> to vector<32x48xbf16>
    %cst_25 = arith.constant dense<0.000000e+00> : vector<264x48xf32>
    %28 = tpu.matmul %25, %27, %cst_25 {dimension_numbers = #tpu.dot_dimension_numbers<[1], [0], [0], [1], [0, 0, 1, 1], [], []>} : vector<264x32xbf16>, vector<32x48xbf16>, vector<264x48xf32> -> vector<264x48xf32>
    %29 = arith.addf %24, %28 : vector<264x48xf32>
    %30 = vector.extract_strided_slice %5 {offsets = [33, 0], sizes = [264, 32], strides = [1, 1]} : vector<336x32xbf16> to vector<264x32xbf16>
    %c1_26 = arith.constant 1 : index
    %c2_27 = arith.constant 2 : index
    %c0_28 = arith.constant 0 : index
    %c0_29 = arith.constant 0 : index
    %31 = vector.load %arg4[%c1_26, %c2_27, %c0_28, %c0_29] : memref<3x3x32x48xbf16, #tpu.memory_space<vmem>>, vector<1x1x32x48xbf16>
    %32 = vector.shape_cast %31 : vector<1x1x32x48xbf16> to vector<32x48xbf16>
    %cst_30 = arith.constant dense<0.000000e+00> : vector<264x48xf32>
    %33 = tpu.matmul %30, %32, %cst_30 {dimension_numbers = #tpu.dot_dimension_numbers<[1], [0], [0], [1], [0, 0, 1, 1], [], []>} : vector<264x32xbf16>, vector<32x48xbf16>, vector<264x48xf32> -> vector<264x48xf32>
    %34 = arith.addf %29, %33 : vector<264x48xf32>
    %35 = vector.extract_strided_slice %5 {offsets = [55, 0], sizes = [264, 32], strides = [1, 1]} : vector<336x32xbf16> to vector<264x32xbf16>
    %c2_31 = arith.constant 2 : index
    %c0_32 = arith.constant 0 : index
    %c0_33 = arith.constant 0 : index
    %c0_34 = arith.constant 0 : index
    %36 = vector.load %arg4[%c2_31, %c0_32, %c0_33, %c0_34] : memref<3x3x32x48xbf16, #tpu.memory_space<vmem>>, vector<1x1x32x48xbf16>
    %37 = vector.shape_cast %36 : vector<1x1x32x48xbf16> to vector<32x48xbf16>
    %cst_35 = arith.constant dense<0.000000e+00> : vector<264x48xf32>
    %38 = tpu.matmul %35, %37, %cst_35 {dimension_numbers = #tpu.dot_dimension_numbers<[1], [0], [0], [1], [0, 0, 1, 1], [], []>} : vector<264x32xbf16>, vector<32x48xbf16>, vector<264x48xf32> -> vector<264x48xf32>
    %39 = arith.addf %34, %38 : vector<264x48xf32>
    %40 = vector.extract_strided_slice %5 {offsets = [56, 0], sizes = [264, 32], strides = [1, 1]} : vector<336x32xbf16> to vector<264x32xbf16>
    %c2_36 = arith.constant 2 : index
    %c1_37 = arith.constant 1 : index
    %c0_38 = arith.constant 0 : index
    %c0_39 = arith.constant 0 : index
    %41 = vector.load %arg4[%c2_36, %c1_37, %c0_38, %c0_39] : memref<3x3x32x48xbf16, #tpu.memory_space<vmem>>, vector<1x1x32x48xbf16>
    %42 = vector.shape_cast %41 : vector<1x1x32x48xbf16> to vector<32x48xbf16>
    %cst_40 = arith.constant dense<0.000000e+00> : vector<264x48xf32>
    %43 = tpu.matmul %40, %42, %cst_40 {dimension_numbers = #tpu.dot_dimension_numbers<[1], [0], [0], [1], [0, 0, 1, 1], [], []>} : vector<264x32xbf16>, vector<32x48xbf16>, vector<264x48xf32> -> vector<264x48xf32>
    %44 = arith.addf %39, %43 : vector<264x48xf32>
    %45 = vector.extract_strided_slice %5 {offsets = [57, 0], sizes = [264, 32], strides = [1, 1]} : vector<336x32xbf16> to vector<264x32xbf16>
    %c2_41 = arith.constant 2 : index
    %c2_42 = arith.constant 2 : index
    %c0_43 = arith.constant 0 : index
    %c0_44 = arith.constant 0 : index
    %46 = vector.load %arg4[%c2_41, %c2_42, %c0_43, %c0_44] : memref<3x3x32x48xbf16, #tpu.memory_space<vmem>>, vector<1x1x32x48xbf16>
    %47 = vector.shape_cast %46 : vector<1x1x32x48xbf16> to vector<32x48xbf16>
    %cst_45 = arith.constant dense<0.000000e+00> : vector<264x48xf32>
    %48 = tpu.matmul %45, %47, %cst_45 {dimension_numbers = #tpu.dot_dimension_numbers<[1], [0], [0], [1], [0, 0, 1, 1], [], []>} : vector<264x32xbf16>, vector<32x48xbf16>, vector<264x48xf32> -> vector<264x48xf32>
    %49 = arith.addf %44, %48 : vector<264x48xf32>
    %50 = vector.shape_cast %49 : vector<264x48xf32> to vector<1x11x24x48xf32>
    %51 = vector.extract_strided_slice %50 {offsets = [0, 0, 0, 0], sizes = [1, 8, 8, 48], strides = [1, 1, 1, 1]} : vector<1x11x24x48xf32> to vector<1x8x8x48xf32>
    %52 = vector.shape_cast %51 : vector<1x8x8x48xf32> to vector<8x8x48xf32>
    %c0_46 = arith.constant 0 : index
    %c0_47 = arith.constant 0 : index
    %c0_48 = arith.constant 0 : index
    %53 = vector.load %arg10[%c0_46, %c0_47, %c0_48] : memref<8x8x16xf32, #tpu.memory_space<vmem>>, vector<8x8x16xf32>
    %54 = arith.truncf %53 : vector<8x8x16xf32> to vector<8x8x16xbf16>
    %c1_49 = arith.constant 1 : index
    %c8 = arith.constant 8 : index
    %c0_50 = arith.constant 0 : index
    %55 = vector.load %arg11[%c1_49, %c8, %c0_50] : memref<14x24x16xbf16, #tpu.memory_space<vmem>>, vector<8x8x16xbf16>
    tpu.vector_store %arg11[%c1_49, %c8, %c0_50], %54 {strides = array<i32>} : memref<14x24x16xbf16, #tpu.memory_space<vmem>>, vector<8x8x16xbf16>,
    %c0_51 = arith.constant 0 : index
    %c0_52 = arith.constant 0 : index
    %c0_53 = arith.constant 0 : index
    %56 = vector.load %arg11[%c0_51, %c0_52, %c0_53] : memref<14x24x16xbf16, #tpu.memory_space<vmem>>, vector<14x24x16xbf16>
    %57 = vector.shape_cast %56 : vector<14x24x16xbf16> to vector<336x16xbf16>
    %58 = vector.extract_strided_slice %57 {offsets = [7, 0], sizes = [264, 16], strides = [1, 1]} : vector<336x16xbf16> to vector<264x16xbf16>
    %c0_54 = arith.constant 0 : index
    %c0_55 = arith.constant 0 : index
    %c0_56 = arith.constant 0 : index
    %c0_57 = arith.constant 0 : index
    %59 = vector.load %arg5[%c0_54, %c0_55, %c0_56, %c0_57] : memref<3x3x16x32xbf16, #tpu.memory_space<vmem>>, vector<1x1x16x32xbf16>
    %60 = vector.shape_cast %59 : vector<1x1x16x32xbf16> to vector<16x32xbf16>
    %cst_58 = arith.constant dense<0.000000e+00> : vector<264x32xf32>
    %61 = tpu.matmul %58, %60, %cst_58 {dimension_numbers = #tpu.dot_dimension_numbers<[1], [0], [0], [1], [0, 0, 1, 1], [], []>} : vector<264x16xbf16>, vector<16x32xbf16>, vector<264x32xf32> -> vector<264x32xf32>
    %62 = vector.extract_strided_slice %57 {offsets = [8, 0], sizes = [264, 16], strides = [1, 1]} : vector<336x16xbf16> to vector<264x16xbf16>
    %c0_59 = arith.constant 0 : index
    %c1_60 = arith.constant 1 : index
    %c0_61 = arith.constant 0 : index
    %c0_62 = arith.constant 0 : index
    %63 = vector.load %arg5[%c0_59, %c1_60, %c0_61, %c0_62] : memref<3x3x16x32xbf16, #tpu.memory_space<vmem>>, vector<1x1x16x32xbf16>
    %64 = vector.shape_cast %63 : vector<1x1x16x32xbf16> to vector<16x32xbf16>
    %cst_63 = arith.constant dense<0.000000e+00> : vector<264x32xf32>
    %65 = tpu.matmul %62, %64, %cst_63 {dimension_numbers = #tpu.dot_dimension_numbers<[1], [0], [0], [1], [0, 0, 1, 1], [], []>} : vector<264x16xbf16>, vector<16x32xbf16>, vector<264x32xf32> -> vector<264x32xf32>
    %66 = arith.addf %61, %65 : vector<264x32xf32>
    %67 = vector.extract_strided_slice %57 {offsets = [9, 0], sizes = [264, 16], strides = [1, 1]} : vector<336x16xbf16> to vector<264x16xbf16>
    %c0_64 = arith.constant 0 : index
    %c2_65 = arith.constant 2 : index
    %c0_66 = arith.constant 0 : index
    %c0_67 = arith.constant 0 : index
    %68 = vector.load %arg5[%c0_64, %c2_65, %c0_66, %c0_67] : memref<3x3x16x32xbf16, #tpu.memory_space<vmem>>, vector<1x1x16x32xbf16>
    %69 = vector.shape_cast %68 : vector<1x1x16x32xbf16> to vector<16x32xbf16>
    %cst_68 = arith.constant dense<0.000000e+00> : vector<264x32xf32>
    %70 = tpu.matmul %67, %69, %cst_68 {dimension_numbers = #tpu.dot_dimension_numbers<[1], [0], [0], [1], [0, 0, 1, 1], [], []>} : vector<264x16xbf16>, vector<16x32xbf16>, vector<264x32xf32> -> vector<264x32xf32>
    %71 = arith.addf %66, %70 : vector<264x32xf32>
    %72 = vector.extract_strided_slice %57 {offsets = [31, 0], sizes = [264, 16], strides = [1, 1]} : vector<336x16xbf16> to vector<264x16xbf16>
    %c1_69 = arith.constant 1 : index
    %c0_70 = arith.constant 0 : index
    %c0_71 = arith.constant 0 : index
    %c0_72 = arith.constant 0 : index
    %73 = vector.load %arg5[%c1_69, %c0_70, %c0_71, %c0_72] : memref<3x3x16x32xbf16, #tpu.memory_space<vmem>>, vector<1x1x16x32xbf16>
    %74 = vector.shape_cast %73 : vector<1x1x16x32xbf16> to vector<16x32xbf16>
    %cst_73 = arith.constant dense<0.000000e+00> : vector<264x32xf32>
    %75 = tpu.matmul %72, %74, %cst_73 {dimension_numbers = #tpu.dot_dimension_numbers<[1], [0], [0], [1], [0, 0, 1, 1], [], []>} : vector<264x16xbf16>, vector<16x32xbf16>, vector<264x32xf32> -> vector<264x32xf32>
    %76 = arith.addf %71, %75 : vector<264x32xf32>
    %77 = vector.extract_strided_slice %57 {offsets = [32, 0], sizes = [264, 16], strides = [1, 1]} : vector<336x16xbf16> to vector<264x16xbf16>
    %c1_74 = arith.constant 1 : index
    %c1_75 = arith.constant 1 : index
    %c0_76 = arith.constant 0 : index
    %c0_77 = arith.constant 0 : index
    %78 = vector.load %arg5[%c1_74, %c1_75, %c0_76, %c0_77] : memref<3x3x16x32xbf16, #tpu.memory_space<vmem>>, vector<1x1x16x32xbf16>
    %79 = vector.shape_cast %78 : vector<1x1x16x32xbf16> to vector<16x32xbf16>
    %cst_78 = arith.constant dense<0.000000e+00> : vector<264x32xf32>
    %80 = tpu.matmul %77, %79, %cst_78 {dimension_numbers = #tpu.dot_dimension_numbers<[1], [0], [0], [1], [0, 0, 1, 1], [], []>} : vector<264x16xbf16>, vector<16x32xbf16>, vector<264x32xf32> -> vector<264x32xf32>
    %81 = arith.addf %76, %80 : vector<264x32xf32>
    %82 = vector.extract_strided_slice %57 {offsets = [33, 0], sizes = [264, 16], strides = [1, 1]} : vector<336x16xbf16> to vector<264x16xbf16>
    %c1_79 = arith.constant 1 : index
    %c2_80 = arith.constant 2 : index
    %c0_81 = arith.constant 0 : index
    %c0_82 = arith.constant 0 : index
    %83 = vector.load %arg5[%c1_79, %c2_80, %c0_81, %c0_82] : memref<3x3x16x32xbf16, #tpu.memory_space<vmem>>, vector<1x1x16x32xbf16>
    %84 = vector.shape_cast %83 : vector<1x1x16x32xbf16> to vector<16x32xbf16>
    %cst_83 = arith.constant dense<0.000000e+00> : vector<264x32xf32>
    %85 = tpu.matmul %82, %84, %cst_83 {dimension_numbers = #tpu.dot_dimension_numbers<[1], [0], [0], [1], [0, 0, 1, 1], [], []>} : vector<264x16xbf16>, vector<16x32xbf16>, vector<264x32xf32> -> vector<264x32xf32>
    %86 = arith.addf %81, %85 : vector<264x32xf32>
    %87 = vector.extract_strided_slice %57 {offsets = [55, 0], sizes = [264, 16], strides = [1, 1]} : vector<336x16xbf16> to vector<264x16xbf16>
    %c2_84 = arith.constant 2 : index
    %c0_85 = arith.constant 0 : index
    %c0_86 = arith.constant 0 : index
    %c0_87 = arith.constant 0 : index
    %88 = vector.load %arg5[%c2_84, %c0_85, %c0_86, %c0_87] : memref<3x3x16x32xbf16, #tpu.memory_space<vmem>>, vector<1x1x16x32xbf16>
    %89 = vector.shape_cast %88 : vector<1x1x16x32xbf16> to vector<16x32xbf16>
    %cst_88 = arith.constant dense<0.000000e+00> : vector<264x32xf32>
    %90 = tpu.matmul %87, %89, %cst_88 {dimension_numbers = #tpu.dot_dimension_numbers<[1], [0], [0], [1], [0, 0, 1, 1], [], []>} : vector<264x16xbf16>, vector<16x32xbf16>, vector<264x32xf32> -> vector<264x32xf32>
    %91 = arith.addf %86, %90 : vector<264x32xf32>
    %92 = vector.extract_strided_slice %57 {offsets = [56, 0], sizes = [264, 16], strides = [1, 1]} : vector<336x16xbf16> to vector<264x16xbf16>
    %c2_89 = arith.constant 2 : index
    %c1_90 = arith.constant 1 : index
    %c0_91 = arith.constant 0 : index
    %c0_92 = arith.constant 0 : index
    %93 = vector.load %arg5[%c2_89, %c1_90, %c0_91, %c0_92] : memref<3x3x16x32xbf16, #tpu.memory_space<vmem>>, vector<1x1x16x32xbf16>
    %94 = vector.shape_cast %93 : vector<1x1x16x32xbf16> to vector<16x32xbf16>
    %cst_93 = arith.constant dense<0.000000e+00> : vector<264x32xf32>
    %95 = tpu.matmul %92, %94, %cst_93 {dimension_numbers = #tpu.dot_dimension_numbers<[1], [0], [0], [1], [0, 0, 1, 1], [], []>} : vector<264x16xbf16>, vector<16x32xbf16>, vector<264x32xf32> -> vector<264x32xf32>
    %96 = arith.addf %91, %95 : vector<264x32xf32>
    %97 = vector.extract_strided_slice %57 {offsets = [57, 0], sizes = [264, 16], strides = [1, 1]} : vector<336x16xbf16> to vector<264x16xbf16>
    %c2_94 = arith.constant 2 : index
    %c2_95 = arith.constant 2 : index
    %c0_96 = arith.constant 0 : index
    %c0_97 = arith.constant 0 : index
    %98 = vector.load %arg5[%c2_94, %c2_95, %c0_96, %c0_97] : memref<3x3x16x32xbf16, #tpu.memory_space<vmem>>, vector<1x1x16x32xbf16>
    %99 = vector.shape_cast %98 : vector<1x1x16x32xbf16> to vector<16x32xbf16>
    %cst_98 = arith.constant dense<0.000000e+00> : vector<264x32xf32>
    %100 = tpu.matmul %97, %99, %cst_98 {dimension_numbers = #tpu.dot_dimension_numbers<[1], [0], [0], [1], [0, 0, 1, 1], [], []>} : vector<264x16xbf16>, vector<16x32xbf16>, vector<264x32xf32> -> vector<264x32xf32>
    %101 = arith.addf %96, %100 : vector<264x32xf32>
    %102 = vector.shape_cast %101 : vector<264x32xf32> to vector<1x11x24x32xf32>
    %103 = vector.extract_strided_slice %102 {offsets = [0, 0, 0, 0], sizes = [1, 8, 8, 32], strides = [1, 1, 1, 1]} : vector<1x11x24x32xf32> to vector<1x8x8x32xf32>
    %104 = vector.shape_cast %103 : vector<1x8x8x32xf32> to vector<8x8x32xf32>
    %105 = vector.extract_strided_slice %52 {offsets = [0, 0, 0], sizes = [8, 8, 32], strides = [1, 1, 1]} : vector<8x8x48xf32> to vector<8x8x32xf32>
    %106 = arith.addf %105, %104 : vector<8x8x32xf32>
    %c0_99 = arith.constant 0 : index
    %c0_100 = arith.constant 0 : index
    %c0_101 = arith.constant 0 : index
    %107 = vector.load %arg7[%c0_99, %c0_100, %c0_101] : memref<1x1x32xf32, #tpu.memory_space<vmem>>, vector<1x1x32xf32>
    %108 = vector.broadcast %107 : vector<1x1x32xf32> to vector<8x8x32xf32>
    %109 = arith.addf %106, %108 : vector<8x8x32xf32>
    %110 = arith.negf %109 : vector<8x8x32xf32>
    %111 = math.exp %110 : vector<8x8x32xf32>
    %cst_102 = arith.constant 1.000000e+00 : f32
    %112 = vector.broadcast %cst_102 : f32 to vector<8x8x32xf32>
    %113 = arith.addf %112, %111 : vector<8x8x32xf32>
    %114 = arith.divf %112, %113 : vector<8x8x32xf32>
    %115 = vector.extract_strided_slice %114 {offsets = [0, 0, 0], sizes = [8, 8, 16], strides = [1, 1, 1]} : vector<8x8x32xf32> to vector<8x8x16xf32>
    %116 = vector.extract_strided_slice %114 {offsets = [0, 0, 16], sizes = [8, 8, 16], strides = [1, 1, 1]} : vector<8x8x32xf32> to vector<8x8x16xf32>
    %117 = arith.mulf %115, %53 : vector<8x8x16xf32>
    %118 = arith.truncf %117 : vector<8x8x16xf32> to vector<8x8x16xbf16>
    %c1_103 = arith.constant 1 : index
    %c8_104 = arith.constant 8 : index
    %c0_105 = arith.constant 0 : index
    %119 = vector.load %arg11[%c1_103, %c8_104, %c0_105] : memref<14x24x16xbf16, #tpu.memory_space<vmem>>, vector<8x8x16xbf16>
    tpu.vector_store %arg11[%c1_103, %c8_104, %c0_105], %118 {strides = array<i32>} : memref<14x24x16xbf16, #tpu.memory_space<vmem>>, vector<8x8x16xbf16>,
    %120 = vector.extract_strided_slice %52 {offsets = [0, 0, 32], sizes = [8, 8, 16], strides = [1, 1, 1]} : vector<8x8x48xf32> to vector<8x8x16xf32>
    %c0_106 = arith.constant 0 : index
    %c0_107 = arith.constant 0 : index
    %c0_108 = arith.constant 0 : index
    %121 = vector.load %arg11[%c0_106, %c0_107, %c0_108] : memref<14x24x16xbf16, #tpu.memory_space<vmem>>, vector<14x24x16xbf16>
    %122 = vector.shape_cast %121 : vector<14x24x16xbf16> to vector<336x16xbf16>
    %123 = vector.extract_strided_slice %122 {offsets = [7, 0], sizes = [264, 16], strides = [1, 1]} : vector<336x16xbf16> to vector<264x16xbf16>
    %c0_109 = arith.constant 0 : index
    %c0_110 = arith.constant 0 : index
    %c0_111 = arith.constant 0 : index
    %c0_112 = arith.constant 0 : index
    %124 = vector.load %arg6[%c0_109, %c0_110, %c0_111, %c0_112] : memref<3x3x16x16xbf16, #tpu.memory_space<vmem>>, vector<1x1x16x16xbf16>
    %125 = vector.shape_cast %124 : vector<1x1x16x16xbf16> to vector<16x16xbf16>
    %cst_113 = arith.constant dense<0.000000e+00> : vector<264x16xf32>
    %126 = tpu.matmul %123, %125, %cst_113 {dimension_numbers = #tpu.dot_dimension_numbers<[1], [0], [0], [1], [0, 0, 1, 1], [], []>} : vector<264x16xbf16>, vector<16x16xbf16>, vector<264x16xf32> -> vector<264x16xf32>
    %127 = vector.extract_strided_slice %122 {offsets = [8, 0], sizes = [264, 16], strides = [1, 1]} : vector<336x16xbf16> to vector<264x16xbf16>
    %c0_114 = arith.constant 0 : index
    %c1_115 = arith.constant 1 : index
    %c0_116 = arith.constant 0 : index
    %c0_117 = arith.constant 0 : index
    %128 = vector.load %arg6[%c0_114, %c1_115, %c0_116, %c0_117] : memref<3x3x16x16xbf16, #tpu.memory_space<vmem>>, vector<1x1x16x16xbf16>
    %129 = vector.shape_cast %128 : vector<1x1x16x16xbf16> to vector<16x16xbf16>
    %cst_118 = arith.constant dense<0.000000e+00> : vector<264x16xf32>
    %130 = tpu.matmul %127, %129, %cst_118 {dimension_numbers = #tpu.dot_dimension_numbers<[1], [0], [0], [1], [0, 0, 1, 1], [], []>} : vector<264x16xbf16>, vector<16x16xbf16>, vector<264x16xf32> -> vector<264x16xf32>
    %131 = arith.addf %126, %130 : vector<264x16xf32>
    %132 = vector.extract_strided_slice %122 {offsets = [9, 0], sizes = [264, 16], strides = [1, 1]} : vector<336x16xbf16> to vector<264x16xbf16>
    %c0_119 = arith.constant 0 : index
    %c2_120 = arith.constant 2 : index
    %c0_121 = arith.constant 0 : index
    %c0_122 = arith.constant 0 : index
    %133 = vector.load %arg6[%c0_119, %c2_120, %c0_121, %c0_122] : memref<3x3x16x16xbf16, #tpu.memory_space<vmem>>, vector<1x1x16x16xbf16>
    %134 = vector.shape_cast %133 : vector<1x1x16x16xbf16> to vector<16x16xbf16>
    %cst_123 = arith.constant dense<0.000000e+00> : vector<264x16xf32>
    %135 = tpu.matmul %132, %134, %cst_123 {dimension_numbers = #tpu.dot_dimension_numbers<[1], [0], [0], [1], [0, 0, 1, 1], [], []>} : vector<264x16xbf16>, vector<16x16xbf16>, vector<264x16xf32> -> vector<264x16xf32>
    %136 = arith.addf %131, %135 : vector<264x16xf32>
    %137 = vector.extract_strided_slice %122 {offsets = [31, 0], sizes = [264, 16], strides = [1, 1]} : vector<336x16xbf16> to vector<264x16xbf16>
    %c1_124 = arith.constant 1 : index
    %c0_125 = arith.constant 0 : index
    %c0_126 = arith.constant 0 : index
    %c0_127 = arith.constant 0 : index
    %138 = vector.load %arg6[%c1_124, %c0_125, %c0_126, %c0_127] : memref<3x3x16x16xbf16, #tpu.memory_space<vmem>>, vector<1x1x16x16xbf16>
    %139 = vector.shape_cast %138 : vector<1x1x16x16xbf16> to vector<16x16xbf16>
    %cst_128 = arith.constant dense<0.000000e+00> : vector<264x16xf32>
    %140 = tpu.matmul %137, %139, %cst_128 {dimension_numbers = #tpu.dot_dimension_numbers<[1], [0], [0], [1], [0, 0, 1, 1], [], []>} : vector<264x16xbf16>, vector<16x16xbf16>, vector<264x16xf32> -> vector<264x16xf32>
    %141 = arith.addf %136, %140 : vector<264x16xf32>
    %142 = vector.extract_strided_slice %122 {offsets = [32, 0], sizes = [264, 16], strides = [1, 1]} : vector<336x16xbf16> to vector<264x16xbf16>
    %c1_129 = arith.constant 1 : index
    %c1_130 = arith.constant 1 : index
    %c0_131 = arith.constant 0 : index
    %c0_132 = arith.constant 0 : index
    %143 = vector.load %arg6[%c1_129, %c1_130, %c0_131, %c0_132] : memref<3x3x16x16xbf16, #tpu.memory_space<vmem>>, vector<1x1x16x16xbf16>
    %144 = vector.shape_cast %143 : vector<1x1x16x16xbf16> to vector<16x16xbf16>
    %cst_133 = arith.constant dense<0.000000e+00> : vector<264x16xf32>
    %145 = tpu.matmul %142, %144, %cst_133 {dimension_numbers = #tpu.dot_dimension_numbers<[1], [0], [0], [1], [0, 0, 1, 1], [], []>} : vector<264x16xbf16>, vector<16x16xbf16>, vector<264x16xf32> -> vector<264x16xf32>
    %146 = arith.addf %141, %145 : vector<264x16xf32>
    %147 = vector.extract_strided_slice %122 {offsets = [33, 0], sizes = [264, 16], strides = [1, 1]} : vector<336x16xbf16> to vector<264x16xbf16>
    %c1_134 = arith.constant 1 : index
    %c2_135 = arith.constant 2 : index
    %c0_136 = arith.constant 0 : index
    %c0_137 = arith.constant 0 : index
    %148 = vector.load %arg6[%c1_134, %c2_135, %c0_136, %c0_137] : memref<3x3x16x16xbf16, #tpu.memory_space<vmem>>, vector<1x1x16x16xbf16>
    %149 = vector.shape_cast %148 : vector<1x1x16x16xbf16> to vector<16x16xbf16>
    %cst_138 = arith.constant dense<0.000000e+00> : vector<264x16xf32>
    %150 = tpu.matmul %147, %149, %cst_138 {dimension_numbers = #tpu.dot_dimension_numbers<[1], [0], [0], [1], [0, 0, 1, 1], [], []>} : vector<264x16xbf16>, vector<16x16xbf16>, vector<264x16xf32> -> vector<264x16xf32>
    %151 = arith.addf %146, %150 : vector<264x16xf32>
    %152 = vector.extract_strided_slice %122 {offsets = [55, 0], sizes = [264, 16], strides = [1, 1]} : vector<336x16xbf16> to vector<264x16xbf16>
    %c2_139 = arith.constant 2 : index
    %c0_140 = arith.constant 0 : index
    %c0_141 = arith.constant 0 : index
    %c0_142 = arith.constant 0 : index
    %153 = vector.load %arg6[%c2_139, %c0_140, %c0_141, %c0_142] : memref<3x3x16x16xbf16, #tpu.memory_space<vmem>>, vector<1x1x16x16xbf16>
    %154 = vector.shape_cast %153 : vector<1x1x16x16xbf16> to vector<16x16xbf16>
    %cst_143 = arith.constant dense<0.000000e+00> : vector<264x16xf32>
    %155 = tpu.matmul %152, %154, %cst_143 {dimension_numbers = #tpu.dot_dimension_numbers<[1], [0], [0], [1], [0, 0, 1, 1], [], []>} : vector<264x16xbf16>, vector<16x16xbf16>, vector<264x16xf32> -> vector<264x16xf32>
    %156 = arith.addf %151, %155 : vector<264x16xf32>
    %157 = vector.extract_strided_slice %122 {offsets = [56, 0], sizes = [264, 16], strides = [1, 1]} : vector<336x16xbf16> to vector<264x16xbf16>
    %c2_144 = arith.constant 2 : index
    %c1_145 = arith.constant 1 : index
    %c0_146 = arith.constant 0 : index
    %c0_147 = arith.constant 0 : index
    %158 = vector.load %arg6[%c2_144, %c1_145, %c0_146, %c0_147] : memref<3x3x16x16xbf16, #tpu.memory_space<vmem>>, vector<1x1x16x16xbf16>
    %159 = vector.shape_cast %158 : vector<1x1x16x16xbf16> to vector<16x16xbf16>
    %cst_148 = arith.constant dense<0.000000e+00> : vector<264x16xf32>
    %160 = tpu.matmul %157, %159, %cst_148 {dimension_numbers = #tpu.dot_dimension_numbers<[1], [0], [0], [1], [0, 0, 1, 1], [], []>} : vector<264x16xbf16>, vector<16x16xbf16>, vector<264x16xf32> -> vector<264x16xf32>
    %161 = arith.addf %156, %160 : vector<264x16xf32>
    %162 = vector.extract_strided_slice %122 {offsets = [57, 0], sizes = [264, 16], strides = [1, 1]} : vector<336x16xbf16> to vector<264x16xbf16>
    %c2_149 = arith.constant 2 : index
    %c2_150 = arith.constant 2 : index
    %c0_151 = arith.constant 0 : index
    %c0_152 = arith.constant 0 : index
    %163 = vector.load %arg6[%c2_149, %c2_150, %c0_151, %c0_152] : memref<3x3x16x16xbf16, #tpu.memory_space<vmem>>, vector<1x1x16x16xbf16>
    %164 = vector.shape_cast %163 : vector<1x1x16x16xbf16> to vector<16x16xbf16>
    %cst_153 = arith.constant dense<0.000000e+00> : vector<264x16xf32>
    %165 = tpu.matmul %162, %164, %cst_153 {dimension_numbers = #tpu.dot_dimension_numbers<[1], [0], [0], [1], [0, 0, 1, 1], [], []>} : vector<264x16xbf16>, vector<16x16xbf16>, vector<264x16xf32> -> vector<264x16xf32>
    %166 = arith.addf %161, %165 : vector<264x16xf32>
    %167 = vector.shape_cast %166 : vector<264x16xf32> to vector<1x11x24x16xf32>
    %168 = vector.extract_strided_slice %167 {offsets = [0, 0, 0, 0], sizes = [1, 8, 8, 16], strides = [1, 1, 1, 1]} : vector<1x11x24x16xf32> to vector<1x8x8x16xf32>
    %169 = vector.shape_cast %168 : vector<1x8x8x16xf32> to vector<8x8x16xf32>
    %170 = arith.addf %120, %169 : vector<8x8x16xf32>
    %c0_154 = arith.constant 0 : index
    %c0_155 = arith.constant 0 : index
    %c0_156 = arith.constant 0 : index
    %171 = vector.load %arg8[%c0_154, %c0_155, %c0_156] : memref<1x1x16xf32, #tpu.memory_space<vmem>>, vector<1x1x16xf32>
    %172 = vector.broadcast %171 : vector<1x1x16xf32> to vector<8x8x16xf32>
    %173 = arith.addf %170, %172 : vector<8x8x16xf32>
    %cst_157 = arith.constant 0.000000e+00 : f32
    %174 = vector.broadcast %cst_157 : f32 to vector<8x8x16xf32>
    %175 = arith.maximumf %173, %174 : vector<8x8x16xf32>
    %176 = arith.mulf %116, %53 : vector<8x8x16xf32>
    %cst_158 = arith.constant 1.000000e+00 : f32
    %177 = vector.broadcast %cst_158 : f32 to vector<8x8x16xf32>
    %178 = arith.subf %177, %116 : vector<8x8x16xf32>
    %179 = arith.mulf %178, %175 : vector<8x8x16xf32>
    %180 = arith.addf %176, %179 : vector<8x8x16xf32>
    %c0_159 = arith.constant 0 : index
    %c0_160 = arith.constant 0 : index
    %c0_161 = arith.constant 0 : index
    %181 = vector.load %arg10[%c0_159, %c0_160, %c0_161] : memref<8x8x16xf32, #tpu.memory_space<vmem>>, vector<8x8x16xf32>
    tpu.vector_store %arg10[%c0_159, %c0_160, %c0_161], %180 {strides = array<i32>} : memref<8x8x16xf32, #tpu.memory_space<vmem>>, vector<8x8x16xf32>,
    %182 = arith.truncf %180 : vector<8x8x16xf32> to vector<8x8x16xbf16>
    %c0_162 = arith.constant 0 : index
    %c0_163 = arith.constant 0 : index
    %c0_164 = arith.constant 0 : index
    %c0_165 = arith.constant 0 : index
    %183 = vector.load %arg9[%c0_162, %c0_163, %c0_164, %c0_165] : memref<1x8x8x16xbf16, #tpu.memory_space<vmem>>, vector<1x8x8x16xbf16>
    %184 = vector.shape_cast %183 : vector<1x8x8x16xbf16> to vector<8x8x16xbf16>
    %185 = vector.shape_cast %182 : vector<8x8x16xbf16> to vector<1x8x8x16xbf16>
    tpu.vector_store %arg9[%c0_162, %c0_163, %c0_164, %c0_165], %185 {strides = array<i32>} : memref<1x8x8x16xbf16, #tpu.memory_space<vmem>>, vector<1x8x8x16xbf16>,
    return
  }
  func.func @transform_0(%arg0: i32, %arg1: i32) -> (i32, i32, i32, i32) {
    %c2_i32 = arith.constant 2 : i32
    %0 = arith.muli %arg1, %c2_i32 : i32
    %1 = arith.addi %0, %arg0 : i32
    %c0_i32 = arith.constant 0 : i32
    %c0_i32_0 = arith.constant 0 : i32
    %c0_i32_1 = arith.constant 0 : i32
    %c0_i32_2 = arith.constant 0 : i32
    return %1, %c0_i32, %c0_i32_0, %c0_i32_1 : i32, i32, i32, i32
  }
  func.func @transform_1(%arg0: i32, %arg1: i32) -> (i32, i32, i32, i32) {
    %c0_i32 = arith.constant 0 : i32
    %c0_i32_0 = arith.constant 0 : i32
    %c0_i32_1 = arith.constant 0 : i32
    %c0_i32_2 = arith.constant 0 : i32
    return %arg0, %c0_i32, %c0_i32_0, %c0_i32_1 : i32, i32, i32, i32
  }
  func.func @transform_2(%arg0: i32, %arg1: i32) -> (i32, i32, i32, i32) {
    %c0_i32 = arith.constant 0 : i32
    %c0_i32_0 = arith.constant 0 : i32
    %c0_i32_1 = arith.constant 0 : i32
    %c0_i32_2 = arith.constant 0 : i32
    %c0_i32_3 = arith.constant 0 : i32
    return %c0_i32, %c0_i32_0, %c0_i32_1, %c0_i32_2 : i32, i32, i32, i32
  }
  func.func @transform_3(%arg0: i32, %arg1: i32) -> (i32, i32, i32, i32) {
    %c0_i32 = arith.constant 0 : i32
    %c0_i32_0 = arith.constant 0 : i32
    %c0_i32_1 = arith.constant 0 : i32
    %c0_i32_2 = arith.constant 0 : i32
    %c0_i32_3 = arith.constant 0 : i32
    return %c0_i32, %c0_i32_0, %c0_i32_1, %c0_i32_2 : i32, i32, i32, i32
  }
  func.func @transform_4(%arg0: i32, %arg1: i32) -> (i32, i32, i32, i32) {
    %c0_i32 = arith.constant 0 : i32
    %c0_i32_0 = arith.constant 0 : i32
    %c0_i32_1 = arith.constant 0 : i32
    %c0_i32_2 = arith.constant 0 : i32
    %c0_i32_3 = arith.constant 0 : i32
    return %c0_i32, %c0_i32_0, %c0_i32_1, %c0_i32_2 : i32, i32, i32, i32
  }
  func.func @transform_5(%arg0: i32, %arg1: i32) -> (i32, i32, i32) {
    %c0_i32 = arith.constant 0 : i32
    %c0_i32_0 = arith.constant 0 : i32
    %c0_i32_1 = arith.constant 0 : i32
    %c0_i32_2 = arith.constant 0 : i32
    return %c0_i32, %c0_i32_0, %c0_i32_1 : i32, i32, i32
  }
  func.func @transform_6(%arg0: i32, %arg1: i32) -> (i32, i32, i32) {
    %c0_i32 = arith.constant 0 : i32
    %c0_i32_0 = arith.constant 0 : i32
    %c0_i32_1 = arith.constant 0 : i32
    %c0_i32_2 = arith.constant 0 : i32
    return %c0_i32, %c0_i32_0, %c0_i32_1 : i32, i32, i32
  }
  func.func @transform_7(%arg0: i32, %arg1: i32) -> (i32, i32, i32, i32) {
    %c2_i32 = arith.constant 2 : i32
    %0 = arith.muli %arg1, %c2_i32 : i32
    %1 = arith.addi %0, %arg0 : i32
    %c0_i32 = arith.constant 0 : i32
    %c0_i32_0 = arith.constant 0 : i32
    %c0_i32_1 = arith.constant 0 : i32
    %c0_i32_2 = arith.constant 0 : i32
    return %1, %c0_i32, %c0_i32_0, %c0_i32_1 : i32, i32, i32, i32
  }
}

</mosaic_0001>

<llo_original>
// kernel: tpu_custom_call.1
$region0: #{tpu_custom_call.1}
  #allocation0 [shape = 'u32[]', space=smem, size = 0x4, offset = 0x4, fixed_abs, tag = 'smem constant byte address 0x4 - core index']
  #allocation1 [shape = 'u32[144,128]{1,0:T(1,128)}', space=vmem, size = 0x12000, scoped, tag = 'internal scratch']
  #allocation2 [shape = 'f32[8,8,16]{2,1,0:T(8,128)}', space=vmem, size = 0x8000, scoped, tag = 'scratch operand']
  #allocation3 [shape = 'bf16[14,24,16]{2,1,0:T(8,128)(2,1)}', space=vmem, size = 0x15000, scoped, tag = 'scratch operand']
  %s0 = inlined_call_operand.hbm [shape: bf16[4,14,24,32], index: 0, kind: input, shape index: {}]
  %s1 = inlined_call_operand.hbm [shape: bf16[2,8,8,16], index: 1, kind: input, shape index: {}]
  %s2 = inlined_call_operand.hbm [shape: bf16[3,3,32,48], index: 2, kind: input, shape index: {}]
  %s3 = inlined_call_operand.hbm [shape: bf16[3,3,16,32], index: 3, kind: input, shape index: {}]
  %s4 = inlined_call_operand.hbm [shape: bf16[3,3,16,16], index: 4, kind: input, shape index: {}]
  %s5 = inlined_call_operand.hbm [shape: f32[1,1,32], index: 5, kind: input, shape index: {}]
  %s6 = inlined_call_operand.hbm [shape: f32[1,1,16], index: 6, kind: input, shape index: {}]
  %s7 = inlined_call_operand.hbm [shape: bf16[4,8,8,16], index: 7, kind: output, shape index: {}]
  %s8 = sld [smem:[#allocation0]]
  $region93: #{tpu_custom_call.1} parent=0
    _
  %s10 = ssub.s32 1, %s8
  %s11 = scalar_select 0, %s10, %s8
  $region1: #{tpu_custom_call.1} parent=0
    #allocation4 [shape = 'u8[172032]{0}', space=vmem, size = 0x2a000, scoped, tag = 'input window, operand 0']
    #allocation5 [shape = 's32[2]{0}', space=sflag, size = 0x8, scoped, tag = 'scoped memory for tpu_custom_call.1']
    #allocation6 [shape = 's32[2]{0}', space=sflag, size = 0x8, scoped, tag = 'scoped memory for tpu_custom_call.1']
    #allocation7 [shape = 'u8[32768]{0}', space=vmem, size = 0x8000, scoped, tag = 'input window, operand 1']
    #allocation8 [shape = 's32[2]{0}', space=sflag, size = 0x8, scoped, tag = 'scoped memory for tpu_custom_call.1']
    #allocation9 [shape = 'u8[73728]{0}', space=vmem, size = 0x12000, scoped, tag = 'input window, operand 2, single buffered']
    #allocation10 [shape = 'u8[36864]{0}', space=vmem, size = 0x9000, scoped, tag = 'input window, operand 3, single buffered']
    #allocation11 [shape = 's32[1]{0}', space=sflag, size = 0x4, scoped, tag = 'scoped memory for tpu_custom_call.1']
    #allocation12 [shape = 'u8[36864]{0}', space=vmem, size = 0x9000, scoped, tag = 'input window, operand 4, single buffered']
    #allocation13 [shape = 'u8[512]{0}', space=vmem, size = 0x400, scoped, tag = 'input window, operand 5, single buffered']
    #allocation14 [shape = 's32[1]{0}', space=sflag, size = 0x4, scoped, tag = 'scoped memory for tpu_custom_call.1']
    #allocation15 [shape = 'u8[512]{0}', space=vmem, size = 0x400, scoped, tag = 'input window, operand 6, single buffered']
    #allocation16 [shape = 'u8[32768]{0}', space=vmem, size = 0x8000, scoped, tag = 'output window, operand 0']
    %12 = vsyncpa [#allocation5], 0
    %s13 = scalar_lea.sflag [#allocation5], 1
    %14 = vsyncpa %s13, 0
    %15 = vsyncpa [#allocation8], 0
    %s16 = scalar_lea.sflag [#allocation8], 1
    %17 = vsyncpa %s16, 0
    %18 = vsyncpa [#allocation11], 0
    %19 = vsyncpa [#allocation14], 0
    %20 = vsyncpa [#allocation6], 0
    %s21 = scalar_lea.sflag [#allocation6], 1
    %22 = vsyncpa %s21, 0
    loop: start=0, step=1, limit=6
    $region2: #{tpu_custom_call.1} parent=1 // loop_pre_header
      _
    $region3: #{tpu_custom_call.1} parent=1 // loop_header
      %s24 = sphi 0, %s28
      %p25 = scmp.ge.s32.totalorder %s24, 6
      %s31 = sphi 0, %s43
      %s32 = sphi 0, %s39
      %s33 = sphi 0, %s31
      %s34 = sphi 0, %s32
      %s35 = sphi 0, %s33
      %s36 = sphi 0, %s34
      %s50 = sphi 0, %s52
      %s53 = sphi 0, %s50
      %s54 = sphi 0, %s53
      %s70 = sphi 0, %s54
      %s76 = sphi 0, %s78
      %s79 = sphi 0, %s76
      %s80 = sphi 0, %s79
      %s96 = sphi 0, %s80
      %s100 = sphi 0, %s100
      %s102 = sphi 0, %s100
      %s103 = sphi 0, %s102
      %s117 = sphi 0, %s103
      %s121 = sphi 0, %s121
      %s123 = sphi 0, %s121
      %s124 = sphi 0, %s123
      %s138 = sphi 0, %s124
      %s142 = sphi 0, %s142
      %s144 = sphi 0, %s142
      %s145 = sphi 0, %s144
      %s159 = sphi 0, %s145
      %s163 = sphi 0, %s163
      %s165 = sphi 0, %s163
      %s166 = sphi 0, %s165
      %s180 = sphi 0, %s166
      %s184 = sphi 0, %s184
      %s186 = sphi 0, %s184
      %s187 = sphi 0, %s186
      %s201 = sphi 0, %s187
      %s211 = sphi 0, %s213
      %s214 = sphi 0, %s211
      %s215 = sphi 0, %s214
      %s231 = sphi 0, %s215
    $region4: #{tpu_custom_call.1} parent=1 // loop_header_branch
      %27 = sbr.rel (%p25) target = $region8
    $region5: #{tpu_custom_call.1} parent=1 // loop_body
      %s29 = ssub.s32 %s24, 1
      %s30 = ssub.s32 %s24, 2
      %s37 = sadd.s32 1, %s32
      %p38 = scmp.ge.s32.totalorder %s37, 2
      %s39 = scalar_select %p38, 0, %s37
      %s40 = sadd.s32 1, %s31
      %s41 = scalar_select %p38, %s40, %s31
      %p42 = scmp.ge.s32.totalorder %s41, 2
      %s43 = scalar_select %p42, 0, %s41
      %s44 = smul.u32 %s32, 2
      %s45 = sadd.s32 %s44, %s31
      %s46 = smul.u32 %s39, 2
      %s47 = sadd.s32 %s46, %s43
      %s48 = ssub.s32 %s45, %s47
      %p49 = scmp.eq.s32.totalorder %s48, 0
      %s51 = sadd.s32 %s50, 1
      %s52 = scalar_select %p49, %s50, %s51
      %p55 = pneg %p49
      %p56 = scmp.eq.s32.totalorder %s24, 3
      %p57 = por %p55, %p56
      %p58 = scmp.ne.s32.totalorder %s50, %s53
      %p59 = scmp.eq.s32.totalorder %s24, 0
      %p60 = por %p58, %p59
      %p61 = scmp.ne.s32.totalorder %s50, %s53
      %p62 = scmp.eq.s32.totalorder %s29, 3
      %p63 = por %p61, %p62
      %p64 = scmp.ne.s32.totalorder %s53, %s54
      %p65 = scmp.eq.s32.totalorder %s29, 0
      %p66 = por %p64, %p65
      %p67 = scmp.ne.s32.totalorder %s53, %s54
      %p68 = scmp.eq.s32.totalorder %s30, 3
      %p69 = por %p67, %p68
      %p71 = scmp.ne.s32.totalorder %s54, %s70
      %p72 = scmp.eq.s32.totalorder %s30, 0
      %p73 = por %p71, %p72
      %s74 = ssub.s32 %s31, %s43
      %p75 = scmp.eq.s32.totalorder %s74, 0
      %s77 = sadd.s32 %s76, 1
      %s78 = scalar_select %p75, %s76, %s77
      %p81 = pneg %p75
      %p82 = scmp.eq.s32.totalorder %s24, 3
      %p83 = por %p81, %p82
      %p84 = scmp.ne.s32.totalorder %s76, %s79
      %p85 = scmp.eq.s32.totalorder %s24, 0
      %p86 = por %p84, %p85
      %p87 = scmp.ne.s32.totalorder %s76, %s79
      %p88 = scmp.eq.s32.totalorder %s29, 3
      %p89 = por %p87, %p88
      %p90 = scmp.ne.s32.totalorder %s79, %s80
      %p91 = scmp.eq.s32.totalorder %s29, 0
      %p92 = por %p90, %p91
      %p93 = scmp.ne.s32.totalorder %s79, %s80
      %p94 = scmp.eq.s32.totalorder %s30, 3
      %p95 = por %p93, %p94
      %p97 = scmp.ne.s32.totalorder %s80, %s96
      %p98 = scmp.eq.s32.totalorder %s30, 0
      %p99 = por %p97, %p98
      %s101 = sadd.s32 %s100, 1
      %p104 = scmp.eq.s32.totalorder %s24, 3
      %p105 = scmp.ne.s32.totalorder %s100, %s102
      %p106 = scmp.eq.s32.totalorder %s24, 0
      %p107 = por %p105, %p106
      %p108 = scmp.ne.s32.totalorder %s100, %s102
      %p109 = scmp.eq.s32.totalorder %s29, 3
      %p110 = por %p108, %p109
      %p111 = scmp.ne.s32.totalorder %s102, %s103
      %p112 = scmp.eq.s32.totalorder %s29, 0
      %p113 = por %p111, %p112
      %p114 = scmp.ne.s32.totalorder %s102, %s103
      %p115 = scmp.eq.s32.totalorder %s30, 3
      %p116 = por %p114, %p115
      %p118 = scmp.ne.s32.totalorder %s103, %s117
      %p119 = scmp.eq.s32.totalorder %s30, 0
      %p120 = por %p118, %p119
      %s122 = sadd.s32 %s121, 1
      %p125 = scmp.eq.s32.totalorder %s24, 3
      %p126 = scmp.ne.s32.totalorder %s121, %s123
      %p127 = scmp.eq.s32.totalorder %s24, 0
      %p128 = por %p126, %p127
      %p129 = scmp.ne.s32.totalorder %s121, %s123
      %p130 = scmp.eq.s32.totalorder %s29, 3
      %p131 = por %p129, %p130
      %p132 = scmp.ne.s32.totalorder %s123, %s124
      %p133 = scmp.eq.s32.totalorder %s29, 0
      %p134 = por %p132, %p133
      %p135 = scmp.ne.s32.totalorder %s123, %s124
      %p136 = scmp.eq.s32.totalorder %s30, 3
      %p137 = por %p135, %p136
      %p139 = scmp.ne.s32.totalorder %s124, %s138
      %p140 = scmp.eq.s32.totalorder %s30, 0
      %p141 = por %p139, %p140
      %s143 = sadd.s32 %s142, 1
      %p146 = scmp.eq.s32.totalorder %s24, 3
      %p147 = scmp.ne.s32.totalorder %s142, %s144
      %p148 = scmp.eq.s32.totalorder %s24, 0
      %p149 = por %p147, %p148
      %p150 = scmp.ne.s32.totalorder %s142, %s144
      %p151 = scmp.eq.s32.totalorder %s29, 3
      %p152 = por %p150, %p151
      %p153 = scmp.ne.s32.totalorder %s144, %s145
      %p154 = scmp.eq.s32.totalorder %s29, 0
      %p155 = por %p153, %p154
      %p156 = scmp.ne.s32.totalorder %s144, %s145
      %p157 = scmp.eq.s32.totalorder %s30, 3
      %p158 = por %p156, %p157
      %p160 = scmp.ne.s32.totalorder %s145, %s159
      %p161 = scmp.eq.s32.totalorder %s30, 0
      %p162 = por %p160, %p161
      %s164 = sadd.s32 %s163, 1
      %p167 = scmp.eq.s32.totalorder %s24, 3
      %p168 = scmp.ne.s32.totalorder %s163, %s165
      %p169 = scmp.eq.s32.totalorder %s24, 0
      %p170 = por %p168, %p169
      %p171 = scmp.ne.s32.totalorder %s163, %s165
      %p172 = scmp.eq.s32.totalorder %s29, 3
      %p173 = por %p171, %p172
      %p174 = scmp.ne.s32.totalorder %s165, %s166
      %p175 = scmp.eq.s32.totalorder %s29, 0
      %p176 = por %p174, %p175
      %p177 = scmp.ne.s32.totalorder %s165, %s166
      %p178 = scmp.eq.s32.totalorder %s30, 3
      %p179 = por %p177, %p178
      %p181 = scmp.ne.s32.totalorder %s166, %s180
      %p182 = scmp.eq.s32.totalorder %s30, 0
      %p183 = por %p181, %p182
      %s185 = sadd.s32 %s184, 1
      %p188 = scmp.eq.s32.totalorder %s24, 3
      %p189 = scmp.ne.s32.totalorder %s184, %s186
      %p190 = scmp.eq.s32.totalorder %s24, 0
      %p191 = por %p189, %p190
      %p192 = scmp.ne.s32.totalorder %s184, %s186
      %p193 = scmp.eq.s32.totalorder %s29, 3
      %p194 = por %p192, %p193
      %p195 = scmp.ne.s32.totalorder %s186, %s187
      %p196 = scmp.eq.s32.totalorder %s29, 0
      %p197 = por %p195, %p196
      %p198 = scmp.ne.s32.totalorder %s186, %s187
      %p199 = scmp.eq.s32.totalorder %s30, 3
      %p200 = por %p198, %p199
      %p202 = scmp.ne.s32.totalorder %s187, %s201
      %p203 = scmp.eq.s32.totalorder %s30, 0
      %p204 = por %p202, %p203
      %s205 = smul.u32 %s32, 2
      %s206 = sadd.s32 %s205, %s31
      %s207 = smul.u32 %s39, 2
      %s208 = sadd.s32 %s207, %s43
      %s209 = ssub.s32 %s206, %s208
      %p210 = scmp.eq.s32.totalorder %s209, 0
      %s212 = sadd.s32 %s211, 1
      %s213 = scalar_select %p210, %s211, %s212
      %p216 = pneg %p210
      %p217 = scmp.eq.s32.totalorder %s24, 3
      %p218 = por %p216, %p217
      %p219 = scmp.ne.s32.totalorder %s211, %s214
      %p220 = scmp.eq.s32.totalorder %s24, 0
      %p221 = por %p219, %p220
      %p222 = scmp.ne.s32.totalorder %s211, %s214
      %p223 = scmp.eq.s32.totalorder %s29, 3
      %p224 = por %p222, %p223
      %p225 = scmp.ne.s32.totalorder %s214, %s215
      %p226 = scmp.eq.s32.totalorder %s29, 0
      %p227 = por %p225, %p226
      %p228 = scmp.ne.s32.totalorder %s214, %s215
      %p229 = scmp.eq.s32.totalorder %s30, 3
      %p230 = por %p228, %p229
      %p232 = scmp.ne.s32.totalorder %s215, %s231
      %p233 = scmp.eq.s32.totalorder %s30, 0
      %p234 = por %p232, %p233
      %p235 = scmp.le.s32.totalorder 1, %s24
      %p236 = scmp.lt.s32.totalorder %s24, 5
      %p237 = pnand %p235, %p236
      %p238 = pneg %p237
      // Predicated region
      $region9: #{tpu_custom_call.1} parent=5 // pred_check
        _
      $region10: #{tpu_custom_call.1} parent=5 // pred_check_branch
        %240 = sbr.rel (%p237) target = $region12
      $region11: #{tpu_custom_call.1} parent=5 // pred_region
        %s241 = ssub.s32 %s24, 1
        // Predicated region
        $region13: #{tpu_custom_call.1} parent=11 // pred_check
          %p242 = pneg %p113
        $region14: #{tpu_custom_call.1} parent=11 // pred_check_branch
          %244 = sbr.rel (%p242) target = $region16
        $region15: #{tpu_custom_call.1} parent=11 // pred_region
          %s246 = ssub.s32 2304, 2304
          %247 = vsyncadd [#allocation8], %s246
          %s248 = sshll.u32 [#allocation9], 4
          %s249 = int_to_ptr.vmem [resolvable:$true] %s248
          %254 = dma.hbm_to_vmem [thread:$0]  %s2, 2304, %s249, [#allocation8], 64, 64, 4
        $region16: #{tpu_custom_call.1} parent=11 // pred_fallthru
          _
        // Predicated region
        $region17: #{tpu_custom_call.1} parent=11 // pred_check
          %p255 = pneg %p134
        $region18: #{tpu_custom_call.1} parent=11 // pred_check_branch
          %257 = sbr.rel (%p255) target = $region20
        $region19: #{tpu_custom_call.1} parent=11 // pred_region
          %s259 = ssub.s32 1152, 1152
          %260 = vsyncadd [#allocation11], %s259
          %s261 = sshll.u32 [#allocation10], 4
          %s262 = int_to_ptr.vmem [resolvable:$true] %s261
          %267 = dma.hbm_to_vmem [thread:$0]  %s3, 1152, %s262, [#allocation11], 64, 64, 4
        $region20: #{tpu_custom_call.1} parent=11 // pred_fallthru
          _
        // Predicated region
        $region21: #{tpu_custom_call.1} parent=11 // pred_check
          %p268 = pneg %p155
        $region22: #{tpu_custom_call.1} parent=11 // pred_check_branch
          %270 = sbr.rel (%p268) target = $region24
        $region23: #{tpu_custom_call.1} parent=11 // pred_region
          %s272 = ssub.s32 1152, 1152
          %273 = vsyncadd [#allocation11], %s272
          %s274 = sshll.u32 [#allocation12], 4
          %s275 = int_to_ptr.vmem [resolvable:$true] %s274
          %280 = dma.hbm_to_vmem [thread:$0]  %s4, 1152, %s275, [#allocation11], 64, 64, 4
        $region24: #{tpu_custom_call.1} parent=11 // pred_fallthru
          _
        // Predicated region
        $region25: #{tpu_custom_call.1} parent=11 // pred_check
          %p281 = pneg %p176
        $region26: #{tpu_custom_call.1} parent=11 // pred_check_branch
          %283 = sbr.rel (%p281) target = $region28
        $region27: #{tpu_custom_call.1} parent=11 // pred_region
          %s285 = ssub.s32 16, 16
          %286 = vsyncadd [#allocation14], %s285
          %s288 = sshll.u32 [#allocation13], 4
          %s289 = int_to_ptr.vmem [resolvable:$true] %s288
          %291 = dma.hbm_to_vmem [thread:$0]  %s5, 16, %s289, [#allocation14]
        $region28: #{tpu_custom_call.1} parent=11 // pred_fallthru
          _
        // Predicated region
        $region29: #{tpu_custom_call.1} parent=11 // pred_check
          %p292 = pneg %p197
        $region30: #{tpu_custom_call.1} parent=11 // pred_check_branch
          %294 = sbr.rel (%p292) target = $region32
        $region31: #{tpu_custom_call.1} parent=11 // pred_region
          %s296 = ssub.s32 16, 16
          %297 = vsyncadd [#allocation14], %s296
          %s299 = sshll.u32 [#allocation15], 4
          %s300 = int_to_ptr.vmem [resolvable:$true] %s299
          %302 = dma.hbm_to_vmem [thread:$0]  %s6, 16, %s300, [#allocation14]
        $region32: #{tpu_custom_call.1} parent=11 // pred_fallthru
          _
      $region12: #{tpu_custom_call.1} parent=5 // pred_fallthru
        _
      %p303 = scmp.lt.s32.totalorder %s24, 4
      // Predicated region
      $region33: #{tpu_custom_call.1} parent=5 // pred_check
        %p304 = pneg %p303
      $region34: #{tpu_custom_call.1} parent=5 // pred_check_branch
        %306 = sbr.rel (%p304) target = $region36
      $region35: #{tpu_custom_call.1} parent=5 // pred_region
        // Predicated region
        $region37: #{tpu_custom_call.1} parent=35 // pred_check
          %p307 = pneg %p60
        $region38: #{tpu_custom_call.1} parent=35 // pred_check_branch
          %309 = sbr.rel (%p307) target = $region40
        $region39: #{tpu_custom_call.1} parent=35 // pred_region
          %s310 = sand.u32 %s50, 1
          %s311 = scalar_lea.sflag [#allocation5], %s310
          %s312 = sand.u32 %s50, 1
          %s313 = smul.addr %s312, 168
          %s314 = scalar_lea.vmem [#allocation4], %s313
          %s315 = smul.u32 %s32, 2
          %s316 = sadd.s32 %s315, %s31
          %s318 = ssub.s32 2688, 2688
          %319 = vsyncadd %s311, %s318
          %s320 = smul.addr %s316, 42
          %s321 = smul.addr %s320, 64
          %s322 = scalar_lea.hbm %s0, %s321
          %s323 = sshll.u32 %s314, 4
          %s324 = int_to_ptr.vmem [resolvable:$true] %s323
          %329 = dma.hbm_to_vmem [thread:$0]  %s322, 2688, %s324, %s311, 64, 64, 4
        $region40: #{tpu_custom_call.1} parent=35 // pred_fallthru
          _
        // Predicated region
        $region41: #{tpu_custom_call.1} parent=35 // pred_check
          %p330 = pneg %p86
        $region42: #{tpu_custom_call.1} parent=35 // pred_check_branch
          %332 = sbr.rel (%p330) target = $region44
        $region43: #{tpu_custom_call.1} parent=35 // pred_region
          %s333 = sand.u32 %s24, 1
          %s334 = scalar_lea.sflag [#allocation8], %s333
          %s335 = sand.u32 %s76, 1
          %s336 = smul.addr %s335, 32
          %s337 = scalar_lea.vmem [#allocation7], %s336
          %s339 = ssub.s32 512, 512
          %340 = vsyncadd %s334, %s339
          %s341 = smul.addr %s31, 8
          %s342 = smul.addr %s341, 64
          %s343 = scalar_lea.hbm %s1, %s342
          %s344 = sshll.u32 %s337, 4
          %s345 = int_to_ptr.vmem [resolvable:$true] %s344
          %350 = dma.hbm_to_vmem [thread:$0]  %s343, 512, %s345, %s334, 64, 64, 4
        $region44: #{tpu_custom_call.1} parent=35 // pred_fallthru
          _
      $region36: #{tpu_custom_call.1} parent=5 // pred_fallthru
        _
      %p351 = scmp.le.s32.totalorder 1, %s24
      %p352 = scmp.lt.s32.totalorder %s24, 5
      %p353 = pnand %p351, %p352
      %p354 = pneg %p353
      // Predicated region
      $region45: #{tpu_custom_call.1} parent=5 // pred_check
        _
      $region46: #{tpu_custom_call.1} parent=5 // pred_check_branch
        %356 = sbr.rel (%p353) target = $region48
      $region47: #{tpu_custom_call.1} parent=5 // pred_region
        %s357 = ssub.s32 %s24, 1
        %s358 = sand.u32 %s53, 1
        %s359 = scalar_lea.sflag [#allocation5], %s358
        %s360 = sand.u32 %s53, 1
        %s361 = smul.addr %s360, 168
        %s362 = scalar_lea.vmem [#allocation4], %s361
        // Predicated region
        $region49: #{tpu_custom_call.1} parent=47 // pred_check
          %p363 = pneg %p66
        $region50: #{tpu_custom_call.1} parent=47 // pred_check_branch
          %365 = sbr.rel (%p363) target = $region52
        $region51: #{tpu_custom_call.1} parent=47 // pred_region
          %366 = dma.done %s359, 2688
        $region52: #{tpu_custom_call.1} parent=47 // pred_fallthru
          _
        %s367 = sand.u32 %s29, 1
        %s368 = scalar_lea.sflag [#allocation8], %s367
        %s369 = sand.u32 %s79, 1
        %s370 = smul.addr %s369, 32
        %s371 = scalar_lea.vmem [#allocation7], %s370
        // Predicated region
        $region53: #{tpu_custom_call.1} parent=47 // pred_check
          %p372 = pneg %p92
        $region54: #{tpu_custom_call.1} parent=47 // pred_check_branch
          %374 = sbr.rel (%p372) target = $region56
        $region55: #{tpu_custom_call.1} parent=47 // pred_region
          %375 = dma.done %s368, 512
        $region56: #{tpu_custom_call.1} parent=47 // pred_fallthru
          _
        // Predicated region
        $region57: #{tpu_custom_call.1} parent=47 // pred_check
          %p376 = pneg %p113
        $region58: #{tpu_custom_call.1} parent=47 // pred_check_branch
          %378 = sbr.rel (%p376) target = $region60
        $region59: #{tpu_custom_call.1} parent=47 // pred_region
          %379 = dma.done [#allocation8], 2304
        $region60: #{tpu_custom_call.1} parent=47 // pred_fallthru
          _
        // Predicated region
        $region61: #{tpu_custom_call.1} parent=47 // pred_check
          %p380 = pneg %p134
        $region62: #{tpu_custom_call.1} parent=47 // pred_check_branch
          %382 = sbr.rel (%p380) target = $region64
        $region63: #{tpu_custom_call.1} parent=47 // pred_region
          %383 = dma.done [#allocation11], 1152
        $region64: #{tpu_custom_call.1} parent=47 // pred_fallthru
          _
        // Predicated region
        $region65: #{tpu_custom_call.1} parent=47 // pred_check
          %p384 = pneg %p155
        $region66: #{tpu_custom_call.1} parent=47 // pred_check_branch
          %386 = sbr.rel (%p384) target = $region68
        $region67: #{tpu_custom_call.1} parent=47 // pred_region
          %387 = dma.done [#allocation11], 1152
        $region68: #{tpu_custom_call.1} parent=47 // pred_fallthru
          _
        // Predicated region
        $region69: #{tpu_custom_call.1} parent=47 // pred_check
          %p388 = pneg %p176
        $region70: #{tpu_custom_call.1} parent=47 // pred_check_branch
          %390 = sbr.rel (%p388) target = $region72
        $region71: #{tpu_custom_call.1} parent=47 // pred_region
          %391 = dma.done [#allocation14], 16
        $region72: #{tpu_custom_call.1} parent=47 // pred_fallthru
          _
        // Predicated region
        $region73: #{tpu_custom_call.1} parent=47 // pred_check
          %p392 = pneg %p197
        $region74: #{tpu_custom_call.1} parent=47 // pred_check_branch
          %394 = sbr.rel (%p392) target = $region76
        $region75: #{tpu_custom_call.1} parent=47 // pred_region
          %395 = dma.done [#allocation14], 16
        $region76: #{tpu_custom_call.1} parent=47 // pred_fallthru
          _
        %s396 = sand.u32 %s53, 1
        %s397 = scalar_lea.sflag [#allocation5], %s396
        %s398 = sand.u32 %s53, 1
        %s399 = smul.addr %s398, 168
        %s400 = scalar_lea.vmem [#allocation4], %s399
        %p401 = pneg %p66
        %p402 = pneg %p63
        %s403 = sand.u32 %s29, 1
        %s404 = scalar_lea.sflag [#allocation8], %s403
        %s405 = sand.u32 %s79, 1
        %s406 = smul.addr %s405, 32
        %s407 = scalar_lea.vmem [#allocation7], %s406
        %p408 = pneg %p92
        %p409 = pneg %p89
        %p410 = pneg %p113
        %p411 = pneg %p110
        %p412 = pneg %p134
        %p413 = pneg %p131
        %p414 = pneg %p155
        %p415 = pneg %p152
        %p416 = pneg %p176
        %p417 = pneg %p173
        %p418 = pneg %p197
        %p419 = pneg %p194
        %p420 = pneg %p227
        %p421 = pneg %p224
        %s422 = sand.u32 %s214, 1
        %s423 = scalar_lea.sflag [#allocation6], %s422
        %s424 = sand.u32 %s214, 1
        %s425 = smul.addr %s424, 32
        %s426 = scalar_lea.vmem [#allocation16], %s425
        %s427 = smul.u32 %s34, 2
        %s428 = sadd.s32 %s427, %s33
        %s429 = smul.u32 %s34, 2
        %s430 = sadd.s32 %s429, %s33
        %p432 = scmp.eq.s32.totalorder %s34, 0
        // Predicated region
        $region77: #{tpu_custom_call.1} parent=47 // pred_check
          %p433 = pneg %p432
        $region78: #{tpu_custom_call.1} parent=47 // pred_check_branch
          %435 = sbr.rel (%p433) target = $region80
        $region79: #{tpu_custom_call.1} parent=47 // pred_region
          %v436 = vld [vmem:[%s371] sm:$0xf]
          %v437 = vld [vmem:[%s371 + $0x4] sm:$0xf]
          %v438 = vld [vmem:[%s371 + $0x8] sm:$0xf]
          %v439 = vld [vmem:[%s371 + $0xc] sm:$0xf]
          %v440 = vld [vmem:[%s371 + $0x10] sm:$0xf]
          %v441 = vld [vmem:[%s371 + $0x14] sm:$0xf]
          %v442 = vld [vmem:[%s371 + $0x18] sm:$0xf]
          %v443 = vld [vmem:[%s371 + $0x1c] sm:$0xf]
          %v444 = vunpack.c.l.bf16 %v436
          %v445 = vunpack.c.l.bf16 %v437
          %v446 = vunpack.c.l.bf16 %v438
          %v447 = vunpack.c.l.bf16 %v439
          %v448 = vunpack.c.l.bf16 %v440
          %v449 = vunpack.c.l.bf16 %v441
          %v450 = vunpack.c.l.bf16 %v442
          %v451 = vunpack.c.l.bf16 %v443
          %vm452 = vcmask 130048
          %453 = vst.msk [vmem:[#allocation2] sm:$0xff] %vm452, %v444
          %454 = vst.msk [vmem:[#allocation2 + $0x8] sm:$0xff] %vm452, %v445
          %455 = vst.msk [vmem:[#allocation2 + $0x10] sm:$0xff] %vm452, %v446
          %456 = vst.msk [vmem:[#allocation2 + $0x18] sm:$0xff] %vm452, %v447
          %457 = vst.msk [vmem:[#allocation2 + $0x20] sm:$0xff] %vm452, %v448
          %458 = vst.msk [vmem:[#allocation2 + $0x28] sm:$0xff] %vm452, %v449
          %459 = vst.msk [vmem:[#allocation2 + $0x30] sm:$0xff] %vm452, %v450
          %460 = vst.msk [vmem:[#allocation2 + $0x38] sm:$0xff] %vm452, %v451
          %vm461 = vcmask 125952
          %462 = vst.msk [vmem:[#allocation3] sm:$0xf] %vm461, 0
          %463 = vst.msk [vmem:[#allocation3 + $0x4] sm:$0xf] %vm461, 0
          %464 = vst.msk [vmem:[#allocation3 + $0x8] sm:$0xf] %vm461, 0
          %465 = vst.msk [vmem:[#allocation3 + $0xc] sm:$0xf] %vm461, 0
          %466 = vst.msk [vmem:[#allocation3 + $0x10] sm:$0xf] %vm461, 0
          %467 = vst.msk [vmem:[#allocation3 + $0x14] sm:$0xf] %vm461, 0
          %468 = vst.msk [vmem:[#allocation3 + $0x18] sm:$0xf] %vm461, 0
          %469 = vst.msk [vmem:[#allocation3 + $0x1c] sm:$0xf] %vm461, 0
          %470 = vst.msk [vmem:[#allocation3 + $0x20] sm:$0xf] %vm461, 0
          %471 = vst.msk [vmem:[#allocation3 + $0x24] sm:$0xf] %vm461, 0
          %472 = vst.msk [vmem:[#allocation3 + $0x28] sm:$0xf] %vm461, 0
          %473 = vst.msk [vmem:[#allocation3 + $0x2c] sm:$0xf] %vm461, 0
          %474 = vst.msk [vmem:[#allocation3 + $0x30] sm:$0xf] %vm461, 0
          %475 = vst.msk [vmem:[#allocation3 + $0x34] sm:$0xf] %vm461, 0
          %476 = vst.msk [vmem:[#allocation3 + $0x38] sm:$0xf] %vm461, 0
          %477 = vst.msk [vmem:[#allocation3 + $0x3c] sm:$0xf] %vm461, 0
          %478 = vst.msk [vmem:[#allocation3 + $0x40] sm:$0xf] %vm461, 0
          %479 = vst.msk [vmem:[#allocation3 + $0x44] sm:$0xf] %vm461, 0
          %480 = vst.msk [vmem:[#allocation3 + $0x48] sm:$0xf] %vm461, 0
          %481 = vst.msk [vmem:[#allocation3 + $0x4c] sm:$0xf] %vm461, 0
          %482 = vst.msk [vmem:[#allocation3 + $0x50] sm:$0xf] %vm461, 0
          %483 = vst.msk [vmem:[#allocation3 + $0x54] sm:$0xf] %vm461, 0
          %484 = vst.msk [vmem:[#allocation3 + $0x58] sm:$0xf] %vm461, 0
          %485 = vst.msk [vmem:[#allocation3 + $0x5c] sm:$0xf] %vm461, 0
          %486 = vst.msk [vmem:[#allocation3 + $0x60] sm:$0xf] %vm461, 0
          %487 = vst.msk [vmem:[#allocation3 + $0x64] sm:$0xf] %vm461, 0
          %488 = vst.msk [vmem:[#allocation3 + $0x68] sm:$0xf] %vm461, 0
          %489 = vst.msk [vmem:[#allocation3 + $0x6c] sm:$0xf] %vm461, 0
          %490 = vst.msk [vmem:[#allocation3 + $0x70] sm:$0xf] %vm461, 0
          %491 = vst.msk [vmem:[#allocation3 + $0x74] sm:$0xf] %vm461, 0
          %492 = vst.msk [vmem:[#allocation3 + $0x78] sm:$0xf] %vm461, 0
          %493 = vst.msk [vmem:[#allocation3 + $0x7c] sm:$0xf] %vm461, 0
          %494 = vst.msk [vmem:[#allocation3 + $0x80] sm:$0xf] %vm461, 0
          %495 = vst.msk [vmem:[#allocation3 + $0x84] sm:$0xf] %vm461, 0
          %496 = vst.msk [vmem:[#allocation3 + $0x88] sm:$0xf] %vm461, 0
          %497 = vst.msk [vmem:[#allocation3 + $0x8c] sm:$0xf] %vm461, 0
          %498 = vst.msk [vmem:[#allocation3 + $0x90] sm:$0xf] %vm461, 0
          %499 = vst.msk [vmem:[#allocation3 + $0x94] sm:$0xf] %vm461, 0
          %500 = vst.msk [vmem:[#allocation3 + $0x98] sm:$0xf] %vm461, 0
          %501 = vst.msk [vmem:[#allocation3 + $0x9c] sm:$0xf] %vm461, 0
          %502 = vst.msk [vmem:[#allocation3 + $0xa0] sm:$0xf] %vm461, 0
          %503 = vst.msk [vmem:[#allocation3 + $0xa4] sm:$0xf] %vm461, 0
        $region80: #{tpu_custom_call.1} parent=47 // pred_fallthru
          _
        %v504 = vld [vmem:[%s362] sm:$0xf]
        %v505 = vld [vmem:[%s362 + $0x4] sm:$0xf]
        %v506 = vld [vmem:[%s362 + $0x8] sm:$0xf]
        %v507 = vld [vmem:[%s362 + $0xc] sm:$0xf]
        %v508 = vld [vmem:[%s362 + $0x10] sm:$0xf]
        %v509 = vld [vmem:[%s362 + $0x14] sm:$0xf]
        %v510 = vld [vmem:[%s362 + $0x18] sm:$0xf]
        %v511 = vld [vmem:[%s362 + $0x1c] sm:$0xf]
        %v512 = vld [vmem:[%s362 + $0x20] sm:$0xf]
        %v513 = vld [vmem:[%s362 + $0x24] sm:$0xf]
        %v514 = vld [vmem:[%s362 + $0x28] sm:$0xf]
        %v515 = vld [vmem:[%s362 + $0x2c] sm:$0xf]
        %v516 = vld [vmem:[%s362 + $0x30] sm:$0xf]
        %v517 = vld [vmem:[%s362 + $0x34] sm:$0xf]
        %v518 = vld [vmem:[%s362 + $0x38] sm:$0xf]
        %v519 = vld [vmem:[%s362 + $0x3c] sm:$0xf]
        %v520 = vld [vmem:[%s362 + $0x40] sm:$0xf]
        %v521 = vld [vmem:[%s362 + $0x44] sm:$0xf]
        %v522 = vld [vmem:[%s362 + $0x48] sm:$0xf]
        %v523 = vld [vmem:[%s362 + $0x4c] sm:$0xf]
        %v524 = vld [vmem:[%s362 + $0x50] sm:$0xf]
        %v525 = vld [vmem:[%s362 + $0x54] sm:$0xf]
        %v526 = vld [vmem:[%s362 + $0x58] sm:$0xf]
        %v527 = vld [vmem:[%s362 + $0x5c] sm:$0xf]
        %v528 = vld [vmem:[%s362 + $0x60] sm:$0xf]
        %v529 = vld [vmem:[%s362 + $0x64] sm:$0xf]
        %v530 = vld [vmem:[%s362 + $0x68] sm:$0xf]
        %v531 = vld [vmem:[%s362 + $0x6c] sm:$0xf]
        %v532 = vld [vmem:[%s362 + $0x70] sm:$0xf]
        %v533 = vld [vmem:[%s362 + $0x74] sm:$0xf]
        %v534 = vld [vmem:[%s362 + $0x78] sm:$0xf]
        %v535 = vld [vmem:[%s362 + $0x7c] sm:$0xf]
        %v536 = vld [vmem:[%s362 + $0x80] sm:$0xf]
        %v537 = vld [vmem:[%s362 + $0x84] sm:$0xf]
        %v538 = vld [vmem:[%s362 + $0x88] sm:$0xf]
        %v539 = vld [vmem:[%s362 + $0x8c] sm:$0xf]
        %v540 = vld [vmem:[%s362 + $0x90] sm:$0xf]
        %v541 = vld [vmem:[%s362 + $0x94] sm:$0xf]
        %v542 = vld [vmem:[%s362 + $0x98] sm:$0xf]
        %v543 = vld [vmem:[%s362 + $0x9c] sm:$0xf]
        %v544 = vld [vmem:[%s362 + $0xa0] sm:$0xf]
        %v545 = vld [vmem:[#allocation9] sm:$0xf]
        %v546 = vld [vmem:[#allocation9 + $0x4] sm:$0xf]
        %v547 = vld [vmem:[#allocation9 + $0x8] sm:$0xf]
        %v548 = vld [vmem:[#allocation9 + $0xc] sm:$0xf]
        %s549 = scalar_lea.vmem [#allocation9], 16
        %v550 = vld [vmem:[%s549] sm:$0xf]
        %v551 = vld [vmem:[%s549 + $0x4] sm:$0xf]
        %v552 = vld [vmem:[%s549 + $0x8] sm:$0xf]
        %v553 = vld [vmem:[%s549 + $0xc] sm:$0xf]
        %v587 = vunpack.c.l.b16 %v505
        %v588 = vunpack.c.l.b16 %v506
        %v589 = vunpack.c.l.b16 %v507
        %v590 = vunpack.c.l.b16 %v508
        %v591 = vunpack.c.l.b16 %v509
        %v592 = vunpack.c.l.b16 %v510
        %v593 = vunpack.c.l.b16 %v511
        %v594 = vunpack.c.l.b16 %v512
        %v595 = vunpack.c.l.b16 %v513
        %v596 = vunpack.c.l.b16 %v514
        %v597 = vunpack.c.l.b16 %v515
        %v598 = vunpack.c.l.b16 %v516
        %v599 = vunpack.c.l.b16 %v517
        %v600 = vunpack.c.l.b16 %v518
        %v601 = vunpack.c.l.b16 %v519
        %v602 = vunpack.c.l.b16 %v520
        %v603 = vunpack.c.l.b16 %v521
        %v604 = vunpack.c.l.b16 %v522
        %v605 = vunpack.c.l.b16 %v523
        %v606 = vunpack.c.l.b16 %v524
        %v607 = vunpack.c.l.b16 %v525
        %v608 = vunpack.c.l.b16 %v526
        %v609 = vunpack.c.l.b16 %v527
        %v610 = vunpack.c.l.b16 %v528
        %v611 = vunpack.c.l.b16 %v529
        %v612 = vunpack.c.l.b16 %v530
        %v613 = vunpack.c.l.b16 %v531
        %v614 = vunpack.c.l.b16 %v532
        %v615 = vunpack.c.l.b16 %v533
        %v616 = vunpack.c.l.b16 %v534
        %v617 = vunpack.c.l.b16 %v535
        %v618 = vunpack.c.l.b16 %v536
        %v619 = vunpack.c.l.b16 %v537
        %v620 = vpack.c.b16 %v588, %v587
        %v621 = vpack.c.b16 %v590, %v589
        %v622 = vpack.c.b16 %v592, %v591
        %v623 = vpack.c.b16 %v594, %v593
        %v624 = vpack.c.b16 %v596, %v595
        %v625 = vpack.c.b16 %v598, %v597
        %v626 = vpack.c.b16 %v600, %v599
        %v627 = vpack.c.b16 %v602, %v601
        %v628 = vpack.c.b16 %v604, %v603
        %v629 = vpack.c.b16 %v606, %v605
        %v630 = vpack.c.b16 %v608, %v607
        %v631 = vpack.c.b16 %v610, %v609
        %v632 = vpack.c.b16 %v612, %v611
        %v633 = vpack.c.b16 %v614, %v613
        %v634 = vpack.c.b16 %v616, %v615
        %v635 = vpack.c.b16 %v618, %v617
        %v636 = vpack.c.b16 %v619, %v619
        %v641 = vunpack.c.l.b16 %v550
        %v642 = vunpack.c.l.b16 %v551
        %v643 = vunpack.c.l.b16 %v552
        %v644 = vunpack.c.l.b16 %v553
        %v645 = vpack.c.b16 %v642, %v641
        %v646 = vpack.c.b16 %v644, %v643
        %vm649 = vcmask 261120
        %v651 = vsel %vm649, %v620, 0
        %v654 = vsel %vm649, %v621, 0
        %v657 = vsel %vm649, %v622, 0
        %v660 = vsel %vm649, %v623, 0
        %v663 = vsel %vm649, %v624, 0
        %v666 = vsel %vm649, %v625, 0
        %v669 = vsel %vm649, %v626, 0
        %v672 = vsel %vm649, %v627, 0
        %v675 = vsel %vm649, %v628, 0
        %v678 = vsel %vm649, %v629, 0
        %v681 = vsel %vm649, %v630, 0
        %v684 = vsel %vm649, %v631, 0
        %v687 = vsel %vm649, %v632, 0
        %v690 = vsel %vm649, %v633, 0
        %v693 = vsel %vm649, %v634, 0
        %v696 = vsel %vm649, %v635, 0
        %v699 = vsel %vm649, %v636, 0
        %701 = vmatprep.subr.bf16.mxu0 0
        %702 = vmatpush1.bf16.msra.mxu0 0
        %703 = vmatprep.subr.bf16.mxu0 0
        %704 = vmatpush1.bf16.msra.mxu0 0
        %705 = vmatprep.subr.bf16.mxu0 0
        %706 = vmatpush1.bf16.msra.mxu0 0
        %707 = vmatprep.subr.bf16.mxu0 0
        %708 = vmatpush1.bf16.msra.mxu0 0
        %709 = vmatprep.subr.bf16.mxu0 0
        %710 = vmatpush1.bf16.msra.mxu0 0
        %711 = vmatprep.subr.bf16.mxu0 0
        %712 = vmatpush1.bf16.msra.mxu0 0
        %713 = vmatprep.subr.bf16.mxu0 0
        %714 = vmatpush1.bf16.msra.mxu0 %v646
        %715 = vmatprep.subr.bf16.mxu0 0
        %716 = vmatpush1.bf16.msra.mxu0 %v645
        %717 = vmatprep.subr.bf16.mxu0 0
        %718 = vmatpush2.bf16.msra.mxu0 0
        %719 = vmatprep.subr.bf16.mxu0 0
        %720 = vmatpush2.bf16.msra.mxu0 0
        %721 = vmatprep.subr.bf16.mxu0 0
        %722 = vmatpush2.bf16.msra.mxu0 0
        %723 = vmatprep.subr.bf16.mxu0 0
        %724 = vmatpush2.bf16.msra.mxu0 0
        %725 = vmatprep.subr.bf16.mxu0 0
        %726 = vmatpush2.bf16.msra.mxu0 0
        %727 = vmatprep.subr.bf16.mxu0 0
        %728 = vmatpush2.bf16.msra.mxu0 0
        %729 = vmatprep.subr.bf16.mxu0 0
        %730 = vmatpush2.bf16.msra.mxu0 0
        %731 = vmatprep.subr.bf16.mxu0 0
        %732 = vmatpush2.bf16.msra.mxu0 0
        %733 = vmatprep.mubr.bf16.mxu0 0
        %734 = vmatmul.mubr.bf16.gmra.mxu0 %v651
        %v735 = vpop.f32.mrf.mxu0
        %v736 = vadd.f32 0.0, %v735
        %v737 = vpop.f32.mrf.mxu0
        %v738 = vpop.f32.mrf.mxu0
        %v739 = vpop.f32.mrf.mxu0
        %740 = vmatprep.mubr.bf16.mxu0 0
        %741 = vmatmul.mubr.bf16.gmra.mxu0 %v654
        %v742 = vpop.f32.mrf.mxu0
        %v743 = vpop.f32.mrf.mxu0
        %v744 = vpop.f32.mrf.mxu0
        %v745 = vadd.f32 0.0, %v744
        %v746 = vpop.f32.mrf.mxu0
        %747 = vmatprep.mubr.bf16.mxu0 0
        %748 = vmatmul.mubr.bf16.gmra.mxu0 %v657
        %v749 = vpop.f32.mrf.mxu0
        %v750 = vpop.f32.mrf.mxu0
        %v751 = vpop.f32.mrf.mxu0
        %v752 = vpop.f32.mrf.mxu0
        %753 = vmatprep.mubr.bf16.mxu0 0
        %754 = vmatmul.mubr.bf16.gmra.mxu0 %v660
        %v755 = vpop.f32.mrf.mxu0
        %v756 = vadd.f32 0.0, %v755
        %v757 = vpop.f32.mrf.mxu0
        %v758 = vpop.f32.mrf.mxu0
        %v759 = vpop.f32.mrf.mxu0
        %760 = vmatprep.mubr.bf16.mxu0 0
        %761 = vmatmul.mubr.bf16.gmra.mxu0 %v663
        %v762 = vpop.f32.mrf.mxu0
        %v763 = vpop.f32.mrf.mxu0
        %v764 = vpop.f32.mrf.mxu0
        %v765 = vadd.f32 0.0, %v764
        %v766 = vpop.f32.mrf.mxu0
        %767 = vmatprep.mubr.bf16.mxu0 0
        %768 = vmatmul.mubr.bf16.gmra.mxu0 %v666
        %v769 = vpop.f32.mrf.mxu0
        %v770 = vpop.f32.mrf.mxu0
        %v771 = vpop.f32.mrf.mxu0
        %v772 = vpop.f32.mrf.mxu0
        %773 = vmatprep.mubr.bf16.mxu0 0
        %774 = vmatmul.mubr.bf16.gmra.mxu0 %v669
        %v775 = vpop.f32.mrf.mxu0
        %v776 = vadd.f32 0.0, %v775
        %v777 = vpop.f32.mrf.mxu0
        %v778 = vpop.f32.mrf.mxu0
        %v779 = vpop.f32.mrf.mxu0
        %780 = vmatprep.mubr.bf16.mxu0 0
        %781 = vmatmul.mubr.bf16.gmra.mxu0 %v672
        %v782 = vpop.f32.mrf.mxu0
        %v783 = vpop.f32.mrf.mxu0
        %v784 = vpop.f32.mrf.mxu0
        %v785 = vadd.f32 0.0, %v784
        %v786 = vpop.f32.mrf.mxu0
        %787 = vmatprep.mubr.bf16.mxu0 0
        %788 = vmatmul.mubr.bf16.gmra.mxu0 %v675
        %v789 = vpop.f32.mrf.mxu0
        %v790 = vpop.f32.mrf.mxu0
        %v791 = vpop.f32.mrf.mxu0
        %v792 = vpop.f32.mrf.mxu0
        %793 = vmatprep.mubr.bf16.mxu0 0
        %794 = vmatmul.mubr.bf16.gmra.mxu0 %v678
        %v795 = vpop.f32.mrf.mxu0
        %v796 = vadd.f32 0.0, %v795
        %v797 = vpop.f32.mrf.mxu0
        %v798 = vpop.f32.mrf.mxu0
        %v799 = vpop.f32.mrf.mxu0
        %800 = vmatprep.mubr.bf16.mxu0 0
        %801 = vmatmul.mubr.bf16.gmra.mxu0 %v681
        %v802 = vpop.f32.mrf.mxu0
        %v803 = vpop.f32.mrf.mxu0
        %v804 = vpop.f32.mrf.mxu0
        %v805 = vadd.f32 0.0, %v804
        %v806 = vpop.f32.mrf.mxu0
        %807 = vmatprep.mubr.bf16.mxu0 0
        %808 = vmatmul.mubr.bf16.gmra.mxu0 %v684
        %v809 = vpop.f32.mrf.mxu0
        %v810 = vpop.f32.mrf.mxu0
        %v811 = vpop.f32.mrf.mxu0
        %v812 = vpop.f32.mrf.mxu0
        %813 = vmatprep.mubr.bf16.mxu0 0
        %814 = vmatmul.mubr.bf16.gmra.mxu0 %v687
        %v815 = vpop.f32.mrf.mxu0
        %v816 = vpop.f32.mrf.mxu0
        %v817 = vpop.f32.mrf.mxu0
        %v818 = vpop.f32.mrf.mxu0
        %819 = vmatprep.mubr.bf16.mxu0 0
        %820 = vmatmul.mubr.bf16.gmra.mxu0 %v690
        %v821 = vpop.f32.mrf.mxu0
        %v822 = vpop.f32.mrf.mxu0
        %v823 = vpop.f32.mrf.mxu0
        %v824 = vpop.f32.mrf.mxu0
        %825 = vmatprep.mubr.bf16.mxu0 0
        %826 = vmatmul.mubr.bf16.gmra.mxu0 %v693
        %v827 = vpop.f32.mrf.mxu0
        %v828 = vpop.f32.mrf.mxu0
        %v829 = vpop.f32.mrf.mxu0
        %v830 = vpop.f32.mrf.mxu0
        %831 = vmatprep.mubr.bf16.mxu0 0
        %832 = vmatmul.mubr.bf16.gmra.mxu0 %v696
        %v833 = vpop.f32.mrf.mxu0
        %v834 = vpop.f32.mrf.mxu0
        %v835 = vpop.f32.mrf.mxu0
        %v836 = vpop.f32.mrf.mxu0
        %837 = vmatprep.mubr.bf16.mxu0 0
        %838 = vmatmul.mubr.bf16.gmra.mxu0 %v699
        %v839 = vpop.f32.mrf.mxu0
        %v840 = vpop.f32.mrf.mxu0
        %v841 = vpop.f32.mrf.mxu0
        %v842 = vpop.f32.mrf.mxu0
        %843 = vdwg.mxu0
        %v845 = vunpack.c.l.b16 %v504
        %v846 = vpack.c.b16 %v587, %v845
        %v847 = vpack.c.b16 %v589, %v588
        %v848 = vpack.c.b16 %v591, %v590
        %v849 = vpack.c.b16 %v593, %v592
        %v850 = vpack.c.b16 %v595, %v594
        %v851 = vpack.c.b16 %v597, %v596
        %v852 = vpack.c.b16 %v599, %v598
        %v853 = vpack.c.b16 %v601, %v600
        %v854 = vpack.c.b16 %v603, %v602
        %v855 = vpack.c.b16 %v605, %v604
        %v856 = vpack.c.b16 %v607, %v606
        %v857 = vpack.c.b16 %v609, %v608
        %v858 = vpack.c.b16 %v611, %v610
        %v859 = vpack.c.b16 %v613, %v612
        %v860 = vpack.c.b16 %v615, %v614
        %v861 = vpack.c.b16 %v617, %v616
        %v862 = vpack.c.b16 %v619, %v618
        %vm863 = vsmask.f32 4352
        %v865 = vshrl.u32 %v846, 16
        %v867 = vrot.slane %v865, 3
        %v868 = vshll.u32 %v846, 16
        %v870 = vrot.slane %v868, 4
        %v871 = vor.u32 %v867, %v870
        %v873 = vshrl.u32 %v847, 16
        %v875 = vrot.slane %v873, 3
        %v876 = vshll.u32 %v847, 16
        %v878 = vrot.slane %v876, 4
        %v879 = vor.u32 %v875, %v878
        %v880 = vsel %vm863, %v871, %v879
        %v882 = vshrl.u32 %v848, 16
        %v884 = vrot.slane %v882, 3
        %v885 = vshll.u32 %v848, 16
        %v887 = vrot.slane %v885, 4
        %v888 = vor.u32 %v884, %v887
        %v889 = vsel %vm863, %v879, %v888
        %v891 = vshrl.u32 %v849, 16
        %v893 = vrot.slane %v891, 3
        %v894 = vshll.u32 %v849, 16
        %v896 = vrot.slane %v894, 4
        %v897 = vor.u32 %v893, %v896
        %v898 = vsel %vm863, %v888, %v897
        %v900 = vshrl.u32 %v850, 16
        %v902 = vrot.slane %v900, 3
        %v903 = vshll.u32 %v850, 16
        %v905 = vrot.slane %v903, 4
        %v906 = vor.u32 %v902, %v905
        %v907 = vsel %vm863, %v897, %v906
        %v909 = vshrl.u32 %v851, 16
        %v911 = vrot.slane %v909, 3
        %v912 = vshll.u32 %v851, 16
        %v914 = vrot.slane %v912, 4
        %v915 = vor.u32 %v911, %v914
        %v916 = vsel %vm863, %v906, %v915
        %v918 = vshrl.u32 %v852, 16
        %v920 = vrot.slane %v918, 3
        %v921 = vshll.u32 %v852, 16
        %v923 = vrot.slane %v921, 4
        %v924 = vor.u32 %v920, %v923
        %v925 = vsel %vm863, %v915, %v924
        %v927 = vshrl.u32 %v853, 16
        %v929 = vrot.slane %v927, 3
        %v930 = vshll.u32 %v853, 16
        %v932 = vrot.slane %v930, 4
        %v933 = vor.u32 %v929, %v932
        %v934 = vsel %vm863, %v924, %v933
        %v936 = vshrl.u32 %v854, 16
        %v938 = vrot.slane %v936, 3
        %v939 = vshll.u32 %v854, 16
        %v941 = vrot.slane %v939, 4
        %v942 = vor.u32 %v938, %v941
        %v943 = vsel %vm863, %v933, %v942
        %v945 = vshrl.u32 %v855, 16
        %v947 = vrot.slane %v945, 3
        %v948 = vshll.u32 %v855, 16
        %v950 = vrot.slane %v948, 4
        %v951 = vor.u32 %v947, %v950
        %v952 = vsel %vm863, %v942, %v951
        %v954 = vshrl.u32 %v856, 16
        %v956 = vrot.slane %v954, 3
        %v957 = vshll.u32 %v856, 16
        %v959 = vrot.slane %v957, 4
        %v960 = vor.u32 %v956, %v959
        %v961 = vsel %vm863, %v951, %v960
        %v963 = vshrl.u32 %v857, 16
        %v965 = vrot.slane %v963, 3
        %v966 = vshll.u32 %v857, 16
        %v968 = vrot.slane %v966, 4
        %v969 = vor.u32 %v965, %v968
        %v970 = vsel %vm863, %v960, %v969
        %v972 = vshrl.u32 %v858, 16
        %v974 = vrot.slane %v972, 3
        %v975 = vshll.u32 %v858, 16
        %v977 = vrot.slane %v975, 4
        %v978 = vor.u32 %v974, %v977
        %v979 = vsel %vm863, %v969, %v978
        %v981 = vshrl.u32 %v859, 16
        %v983 = vrot.slane %v981, 3
        %v984 = vshll.u32 %v859, 16
        %v986 = vrot.slane %v984, 4
        %v987 = vor.u32 %v983, %v986
        %v988 = vsel %vm863, %v978, %v987
        %v990 = vshrl.u32 %v860, 16
        %v992 = vrot.slane %v990, 3
        %v993 = vshll.u32 %v860, 16
        %v995 = vrot.slane %v993, 4
        %v996 = vor.u32 %v992, %v995
        %v997 = vsel %vm863, %v987, %v996
        %v999 = vshrl.u32 %v861, 16
        %v1001 = vrot.slane %v999, 3
        %v1002 = vshll.u32 %v861, 16
        %v1004 = vrot.slane %v1002, 4
        %v1005 = vor.u32 %v1001, %v1004
        %v1006 = vsel %vm863, %v996, %v1005
        %v1008 = vshrl.u32 %v862, 16
        %v1010 = vrot.slane %v1008, 3
        %v1011 = vshll.u32 %v862, 16
        %v1013 = vrot.slane %v1011, 4
        %v1014 = vor.u32 %v1010, %v1013
        %v1015 = vsel %vm863, %v1005, %v1014
        %v1020 = vunpack.c.l.b16 %v545
        %v1021 = vunpack.c.l.b16 %v546
        %v1022 = vunpack.c.l.b16 %v547
        %v1023 = vunpack.c.l.b16 %v548
        %v1024 = vpack.c.b16 %v1021, %v1020
        %v1025 = vpack.c.b16 %v1023, %v1022
        %v1029 = vsel %vm649, %v880, 0
        %v1032 = vsel %vm649, %v889, 0
        %v1035 = vsel %vm649, %v898, 0
        %v1038 = vsel %vm649, %v907, 0
        %v1041 = vsel %vm649, %v916, 0
        %v1044 = vsel %vm649, %v925, 0
        %v1047 = vsel %vm649, %v934, 0
        %v1050 = vsel %vm649, %v943, 0
        %v1053 = vsel %vm649, %v952, 0
        %v1056 = vsel %vm649, %v961, 0
        %v1059 = vsel %vm649, %v970, 0
        %v1062 = vsel %vm649, %v979, 0
        %v1065 = vsel %vm649, %v988, 0
        %v1068 = vsel %vm649, %v997, 0
        %v1071 = vsel %vm649, %v1006, 0
        %v1074 = vsel %vm649, %v1015, 0
        %v1077 = vsel %vm649, %v1014, 0
        %1079 = vmatprep.subr.bf16.mxu0 0
        %1080 = vmatpush1.bf16.msra.mxu0 0
        %1081 = vmatprep.subr.bf16.mxu0 0
        %1082 = vmatpush1.bf16.msra.mxu0 0
        %1083 = vmatprep.subr.bf16.mxu0 0
        %1084 = vmatpush1.bf16.msra.mxu0 0
        %1085 = vmatprep.subr.bf16.mxu0 0
        %1086 = vmatpush1.bf16.msra.mxu0 0
        %1087 = vmatprep.subr.bf16.mxu0 0
        %1088 = vmatpush1.bf16.msra.mxu0 0
        %1089 = vmatprep.subr.bf16.mxu0 0
        %1090 = vmatpush1.bf16.msra.mxu0 0
        %1091 = vmatprep.subr.bf16.mxu0 0
        %1092 = vmatpush1.bf16.msra.mxu0 %v1025
        %1093 = vmatprep.subr.bf16.mxu0 0
        %1094 = vmatpush1.bf16.msra.mxu0 %v1024
        %1095 = vmatprep.subr.bf16.mxu0 0
        %1096 = vmatpush2.bf16.msra.mxu0 0
        %1097 = vmatprep.subr.bf16.mxu0 0
        %1098 = vmatpush2.bf16.msra.mxu0 0
        %1099 = vmatprep.subr.bf16.mxu0 0
        %1100 = vmatpush2.bf16.msra.mxu0 0
        %1101 = vmatprep.subr.bf16.mxu0 0
        %1102 = vmatpush2.bf16.msra.mxu0 0
        %1103 = vmatprep.subr.bf16.mxu0 0
        %1104 = vmatpush2.bf16.msra.mxu0 0
        %1105 = vmatprep.subr.bf16.mxu0 0
        %1106 = vmatpush2.bf16.msra.mxu0 0
        %1107 = vmatprep.subr.bf16.mxu0 0
        %1108 = vmatpush2.bf16.msra.mxu0 0
        %1109 = vmatprep.subr.bf16.mxu0 0
        %1110 = vmatpush2.bf16.msra.mxu0 0
        %1111 = vmatprep.mubr.bf16.mxu0 0
        %1112 = vmatmul.mubr.bf16.gmra.mxu0 %v1029
        %v1113 = vpop.f32.mrf.mxu0
        %v1114 = vadd.f32 %v736, %v1113
        %v1115 = vpop.f32.mrf.mxu0
        %v1116 = vpop.f32.mrf.mxu0
        %v1117 = vpop.f32.mrf.mxu0
        %1118 = vmatprep.mubr.bf16.mxu0 0
        %1119 = vmatmul.mubr.bf16.gmra.mxu0 %v1032
        %v1120 = vpop.f32.mrf.mxu0
        %v1121 = vpop.f32.mrf.mxu0
        %v1122 = vpop.f32.mrf.mxu0
        %v1123 = vadd.f32 %v745, %v1122
        %v1124 = vpop.f32.mrf.mxu0
        %1125 = vmatprep.mubr.bf16.mxu0 0
        %1126 = vmatmul.mubr.bf16.gmra.mxu0 %v1035
        %v1127 = vpop.f32.mrf.mxu0
        %v1128 = vpop.f32.mrf.mxu0
        %v1129 = vpop.f32.mrf.mxu0
        %v1130 = vpop.f32.mrf.mxu0
        %1131 = vmatprep.mubr.bf16.mxu0 0
        %1132 = vmatmul.mubr.bf16.gmra.mxu0 %v1038
        %v1133 = vpop.f32.mrf.mxu0
        %v1134 = vadd.f32 %v756, %v1133
        %v1135 = vpop.f32.mrf.mxu0
        %v1136 = vpop.f32.mrf.mxu0
        %v1137 = vpop.f32.mrf.mxu0
        %1138 = vmatprep.mubr.bf16.mxu0 0
        %1139 = vmatmul.mubr.bf16.gmra.mxu0 %v1041
        %v1140 = vpop.f32.mrf.mxu0
        %v1141 = vpop.f32.mrf.mxu0
        %v1142 = vpop.f32.mrf.mxu0
        %v1143 = vadd.f32 %v765, %v1142
        %v1144 = vpop.f32.mrf.mxu0
        %1145 = vmatprep.mubr.bf16.mxu0 0
        %1146 = vmatmul.mubr.bf16.gmra.mxu0 %v1044
        %v1147 = vpop.f32.mrf.mxu0
        %v1148 = vpop.f32.mrf.mxu0
        %v1149 = vpop.f32.mrf.mxu0
        %v1150 = vpop.f32.mrf.mxu0
        %1151 = vmatprep.mubr.bf16.mxu0 0
        %1152 = vmatmul.mubr.bf16.gmra.mxu0 %v1047
        %v1153 = vpop.f32.mrf.mxu0
        %v1154 = vadd.f32 %v776, %v1153
        %v1155 = vpop.f32.mrf.mxu0
        %v1156 = vpop.f32.mrf.mxu0
        %v1157 = vpop.f32.mrf.mxu0
        %1158 = vmatprep.mubr.bf16.mxu0 0
        %1159 = vmatmul.mubr.bf16.gmra.mxu0 %v1050
        %v1160 = vpop.f32.mrf.mxu0
        %v1161 = vpop.f32.mrf.mxu0
        %v1162 = vpop.f32.mrf.mxu0
        %v1163 = vadd.f32 %v785, %v1162
        %v1164 = vpop.f32.mrf.mxu0
        %1165 = vmatprep.mubr.bf16.mxu0 0
        %1166 = vmatmul.mubr.bf16.gmra.mxu0 %v1053
        %v1167 = vpop.f32.mrf.mxu0
        %v1168 = vpop.f32.mrf.mxu0
        %v1169 = vpop.f32.mrf.mxu0
        %v1170 = vpop.f32.mrf.mxu0
        %1171 = vmatprep.mubr.bf16.mxu0 0
        %1172 = vmatmul.mubr.bf16.gmra.mxu0 %v1056
        %v1173 = vpop.f32.mrf.mxu0
        %v1174 = vadd.f32 %v796, %v1173
        %v1175 = vpop.f32.mrf.mxu0
        %v1176 = vpop.f32.mrf.mxu0
        %v1177 = vpop.f32.mrf.mxu0
        %1178 = vmatprep.mubr.bf16.mxu0 0
        %1179 = vmatmul.mubr.bf16.gmra.mxu0 %v1059
        %v1180 = vpop.f32.mrf.mxu0
        %v1181 = vpop.f32.mrf.mxu0
        %v1182 = vpop.f32.mrf.mxu0
        %v1183 = vadd.f32 %v805, %v1182
        %v1184 = vpop.f32.mrf.mxu0
        %1185 = vmatprep.mubr.bf16.mxu0 0
        %1186 = vmatmul.mubr.bf16.gmra.mxu0 %v1062
        %v1187 = vpop.f32.mrf.mxu0
        %v1188 = vpop.f32.mrf.mxu0
        %v1189 = vpop.f32.mrf.mxu0
        %v1190 = vpop.f32.mrf.mxu0
        %1191 = vmatprep.mubr.bf16.mxu0 0
        %1192 = vmatmul.mubr.bf16.gmra.mxu0 %v1065
        %v1193 = vpop.f32.mrf.mxu0
        %v1194 = vpop.f32.mrf.mxu0
        %v1195 = vpop.f32.mrf.mxu0
        %v1196 = vpop.f32.mrf.mxu0
        %1197 = vmatprep.mubr.bf16.mxu0 0
        %1198 = vmatmul.mubr.bf16.gmra.mxu0 %v1068
        %v1199 = vpop.f32.mrf.mxu0
        %v1200 = vpop.f32.mrf.mxu0
        %v1201 = vpop.f32.mrf.mxu0
        %v1202 = vpop.f32.mrf.mxu0
        %1203 = vmatprep.mubr.bf16.mxu0 0
        %1204 = vmatmul.mubr.bf16.gmra.mxu0 %v1071
        %v1205 = vpop.f32.mrf.mxu0
        %v1206 = vpop.f32.mrf.mxu0
        %v1207 = vpop.f32.mrf.mxu0
        %v1208 = vpop.f32.mrf.mxu0
        %1209 = vmatprep.mubr.bf16.mxu0 0
        %1210 = vmatmul.mubr.bf16.gmra.mxu0 %v1074
        %v1211 = vpop.f32.mrf.mxu0
        %v1212 = vpop.f32.mrf.mxu0
        %v1213 = vpop.f32.mrf.mxu0
        %v1214 = vpop.f32.mrf.mxu0
        %1215 = vmatprep.mubr.bf16.mxu0 0
        %1216 = vmatmul.mubr.bf16.gmra.mxu0 %v1077
        %v1217 = vpop.f32.mrf.mxu0
        %v1218 = vpop.f32.mrf.mxu0
        %v1219 = vpop.f32.mrf.mxu0
        %v1220 = vpop.f32.mrf.mxu0
        %1221 = vdwg.mxu0
        %s1222 = scalar_lea.vmem [#allocation9], 32
        %v1223 = vld [vmem:[%s1222] sm:$0xf]
        %v1224 = vld [vmem:[%s1222 + $0x4] sm:$0xf]
        %v1225 = vld [vmem:[%s1222 + $0x8] sm:$0xf]
        %v1226 = vld [vmem:[%s1222 + $0xc] sm:$0xf]
        %v1228 = vunpack.c.l.b16 %v538
        %v1229 = vpack.c.b16 %v1228, %v619
        %vm1230 = vsmask.f32 7424
        %v1231 = vshrl.u32 %v620, 16
        %v1233 = vshll.u32 %v620, 16
        %v1235 = vrot.slane %v1233, 1
        %v1236 = vor.u32 %v1231, %v1235
        %v1237 = vshll.u32 %v621, 16
        %v1239 = vrot.slane %v1237, 1
        %v1240 = vsel %vm1230, %v1236, %v1239
        %v1241 = vshrl.u32 %v621, 16
        %v1243 = vor.u32 %v1241, %v1239
        %v1244 = vshll.u32 %v622, 16
        %v1246 = vrot.slane %v1244, 1
        %v1247 = vsel %vm1230, %v1243, %v1246
        %v1248 = vshrl.u32 %v622, 16
        %v1250 = vor.u32 %v1248, %v1246
        %v1251 = vshll.u32 %v623, 16
        %v1253 = vrot.slane %v1251, 1
        %v1254 = vsel %vm1230, %v1250, %v1253
        %v1255 = vshrl.u32 %v623, 16
        %v1257 = vor.u32 %v1255, %v1253
        %v1258 = vshll.u32 %v624, 16
        %v1260 = vrot.slane %v1258, 1
        %v1261 = vsel %vm1230, %v1257, %v1260
        %v1262 = vshrl.u32 %v624, 16
        %v1264 = vor.u32 %v1262, %v1260
        %v1265 = vshll.u32 %v625, 16
        %v1267 = vrot.slane %v1265, 1
        %v1268 = vsel %vm1230, %v1264, %v1267
        %v1269 = vshrl.u32 %v625, 16
        %v1271 = vor.u32 %v1269, %v1267
        %v1272 = vshll.u32 %v626, 16
        %v1274 = vrot.slane %v1272, 1
        %v1275 = vsel %vm1230, %v1271, %v1274
        %v1276 = vshrl.u32 %v626, 16
        %v1278 = vor.u32 %v1276, %v1274
        %v1279 = vshll.u32 %v627, 16
        %v1281 = vrot.slane %v1279, 1
        %v1282 = vsel %vm1230, %v1278, %v1281
        %v1283 = vshrl.u32 %v627, 16
        %v1285 = vor.u32 %v1283, %v1281
        %v1286 = vshll.u32 %v628, 16
        %v1288 = vrot.slane %v1286, 1
        %v1289 = vsel %vm1230, %v1285, %v1288
        %v1290 = vshrl.u32 %v628, 16
        %v1292 = vor.u32 %v1290, %v1288
        %v1293 = vshll.u32 %v629, 16
        %v1295 = vrot.slane %v1293, 1
        %v1296 = vsel %vm1230, %v1292, %v1295
        %v1297 = vshrl.u32 %v629, 16
        %v1299 = vor.u32 %v1297, %v1295
        %v1300 = vshll.u32 %v630, 16
        %v1302 = vrot.slane %v1300, 1
        %v1303 = vsel %vm1230, %v1299, %v1302
        %v1304 = vshrl.u32 %v630, 16
        %v1306 = vor.u32 %v1304, %v1302
        %v1307 = vshll.u32 %v631, 16
        %v1309 = vrot.slane %v1307, 1
        %v1310 = vsel %vm1230, %v1306, %v1309
        %v1311 = vshrl.u32 %v631, 16
        %v1313 = vor.u32 %v1311, %v1309
        %v1314 = vshll.u32 %v632, 16
        %v1316 = vrot.slane %v1314, 1
        %v1317 = vsel %vm1230, %v1313, %v1316
        %v1318 = vshrl.u32 %v632, 16
        %v1320 = vor.u32 %v1318, %v1316
        %v1321 = vshll.u32 %v633, 16
        %v1323 = vrot.slane %v1321, 1
        %v1324 = vsel %vm1230, %v1320, %v1323
        %v1325 = vshrl.u32 %v633, 16
        %v1327 = vor.u32 %v1325, %v1323
        %v1328 = vshll.u32 %v634, 16
        %v1330 = vrot.slane %v1328, 1
        %v1331 = vsel %vm1230, %v1327, %v1330
        %v1332 = vshrl.u32 %v634, 16
        %v1334 = vor.u32 %v1332, %v1330
        %v1335 = vshll.u32 %v635, 16
        %v1337 = vrot.slane %v1335, 1
        %v1338 = vsel %vm1230, %v1334, %v1337
        %v1339 = vshrl.u32 %v635, 16
        %v1341 = vor.u32 %v1339, %v1337
        %v1343 = vshll.u32 %v1229, 16
        %v1345 = vrot.slane %v1343, 1
        %v1346 = vsel %vm1230, %v1341, %v1345
        %v1347 = vshrl.u32 %v1229, 16
        %v1349 = vor.u32 %v1347, %v1345
        %v1354 = vunpack.c.l.b16 %v1223
        %v1355 = vunpack.c.l.b16 %v1224
        %v1356 = vunpack.c.l.b16 %v1225
        %v1357 = vunpack.c.l.b16 %v1226
        %v1358 = vpack.c.b16 %v1355, %v1354
        %v1359 = vpack.c.b16 %v1357, %v1356
        %v1363 = vsel %vm649, %v1240, 0
        %v1366 = vsel %vm649, %v1247, 0
        %v1369 = vsel %vm649, %v1254, 0
        %v1372 = vsel %vm649, %v1261, 0
        %v1375 = vsel %vm649, %v1268, 0
        %v1378 = vsel %vm649, %v1275, 0
        %v1381 = vsel %vm649, %v1282, 0
        %v1384 = vsel %vm649, %v1289, 0
        %v1387 = vsel %vm649, %v1296, 0
        %v1390 = vsel %vm649, %v1303, 0
        %v1393 = vsel %vm649, %v1310, 0
        %v1396 = vsel %vm649, %v1317, 0
        %v1399 = vsel %vm649, %v1324, 0
        %v1402 = vsel %vm649, %v1331, 0
        %v1405 = vsel %vm649, %v1338, 0
        %v1408 = vsel %vm649, %v1346, 0
        %v1411 = vsel %vm649, %v1349, 0
        %1413 = vmatprep.subr.bf16.mxu0 0
        %1414 = vmatpush1.bf16.msra.mxu0 0
        %1415 = vmatprep.subr.bf16.mxu0 0
        %1416 = vmatpush1.bf16.msra.mxu0 0
        %1417 = vmatprep.subr.bf16.mxu0 0
        %1418 = vmatpush1.bf16.msra.mxu0 0
        %1419 = vmatprep.subr.bf16.mxu0 0
        %1420 = vmatpush1.bf16.msra.mxu0 0
        %1421 = vmatprep.subr.bf16.mxu0 0
        %1422 = vmatpush1.bf16.msra.mxu0 0
        %1423 = vmatprep.subr.bf16.mxu0 0
        %1424 = vmatpush1.bf16.msra.mxu0 0
        %1425 = vmatprep.subr.bf16.mxu0 0
        %1426 = vmatpush1.bf16.msra.mxu0 %v1359
        %1427 = vmatprep.subr.bf16.mxu0 0
        %1428 = vmatpush1.bf16.msra.mxu0 %v1358
        %1429 = vmatprep.subr.bf16.mxu0 0
        %1430 = vmatpush2.bf16.msra.mxu0 0
        %1431 = vmatprep.subr.bf16.mxu0 0
        %1432 = vmatpush2.bf16.msra.mxu0 0
        %1433 = vmatprep.subr.bf16.mxu0 0
        %1434 = vmatpush2.bf16.msra.mxu0 0
        %1435 = vmatprep.subr.bf16.mxu0 0
        %1436 = vmatpush2.bf16.msra.mxu0 0
        %1437 = vmatprep.subr.bf16.mxu0 0
        %1438 = vmatpush2.bf16.msra.mxu0 0
        %1439 = vmatprep.subr.bf16.mxu0 0
        %1440 = vmatpush2.bf16.msra.mxu0 0
        %1441 = vmatprep.subr.bf16.mxu0 0
        %1442 = vmatpush2.bf16.msra.mxu0 0
        %1443 = vmatprep.subr.bf16.mxu0 0
        %1444 = vmatpush2.bf16.msra.mxu0 0
        %1445 = vmatprep.mubr.bf16.mxu0 0
        %1446 = vmatmul.mubr.bf16.gmra.mxu0 %v1363
        %v1447 = vpop.f32.mrf.mxu0
        %v1448 = vadd.f32 0.0, %v1447
        %v1449 = vpop.f32.mrf.mxu0
        %v1450 = vpop.f32.mrf.mxu0
        %v1451 = vpop.f32.mrf.mxu0
        %1452 = vmatprep.mubr.bf16.mxu0 0
        %1453 = vmatmul.mubr.bf16.gmra.mxu0 %v1366
        %v1454 = vpop.f32.mrf.mxu0
        %v1455 = vpop.f32.mrf.mxu0
        %v1456 = vpop.f32.mrf.mxu0
        %v1457 = vadd.f32 0.0, %v1456
        %v1458 = vpop.f32.mrf.mxu0
        %1459 = vmatprep.mubr.bf16.mxu0 0
        %1460 = vmatmul.mubr.bf16.gmra.mxu0 %v1369
        %v1461 = vpop.f32.mrf.mxu0
        %v1462 = vpop.f32.mrf.mxu0
        %v1463 = vpop.f32.mrf.mxu0
        %v1464 = vpop.f32.mrf.mxu0
        %1465 = vmatprep.mubr.bf16.mxu0 0
        %1466 = vmatmul.mubr.bf16.gmra.mxu0 %v1372
        %v1467 = vpop.f32.mrf.mxu0
        %v1468 = vadd.f32 0.0, %v1467
        %v1469 = vpop.f32.mrf.mxu0
        %v1470 = vpop.f32.mrf.mxu0
        %v1471 = vpop.f32.mrf.mxu0
        %1472 = vmatprep.mubr.bf16.mxu0 0
        %1473 = vmatmul.mubr.bf16.gmra.mxu0 %v1375
        %v1474 = vpop.f32.mrf.mxu0
        %v1475 = vpop.f32.mrf.mxu0
        %v1476 = vpop.f32.mrf.mxu0
        %v1477 = vadd.f32 0.0, %v1476
        %v1478 = vpop.f32.mrf.mxu0
        %1479 = vmatprep.mubr.bf16.mxu0 0
        %1480 = vmatmul.mubr.bf16.gmra.mxu0 %v1378
        %v1481 = vpop.f32.mrf.mxu0
        %v1482 = vpop.f32.mrf.mxu0
        %v1483 = vpop.f32.mrf.mxu0
        %v1484 = vpop.f32.mrf.mxu0
        %1485 = vmatprep.mubr.bf16.mxu0 0
        %1486 = vmatmul.mubr.bf16.gmra.mxu0 %v1381
        %v1487 = vpop.f32.mrf.mxu0
        %v1488 = vadd.f32 0.0, %v1487
        %v1489 = vpop.f32.mrf.mxu0
        %v1490 = vpop.f32.mrf.mxu0
        %v1491 = vpop.f32.mrf.mxu0
        %1492 = vmatprep.mubr.bf16.mxu0 0
        %1493 = vmatmul.mubr.bf16.gmra.mxu0 %v1384
        %v1494 = vpop.f32.mrf.mxu0
        %v1495 = vpop.f32.mrf.mxu0
        %v1496 = vpop.f32.mrf.mxu0
        %v1497 = vadd.f32 0.0, %v1496
        %v1498 = vpop.f32.mrf.mxu0
        %1499 = vmatprep.mubr.bf16.mxu0 0
        %1500 = vmatmul.mubr.bf16.gmra.mxu0 %v1387
        %v1501 = vpop.f32.mrf.mxu0
        %v1502 = vpop.f32.mrf.mxu0
        %v1503 = vpop.f32.mrf.mxu0
        %v1504 = vpop.f32.mrf.mxu0
        %1505 = vmatprep.mubr.bf16.mxu0 0
        %1506 = vmatmul.mubr.bf16.gmra.mxu0 %v1390
        %v1507 = vpop.f32.mrf.mxu0
        %v1508 = vadd.f32 0.0, %v1507
        %v1509 = vpop.f32.mrf.mxu0
        %v1510 = vpop.f32.mrf.mxu0
        %v1511 = vpop.f32.mrf.mxu0
        %1512 = vmatprep.mubr.bf16.mxu0 0
        %1513 = vmatmul.mubr.bf16.gmra.mxu0 %v1393
        %v1514 = vpop.f32.mrf.mxu0
        %v1515 = vpop.f32.mrf.mxu0
        %v1516 = vpop.f32.mrf.mxu0
        %v1517 = vadd.f32 0.0, %v1516
        %v1518 = vpop.f32.mrf.mxu0
        %1519 = vmatprep.mubr.bf16.mxu0 0
        %1520 = vmatmul.mubr.bf16.gmra.mxu0 %v1396
        %v1521 = vpop.f32.mrf.mxu0
        %v1522 = vpop.f32.mrf.mxu0
        %v1523 = vpop.f32.mrf.mxu0
        %v1524 = vpop.f32.mrf.mxu0
        %1525 = vmatprep.mubr.bf16.mxu0 0
        %1526 = vmatmul.mubr.bf16.gmra.mxu0 %v1399
        %v1527 = vpop.f32.mrf.mxu0
        %v1528 = vpop.f32.mrf.mxu0
        %v1529 = vpop.f32.mrf.mxu0
        %v1530 = vpop.f32.mrf.mxu0
        %1531 = vmatprep.mubr.bf16.mxu0 0
        %1532 = vmatmul.mubr.bf16.gmra.mxu0 %v1402
        %v1533 = vpop.f32.mrf.mxu0
        %v1534 = vpop.f32.mrf.mxu0
        %v1535 = vpop.f32.mrf.mxu0
        %v1536 = vpop.f32.mrf.mxu0
        %1537 = vmatprep.mubr.bf16.mxu0 0
        %1538 = vmatmul.mubr.bf16.gmra.mxu0 %v1405
        %v1539 = vpop.f32.mrf.mxu0
        %v1540 = vpop.f32.mrf.mxu0
        %v1541 = vpop.f32.mrf.mxu0
        %v1542 = vpop.f32.mrf.mxu0
        %1543 = vmatprep.mubr.bf16.mxu0 0
        %1544 = vmatmul.mubr.bf16.gmra.mxu0 %v1408
        %v1545 = vpop.f32.mrf.mxu0
        %v1546 = vpop.f32.mrf.mxu0
        %v1547 = vpop.f32.mrf.mxu0
        %v1548 = vpop.f32.mrf.mxu0
        %1549 = vmatprep.mubr.bf16.mxu0 0
        %1550 = vmatmul.mubr.bf16.gmra.mxu0 %v1411
        %v1551 = vpop.f32.mrf.mxu0
        %v1552 = vpop.f32.mrf.mxu0
        %v1553 = vpop.f32.mrf.mxu0
        %v1554 = vpop.f32.mrf.mxu0
        %1555 = vdwg.mxu0
        %v1556 = vadd.f32 %v1114, %v1448
        %v1557 = vadd.f32 %v1123, %v1457
        %v1558 = vadd.f32 %v1134, %v1468
        %v1559 = vadd.f32 %v1143, %v1477
        %v1560 = vadd.f32 %v1154, %v1488
        %v1561 = vadd.f32 %v1163, %v1497
        %v1562 = vadd.f32 %v1174, %v1508
        %v1563 = vadd.f32 %v1183, %v1517
        %s1564 = scalar_lea.vmem [#allocation9], 48
        %v1565 = vld [vmem:[%s1564] sm:$0xf]
        %v1566 = vld [vmem:[%s1564 + $0x4] sm:$0xf]
        %v1567 = vld [vmem:[%s1564 + $0x8] sm:$0xf]
        %v1568 = vld [vmem:[%s1564 + $0xc] sm:$0xf]
        %v1571 = vunpack.c.l.b16 %v539
        %v1572 = vunpack.c.l.b16 %v540
        %v1573 = vpack.c.b16 %v1572, %v1571
        %v1574 = vrot.slane %v1241, 3
        %v1575 = vrot.slane %v1237, 4
        %v1576 = vor.u32 %v1574, %v1575
        %v1577 = vrot.slane %v1248, 3
        %v1578 = vrot.slane %v1244, 4
        %v1579 = vor.u32 %v1577, %v1578
        %v1580 = vsel %vm863, %v1576, %v1579
        %v1581 = vrot.slane %v1255, 3
        %v1582 = vrot.slane %v1251, 4
        %v1583 = vor.u32 %v1581, %v1582
        %v1584 = vsel %vm863, %v1579, %v1583
        %v1585 = vrot.slane %v1262, 3
        %v1586 = vrot.slane %v1258, 4
        %v1587 = vor.u32 %v1585, %v1586
        %v1588 = vsel %vm863, %v1583, %v1587
        %v1589 = vrot.slane %v1269, 3
        %v1590 = vrot.slane %v1265, 4
        %v1591 = vor.u32 %v1589, %v1590
        %v1592 = vsel %vm863, %v1587, %v1591
        %v1593 = vrot.slane %v1276, 3
        %v1594 = vrot.slane %v1272, 4
        %v1595 = vor.u32 %v1593, %v1594
        %v1596 = vsel %vm863, %v1591, %v1595
        %v1597 = vrot.slane %v1283, 3
        %v1598 = vrot.slane %v1279, 4
        %v1599 = vor.u32 %v1597, %v1598
        %v1600 = vsel %vm863, %v1595, %v1599
        %v1601 = vrot.slane %v1290, 3
        %v1602 = vrot.slane %v1286, 4
        %v1603 = vor.u32 %v1601, %v1602
        %v1604 = vsel %vm863, %v1599, %v1603
        %v1605 = vrot.slane %v1297, 3
        %v1606 = vrot.slane %v1293, 4
        %v1607 = vor.u32 %v1605, %v1606
        %v1608 = vsel %vm863, %v1603, %v1607
        %v1609 = vrot.slane %v1304, 3
        %v1610 = vrot.slane %v1300, 4
        %v1611 = vor.u32 %v1609, %v1610
        %v1612 = vsel %vm863, %v1607, %v1611
        %v1613 = vrot.slane %v1311, 3
        %v1614 = vrot.slane %v1307, 4
        %v1615 = vor.u32 %v1613, %v1614
        %v1616 = vsel %vm863, %v1611, %v1615
        %v1617 = vrot.slane %v1318, 3
        %v1618 = vrot.slane %v1314, 4
        %v1619 = vor.u32 %v1617, %v1618
        %v1620 = vsel %vm863, %v1615, %v1619
        %v1621 = vrot.slane %v1325, 3
        %v1622 = vrot.slane %v1321, 4
        %v1623 = vor.u32 %v1621, %v1622
        %v1624 = vsel %vm863, %v1619, %v1623
        %v1625 = vrot.slane %v1332, 3
        %v1626 = vrot.slane %v1328, 4
        %v1627 = vor.u32 %v1625, %v1626
        %v1628 = vsel %vm863, %v1623, %v1627
        %v1629 = vrot.slane %v1339, 3
        %v1630 = vrot.slane %v1335, 4
        %v1631 = vor.u32 %v1629, %v1630
        %v1632 = vsel %vm863, %v1627, %v1631
        %v1633 = vrot.slane %v1347, 3
        %v1634 = vrot.slane %v1343, 4
        %v1635 = vor.u32 %v1633, %v1634
        %v1636 = vsel %vm863, %v1631, %v1635
        %v1638 = vshrl.u32 %v1573, 16
        %v1640 = vrot.slane %v1638, 3
        %v1641 = vshll.u32 %v1573, 16
        %v1643 = vrot.slane %v1641, 4
        %v1644 = vor.u32 %v1640, %v1643
        %v1645 = vsel %vm863, %v1635, %v1644
        %v1650 = vunpack.c.l.b16 %v1565
        %v1651 = vunpack.c.l.b16 %v1566
        %v1652 = vunpack.c.l.b16 %v1567
        %v1653 = vunpack.c.l.b16 %v1568
        %v1654 = vpack.c.b16 %v1651, %v1650
        %v1655 = vpack.c.b16 %v1653, %v1652
        %v1659 = vsel %vm649, %v1580, 0
        %v1662 = vsel %vm649, %v1584, 0
        %v1665 = vsel %vm649, %v1588, 0
        %v1668 = vsel %vm649, %v1592, 0
        %v1671 = vsel %vm649, %v1596, 0
        %v1674 = vsel %vm649, %v1600, 0
        %v1677 = vsel %vm649, %v1604, 0
        %v1680 = vsel %vm649, %v1608, 0
        %v1683 = vsel %vm649, %v1612, 0
        %v1686 = vsel %vm649, %v1616, 0
        %v1689 = vsel %vm649, %v1620, 0
        %v1692 = vsel %vm649, %v1624, 0
        %v1695 = vsel %vm649, %v1628, 0
        %v1698 = vsel %vm649, %v1632, 0
        %v1701 = vsel %vm649, %v1636, 0
        %v1704 = vsel %vm649, %v1645, 0
        %v1707 = vsel %vm649, %v1644, 0
        %1709 = vmatprep.subr.bf16.mxu0 0
        %1710 = vmatpush1.bf16.msra.mxu0 0
        %1711 = vmatprep.subr.bf16.mxu0 0
        %1712 = vmatpush1.bf16.msra.mxu0 0
        %1713 = vmatprep.subr.bf16.mxu0 0
        %1714 = vmatpush1.bf16.msra.mxu0 0
        %1715 = vmatprep.subr.bf16.mxu0 0
        %1716 = vmatpush1.bf16.msra.mxu0 0
        %1717 = vmatprep.subr.bf16.mxu0 0
        %1718 = vmatpush1.bf16.msra.mxu0 0
        %1719 = vmatprep.subr.bf16.mxu0 0
        %1720 = vmatpush1.bf16.msra.mxu0 0
        %1721 = vmatprep.subr.bf16.mxu0 0
        %1722 = vmatpush1.bf16.msra.mxu0 %v1655
        %1723 = vmatprep.subr.bf16.mxu0 0
        %1724 = vmatpush1.bf16.msra.mxu0 %v1654
        %1725 = vmatprep.subr.bf16.mxu0 0
        %1726 = vmatpush2.bf16.msra.mxu0 0
        %1727 = vmatprep.subr.bf16.mxu0 0
        %1728 = vmatpush2.bf16.msra.mxu0 0
        %1729 = vmatprep.subr.bf16.mxu0 0
        %1730 = vmatpush2.bf16.msra.mxu0 0
        %1731 = vmatprep.subr.bf16.mxu0 0
        %1732 = vmatpush2.bf16.msra.mxu0 0
        %1733 = vmatprep.subr.bf16.mxu0 0
        %1734 = vmatpush2.bf16.msra.mxu0 0
        %1735 = vmatprep.subr.bf16.mxu0 0
        %1736 = vmatpush2.bf16.msra.mxu0 0
        %1737 = vmatprep.subr.bf16.mxu0 0
        %1738 = vmatpush2.bf16.msra.mxu0 0
        %1739 = vmatprep.subr.bf16.mxu0 0
        %1740 = vmatpush2.bf16.msra.mxu0 0
        %1741 = vmatprep.mubr.bf16.mxu0 0
        %1742 = vmatmul.mubr.bf16.gmra.mxu0 %v1659
        %v1743 = vpop.f32.mrf.mxu0
        %v1744 = vadd.f32 0.0, %v1743
        %v1745 = vpop.f32.mrf.mxu0
        %v1746 = vpop.f32.mrf.mxu0
        %v1747 = vpop.f32.mrf.mxu0
        %1748 = vmatprep.mubr.bf16.mxu0 0
        %1749 = vmatmul.mubr.bf16.gmra.mxu0 %v1662
        %v1750 = vpop.f32.mrf.mxu0
        %v1751 = vpop.f32.mrf.mxu0
        %v1752 = vpop.f32.mrf.mxu0
        %v1753 = vadd.f32 0.0, %v1752
        %v1754 = vpop.f32.mrf.mxu0
        %1755 = vmatprep.mubr.bf16.mxu0 0
        %1756 = vmatmul.mubr.bf16.gmra.mxu0 %v1665
        %v1757 = vpop.f32.mrf.mxu0
        %v1758 = vpop.f32.mrf.mxu0
        %v1759 = vpop.f32.mrf.mxu0
        %v1760 = vpop.f32.mrf.mxu0
        %1761 = vmatprep.mubr.bf16.mxu0 0
        %1762 = vmatmul.mubr.bf16.gmra.mxu0 %v1668
        %v1763 = vpop.f32.mrf.mxu0
        %v1764 = vadd.f32 0.0, %v1763
        %v1765 = vpop.f32.mrf.mxu0
        %v1766 = vpop.f32.mrf.mxu0
        %v1767 = vpop.f32.mrf.mxu0
        %1768 = vmatprep.mubr.bf16.mxu0 0
        %1769 = vmatmul.mubr.bf16.gmra.mxu0 %v1671
        %v1770 = vpop.f32.mrf.mxu0
        %v1771 = vpop.f32.mrf.mxu0
        %v1772 = vpop.f32.mrf.mxu0
        %v1773 = vadd.f32 0.0, %v1772
        %v1774 = vpop.f32.mrf.mxu0
        %1775 = vmatprep.mubr.bf16.mxu0 0
        %1776 = vmatmul.mubr.bf16.gmra.mxu0 %v1674
        %v1777 = vpop.f32.mrf.mxu0
        %v1778 = vpop.f32.mrf.mxu0
        %v1779 = vpop.f32.mrf.mxu0
        %v1780 = vpop.f32.mrf.mxu0
        %1781 = vmatprep.mubr.bf16.mxu0 0
        %1782 = vmatmul.mubr.bf16.gmra.mxu0 %v1677
        %v1783 = vpop.f32.mrf.mxu0
        %v1784 = vadd.f32 0.0, %v1783
        %v1785 = vpop.f32.mrf.mxu0
        %v1786 = vpop.f32.mrf.mxu0
        %v1787 = vpop.f32.mrf.mxu0
        %1788 = vmatprep.mubr.bf16.mxu0 0
        %1789 = vmatmul.mubr.bf16.gmra.mxu0 %v1680
        %v1790 = vpop.f32.mrf.mxu0
        %v1791 = vpop.f32.mrf.mxu0
        %v1792 = vpop.f32.mrf.mxu0
        %v1793 = vadd.f32 0.0, %v1792
        %v1794 = vpop.f32.mrf.mxu0
        %1795 = vmatprep.mubr.bf16.mxu0 0
        %1796 = vmatmul.mubr.bf16.gmra.mxu0 %v1683
        %v1797 = vpop.f32.mrf.mxu0
        %v1798 = vpop.f32.mrf.mxu0
        %v1799 = vpop.f32.mrf.mxu0
        %v1800 = vpop.f32.mrf.mxu0
        %1801 = vmatprep.mubr.bf16.mxu0 0
        %1802 = vmatmul.mubr.bf16.gmra.mxu0 %v1686
        %v1803 = vpop.f32.mrf.mxu0
        %v1804 = vadd.f32 0.0, %v1803
        %v1805 = vpop.f32.mrf.mxu0
        %v1806 = vpop.f32.mrf.mxu0
        %v1807 = vpop.f32.mrf.mxu0
        %1808 = vmatprep.mubr.bf16.mxu0 0
        %1809 = vmatmul.mubr.bf16.gmra.mxu0 %v1689
        %v1810 = vpop.f32.mrf.mxu0
        %v1811 = vpop.f32.mrf.mxu0
        %v1812 = vpop.f32.mrf.mxu0
        %v1813 = vadd.f32 0.0, %v1812
        %v1814 = vpop.f32.mrf.mxu0
        %1815 = vmatprep.mubr.bf16.mxu0 0
        %1816 = vmatmul.mubr.bf16.gmra.mxu0 %v1692
        %v1817 = vpop.f32.mrf.mxu0
        %v1818 = vpop.f32.mrf.mxu0
        %v1819 = vpop.f32.mrf.mxu0
        %v1820 = vpop.f32.mrf.mxu0
        %1821 = vmatprep.mubr.bf16.mxu0 0
        %1822 = vmatmul.mubr.bf16.gmra.mxu0 %v1695
        %v1823 = vpop.f32.mrf.mxu0
        %v1824 = vpop.f32.mrf.mxu0
        %v1825 = vpop.f32.mrf.mxu0
        %v1826 = vpop.f32.mrf.mxu0
        %1827 = vmatprep.mubr.bf16.mxu0 0
        %1828 = vmatmul.mubr.bf16.gmra.mxu0 %v1698
        %v1829 = vpop.f32.mrf.mxu0
        %v1830 = vpop.f32.mrf.mxu0
        %v1831 = vpop.f32.mrf.mxu0
        %v1832 = vpop.f32.mrf.mxu0
        %1833 = vmatprep.mubr.bf16.mxu0 0
        %1834 = vmatmul.mubr.bf16.gmra.mxu0 %v1701
        %v1835 = vpop.f32.mrf.mxu0
        %v1836 = vpop.f32.mrf.mxu0
        %v1837 = vpop.f32.mrf.mxu0
        %v1838 = vpop.f32.mrf.mxu0
        %1839 = vmatprep.mubr.bf16.mxu0 0
        %1840 = vmatmul.mubr.bf16.gmra.mxu0 %v1704
        %v1841 = vpop.f32.mrf.mxu0
        %v1842 = vpop.f32.mrf.mxu0
        %v1843 = vpop.f32.mrf.mxu0
        %v1844 = vpop.f32.mrf.mxu0
        %1845 = vmatprep.mubr.bf16.mxu0 0
        %1846 = vmatmul.mubr.bf16.gmra.mxu0 %v1707
        %v1847 = vpop.f32.mrf.mxu0
        %v1848 = vpop.f32.mrf.mxu0
        %v1849 = vpop.f32.mrf.mxu0
        %v1850 = vpop.f32.mrf.mxu0
        %1851 = vdwg.mxu0
        %v1852 = vadd.f32 %v1556, %v1744
        %v1853 = vadd.f32 %v1557, %v1753
        %v1854 = vadd.f32 %v1558, %v1764
        %v1855 = vadd.f32 %v1559, %v1773
        %v1856 = vadd.f32 %v1560, %v1784
        %v1857 = vadd.f32 %v1561, %v1793
        %v1858 = vadd.f32 %v1562, %v1804
        %v1859 = vadd.f32 %v1563, %v1813
        %s1860 = scalar_lea.vmem [#allocation9], 64
        %v1861 = vld [vmem:[%s1860] sm:$0xf]
        %v1862 = vld [vmem:[%s1860 + $0x4] sm:$0xf]
        %v1863 = vld [vmem:[%s1860 + $0x8] sm:$0xf]
        %v1864 = vld [vmem:[%s1860 + $0xc] sm:$0xf]
        %v1865 = vpack.c.b16 %v1571, %v1228
        %v1866 = vpack.c.b16 %v1572, %v1572
        %v1871 = vunpack.c.l.b16 %v1861
        %v1872 = vunpack.c.l.b16 %v1862
        %v1873 = vunpack.c.l.b16 %v1863
        %v1874 = vunpack.c.l.b16 %v1864
        %v1875 = vpack.c.b16 %v1872, %v1871
        %v1876 = vpack.c.b16 %v1874, %v1873
        %v1879 = vsel %vm649, %v848, 0
        %v1881 = vsel %vm649, %v849, 0
        %v1883 = vsel %vm649, %v850, 0
        %v1885 = vsel %vm649, %v851, 0
        %v1887 = vsel %vm649, %v852, 0
        %v1889 = vsel %vm649, %v853, 0
        %v1891 = vsel %vm649, %v854, 0
        %v1893 = vsel %vm649, %v855, 0
        %v1895 = vsel %vm649, %v856, 0
        %v1897 = vsel %vm649, %v857, 0
        %v1899 = vsel %vm649, %v858, 0
        %v1901 = vsel %vm649, %v859, 0
        %v1903 = vsel %vm649, %v860, 0
        %v1905 = vsel %vm649, %v861, 0
        %v1907 = vsel %vm649, %v862, 0
        %v1910 = vsel %vm649, %v1865, 0
        %v1913 = vsel %vm649, %v1866, 0
        %1915 = vmatprep.subr.bf16.mxu0 0
        %1916 = vmatpush1.bf16.msra.mxu0 0
        %1917 = vmatprep.subr.bf16.mxu0 0
        %1918 = vmatpush1.bf16.msra.mxu0 0
        %1919 = vmatprep.subr.bf16.mxu0 0
        %1920 = vmatpush1.bf16.msra.mxu0 0
        %1921 = vmatprep.subr.bf16.mxu0 0
        %1922 = vmatpush1.bf16.msra.mxu0 0
        %1923 = vmatprep.subr.bf16.mxu0 0
        %1924 = vmatpush1.bf16.msra.mxu0 0
        %1925 = vmatprep.subr.bf16.mxu0 0
        %1926 = vmatpush1.bf16.msra.mxu0 0
        %1927 = vmatprep.subr.bf16.mxu0 0
        %1928 = vmatpush1.bf16.msra.mxu0 %v1876
        %1929 = vmatprep.subr.bf16.mxu0 0
        %1930 = vmatpush1.bf16.msra.mxu0 %v1875
        %1931 = vmatprep.subr.bf16.mxu0 0
        %1932 = vmatpush2.bf16.msra.mxu0 0
        %1933 = vmatprep.subr.bf16.mxu0 0
        %1934 = vmatpush2.bf16.msra.mxu0 0
        %1935 = vmatprep.subr.bf16.mxu0 0
        %1936 = vmatpush2.bf16.msra.mxu0 0
        %1937 = vmatprep.subr.bf16.mxu0 0
        %1938 = vmatpush2.bf16.msra.mxu0 0
        %1939 = vmatprep.subr.bf16.mxu0 0
        %1940 = vmatpush2.bf16.msra.mxu0 0
        %1941 = vmatprep.subr.bf16.mxu0 0
        %1942 = vmatpush2.bf16.msra.mxu0 0
        %1943 = vmatprep.subr.bf16.mxu0 0
        %1944 = vmatpush2.bf16.msra.mxu0 0
        %1945 = vmatprep.subr.bf16.mxu0 0
        %1946 = vmatpush2.bf16.msra.mxu0 0
        %1947 = vmatprep.mubr.bf16.mxu0 0
        %1948 = vmatmul.mubr.bf16.gmra.mxu0 %v1879
        %v1949 = vpop.f32.mrf.mxu0
        %v1950 = vadd.f32 0.0, %v1949
        %v1951 = vpop.f32.mrf.mxu0
        %v1952 = vpop.f32.mrf.mxu0
        %v1953 = vpop.f32.mrf.mxu0
        %1954 = vmatprep.mubr.bf16.mxu0 0
        %1955 = vmatmul.mubr.bf16.gmra.mxu0 %v1881
        %v1956 = vpop.f32.mrf.mxu0
        %v1957 = vpop.f32.mrf.mxu0
        %v1958 = vpop.f32.mrf.mxu0
        %v1959 = vadd.f32 0.0, %v1958
        %v1960 = vpop.f32.mrf.mxu0
        %1961 = vmatprep.mubr.bf16.mxu0 0
        %1962 = vmatmul.mubr.bf16.gmra.mxu0 %v1883
        %v1963 = vpop.f32.mrf.mxu0
        %v1964 = vpop.f32.mrf.mxu0
        %v1965 = vpop.f32.mrf.mxu0
        %v1966 = vpop.f32.mrf.mxu0
        %1967 = vmatprep.mubr.bf16.mxu0 0
        %1968 = vmatmul.mubr.bf16.gmra.mxu0 %v1885
        %v1969 = vpop.f32.mrf.mxu0
        %v1970 = vadd.f32 0.0, %v1969
        %v1971 = vpop.f32.mrf.mxu0
        %v1972 = vpop.f32.mrf.mxu0
        %v1973 = vpop.f32.mrf.mxu0
        %1974 = vmatprep.mubr.bf16.mxu0 0
        %1975 = vmatmul.mubr.bf16.gmra.mxu0 %v1887
        %v1976 = vpop.f32.mrf.mxu0
        %v1977 = vpop.f32.mrf.mxu0
        %v1978 = vpop.f32.mrf.mxu0
        %v1979 = vadd.f32 0.0, %v1978
        %v1980 = vpop.f32.mrf.mxu0
        %1981 = vmatprep.mubr.bf16.mxu0 0
        %1982 = vmatmul.mubr.bf16.gmra.mxu0 %v1889
        %v1983 = vpop.f32.mrf.mxu0
        %v1984 = vpop.f32.mrf.mxu0
        %v1985 = vpop.f32.mrf.mxu0
        %v1986 = vpop.f32.mrf.mxu0
        %1987 = vmatprep.mubr.bf16.mxu0 0
        %1988 = vmatmul.mubr.bf16.gmra.mxu0 %v1891
        %v1989 = vpop.f32.mrf.mxu0
        %v1990 = vadd.f32 0.0, %v1989
        %v1991 = vpop.f32.mrf.mxu0
        %v1992 = vpop.f32.mrf.mxu0
        %v1993 = vpop.f32.mrf.mxu0
        %1994 = vmatprep.mubr.bf16.mxu0 0
        %1995 = vmatmul.mubr.bf16.gmra.mxu0 %v1893
        %v1996 = vpop.f32.mrf.mxu0
        %v1997 = vpop.f32.mrf.mxu0
        %v1998 = vpop.f32.mrf.mxu0
        %v1999 = vadd.f32 0.0, %v1998
        %v2000 = vpop.f32.mrf.mxu0
        %2001 = vmatprep.mubr.bf16.mxu0 0
        %2002 = vmatmul.mubr.bf16.gmra.mxu0 %v1895
        %v2003 = vpop.f32.mrf.mxu0
        %v2004 = vpop.f32.mrf.mxu0
        %v2005 = vpop.f32.mrf.mxu0
        %v2006 = vpop.f32.mrf.mxu0
        %2007 = vmatprep.mubr.bf16.mxu0 0
        %2008 = vmatmul.mubr.bf16.gmra.mxu0 %v1897
        %v2009 = vpop.f32.mrf.mxu0
        %v2010 = vadd.f32 0.0, %v2009
        %v2011 = vpop.f32.mrf.mxu0
        %v2012 = vpop.f32.mrf.mxu0
        %v2013 = vpop.f32.mrf.mxu0
        %2014 = vmatprep.mubr.bf16.mxu0 0
        %2015 = vmatmul.mubr.bf16.gmra.mxu0 %v1899
        %v2016 = vpop.f32.mrf.mxu0
        %v2017 = vpop.f32.mrf.mxu0
        %v2018 = vpop.f32.mrf.mxu0
        %v2019 = vadd.f32 0.0, %v2018
        %v2020 = vpop.f32.mrf.mxu0
        %2021 = vmatprep.mubr.bf16.mxu0 0
        %2022 = vmatmul.mubr.bf16.gmra.mxu0 %v1901
        %v2023 = vpop.f32.mrf.mxu0
        %v2024 = vpop.f32.mrf.mxu0
        %v2025 = vpop.f32.mrf.mxu0
        %v2026 = vpop.f32.mrf.mxu0
        %2027 = vmatprep.mubr.bf16.mxu0 0
        %2028 = vmatmul.mubr.bf16.gmra.mxu0 %v1903
        %v2029 = vpop.f32.mrf.mxu0
        %v2030 = vpop.f32.mrf.mxu0
        %v2031 = vpop.f32.mrf.mxu0
        %v2032 = vpop.f32.mrf.mxu0
        %2033 = vmatprep.mubr.bf16.mxu0 0
        %2034 = vmatmul.mubr.bf16.gmra.mxu0 %v1905
        %v2035 = vpop.f32.mrf.mxu0
        %v2036 = vpop.f32.mrf.mxu0
        %v2037 = vpop.f32.mrf.mxu0
        %v2038 = vpop.f32.mrf.mxu0
        %2039 = vmatprep.mubr.bf16.mxu0 0
        %2040 = vmatmul.mubr.bf16.gmra.mxu0 %v1907
        %v2041 = vpop.f32.mrf.mxu0
        %v2042 = vpop.f32.mrf.mxu0
        %v2043 = vpop.f32.mrf.mxu0
        %v2044 = vpop.f32.mrf.mxu0
        %2045 = vmatprep.mubr.bf16.mxu0 0
        %2046 = vmatmul.mubr.bf16.gmra.mxu0 %v1910
        %v2047 = vpop.f32.mrf.mxu0
        %v2048 = vpop.f32.mrf.mxu0
        %v2049 = vpop.f32.mrf.mxu0
        %v2050 = vpop.f32.mrf.mxu0
        %2051 = vmatprep.mubr.bf16.mxu0 0
        %2052 = vmatmul.mubr.bf16.gmra.mxu0 %v1913
        %v2053 = vpop.f32.mrf.mxu0
        %v2054 = vpop.f32.mrf.mxu0
        %v2055 = vpop.f32.mrf.mxu0
        %v2056 = vpop.f32.mrf.mxu0
        %2057 = vdwg.mxu0
        %v2058 = vadd.f32 %v1852, %v1950
        %v2059 = vadd.f32 %v1853, %v1959
        %v2060 = vadd.f32 %v1854, %v1970
        %v2061 = vadd.f32 %v1855, %v1979
        %v2062 = vadd.f32 %v1856, %v1990
        %v2063 = vadd.f32 %v1857, %v1999
        %v2064 = vadd.f32 %v1858, %v2010
        %v2065 = vadd.f32 %v1859, %v2019
        %s2066 = scalar_lea.vmem [#allocation9], 80
        %v2067 = vld [vmem:[%s2066] sm:$0xf]
        %v2068 = vld [vmem:[%s2066 + $0x4] sm:$0xf]
        %v2069 = vld [vmem:[%s2066 + $0x8] sm:$0xf]
        %v2070 = vld [vmem:[%s2066 + $0xc] sm:$0xf]
        %v2072 = vunpack.c.l.b16 %v541
        %v2073 = vpack.c.b16 %v2072, %v1572
        %v2074 = vrot.slane %v885, 1
        %v2075 = vor.u32 %v882, %v2074
        %v2076 = vrot.slane %v894, 1
        %v2077 = vsel %vm1230, %v2075, %v2076
        %v2078 = vor.u32 %v891, %v2076
        %v2079 = vrot.slane %v903, 1
        %v2080 = vsel %vm1230, %v2078, %v2079
        %v2081 = vor.u32 %v900, %v2079
        %v2082 = vrot.slane %v912, 1
        %v2083 = vsel %vm1230, %v2081, %v2082
        %v2084 = vor.u32 %v909, %v2082
        %v2085 = vrot.slane %v921, 1
        %v2086 = vsel %vm1230, %v2084, %v2085
        %v2087 = vor.u32 %v918, %v2085
        %v2088 = vrot.slane %v930, 1
        %v2089 = vsel %vm1230, %v2087, %v2088
        %v2090 = vor.u32 %v927, %v2088
        %v2091 = vrot.slane %v939, 1
        %v2092 = vsel %vm1230, %v2090, %v2091
        %v2093 = vor.u32 %v936, %v2091
        %v2094 = vrot.slane %v948, 1
        %v2095 = vsel %vm1230, %v2093, %v2094
        %v2096 = vor.u32 %v945, %v2094
        %v2097 = vrot.slane %v957, 1
        %v2098 = vsel %vm1230, %v2096, %v2097
        %v2099 = vor.u32 %v954, %v2097
        %v2100 = vrot.slane %v966, 1
        %v2101 = vsel %vm1230, %v2099, %v2100
        %v2102 = vor.u32 %v963, %v2100
        %v2103 = vrot.slane %v975, 1
        %v2104 = vsel %vm1230, %v2102, %v2103
        %v2105 = vor.u32 %v972, %v2103
        %v2106 = vrot.slane %v984, 1
        %v2107 = vsel %vm1230, %v2105, %v2106
        %v2108 = vor.u32 %v981, %v2106
        %v2109 = vrot.slane %v993, 1
        %v2110 = vsel %vm1230, %v2108, %v2109
        %v2111 = vor.u32 %v990, %v2109
        %v2112 = vrot.slane %v1002, 1
        %v2113 = vsel %vm1230, %v2111, %v2112
        %v2114 = vor.u32 %v999, %v2112
        %v2115 = vrot.slane %v1011, 1
        %v2116 = vsel %vm1230, %v2114, %v2115
        %v2117 = vor.u32 %v1008, %v2115
        %v2118 = vshll.u32 %v1865, 16
        %v2120 = vrot.slane %v2118, 1
        %v2121 = vsel %vm1230, %v2117, %v2120
        %v2122 = vshrl.u32 %v1865, 16
        %v2124 = vor.u32 %v2122, %v2120
        %v2126 = vshll.u32 %v2073, 16
        %v2128 = vrot.slane %v2126, 1
        %v2129 = vsel %vm1230, %v2124, %v2128
        %v2130 = vshrl.u32 %v2073, 16
        %v2132 = vor.u32 %v2130, %v2128
        %v2137 = vunpack.c.l.b16 %v2067
        %v2138 = vunpack.c.l.b16 %v2068
        %v2139 = vunpack.c.l.b16 %v2069
        %v2140 = vunpack.c.l.b16 %v2070
        %v2141 = vpack.c.b16 %v2138, %v2137
        %v2142 = vpack.c.b16 %v2140, %v2139
        %v2146 = vsel %vm649, %v2077, 0
        %v2149 = vsel %vm649, %v2080, 0
        %v2152 = vsel %vm649, %v2083, 0
        %v2155 = vsel %vm649, %v2086, 0
        %v2158 = vsel %vm649, %v2089, 0
        %v2161 = vsel %vm649, %v2092, 0
        %v2164 = vsel %vm649, %v2095, 0
        %v2167 = vsel %vm649, %v2098, 0
        %v2170 = vsel %vm649, %v2101, 0
        %v2173 = vsel %vm649, %v2104, 0
        %v2176 = vsel %vm649, %v2107, 0
        %v2179 = vsel %vm649, %v2110, 0
        %v2182 = vsel %vm649, %v2113, 0
        %v2185 = vsel %vm649, %v2116, 0
        %v2188 = vsel %vm649, %v2121, 0
        %v2191 = vsel %vm649, %v2129, 0
        %v2194 = vsel %vm649, %v2132, 0
        %2196 = vmatprep.subr.bf16.mxu0 0
        %2197 = vmatpush1.bf16.msra.mxu0 0
        %2198 = vmatprep.subr.bf16.mxu0 0
        %2199 = vmatpush1.bf16.msra.mxu0 0
        %2200 = vmatprep.subr.bf16.mxu0 0
        %2201 = vmatpush1.bf16.msra.mxu0 0
        %2202 = vmatprep.subr.bf16.mxu0 0
        %2203 = vmatpush1.bf16.msra.mxu0 0
        %2204 = vmatprep.subr.bf16.mxu0 0
        %2205 = vmatpush1.bf16.msra.mxu0 0
        %2206 = vmatprep.subr.bf16.mxu0 0
        %2207 = vmatpush1.bf16.msra.mxu0 0
        %2208 = vmatprep.subr.bf16.mxu0 0
        %2209 = vmatpush1.bf16.msra.mxu0 %v2142
        %2210 = vmatprep.subr.bf16.mxu0 0
        %2211 = vmatpush1.bf16.msra.mxu0 %v2141
        %2212 = vmatprep.subr.bf16.mxu0 0
        %2213 = vmatpush2.bf16.msra.mxu0 0
        %2214 = vmatprep.subr.bf16.mxu0 0
        %2215 = vmatpush2.bf16.msra.mxu0 0
        %2216 = vmatprep.subr.bf16.mxu0 0
        %2217 = vmatpush2.bf16.msra.mxu0 0
        %2218 = vmatprep.subr.bf16.mxu0 0
        %2219 = vmatpush2.bf16.msra.mxu0 0
        %2220 = vmatprep.subr.bf16.mxu0 0
        %2221 = vmatpush2.bf16.msra.mxu0 0
        %2222 = vmatprep.subr.bf16.mxu0 0
        %2223 = vmatpush2.bf16.msra.mxu0 0
        %2224 = vmatprep.subr.bf16.mxu0 0
        %2225 = vmatpush2.bf16.msra.mxu0 0
        %2226 = vmatprep.subr.bf16.mxu0 0
        %2227 = vmatpush2.bf16.msra.mxu0 0
        %2228 = vmatprep.mubr.bf16.mxu0 0
        %2229 = vmatmul.mubr.bf16.gmra.mxu0 %v2146
        %v2230 = vpop.f32.mrf.mxu0
        %v2231 = vadd.f32 0.0, %v2230
        %v2232 = vpop.f32.mrf.mxu0
        %v2233 = vpop.f32.mrf.mxu0
        %v2234 = vpop.f32.mrf.mxu0
        %2235 = vmatprep.mubr.bf16.mxu0 0
        %2236 = vmatmul.mubr.bf16.gmra.mxu0 %v2149
        %v2237 = vpop.f32.mrf.mxu0
        %v2238 = vpop.f32.mrf.mxu0
        %v2239 = vpop.f32.mrf.mxu0
        %v2240 = vadd.f32 0.0, %v2239
        %v2241 = vpop.f32.mrf.mxu0
        %2242 = vmatprep.mubr.bf16.mxu0 0
        %2243 = vmatmul.mubr.bf16.gmra.mxu0 %v2152
        %v2244 = vpop.f32.mrf.mxu0
        %v2245 = vpop.f32.mrf.mxu0
        %v2246 = vpop.f32.mrf.mxu0
        %v2247 = vpop.f32.mrf.mxu0
        %2248 = vmatprep.mubr.bf16.mxu0 0
        %2249 = vmatmul.mubr.bf16.gmra.mxu0 %v2155
        %v2250 = vpop.f32.mrf.mxu0
        %v2251 = vadd.f32 0.0, %v2250
        %v2252 = vpop.f32.mrf.mxu0
        %v2253 = vpop.f32.mrf.mxu0
        %v2254 = vpop.f32.mrf.mxu0
        %2255 = vmatprep.mubr.bf16.mxu0 0
        %2256 = vmatmul.mubr.bf16.gmra.mxu0 %v2158
        %v2257 = vpop.f32.mrf.mxu0
        %v2258 = vpop.f32.mrf.mxu0
        %v2259 = vpop.f32.mrf.mxu0
        %v2260 = vadd.f32 0.0, %v2259
        %v2261 = vpop.f32.mrf.mxu0
        %2262 = vmatprep.mubr.bf16.mxu0 0
        %2263 = vmatmul.mubr.bf16.gmra.mxu0 %v2161
        %v2264 = vpop.f32.mrf.mxu0
        %v2265 = vpop.f32.mrf.mxu0
        %v2266 = vpop.f32.mrf.mxu0
        %v2267 = vpop.f32.mrf.mxu0
        %2268 = vmatprep.mubr.bf16.mxu0 0
        %2269 = vmatmul.mubr.bf16.gmra.mxu0 %v2164
        %v2270 = vpop.f32.mrf.mxu0
        %v2271 = vadd.f32 0.0, %v2270
        %v2272 = vpop.f32.mrf.mxu0
        %v2273 = vpop.f32.mrf.mxu0
        %v2274 = vpop.f32.mrf.mxu0
        %2275 = vmatprep.mubr.bf16.mxu0 0
        %2276 = vmatmul.mubr.bf16.gmra.mxu0 %v2167
        %v2277 = vpop.f32.mrf.mxu0
        %v2278 = vpop.f32.mrf.mxu0
        %v2279 = vpop.f32.mrf.mxu0
        %v2280 = vadd.f32 0.0, %v2279
        %v2281 = vpop.f32.mrf.mxu0
        %2282 = vmatprep.mubr.bf16.mxu0 0
        %2283 = vmatmul.mubr.bf16.gmra.mxu0 %v2170
        %v2284 = vpop.f32.mrf.mxu0
        %v2285 = vpop.f32.mrf.mxu0
        %v2286 = vpop.f32.mrf.mxu0
        %v2287 = vpop.f32.mrf.mxu0
        %2288 = vmatprep.mubr.bf16.mxu0 0
        %2289 = vmatmul.mubr.bf16.gmra.mxu0 %v2173
        %v2290 = vpop.f32.mrf.mxu0
        %v2291 = vadd.f32 0.0, %v2290
        %v2292 = vpop.f32.mrf.mxu0
        %v2293 = vpop.f32.mrf.mxu0
        %v2294 = vpop.f32.mrf.mxu0
        %2295 = vmatprep.mubr.bf16.mxu0 0
        %2296 = vmatmul.mubr.bf16.gmra.mxu0 %v2176
        %v2297 = vpop.f32.mrf.mxu0
        %v2298 = vpop.f32.mrf.mxu0
        %v2299 = vpop.f32.mrf.mxu0
        %v2300 = vadd.f32 0.0, %v2299
        %v2301 = vpop.f32.mrf.mxu0
        %2302 = vmatprep.mubr.bf16.mxu0 0
        %2303 = vmatmul.mubr.bf16.gmra.mxu0 %v2179
        %v2304 = vpop.f32.mrf.mxu0
        %v2305 = vpop.f32.mrf.mxu0
        %v2306 = vpop.f32.mrf.mxu0
        %v2307 = vpop.f32.mrf.mxu0
        %2308 = vmatprep.mubr.bf16.mxu0 0
        %2309 = vmatmul.mubr.bf16.gmra.mxu0 %v2182
        %v2310 = vpop.f32.mrf.mxu0
        %v2311 = vpop.f32.mrf.mxu0
        %v2312 = vpop.f32.mrf.mxu0
        %v2313 = vpop.f32.mrf.mxu0
        %2314 = vmatprep.mubr.bf16.mxu0 0
        %2315 = vmatmul.mubr.bf16.gmra.mxu0 %v2185
        %v2316 = vpop.f32.mrf.mxu0
        %v2317 = vpop.f32.mrf.mxu0
        %v2318 = vpop.f32.mrf.mxu0
        %v2319 = vpop.f32.mrf.mxu0
        %2320 = vmatprep.mubr.bf16.mxu0 0
        %2321 = vmatmul.mubr.bf16.gmra.mxu0 %v2188
        %v2322 = vpop.f32.mrf.mxu0
        %v2323 = vpop.f32.mrf.mxu0
        %v2324 = vpop.f32.mrf.mxu0
        %v2325 = vpop.f32.mrf.mxu0
        %2326 = vmatprep.mubr.bf16.mxu0 0
        %2327 = vmatmul.mubr.bf16.gmra.mxu0 %v2191
        %v2328 = vpop.f32.mrf.mxu0
        %v2329 = vpop.f32.mrf.mxu0
        %v2330 = vpop.f32.mrf.mxu0
        %v2331 = vpop.f32.mrf.mxu0
        %2332 = vmatprep.mubr.bf16.mxu0 0
        %2333 = vmatmul.mubr.bf16.gmra.mxu0 %v2194
        %v2334 = vpop.f32.mrf.mxu0
        %v2335 = vpop.f32.mrf.mxu0
        %v2336 = vpop.f32.mrf.mxu0
        %v2337 = vpop.f32.mrf.mxu0
        %2338 = vdwg.mxu0
        %v2339 = vadd.f32 %v2058, %v2231
        %v2340 = vadd.f32 %v2059, %v2240
        %v2341 = vadd.f32 %v2060, %v2251
        %v2342 = vadd.f32 %v2061, %v2260
        %v2343 = vadd.f32 %v2062, %v2271
        %v2344 = vadd.f32 %v2063, %v2280
        %v2345 = vadd.f32 %v2064, %v2291
        %v2346 = vadd.f32 %v2065, %v2300
        %s2347 = scalar_lea.vmem [#allocation9], 96
        %v2348 = vld [vmem:[%s2347] sm:$0xf]
        %v2349 = vld [vmem:[%s2347 + $0x4] sm:$0xf]
        %v2350 = vld [vmem:[%s2347 + $0x8] sm:$0xf]
        %v2351 = vld [vmem:[%s2347 + $0xc] sm:$0xf]
        %v2354 = vunpack.c.l.b16 %v542
        %v2355 = vunpack.c.l.b16 %v543
        %v2356 = vpack.c.b16 %v2355, %v2354
        %v2357 = vrot.slane %v2122, 3
        %v2358 = vrot.slane %v2118, 4
        %v2359 = vor.u32 %v2357, %v2358
        %v2360 = vsel %vm863, %v1014, %v2359
        %v2361 = vrot.slane %v2130, 3
        %v2362 = vrot.slane %v2126, 4
        %v2363 = vor.u32 %v2361, %v2362
        %v2364 = vsel %vm863, %v2359, %v2363
        %v2366 = vshrl.u32 %v2356, 16
        %v2368 = vrot.slane %v2366, 3
        %v2369 = vshll.u32 %v2356, 16
        %v2371 = vrot.slane %v2369, 4
        %v2372 = vor.u32 %v2368, %v2371
        %v2373 = vsel %vm863, %v2363, %v2372
        %v2378 = vunpack.c.l.b16 %v2348
        %v2379 = vunpack.c.l.b16 %v2349
        %v2380 = vunpack.c.l.b16 %v2350
        %v2381 = vunpack.c.l.b16 %v2351
        %v2382 = vpack.c.b16 %v2379, %v2378
        %v2383 = vpack.c.b16 %v2381, %v2380
        %v2387 = vsel %vm649, %v2360, 0
        %v2390 = vsel %vm649, %v2364, 0
        %v2393 = vsel %vm649, %v2373, 0
        %v2396 = vsel %vm649, %v2372, 0
        %2398 = vmatprep.subr.bf16.mxu0 0
        %2399 = vmatpush1.bf16.msra.mxu0 0
        %2400 = vmatprep.subr.bf16.mxu0 0
        %2401 = vmatpush1.bf16.msra.mxu0 0
        %2402 = vmatprep.subr.bf16.mxu0 0
        %2403 = vmatpush1.bf16.msra.mxu0 0
        %2404 = vmatprep.subr.bf16.mxu0 0
        %2405 = vmatpush1.bf16.msra.mxu0 0
        %2406 = vmatprep.subr.bf16.mxu0 0
        %2407 = vmatpush1.bf16.msra.mxu0 0
        %2408 = vmatprep.subr.bf16.mxu0 0
        %2409 = vmatpush1.bf16.msra.mxu0 0
        %2410 = vmatprep.subr.bf16.mxu0 0
        %2411 = vmatpush1.bf16.msra.mxu0 %v2383
        %2412 = vmatprep.subr.bf16.mxu0 0
        %2413 = vmatpush1.bf16.msra.mxu0 %v2382
        %2414 = vmatprep.subr.bf16.mxu0 0
        %2415 = vmatpush2.bf16.msra.mxu0 0
        %2416 = vmatprep.subr.bf16.mxu0 0
        %2417 = vmatpush2.bf16.msra.mxu0 0
        %2418 = vmatprep.subr.bf16.mxu0 0
        %2419 = vmatpush2.bf16.msra.mxu0 0
        %2420 = vmatprep.subr.bf16.mxu0 0
        %2421 = vmatpush2.bf16.msra.mxu0 0
        %2422 = vmatprep.subr.bf16.mxu0 0
        %2423 = vmatpush2.bf16.msra.mxu0 0
        %2424 = vmatprep.subr.bf16.mxu0 0
        %2425 = vmatpush2.bf16.msra.mxu0 0
        %2426 = vmatprep.subr.bf16.mxu0 0
        %2427 = vmatpush2.bf16.msra.mxu0 0
        %2428 = vmatprep.subr.bf16.mxu0 0
        %2429 = vmatpush2.bf16.msra.mxu0 0
        %2430 = vmatprep.mubr.bf16.mxu0 0
        %2431 = vmatmul.mubr.bf16.gmra.mxu0 %v1038
        %v2432 = vpop.f32.mrf.mxu0
        %v2433 = vadd.f32 0.0, %v2432
        %v2434 = vpop.f32.mrf.mxu0
        %v2435 = vpop.f32.mrf.mxu0
        %v2436 = vpop.f32.mrf.mxu0
        %2437 = vmatprep.mubr.bf16.mxu0 0
        %2438 = vmatmul.mubr.bf16.gmra.mxu0 %v1041
        %v2439 = vpop.f32.mrf.mxu0
        %v2440 = vpop.f32.mrf.mxu0
        %v2441 = vpop.f32.mrf.mxu0
        %v2442 = vadd.f32 0.0, %v2441
        %v2443 = vpop.f32.mrf.mxu0
        %2444 = vmatprep.mubr.bf16.mxu0 0
        %2445 = vmatmul.mubr.bf16.gmra.mxu0 %v1044
        %v2446 = vpop.f32.mrf.mxu0
        %v2447 = vpop.f32.mrf.mxu0
        %v2448 = vpop.f32.mrf.mxu0
        %v2449 = vpop.f32.mrf.mxu0
        %2450 = vmatprep.mubr.bf16.mxu0 0
        %2451 = vmatmul.mubr.bf16.gmra.mxu0 %v1047
        %v2452 = vpop.f32.mrf.mxu0
        %v2453 = vadd.f32 0.0, %v2452
        %v2454 = vpop.f32.mrf.mxu0
        %v2455 = vpop.f32.mrf.mxu0
        %v2456 = vpop.f32.mrf.mxu0
        %2457 = vmatprep.mubr.bf16.mxu0 0
        %2458 = vmatmul.mubr.bf16.gmra.mxu0 %v1050
        %v2459 = vpop.f32.mrf.mxu0
        %v2460 = vpop.f32.mrf.mxu0
        %v2461 = vpop.f32.mrf.mxu0
        %v2462 = vadd.f32 0.0, %v2461
        %v2463 = vpop.f32.mrf.mxu0
        %2464 = vmatprep.mubr.bf16.mxu0 0
        %2465 = vmatmul.mubr.bf16.gmra.mxu0 %v1053
        %v2466 = vpop.f32.mrf.mxu0
        %v2467 = vpop.f32.mrf.mxu0
        %v2468 = vpop.f32.mrf.mxu0
        %v2469 = vpop.f32.mrf.mxu0
        %2470 = vmatprep.mubr.bf16.mxu0 0
        %2471 = vmatmul.mubr.bf16.gmra.mxu0 %v1056
        %v2472 = vpop.f32.mrf.mxu0
        %v2473 = vadd.f32 0.0, %v2472
        %v2474 = vpop.f32.mrf.mxu0
        %v2475 = vpop.f32.mrf.mxu0
        %v2476 = vpop.f32.mrf.mxu0
        %2477 = vmatprep.mubr.bf16.mxu0 0
        %2478 = vmatmul.mubr.bf16.gmra.mxu0 %v1059
        %v2479 = vpop.f32.mrf.mxu0
        %v2480 = vpop.f32.mrf.mxu0
        %v2481 = vpop.f32.mrf.mxu0
        %v2482 = vadd.f32 0.0, %v2481
        %v2483 = vpop.f32.mrf.mxu0
        %2484 = vmatprep.mubr.bf16.mxu0 0
        %2485 = vmatmul.mubr.bf16.gmra.mxu0 %v1062
        %v2486 = vpop.f32.mrf.mxu0
        %v2487 = vpop.f32.mrf.mxu0
        %v2488 = vpop.f32.mrf.mxu0
        %v2489 = vpop.f32.mrf.mxu0
        %2490 = vmatprep.mubr.bf16.mxu0 0
        %2491 = vmatmul.mubr.bf16.gmra.mxu0 %v1065
        %v2492 = vpop.f32.mrf.mxu0
        %v2493 = vadd.f32 0.0, %v2492
        %v2494 = vpop.f32.mrf.mxu0
        %v2495 = vpop.f32.mrf.mxu0
        %v2496 = vpop.f32.mrf.mxu0
        %2497 = vmatprep.mubr.bf16.mxu0 0
        %2498 = vmatmul.mubr.bf16.gmra.mxu0 %v1068
        %v2499 = vpop.f32.mrf.mxu0
        %v2500 = vpop.f32.mrf.mxu0
        %v2501 = vpop.f32.mrf.mxu0
        %v2502 = vadd.f32 0.0, %v2501
        %v2503 = vpop.f32.mrf.mxu0
        %2504 = vmatprep.mubr.bf16.mxu0 0
        %2505 = vmatmul.mubr.bf16.gmra.mxu0 %v1071
        %v2506 = vpop.f32.mrf.mxu0
        %v2507 = vpop.f32.mrf.mxu0
        %v2508 = vpop.f32.mrf.mxu0
        %v2509 = vpop.f32.mrf.mxu0
        %2510 = vmatprep.mubr.bf16.mxu0 0
        %2511 = vmatmul.mubr.bf16.gmra.mxu0 %v1074
        %v2512 = vpop.f32.mrf.mxu0
        %v2513 = vpop.f32.mrf.mxu0
        %v2514 = vpop.f32.mrf.mxu0
        %v2515 = vpop.f32.mrf.mxu0
        %2516 = vmatprep.mubr.bf16.mxu0 0
        %2517 = vmatmul.mubr.bf16.gmra.mxu0 %v2387
        %v2518 = vpop.f32.mrf.mxu0
        %v2519 = vpop.f32.mrf.mxu0
        %v2520 = vpop.f32.mrf.mxu0
        %v2521 = vpop.f32.mrf.mxu0
        %2522 = vmatprep.mubr.bf16.mxu0 0
        %2523 = vmatmul.mubr.bf16.gmra.mxu0 %v2390
        %v2524 = vpop.f32.mrf.mxu0
        %v2525 = vpop.f32.mrf.mxu0
        %v2526 = vpop.f32.mrf.mxu0
        %v2527 = vpop.f32.mrf.mxu0
        %2528 = vmatprep.mubr.bf16.mxu0 0
        %2529 = vmatmul.mubr.bf16.gmra.mxu0 %v2393
        %v2530 = vpop.f32.mrf.mxu0
        %v2531 = vpop.f32.mrf.mxu0
        %v2532 = vpop.f32.mrf.mxu0
        %v2533 = vpop.f32.mrf.mxu0
        %2534 = vmatprep.mubr.bf16.mxu0 0
        %2535 = vmatmul.mubr.bf16.gmra.mxu0 %v2396
        %v2536 = vpop.f32.mrf.mxu0
        %v2537 = vpop.f32.mrf.mxu0
        %v2538 = vpop.f32.mrf.mxu0
        %v2539 = vpop.f32.mrf.mxu0
        %2540 = vdwg.mxu0
        %v2541 = vadd.f32 %v2339, %v2433
        %v2542 = vadd.f32 %v2340, %v2442
        %v2543 = vadd.f32 %v2341, %v2453
        %v2544 = vadd.f32 %v2342, %v2462
        %v2545 = vadd.f32 %v2343, %v2473
        %v2546 = vadd.f32 %v2344, %v2482
        %v2547 = vadd.f32 %v2345, %v2493
        %v2548 = vadd.f32 %v2346, %v2502
        %s2549 = scalar_lea.vmem [#allocation9], 112
        %v2550 = vld [vmem:[%s2549] sm:$0xf]
        %v2551 = vld [vmem:[%s2549 + $0x4] sm:$0xf]
        %v2552 = vld [vmem:[%s2549 + $0x8] sm:$0xf]
        %v2553 = vld [vmem:[%s2549 + $0xc] sm:$0xf]
        %v2554 = vpack.c.b16 %v2354, %v2072
        %v2555 = vpack.c.b16 %v2355, %v2355
        %v2560 = vunpack.c.l.b16 %v2550
        %v2561 = vunpack.c.l.b16 %v2551
        %v2562 = vunpack.c.l.b16 %v2552
        %v2563 = vunpack.c.l.b16 %v2553
        %v2564 = vpack.c.b16 %v2561, %v2560
        %v2565 = vpack.c.b16 %v2563, %v2562
        %v2568 = vsel %vm649, %v1229, 0
        %v2570 = vsel %vm649, %v1573, 0
        %v2573 = vsel %vm649, %v2554, 0
        %v2576 = vsel %vm649, %v2555, 0
        %2578 = vmatprep.subr.bf16.mxu0 0
        %2579 = vmatpush1.bf16.msra.mxu0 0
        %2580 = vmatprep.subr.bf16.mxu0 0
        %2581 = vmatpush1.bf16.msra.mxu0 0
        %2582 = vmatprep.subr.bf16.mxu0 0
        %2583 = vmatpush1.bf16.msra.mxu0 0
        %2584 = vmatprep.subr.bf16.mxu0 0
        %2585 = vmatpush1.bf16.msra.mxu0 0
        %2586 = vmatprep.subr.bf16.mxu0 0
        %2587 = vmatpush1.bf16.msra.mxu0 0
        %2588 = vmatprep.subr.bf16.mxu0 0
        %2589 = vmatpush1.bf16.msra.mxu0 0
        %2590 = vmatprep.subr.bf16.mxu0 0
        %2591 = vmatpush1.bf16.msra.mxu0 %v2565
        %2592 = vmatprep.subr.bf16.mxu0 0
        %2593 = vmatpush1.bf16.msra.mxu0 %v2564
        %2594 = vmatprep.subr.bf16.mxu0 0
        %2595 = vmatpush2.bf16.msra.mxu0 0
        %2596 = vmatprep.subr.bf16.mxu0 0
        %2597 = vmatpush2.bf16.msra.mxu0 0
        %2598 = vmatprep.subr.bf16.mxu0 0
        %2599 = vmatpush2.bf16.msra.mxu0 0
        %2600 = vmatprep.subr.bf16.mxu0 0
        %2601 = vmatpush2.bf16.msra.mxu0 0
        %2602 = vmatprep.subr.bf16.mxu0 0
        %2603 = vmatpush2.bf16.msra.mxu0 0
        %2604 = vmatprep.subr.bf16.mxu0 0
        %2605 = vmatpush2.bf16.msra.mxu0 0
        %2606 = vmatprep.subr.bf16.mxu0 0
        %2607 = vmatpush2.bf16.msra.mxu0 0
        %2608 = vmatprep.subr.bf16.mxu0 0
        %2609 = vmatpush2.bf16.msra.mxu0 0
        %2610 = vmatprep.mubr.bf16.mxu0 0
        %2611 = vmatmul.mubr.bf16.gmra.mxu0 %v660
        %v2612 = vpop.f32.mrf.mxu0
        %v2613 = vadd.f32 0.0, %v2612
        %v2614 = vpop.f32.mrf.mxu0
        %v2615 = vpop.f32.mrf.mxu0
        %v2616 = vpop.f32.mrf.mxu0
        %2617 = vmatprep.mubr.bf16.mxu0 0
        %2618 = vmatmul.mubr.bf16.gmra.mxu0 %v663
        %v2619 = vpop.f32.mrf.mxu0
        %v2620 = vpop.f32.mrf.mxu0
        %v2621 = vpop.f32.mrf.mxu0
        %v2622 = vadd.f32 0.0, %v2621
        %v2623 = vpop.f32.mrf.mxu0
        %2624 = vmatprep.mubr.bf16.mxu0 0
        %2625 = vmatmul.mubr.bf16.gmra.mxu0 %v666
        %v2626 = vpop.f32.mrf.mxu0
        %v2627 = vpop.f32.mrf.mxu0
        %v2628 = vpop.f32.mrf.mxu0
        %v2629 = vpop.f32.mrf.mxu0
        %2630 = vmatprep.mubr.bf16.mxu0 0
        %2631 = vmatmul.mubr.bf16.gmra.mxu0 %v669
        %v2632 = vpop.f32.mrf.mxu0
        %v2633 = vadd.f32 0.0, %v2632
        %v2634 = vpop.f32.mrf.mxu0
        %v2635 = vpop.f32.mrf.mxu0
        %v2636 = vpop.f32.mrf.mxu0
        %2637 = vmatprep.mubr.bf16.mxu0 0
        %2638 = vmatmul.mubr.bf16.gmra.mxu0 %v672
        %v2639 = vpop.f32.mrf.mxu0
        %v2640 = vpop.f32.mrf.mxu0
        %v2641 = vpop.f32.mrf.mxu0
        %v2642 = vadd.f32 0.0, %v2641
        %v2643 = vpop.f32.mrf.mxu0
        %2644 = vmatprep.mubr.bf16.mxu0 0
        %2645 = vmatmul.mubr.bf16.gmra.mxu0 %v675
        %v2646 = vpop.f32.mrf.mxu0
        %v2647 = vpop.f32.mrf.mxu0
        %v2648 = vpop.f32.mrf.mxu0
        %v2649 = vpop.f32.mrf.mxu0
        %2650 = vmatprep.mubr.bf16.mxu0 0
        %2651 = vmatmul.mubr.bf16.gmra.mxu0 %v678
        %v2652 = vpop.f32.mrf.mxu0
        %v2653 = vadd.f32 0.0, %v2652
        %v2654 = vpop.f32.mrf.mxu0
        %v2655 = vpop.f32.mrf.mxu0
        %v2656 = vpop.f32.mrf.mxu0
        %2657 = vmatprep.mubr.bf16.mxu0 0
        %2658 = vmatmul.mubr.bf16.gmra.mxu0 %v681
        %v2659 = vpop.f32.mrf.mxu0
        %v2660 = vpop.f32.mrf.mxu0
        %v2661 = vpop.f32.mrf.mxu0
        %v2662 = vadd.f32 0.0, %v2661
        %v2663 = vpop.f32.mrf.mxu0
        %2664 = vmatprep.mubr.bf16.mxu0 0
        %2665 = vmatmul.mubr.bf16.gmra.mxu0 %v684
        %v2666 = vpop.f32.mrf.mxu0
        %v2667 = vpop.f32.mrf.mxu0
        %v2668 = vpop.f32.mrf.mxu0
        %v2669 = vpop.f32.mrf.mxu0
        %2670 = vmatprep.mubr.bf16.mxu0 0
        %2671 = vmatmul.mubr.bf16.gmra.mxu0 %v687
        %v2672 = vpop.f32.mrf.mxu0
        %v2673 = vadd.f32 0.0, %v2672
        %v2674 = vpop.f32.mrf.mxu0
        %v2675 = vpop.f32.mrf.mxu0
        %v2676 = vpop.f32.mrf.mxu0
        %2677 = vmatprep.mubr.bf16.mxu0 0
        %2678 = vmatmul.mubr.bf16.gmra.mxu0 %v690
        %v2679 = vpop.f32.mrf.mxu0
        %v2680 = vpop.f32.mrf.mxu0
        %v2681 = vpop.f32.mrf.mxu0
        %v2682 = vadd.f32 0.0, %v2681
        %v2683 = vpop.f32.mrf.mxu0
        %2684 = vmatprep.mubr.bf16.mxu0 0
        %2685 = vmatmul.mubr.bf16.gmra.mxu0 %v693
        %v2686 = vpop.f32.mrf.mxu0
        %v2687 = vpop.f32.mrf.mxu0
        %v2688 = vpop.f32.mrf.mxu0
        %v2689 = vpop.f32.mrf.mxu0
        %2690 = vmatprep.mubr.bf16.mxu0 0
        %2691 = vmatmul.mubr.bf16.gmra.mxu0 %v696
        %v2692 = vpop.f32.mrf.mxu0
        %v2693 = vpop.f32.mrf.mxu0
        %v2694 = vpop.f32.mrf.mxu0
        %v2695 = vpop.f32.mrf.mxu0
        %2696 = vmatprep.mubr.bf16.mxu0 0
        %2697 = vmatmul.mubr.bf16.gmra.mxu0 %v2568
        %v2698 = vpop.f32.mrf.mxu0
        %v2699 = vpop.f32.mrf.mxu0
        %v2700 = vpop.f32.mrf.mxu0
        %v2701 = vpop.f32.mrf.mxu0
        %2702 = vmatprep.mubr.bf16.mxu0 0
        %2703 = vmatmul.mubr.bf16.gmra.mxu0 %v2570
        %v2704 = vpop.f32.mrf.mxu0
        %v2705 = vpop.f32.mrf.mxu0
        %v2706 = vpop.f32.mrf.mxu0
        %v2707 = vpop.f32.mrf.mxu0
        %2708 = vmatprep.mubr.bf16.mxu0 0
        %2709 = vmatmul.mubr.bf16.gmra.mxu0 %v2573
        %v2710 = vpop.f32.mrf.mxu0
        %v2711 = vpop.f32.mrf.mxu0
        %v2712 = vpop.f32.mrf.mxu0
        %v2713 = vpop.f32.mrf.mxu0
        %2714 = vmatprep.mubr.bf16.mxu0 0
        %2715 = vmatmul.mubr.bf16.gmra.mxu0 %v2576
        %v2716 = vpop.f32.mrf.mxu0
        %v2717 = vpop.f32.mrf.mxu0
        %v2718 = vpop.f32.mrf.mxu0
        %v2719 = vpop.f32.mrf.mxu0
        %2720 = vdwg.mxu0
        %v2721 = vadd.f32 %v2541, %v2613
        %v2722 = vadd.f32 %v2542, %v2622
        %v2723 = vadd.f32 %v2543, %v2633
        %v2724 = vadd.f32 %v2544, %v2642
        %v2725 = vadd.f32 %v2545, %v2653
        %v2726 = vadd.f32 %v2546, %v2662
        %v2727 = vadd.f32 %v2547, %v2673
        %v2728 = vadd.f32 %v2548, %v2682
        %s2729 = scalar_lea.vmem [#allocation9], 128
        %v2730 = vld [vmem:[%s2729] sm:$0xf]
        %v2731 = vld [vmem:[%s2729 + $0x4] sm:$0xf]
        %v2732 = vld [vmem:[%s2729 + $0x8] sm:$0xf]
        %v2733 = vld [vmem:[%s2729 + $0xc] sm:$0xf]
        %v2735 = vunpack.c.l.b16 %v544
        %v2736 = vpack.c.b16 %v2735, %v2355
        %v2737 = vrot.slane %v1641, 1
        %v2738 = vsel %vm1230, %v1349, %v2737
        %v2739 = vor.u32 %v1638, %v2737
        %v2740 = vshll.u32 %v2554, 16
        %v2742 = vrot.slane %v2740, 1
        %v2743 = vsel %vm1230, %v2739, %v2742
        %v2744 = vshrl.u32 %v2554, 16
        %v2746 = vor.u32 %v2744, %v2742
        %v2748 = vshll.u32 %v2736, 16
        %v2750 = vrot.slane %v2748, 1
        %v2751 = vsel %vm1230, %v2746, %v2750
        %v2752 = vshrl.u32 %v2736, 16
        %v2754 = vor.u32 %v2752, %v2750
        %v2759 = vunpack.c.l.b16 %v2730
        %v2760 = vunpack.c.l.b16 %v2731
        %v2761 = vunpack.c.l.b16 %v2732
        %v2762 = vunpack.c.l.b16 %v2733
        %v2763 = vpack.c.b16 %v2760, %v2759
        %v2764 = vpack.c.b16 %v2762, %v2761
        %v2768 = vsel %vm649, %v2738, 0
        %v2771 = vsel %vm649, %v2743, 0
        %v2774 = vsel %vm649, %v2751, 0
        %v2777 = vsel %vm649, %v2754, 0
        %2779 = vmatprep.subr.bf16.mxu0 0
        %2780 = vmatpush1.bf16.msra.mxu0 0
        %2781 = vmatprep.subr.bf16.mxu0 0
        %2782 = vmatpush1.bf16.msra.mxu0 0
        %2783 = vmatprep.subr.bf16.mxu0 0
        %2784 = vmatpush1.bf16.msra.mxu0 0
        %2785 = vmatprep.subr.bf16.mxu0 0
        %2786 = vmatpush1.bf16.msra.mxu0 0
        %2787 = vmatprep.subr.bf16.mxu0 0
        %2788 = vmatpush1.bf16.msra.mxu0 0
        %2789 = vmatprep.subr.bf16.mxu0 0
        %2790 = vmatpush1.bf16.msra.mxu0 0
        %2791 = vmatprep.subr.bf16.mxu0 0
        %2792 = vmatpush1.bf16.msra.mxu0 %v2764
        %2793 = vmatprep.subr.bf16.mxu0 0
        %2794 = vmatpush1.bf16.msra.mxu0 %v2763
        %2795 = vmatprep.subr.bf16.mxu0 0
        %2796 = vmatpush2.bf16.msra.mxu0 0
        %2797 = vmatprep.subr.bf16.mxu0 0
        %2798 = vmatpush2.bf16.msra.mxu0 0
        %2799 = vmatprep.subr.bf16.mxu0 0
        %2800 = vmatpush2.bf16.msra.mxu0 0
        %2801 = vmatprep.subr.bf16.mxu0 0
        %2802 = vmatpush2.bf16.msra.mxu0 0
        %2803 = vmatprep.subr.bf16.mxu0 0
        %2804 = vmatpush2.bf16.msra.mxu0 0
        %2805 = vmatprep.subr.bf16.mxu0 0
        %2806 = vmatpush2.bf16.msra.mxu0 0
        %2807 = vmatprep.subr.bf16.mxu0 0
        %2808 = vmatpush2.bf16.msra.mxu0 0
        %2809 = vmatprep.subr.bf16.mxu0 0
        %2810 = vmatpush2.bf16.msra.mxu0 0
        %2811 = vmatprep.mubr.bf16.mxu0 0
        %2812 = vmatmul.mubr.bf16.gmra.mxu0 %v1372
        %v2813 = vpop.f32.mrf.mxu0
        %v2814 = vadd.f32 0.0, %v2813
        %v2815 = vpop.f32.mrf.mxu0
        %v2816 = vpop.f32.mrf.mxu0
        %v2817 = vpop.f32.mrf.mxu0
        %2818 = vmatprep.mubr.bf16.mxu0 0
        %2819 = vmatmul.mubr.bf16.gmra.mxu0 %v1375
        %v2820 = vpop.f32.mrf.mxu0
        %v2821 = vpop.f32.mrf.mxu0
        %v2822 = vpop.f32.mrf.mxu0
        %v2823 = vadd.f32 0.0, %v2822
        %v2824 = vpop.f32.mrf.mxu0
        %2825 = vmatprep.mubr.bf16.mxu0 0
        %2826 = vmatmul.mubr.bf16.gmra.mxu0 %v1378
        %v2827 = vpop.f32.mrf.mxu0
        %v2828 = vpop.f32.mrf.mxu0
        %v2829 = vpop.f32.mrf.mxu0
        %v2830 = vpop.f32.mrf.mxu0
        %2831 = vmatprep.mubr.bf16.mxu0 0
        %2832 = vmatmul.mubr.bf16.gmra.mxu0 %v1381
        %v2833 = vpop.f32.mrf.mxu0
        %v2834 = vadd.f32 0.0, %v2833
        %v2835 = vpop.f32.mrf.mxu0
        %v2836 = vpop.f32.mrf.mxu0
        %v2837 = vpop.f32.mrf.mxu0
        %2838 = vmatprep.mubr.bf16.mxu0 0
        %2839 = vmatmul.mubr.bf16.gmra.mxu0 %v1384
        %v2840 = vpop.f32.mrf.mxu0
        %v2841 = vpop.f32.mrf.mxu0
        %v2842 = vpop.f32.mrf.mxu0
        %v2843 = vadd.f32 0.0, %v2842
        %v2844 = vpop.f32.mrf.mxu0
        %2845 = vmatprep.mubr.bf16.mxu0 0
        %2846 = vmatmul.mubr.bf16.gmra.mxu0 %v1387
        %v2847 = vpop.f32.mrf.mxu0
        %v2848 = vpop.f32.mrf.mxu0
        %v2849 = vpop.f32.mrf.mxu0
        %v2850 = vpop.f32.mrf.mxu0
        %2851 = vmatprep.mubr.bf16.mxu0 0
        %2852 = vmatmul.mubr.bf16.gmra.mxu0 %v1390
        %v2853 = vpop.f32.mrf.mxu0
        %v2854 = vadd.f32 0.0, %v2853
        %v2855 = vpop.f32.mrf.mxu0
        %v2856 = vpop.f32.mrf.mxu0
        %v2857 = vpop.f32.mrf.mxu0
        %2858 = vmatprep.mubr.bf16.mxu0 0
        %2859 = vmatmul.mubr.bf16.gmra.mxu0 %v1393
        %v2860 = vpop.f32.mrf.mxu0
        %v2861 = vpop.f32.mrf.mxu0
        %v2862 = vpop.f32.mrf.mxu0
        %v2863 = vadd.f32 0.0, %v2862
        %v2864 = vpop.f32.mrf.mxu0
        %2865 = vmatprep.mubr.bf16.mxu0 0
        %2866 = vmatmul.mubr.bf16.gmra.mxu0 %v1396
        %v2867 = vpop.f32.mrf.mxu0
        %v2868 = vpop.f32.mrf.mxu0
        %v2869 = vpop.f32.mrf.mxu0
        %v2870 = vpop.f32.mrf.mxu0
        %2871 = vmatprep.mubr.bf16.mxu0 0
        %2872 = vmatmul.mubr.bf16.gmra.mxu0 %v1399
        %v2873 = vpop.f32.mrf.mxu0
        %v2874 = vadd.f32 0.0, %v2873
        %v2875 = vpop.f32.mrf.mxu0
        %v2876 = vpop.f32.mrf.mxu0
        %v2877 = vpop.f32.mrf.mxu0
        %2878 = vmatprep.mubr.bf16.mxu0 0
        %2879 = vmatmul.mubr.bf16.gmra.mxu0 %v1402
        %v2880 = vpop.f32.mrf.mxu0
        %v2881 = vpop.f32.mrf.mxu0
        %v2882 = vpop.f32.mrf.mxu0
        %v2883 = vadd.f32 0.0, %v2882
        %v2884 = vpop.f32.mrf.mxu0
        %2885 = vmatprep.mubr.bf16.mxu0 0
        %2886 = vmatmul.mubr.bf16.gmra.mxu0 %v1405
        %v2887 = vpop.f32.mrf.mxu0
        %v2888 = vpop.f32.mrf.mxu0
        %v2889 = vpop.f32.mrf.mxu0
        %v2890 = vpop.f32.mrf.mxu0
        %2891 = vmatprep.mubr.bf16.mxu0 0
        %2892 = vmatmul.mubr.bf16.gmra.mxu0 %v1408
        %v2893 = vpop.f32.mrf.mxu0
        %v2894 = vpop.f32.mrf.mxu0
        %v2895 = vpop.f32.mrf.mxu0
        %v2896 = vpop.f32.mrf.mxu0
        %2897 = vmatprep.mubr.bf16.mxu0 0
        %2898 = vmatmul.mubr.bf16.gmra.mxu0 %v2768
        %v2899 = vpop.f32.mrf.mxu0
        %v2900 = vpop.f32.mrf.mxu0
        %v2901 = vpop.f32.mrf.mxu0
        %v2902 = vpop.f32.mrf.mxu0
        %2903 = vmatprep.mubr.bf16.mxu0 0
        %2904 = vmatmul.mubr.bf16.gmra.mxu0 %v2771
        %v2905 = vpop.f32.mrf.mxu0
        %v2906 = vpop.f32.mrf.mxu0
        %v2907 = vpop.f32.mrf.mxu0
        %v2908 = vpop.f32.mrf.mxu0
        %2909 = vmatprep.mubr.bf16.mxu0 0
        %2910 = vmatmul.mubr.bf16.gmra.mxu0 %v2774
        %v2911 = vpop.f32.mrf.mxu0
        %v2912 = vpop.f32.mrf.mxu0
        %v2913 = vpop.f32.mrf.mxu0
        %v2914 = vpop.f32.mrf.mxu0
        %2915 = vmatprep.mubr.bf16.mxu0 0
        %2916 = vmatmul.mubr.bf16.gmra.mxu0 %v2777
        %v2917 = vpop.f32.mrf.mxu0
        %v2918 = vpop.f32.mrf.mxu0
        %v2919 = vpop.f32.mrf.mxu0
        %v2920 = vpop.f32.mrf.mxu0
        %2921 = vdwg.mxu0
        %v2922 = vadd.f32 %v2721, %v2814
        %v2923 = vadd.f32 %v2722, %v2823
        %v2924 = vadd.f32 %v2723, %v2834
        %v2925 = vadd.f32 %v2724, %v2843
        %v2926 = vadd.f32 %v2725, %v2854
        %v2927 = vadd.f32 %v2726, %v2863
        %v2928 = vadd.f32 %v2727, %v2874
        %v2929 = vadd.f32 %v2728, %v2883
        %v2930 = vld [vmem:[#allocation2] sm:$0xff]
        %v2931 = vld [vmem:[#allocation2 + $0x8] sm:$0xff]
        %v2932 = vld [vmem:[#allocation2 + $0x10] sm:$0xff]
        %v2933 = vld [vmem:[#allocation2 + $0x18] sm:$0xff]
        %v2934 = vld [vmem:[#allocation2 + $0x20] sm:$0xff]
        %v2935 = vld [vmem:[#allocation2 + $0x28] sm:$0xff]
        %v2936 = vld [vmem:[#allocation2 + $0x30] sm:$0xff]
        %v2937 = vld [vmem:[#allocation2 + $0x38] sm:$0xff]
        %v2938 = vpack.c.bf16 %v2930, %v2930
        %v2939 = vpack.c.bf16 %v2931, %v2931
        %v2940 = vpack.c.bf16 %v2932, %v2932
        %v2941 = vpack.c.bf16 %v2933, %v2933
        %v2942 = vpack.c.bf16 %v2934, %v2934
        %v2943 = vpack.c.bf16 %v2935, %v2935
        %v2944 = vpack.c.bf16 %v2936, %v2936
        %v2945 = vpack.c.bf16 %v2937, %v2937
        %s2946 = scalar_lea.vmem [#allocation3], 12
        %vm2947 = vcmask 125952
        %2948 = vst.msk [vmem:[%s2946 + $0x4] sm:$0xf] %vm2947, %v2938
        %2949 = vst.msk [vmem:[%s2946 + $0x10] sm:$0xf] %vm2947, %v2939
        %2950 = vst.msk [vmem:[%s2946 + $0x1c] sm:$0xf] %vm2947, %v2940
        %2951 = vst.msk [vmem:[%s2946 + $0x28] sm:$0xf] %vm2947, %v2941
        %2952 = vst.msk [vmem:[%s2946 + $0x34] sm:$0xf] %vm2947, %v2942
        %2953 = vst.msk [vmem:[%s2946 + $0x40] sm:$0xf] %vm2947, %v2943
        %2954 = vst.msk [vmem:[%s2946 + $0x4c] sm:$0xf] %vm2947, %v2944
        %2955 = vst.msk [vmem:[%s2946 + $0x58] sm:$0xf] %vm2947, %v2945
        %v2956 = vld [vmem:[#allocation3] sm:$0xf]
        %v2957 = vld [vmem:[#allocation3 + $0x4] sm:$0xf]
        %v2958 = vld [vmem:[#allocation3 + $0x8] sm:$0xf]
        %v2959 = vld [vmem:[#allocation3 + $0xc] sm:$0xf]
        %v2960 = vld [vmem:[#allocation3 + $0x10] sm:$0xf]
        %v2961 = vld [vmem:[#allocation3 + $0x14] sm:$0xf]
        %v2962 = vld [vmem:[#allocation3 + $0x18] sm:$0xf]
        %v2963 = vld [vmem:[#allocation3 + $0x1c] sm:$0xf]
        %v2964 = vld [vmem:[#allocation3 + $0x20] sm:$0xf]
        %v2965 = vld [vmem:[#allocation3 + $0x24] sm:$0xf]
        %v2966 = vld [vmem:[#allocation3 + $0x28] sm:$0xf]
        %v2967 = vld [vmem:[#allocation3 + $0x2c] sm:$0xf]
        %v2968 = vld [vmem:[#allocation3 + $0x30] sm:$0xf]
        %v2969 = vld [vmem:[#allocation3 + $0x34] sm:$0xf]
        %v2970 = vld [vmem:[#allocation3 + $0x38] sm:$0xf]
        %v2971 = vld [vmem:[#allocation3 + $0x3c] sm:$0xf]
        %v2972 = vld [vmem:[#allocation3 + $0x40] sm:$0xf]
        %v2973 = vld [vmem:[#allocation3 + $0x44] sm:$0xf]
        %v2974 = vld [vmem:[#allocation3 + $0x48] sm:$0xf]
        %v2975 = vld [vmem:[#allocation3 + $0x4c] sm:$0xf]
        %v2976 = vld [vmem:[#allocation3 + $0x50] sm:$0xf]
        %v2977 = vld [vmem:[#allocation3 + $0x54] sm:$0xf]
        %v2978 = vld [vmem:[#allocation3 + $0x58] sm:$0xf]
        %v2979 = vld [vmem:[#allocation3 + $0x5c] sm:$0xf]
        %v2980 = vld [vmem:[#allocation3 + $0x60] sm:$0xf]
        %v2981 = vld [vmem:[#allocation3 + $0x64] sm:$0xf]
        %v2982 = vld [vmem:[#allocation3 + $0x68] sm:$0xf]
        %v2983 = vld [vmem:[#allocation3 + $0x6c] sm:$0xf]
        %v2984 = vld [vmem:[#allocation3 + $0x70] sm:$0xf]
        %v2985 = vld [vmem:[#allocation3 + $0x74] sm:$0xf]
        %v2986 = vld [vmem:[#allocation3 + $0x78] sm:$0xf]
        %v2987 = vld [vmem:[#allocation3 + $0x7c] sm:$0xf]
        %v2988 = vld [vmem:[#allocation3 + $0x80] sm:$0xf]
        %v2989 = vld [vmem:[#allocation3 + $0x84] sm:$0xf]
        %v2990 = vld [vmem:[#allocation3 + $0x88] sm:$0xf]
        %v2991 = vld [vmem:[#allocation3 + $0x8c] sm:$0xf]
        %v2992 = vld [vmem:[#allocation3 + $0x90] sm:$0xf]
        %v2993 = vld [vmem:[#allocation3 + $0x94] sm:$0xf]
        %v2994 = vld [vmem:[#allocation3 + $0x98] sm:$0xf]
        %v2995 = vld [vmem:[#allocation3 + $0x9c] sm:$0xf]
        %v2996 = vld [vmem:[#allocation3 + $0xa0] sm:$0xf]
        %v2997 = vld [vmem:[#allocation10] sm:$0xf]
        %v2998 = vld [vmem:[#allocation10 + $0x4] sm:$0xf]
        %s2999 = scalar_lea.vmem [#allocation10], 8
        %v3000 = vld [vmem:[%s2999] sm:$0xf]
        %v3001 = vld [vmem:[%s2999 + $0x4] sm:$0xf]
        %v3035 = vunpack.c.l.b16 %v2957
        %v3036 = vunpack.c.l.b16 %v2958
        %v3037 = vunpack.c.l.b16 %v2959
        %v3038 = vunpack.c.l.b16 %v2960
        %v3039 = vunpack.c.l.b16 %v2961
        %v3040 = vunpack.c.l.b16 %v2962
        %v3041 = vunpack.c.l.b16 %v2963
        %v3042 = vunpack.c.l.b16 %v2964
        %v3043 = vunpack.c.l.b16 %v2965
        %v3044 = vunpack.c.l.b16 %v2966
        %v3045 = vunpack.c.l.b16 %v2967
        %v3046 = vunpack.c.l.b16 %v2968
        %v3047 = vunpack.c.l.b16 %v2969
        %v3048 = vunpack.c.l.b16 %v2970
        %v3049 = vunpack.c.l.b16 %v2971
        %v3050 = vunpack.c.l.b16 %v2972
        %v3051 = vunpack.c.l.b16 %v2973
        %v3052 = vunpack.c.l.b16 %v2974
        %v3053 = vunpack.c.l.b16 %v2975
        %v3054 = vunpack.c.l.b16 %v2976
        %v3055 = vunpack.c.l.b16 %v2977
        %v3056 = vunpack.c.l.b16 %v2978
        %v3057 = vunpack.c.l.b16 %v2979
        %v3058 = vunpack.c.l.b16 %v2980
        %v3059 = vunpack.c.l.b16 %v2981
        %v3060 = vunpack.c.l.b16 %v2982
        %v3061 = vunpack.c.l.b16 %v2983
        %v3062 = vunpack.c.l.b16 %v2984
        %v3063 = vunpack.c.l.b16 %v2985
        %v3064 = vunpack.c.l.b16 %v2986
        %v3065 = vunpack.c.l.b16 %v2987
        %v3066 = vunpack.c.l.b16 %v2988
        %v3067 = vunpack.c.l.b16 %v2989
        %v3068 = vpack.c.b16 %v3036, %v3035
        %v3069 = vpack.c.b16 %v3038, %v3037
        %v3070 = vpack.c.b16 %v3040, %v3039
        %v3071 = vpack.c.b16 %v3042, %v3041
        %v3072 = vpack.c.b16 %v3044, %v3043
        %v3073 = vpack.c.b16 %v3046, %v3045
        %v3074 = vpack.c.b16 %v3048, %v3047
        %v3075 = vpack.c.b16 %v3050, %v3049
        %v3076 = vpack.c.b16 %v3052, %v3051
        %v3077 = vpack.c.b16 %v3054, %v3053
        %v3078 = vpack.c.b16 %v3056, %v3055
        %v3079 = vpack.c.b16 %v3058, %v3057
        %v3080 = vpack.c.b16 %v3060, %v3059
        %v3081 = vpack.c.b16 %v3062, %v3061
        %v3082 = vpack.c.b16 %v3064, %v3063
        %v3083 = vpack.c.b16 %v3066, %v3065
        %v3084 = vpack.c.b16 %v3067, %v3067
        %v3087 = vunpack.c.l.b16 %v3000
        %v3088 = vunpack.c.l.b16 %v3001
        %v3089 = vpack.c.b16 %v3088, %v3087
        %vm3091 = vcmask 130048
        %v3093 = vsel %vm3091, %v3068, 0
        %v3096 = vsel %vm3091, %v3069, 0
        %v3099 = vsel %vm3091, %v3070, 0
        %v3102 = vsel %vm3091, %v3071, 0
        %v3105 = vsel %vm3091, %v3072, 0
        %v3108 = vsel %vm3091, %v3073, 0
        %v3111 = vsel %vm3091, %v3074, 0
        %v3114 = vsel %vm3091, %v3075, 0
        %v3117 = vsel %vm3091, %v3076, 0
        %v3120 = vsel %vm3091, %v3077, 0
        %v3123 = vsel %vm3091, %v3078, 0
        %v3126 = vsel %vm3091, %v3079, 0
        %v3129 = vsel %vm3091, %v3080, 0
        %v3132 = vsel %vm3091, %v3081, 0
        %v3135 = vsel %vm3091, %v3082, 0
        %v3138 = vsel %vm3091, %v3083, 0
        %v3141 = vsel %vm3091, %v3084, 0
        %3143 = vmatprep.subr.bf16.mxu0 0
        %3144 = vmatpush1.bf16.msra.mxu0 0
        %3145 = vmatprep.subr.bf16.mxu0 0
        %3146 = vmatpush1.bf16.msra.mxu0 0
        %3147 = vmatprep.subr.bf16.mxu0 0
        %3148 = vmatpush1.bf16.msra.mxu0 0
        %3149 = vmatprep.subr.bf16.mxu0 0
        %3150 = vmatpush1.bf16.msra.mxu0 0
        %3151 = vmatprep.subr.bf16.mxu0 0
        %3152 = vmatpush1.bf16.msra.mxu0 0
        %3153 = vmatprep.subr.bf16.mxu0 0
        %3154 = vmatpush1.bf16.msra.mxu0 0
        %3155 = vmatprep.subr.bf16.mxu0 0
        %3156 = vmatpush1.bf16.msra.mxu0 0
        %3157 = vmatprep.subr.bf16.mxu0 0
        %3158 = vmatpush1.bf16.msra.mxu0 %v3089
        %3159 = vmatprep.subr.bf16.mxu0 0
        %3160 = vmatpush2.bf16.msra.mxu0 0
        %3161 = vmatprep.subr.bf16.mxu0 0
        %3162 = vmatpush2.bf16.msra.mxu0 0
        %3163 = vmatprep.subr.bf16.mxu0 0
        %3164 = vmatpush2.bf16.msra.mxu0 0
        %3165 = vmatprep.subr.bf16.mxu0 0
        %3166 = vmatpush2.bf16.msra.mxu0 0
        %3167 = vmatprep.subr.bf16.mxu0 0
        %3168 = vmatpush2.bf16.msra.mxu0 0
        %3169 = vmatprep.subr.bf16.mxu0 0
        %3170 = vmatpush2.bf16.msra.mxu0 0
        %3171 = vmatprep.subr.bf16.mxu0 0
        %3172 = vmatpush2.bf16.msra.mxu0 0
        %3173 = vmatprep.subr.bf16.mxu0 0
        %3174 = vmatpush2.bf16.msra.mxu0 0
        %3175 = vmatprep.mubr.bf16.mxu0 0
        %3176 = vmatmul.mubr.bf16.gmra.mxu0 %v3093
        %v3177 = vpop.f32.mrf.mxu0
        %v3178 = vadd.f32 0.0, %v3177
        %v3179 = vpop.f32.mrf.mxu0
        %v3180 = vpop.f32.mrf.mxu0
        %v3181 = vpop.f32.mrf.mxu0
        %3182 = vmatprep.mubr.bf16.mxu0 0
        %3183 = vmatmul.mubr.bf16.gmra.mxu0 %v3096
        %v3184 = vpop.f32.mrf.mxu0
        %v3185 = vpop.f32.mrf.mxu0
        %v3186 = vpop.f32.mrf.mxu0
        %v3187 = vadd.f32 0.0, %v3186
        %v3188 = vpop.f32.mrf.mxu0
        %3189 = vmatprep.mubr.bf16.mxu0 0
        %3190 = vmatmul.mubr.bf16.gmra.mxu0 %v3099
        %v3191 = vpop.f32.mrf.mxu0
        %v3192 = vpop.f32.mrf.mxu0
        %v3193 = vpop.f32.mrf.mxu0
        %v3194 = vpop.f32.mrf.mxu0
        %3195 = vmatprep.mubr.bf16.mxu0 0
        %3196 = vmatmul.mubr.bf16.gmra.mxu0 %v3102
        %v3197 = vpop.f32.mrf.mxu0
        %v3198 = vadd.f32 0.0, %v3197
        %v3199 = vpop.f32.mrf.mxu0
        %v3200 = vpop.f32.mrf.mxu0
        %v3201 = vpop.f32.mrf.mxu0
        %3202 = vmatprep.mubr.bf16.mxu0 0
        %3203 = vmatmul.mubr.bf16.gmra.mxu0 %v3105
        %v3204 = vpop.f32.mrf.mxu0
        %v3205 = vpop.f32.mrf.mxu0
        %v3206 = vpop.f32.mrf.mxu0
        %v3207 = vadd.f32 0.0, %v3206
        %v3208 = vpop.f32.mrf.mxu0
        %3209 = vmatprep.mubr.bf16.mxu0 0
        %3210 = vmatmul.mubr.bf16.gmra.mxu0 %v3108
        %v3211 = vpop.f32.mrf.mxu0
        %v3212 = vpop.f32.mrf.mxu0
        %v3213 = vpop.f32.mrf.mxu0
        %v3214 = vpop.f32.mrf.mxu0
        %3215 = vmatprep.mubr.bf16.mxu0 0
        %3216 = vmatmul.mubr.bf16.gmra.mxu0 %v3111
        %v3217 = vpop.f32.mrf.mxu0
        %v3218 = vadd.f32 0.0, %v3217
        %v3219 = vpop.f32.mrf.mxu0
        %v3220 = vpop.f32.mrf.mxu0
        %v3221 = vpop.f32.mrf.mxu0
        %3222 = vmatprep.mubr.bf16.mxu0 0
        %3223 = vmatmul.mubr.bf16.gmra.mxu0 %v3114
        %v3224 = vpop.f32.mrf.mxu0
        %v3225 = vpop.f32.mrf.mxu0
        %v3226 = vpop.f32.mrf.mxu0
        %v3227 = vadd.f32 0.0, %v3226
        %v3228 = vpop.f32.mrf.mxu0
        %3229 = vmatprep.mubr.bf16.mxu0 0
        %3230 = vmatmul.mubr.bf16.gmra.mxu0 %v3117
        %v3231 = vpop.f32.mrf.mxu0
        %v3232 = vpop.f32.mrf.mxu0
        %v3233 = vpop.f32.mrf.mxu0
        %v3234 = vpop.f32.mrf.mxu0
        %3235 = vmatprep.mubr.bf16.mxu0 0
        %3236 = vmatmul.mubr.bf16.gmra.mxu0 %v3120
        %v3237 = vpop.f32.mrf.mxu0
        %v3238 = vadd.f32 0.0, %v3237
        %v3239 = vpop.f32.mrf.mxu0
        %v3240 = vpop.f32.mrf.mxu0
        %v3241 = vpop.f32.mrf.mxu0
        %3242 = vmatprep.mubr.bf16.mxu0 0
        %3243 = vmatmul.mubr.bf16.gmra.mxu0 %v3123
        %v3244 = vpop.f32.mrf.mxu0
        %v3245 = vpop.f32.mrf.mxu0
        %v3246 = vpop.f32.mrf.mxu0
        %v3247 = vadd.f32 0.0, %v3246
        %v3248 = vpop.f32.mrf.mxu0
        %3249 = vmatprep.mubr.bf16.mxu0 0
        %3250 = vmatmul.mubr.bf16.gmra.mxu0 %v3126
        %v3251 = vpop.f32.mrf.mxu0
        %v3252 = vpop.f32.mrf.mxu0
        %v3253 = vpop.f32.mrf.mxu0
        %v3254 = vpop.f32.mrf.mxu0
        %3255 = vmatprep.mubr.bf16.mxu0 0
        %3256 = vmatmul.mubr.bf16.gmra.mxu0 %v3129
        %v3257 = vpop.f32.mrf.mxu0
        %v3258 = vpop.f32.mrf.mxu0
        %v3259 = vpop.f32.mrf.mxu0
        %v3260 = vpop.f32.mrf.mxu0
        %3261 = vmatprep.mubr.bf16.mxu0 0
        %3262 = vmatmul.mubr.bf16.gmra.mxu0 %v3132
        %v3263 = vpop.f32.mrf.mxu0
        %v3264 = vpop.f32.mrf.mxu0
        %v3265 = vpop.f32.mrf.mxu0
        %v3266 = vpop.f32.mrf.mxu0
        %3267 = vmatprep.mubr.bf16.mxu0 0
        %3268 = vmatmul.mubr.bf16.gmra.mxu0 %v3135
        %v3269 = vpop.f32.mrf.mxu0
        %v3270 = vpop.f32.mrf.mxu0
        %v3271 = vpop.f32.mrf.mxu0
        %v3272 = vpop.f32.mrf.mxu0
        %3273 = vmatprep.mubr.bf16.mxu0 0
        %3274 = vmatmul.mubr.bf16.gmra.mxu0 %v3138
        %v3275 = vpop.f32.mrf.mxu0
        %v3276 = vpop.f32.mrf.mxu0
        %v3277 = vpop.f32.mrf.mxu0
        %v3278 = vpop.f32.mrf.mxu0
        %3279 = vmatprep.mubr.bf16.mxu0 0
        %3280 = vmatmul.mubr.bf16.gmra.mxu0 %v3141
        %v3281 = vpop.f32.mrf.mxu0
        %v3282 = vpop.f32.mrf.mxu0
        %v3283 = vpop.f32.mrf.mxu0
        %v3284 = vpop.f32.mrf.mxu0
        %3285 = vdwg.mxu0
        %v3287 = vunpack.c.l.b16 %v2956
        %v3288 = vpack.c.b16 %v3035, %v3287
        %v3289 = vpack.c.b16 %v3037, %v3036
        %v3290 = vpack.c.b16 %v3039, %v3038
        %v3291 = vpack.c.b16 %v3041, %v3040
        %v3292 = vpack.c.b16 %v3043, %v3042
        %v3293 = vpack.c.b16 %v3045, %v3044
        %v3294 = vpack.c.b16 %v3047, %v3046
        %v3295 = vpack.c.b16 %v3049, %v3048
        %v3296 = vpack.c.b16 %v3051, %v3050
        %v3297 = vpack.c.b16 %v3053, %v3052
        %v3298 = vpack.c.b16 %v3055, %v3054
        %v3299 = vpack.c.b16 %v3057, %v3056
        %v3300 = vpack.c.b16 %v3059, %v3058
        %v3301 = vpack.c.b16 %v3061, %v3060
        %v3302 = vpack.c.b16 %v3063, %v3062
        %v3303 = vpack.c.b16 %v3065, %v3064
        %v3304 = vpack.c.b16 %v3067, %v3066
        %v3306 = vshrl.u32 %v3288, 16
        %v3308 = vrot.slane %v3306, 3
        %v3309 = vshll.u32 %v3288, 16
        %v3311 = vrot.slane %v3309, 4
        %v3312 = vor.u32 %v3308, %v3311
        %v3314 = vshrl.u32 %v3289, 16
        %v3316 = vrot.slane %v3314, 3
        %v3317 = vshll.u32 %v3289, 16
        %v3319 = vrot.slane %v3317, 4
        %v3320 = vor.u32 %v3316, %v3319
        %v3321 = vsel %vm863, %v3312, %v3320
        %v3323 = vshrl.u32 %v3290, 16
        %v3325 = vrot.slane %v3323, 3
        %v3326 = vshll.u32 %v3290, 16
        %v3328 = vrot.slane %v3326, 4
        %v3329 = vor.u32 %v3325, %v3328
        %v3330 = vsel %vm863, %v3320, %v3329
        %v3332 = vshrl.u32 %v3291, 16
        %v3334 = vrot.slane %v3332, 3
        %v3335 = vshll.u32 %v3291, 16
        %v3337 = vrot.slane %v3335, 4
        %v3338 = vor.u32 %v3334, %v3337
        %v3339 = vsel %vm863, %v3329, %v3338
        %v3341 = vshrl.u32 %v3292, 16
        %v3343 = vrot.slane %v3341, 3
        %v3344 = vshll.u32 %v3292, 16
        %v3346 = vrot.slane %v3344, 4
        %v3347 = vor.u32 %v3343, %v3346
        %v3348 = vsel %vm863, %v3338, %v3347
        %v3350 = vshrl.u32 %v3293, 16
        %v3352 = vrot.slane %v3350, 3
        %v3353 = vshll.u32 %v3293, 16
        %v3355 = vrot.slane %v3353, 4
        %v3356 = vor.u32 %v3352, %v3355
        %v3357 = vsel %vm863, %v3347, %v3356
        %v3359 = vshrl.u32 %v3294, 16
        %v3361 = vrot.slane %v3359, 3
        %v3362 = vshll.u32 %v3294, 16
        %v3364 = vrot.slane %v3362, 4
        %v3365 = vor.u32 %v3361, %v3364
        %v3366 = vsel %vm863, %v3356, %v3365
        %v3368 = vshrl.u32 %v3295, 16
        %v3370 = vrot.slane %v3368, 3
        %v3371 = vshll.u32 %v3295, 16
        %v3373 = vrot.slane %v3371, 4
        %v3374 = vor.u32 %v3370, %v3373
        %v3375 = vsel %vm863, %v3365, %v3374
        %v3377 = vshrl.u32 %v3296, 16
        %v3379 = vrot.slane %v3377, 3
        %v3380 = vshll.u32 %v3296, 16
        %v3382 = vrot.slane %v3380, 4
        %v3383 = vor.u32 %v3379, %v3382
        %v3384 = vsel %vm863, %v3374, %v3383
        %v3386 = vshrl.u32 %v3297, 16
        %v3388 = vrot.slane %v3386, 3
        %v3389 = vshll.u32 %v3297, 16
        %v3391 = vrot.slane %v3389, 4
        %v3392 = vor.u32 %v3388, %v3391
        %v3393 = vsel %vm863, %v3383, %v3392
        %v3395 = vshrl.u32 %v3298, 16
        %v3397 = vrot.slane %v3395, 3
        %v3398 = vshll.u32 %v3298, 16
        %v3400 = vrot.slane %v3398, 4
        %v3401 = vor.u32 %v3397, %v3400
        %v3402 = vsel %vm863, %v3392, %v3401
        %v3404 = vshrl.u32 %v3299, 16
        %v3406 = vrot.slane %v3404, 3
        %v3407 = vshll.u32 %v3299, 16
        %v3409 = vrot.slane %v3407, 4
        %v3410 = vor.u32 %v3406, %v3409
        %v3411 = vsel %vm863, %v3401, %v3410
        %v3413 = vshrl.u32 %v3300, 16
        %v3415 = vrot.slane %v3413, 3
        %v3416 = vshll.u32 %v3300, 16
        %v3418 = vrot.slane %v3416, 4
        %v3419 = vor.u32 %v3415, %v3418
        %v3420 = vsel %vm863, %v3410, %v3419
        %v3422 = vshrl.u32 %v3301, 16
        %v3424 = vrot.slane %v3422, 3
        %v3425 = vshll.u32 %v3301, 16
        %v3427 = vrot.slane %v3425, 4
        %v3428 = vor.u32 %v3424, %v3427
        %v3429 = vsel %vm863, %v3419, %v3428
        %v3431 = vshrl.u32 %v3302, 16
        %v3433 = vrot.slane %v3431, 3
        %v3434 = vshll.u32 %v3302, 16
        %v3436 = vrot.slane %v3434, 4
        %v3437 = vor.u32 %v3433, %v3436
        %v3438 = vsel %vm863, %v3428, %v3437
        %v3440 = vshrl.u32 %v3303, 16
        %v3442 = vrot.slane %v3440, 3
        %v3443 = vshll.u32 %v3303, 16
        %v3445 = vrot.slane %v3443, 4
        %v3446 = vor.u32 %v3442, %v3445
        %v3447 = vsel %vm863, %v3437, %v3446
        %v3449 = vshrl.u32 %v3304, 16
        %v3451 = vrot.slane %v3449, 3
        %v3452 = vshll.u32 %v3304, 16
        %v3454 = vrot.slane %v3452, 4
        %v3455 = vor.u32 %v3451, %v3454
        %v3456 = vsel %vm863, %v3446, %v3455
        %v3459 = vunpack.c.l.b16 %v2997
        %v3460 = vunpack.c.l.b16 %v2998
        %v3461 = vpack.c.b16 %v3460, %v3459
        %v3464 = vsel %vm3091, %v3321, 0
        %v3467 = vsel %vm3091, %v3330, 0
        %v3470 = vsel %vm3091, %v3339, 0
        %v3473 = vsel %vm3091, %v3348, 0
        %v3476 = vsel %vm3091, %v3357, 0
        %v3479 = vsel %vm3091, %v3366, 0
        %v3482 = vsel %vm3091, %v3375, 0
        %v3485 = vsel %vm3091, %v3384, 0
        %v3488 = vsel %vm3091, %v3393, 0
        %v3491 = vsel %vm3091, %v3402, 0
        %v3494 = vsel %vm3091, %v3411, 0
        %v3497 = vsel %vm3091, %v3420, 0
        %v3500 = vsel %vm3091, %v3429, 0
        %v3503 = vsel %vm3091, %v3438, 0
        %v3506 = vsel %vm3091, %v3447, 0
        %v3509 = vsel %vm3091, %v3456, 0
        %v3512 = vsel %vm3091, %v3455, 0
        %3514 = vmatprep.subr.bf16.mxu0 0
        %3515 = vmatpush1.bf16.msra.mxu0 0
        %3516 = vmatprep.subr.bf16.mxu0 0
        %3517 = vmatpush1.bf16.msra.mxu0 0
        %3518 = vmatprep.subr.bf16.mxu0 0
        %3519 = vmatpush1.bf16.msra.mxu0 0
        %3520 = vmatprep.subr.bf16.mxu0 0
        %3521 = vmatpush1.bf16.msra.mxu0 0
        %3522 = vmatprep.subr.bf16.mxu0 0
        %3523 = vmatpush1.bf16.msra.mxu0 0
        %3524 = vmatprep.subr.bf16.mxu0 0
        %3525 = vmatpush1.bf16.msra.mxu0 0
        %3526 = vmatprep.subr.bf16.mxu0 0
        %3527 = vmatpush1.bf16.msra.mxu0 0
        %3528 = vmatprep.subr.bf16.mxu0 0
        %3529 = vmatpush1.bf16.msra.mxu0 %v3461
        %3530 = vmatprep.subr.bf16.mxu0 0
        %3531 = vmatpush2.bf16.msra.mxu0 0
        %3532 = vmatprep.subr.bf16.mxu0 0
        %3533 = vmatpush2.bf16.msra.mxu0 0
        %3534 = vmatprep.subr.bf16.mxu0 0
        %3535 = vmatpush2.bf16.msra.mxu0 0
        %3536 = vmatprep.subr.bf16.mxu0 0
        %3537 = vmatpush2.bf16.msra.mxu0 0
        %3538 = vmatprep.subr.bf16.mxu0 0
        %3539 = vmatpush2.bf16.msra.mxu0 0
        %3540 = vmatprep.subr.bf16.mxu0 0
        %3541 = vmatpush2.bf16.msra.mxu0 0
        %3542 = vmatprep.subr.bf16.mxu0 0
        %3543 = vmatpush2.bf16.msra.mxu0 0
        %3544 = vmatprep.subr.bf16.mxu0 0
        %3545 = vmatpush2.bf16.msra.mxu0 0
        %3546 = vmatprep.mubr.bf16.mxu0 0
        %3547 = vmatmul.mubr.bf16.gmra.mxu0 %v3464
        %v3548 = vpop.f32.mrf.mxu0
        %v3549 = vadd.f32 %v3178, %v3548
        %v3550 = vpop.f32.mrf.mxu0
        %v3551 = vpop.f32.mrf.mxu0
        %v3552 = vpop.f32.mrf.mxu0
        %3553 = vmatprep.mubr.bf16.mxu0 0
        %3554 = vmatmul.mubr.bf16.gmra.mxu0 %v3467
        %v3555 = vpop.f32.mrf.mxu0
        %v3556 = vpop.f32.mrf.mxu0
        %v3557 = vpop.f32.mrf.mxu0
        %v3558 = vadd.f32 %v3187, %v3557
        %v3559 = vpop.f32.mrf.mxu0
        %3560 = vmatprep.mubr.bf16.mxu0 0
        %3561 = vmatmul.mubr.bf16.gmra.mxu0 %v3470
        %v3562 = vpop.f32.mrf.mxu0
        %v3563 = vpop.f32.mrf.mxu0
        %v3564 = vpop.f32.mrf.mxu0
        %v3565 = vpop.f32.mrf.mxu0
        %3566 = vmatprep.mubr.bf16.mxu0 0
        %3567 = vmatmul.mubr.bf16.gmra.mxu0 %v3473
        %v3568 = vpop.f32.mrf.mxu0
        %v3569 = vadd.f32 %v3198, %v3568
        %v3570 = vpop.f32.mrf.mxu0
        %v3571 = vpop.f32.mrf.mxu0
        %v3572 = vpop.f32.mrf.mxu0
        %3573 = vmatprep.mubr.bf16.mxu0 0
        %3574 = vmatmul.mubr.bf16.gmra.mxu0 %v3476
        %v3575 = vpop.f32.mrf.mxu0
        %v3576 = vpop.f32.mrf.mxu0
        %v3577 = vpop.f32.mrf.mxu0
        %v3578 = vadd.f32 %v3207, %v3577
        %v3579 = vpop.f32.mrf.mxu0
        %3580 = vmatprep.mubr.bf16.mxu0 0
        %3581 = vmatmul.mubr.bf16.gmra.mxu0 %v3479
        %v3582 = vpop.f32.mrf.mxu0
        %v3583 = vpop.f32.mrf.mxu0
        %v3584 = vpop.f32.mrf.mxu0
        %v3585 = vpop.f32.mrf.mxu0
        %3586 = vmatprep.mubr.bf16.mxu0 0
        %3587 = vmatmul.mubr.bf16.gmra.mxu0 %v3482
        %v3588 = vpop.f32.mrf.mxu0
        %v3589 = vadd.f32 %v3218, %v3588
        %v3590 = vpop.f32.mrf.mxu0
        %v3591 = vpop.f32.mrf.mxu0
        %v3592 = vpop.f32.mrf.mxu0
        %3593 = vmatprep.mubr.bf16.mxu0 0
        %3594 = vmatmul.mubr.bf16.gmra.mxu0 %v3485
        %v3595 = vpop.f32.mrf.mxu0
        %v3596 = vpop.f32.mrf.mxu0
        %v3597 = vpop.f32.mrf.mxu0
        %v3598 = vadd.f32 %v3227, %v3597
        %v3599 = vpop.f32.mrf.mxu0
        %3600 = vmatprep.mubr.bf16.mxu0 0
        %3601 = vmatmul.mubr.bf16.gmra.mxu0 %v3488
        %v3602 = vpop.f32.mrf.mxu0
        %v3603 = vpop.f32.mrf.mxu0
        %v3604 = vpop.f32.mrf.mxu0
        %v3605 = vpop.f32.mrf.mxu0
        %3606 = vmatprep.mubr.bf16.mxu0 0
        %3607 = vmatmul.mubr.bf16.gmra.mxu0 %v3491
        %v3608 = vpop.f32.mrf.mxu0
        %v3609 = vadd.f32 %v3238, %v3608
        %v3610 = vpop.f32.mrf.mxu0
        %v3611 = vpop.f32.mrf.mxu0
        %v3612 = vpop.f32.mrf.mxu0
        %3613 = vmatprep.mubr.bf16.mxu0 0
        %3614 = vmatmul.mubr.bf16.gmra.mxu0 %v3494
        %v3615 = vpop.f32.mrf.mxu0
        %v3616 = vpop.f32.mrf.mxu0
        %v3617 = vpop.f32.mrf.mxu0
        %v3618 = vadd.f32 %v3247, %v3617
        %v3619 = vpop.f32.mrf.mxu0
        %3620 = vmatprep.mubr.bf16.mxu0 0
        %3621 = vmatmul.mubr.bf16.gmra.mxu0 %v3497
        %v3622 = vpop.f32.mrf.mxu0
        %v3623 = vpop.f32.mrf.mxu0
        %v3624 = vpop.f32.mrf.mxu0
        %v3625 = vpop.f32.mrf.mxu0
        %3626 = vmatprep.mubr.bf16.mxu0 0
        %3627 = vmatmul.mubr.bf16.gmra.mxu0 %v3500
        %v3628 = vpop.f32.mrf.mxu0
        %v3629 = vpop.f32.mrf.mxu0
        %v3630 = vpop.f32.mrf.mxu0
        %v3631 = vpop.f32.mrf.mxu0
        %3632 = vmatprep.mubr.bf16.mxu0 0
        %3633 = vmatmul.mubr.bf16.gmra.mxu0 %v3503
        %v3634 = vpop.f32.mrf.mxu0
        %v3635 = vpop.f32.mrf.mxu0
        %v3636 = vpop.f32.mrf.mxu0
        %v3637 = vpop.f32.mrf.mxu0
        %3638 = vmatprep.mubr.bf16.mxu0 0
        %3639 = vmatmul.mubr.bf16.gmra.mxu0 %v3506
        %v3640 = vpop.f32.mrf.mxu0
        %v3641 = vpop.f32.mrf.mxu0
        %v3642 = vpop.f32.mrf.mxu0
        %v3643 = vpop.f32.mrf.mxu0
        %3644 = vmatprep.mubr.bf16.mxu0 0
        %3645 = vmatmul.mubr.bf16.gmra.mxu0 %v3509
        %v3646 = vpop.f32.mrf.mxu0
        %v3647 = vpop.f32.mrf.mxu0
        %v3648 = vpop.f32.mrf.mxu0
        %v3649 = vpop.f32.mrf.mxu0
        %3650 = vmatprep.mubr.bf16.mxu0 0
        %3651 = vmatmul.mubr.bf16.gmra.mxu0 %v3512
        %v3652 = vpop.f32.mrf.mxu0
        %v3653 = vpop.f32.mrf.mxu0
        %v3654 = vpop.f32.mrf.mxu0
        %v3655 = vpop.f32.mrf.mxu0
        %3656 = vdwg.mxu0
        %s3657 = scalar_lea.vmem [#allocation10], 16
        %v3658 = vld [vmem:[%s3657] sm:$0xf]
        %v3659 = vld [vmem:[%s3657 + $0x4] sm:$0xf]
        %v3661 = vunpack.c.l.b16 %v2990
        %v3662 = vpack.c.b16 %v3661, %v3067
        %v3663 = vshrl.u32 %v3068, 16
        %v3665 = vshll.u32 %v3068, 16
        %v3667 = vrot.slane %v3665, 1
        %v3668 = vor.u32 %v3663, %v3667
        %v3669 = vshll.u32 %v3069, 16
        %v3671 = vrot.slane %v3669, 1
        %v3672 = vsel %vm1230, %v3668, %v3671
        %v3673 = vshrl.u32 %v3069, 16
        %v3675 = vor.u32 %v3673, %v3671
        %v3676 = vshll.u32 %v3070, 16
        %v3678 = vrot.slane %v3676, 1
        %v3679 = vsel %vm1230, %v3675, %v3678
        %v3680 = vshrl.u32 %v3070, 16
        %v3682 = vor.u32 %v3680, %v3678
        %v3683 = vshll.u32 %v3071, 16
        %v3685 = vrot.slane %v3683, 1
        %v3686 = vsel %vm1230, %v3682, %v3685
        %v3687 = vshrl.u32 %v3071, 16
        %v3689 = vor.u32 %v3687, %v3685
        %v3690 = vshll.u32 %v3072, 16
        %v3692 = vrot.slane %v3690, 1
        %v3693 = vsel %vm1230, %v3689, %v3692
        %v3694 = vshrl.u32 %v3072, 16
        %v3696 = vor.u32 %v3694, %v3692
        %v3697 = vshll.u32 %v3073, 16
        %v3699 = vrot.slane %v3697, 1
        %v3700 = vsel %vm1230, %v3696, %v3699
        %v3701 = vshrl.u32 %v3073, 16
        %v3703 = vor.u32 %v3701, %v3699
        %v3704 = vshll.u32 %v3074, 16
        %v3706 = vrot.slane %v3704, 1
        %v3707 = vsel %vm1230, %v3703, %v3706
        %v3708 = vshrl.u32 %v3074, 16
        %v3710 = vor.u32 %v3708, %v3706
        %v3711 = vshll.u32 %v3075, 16
        %v3713 = vrot.slane %v3711, 1
        %v3714 = vsel %vm1230, %v3710, %v3713
        %v3715 = vshrl.u32 %v3075, 16
        %v3717 = vor.u32 %v3715, %v3713
        %v3718 = vshll.u32 %v3076, 16
        %v3720 = vrot.slane %v3718, 1
        %v3721 = vsel %vm1230, %v3717, %v3720
        %v3722 = vshrl.u32 %v3076, 16
        %v3724 = vor.u32 %v3722, %v3720
        %v3725 = vshll.u32 %v3077, 16
        %v3727 = vrot.slane %v3725, 1
        %v3728 = vsel %vm1230, %v3724, %v3727
        %v3729 = vshrl.u32 %v3077, 16
        %v3731 = vor.u32 %v3729, %v3727
        %v3732 = vshll.u32 %v3078, 16
        %v3734 = vrot.slane %v3732, 1
        %v3735 = vsel %vm1230, %v3731, %v3734
        %v3736 = vshrl.u32 %v3078, 16
        %v3738 = vor.u32 %v3736, %v3734
        %v3739 = vshll.u32 %v3079, 16
        %v3741 = vrot.slane %v3739, 1
        %v3742 = vsel %vm1230, %v3738, %v3741
        %v3743 = vshrl.u32 %v3079, 16
        %v3745 = vor.u32 %v3743, %v3741
        %v3746 = vshll.u32 %v3080, 16
        %v3748 = vrot.slane %v3746, 1
        %v3749 = vsel %vm1230, %v3745, %v3748
        %v3750 = vshrl.u32 %v3080, 16
        %v3752 = vor.u32 %v3750, %v3748
        %v3753 = vshll.u32 %v3081, 16
        %v3755 = vrot.slane %v3753, 1
        %v3756 = vsel %vm1230, %v3752, %v3755
        %v3757 = vshrl.u32 %v3081, 16
        %v3759 = vor.u32 %v3757, %v3755
        %v3760 = vshll.u32 %v3082, 16
        %v3762 = vrot.slane %v3760, 1
        %v3763 = vsel %vm1230, %v3759, %v3762
        %v3764 = vshrl.u32 %v3082, 16
        %v3766 = vor.u32 %v3764, %v3762
        %v3767 = vshll.u32 %v3083, 16
        %v3769 = vrot.slane %v3767, 1
        %v3770 = vsel %vm1230, %v3766, %v3769
        %v3771 = vshrl.u32 %v3083, 16
        %v3773 = vor.u32 %v3771, %v3769
        %v3775 = vshll.u32 %v3662, 16
        %v3777 = vrot.slane %v3775, 1
        %v3778 = vsel %vm1230, %v3773, %v3777
        %v3779 = vshrl.u32 %v3662, 16
        %v3781 = vor.u32 %v3779, %v3777
        %v3784 = vunpack.c.l.b16 %v3658
        %v3785 = vunpack.c.l.b16 %v3659
        %v3786 = vpack.c.b16 %v3785, %v3784
        %v3789 = vsel %vm3091, %v3672, 0
        %v3792 = vsel %vm3091, %v3679, 0
        %v3795 = vsel %vm3091, %v3686, 0
        %v3798 = vsel %vm3091, %v3693, 0
        %v3801 = vsel %vm3091, %v3700, 0
        %v3804 = vsel %vm3091, %v3707, 0
        %v3807 = vsel %vm3091, %v3714, 0
        %v3810 = vsel %vm3091, %v3721, 0
        %v3813 = vsel %vm3091, %v3728, 0
        %v3816 = vsel %vm3091, %v3735, 0
        %v3819 = vsel %vm3091, %v3742, 0
        %v3822 = vsel %vm3091, %v3749, 0
        %v3825 = vsel %vm3091, %v3756, 0
        %v3828 = vsel %vm3091, %v3763, 0
        %v3831 = vsel %vm3091, %v3770, 0
        %v3834 = vsel %vm3091, %v3778, 0
        %v3837 = vsel %vm3091, %v3781, 0
        %3839 = vmatprep.subr.bf16.mxu0 0
        %3840 = vmatpush1.bf16.msra.mxu0 0
        %3841 = vmatprep.subr.bf16.mxu0 0
        %3842 = vmatpush1.bf16.msra.mxu0 0
        %3843 = vmatprep.subr.bf16.mxu0 0
        %3844 = vmatpush1.bf16.msra.mxu0 0
        %3845 = vmatprep.subr.bf16.mxu0 0
        %3846 = vmatpush1.bf16.msra.mxu0 0
        %3847 = vmatprep.subr.bf16.mxu0 0
        %3848 = vmatpush1.bf16.msra.mxu0 0
        %3849 = vmatprep.subr.bf16.mxu0 0
        %3850 = vmatpush1.bf16.msra.mxu0 0
        %3851 = vmatprep.subr.bf16.mxu0 0
        %3852 = vmatpush1.bf16.msra.mxu0 0
        %3853 = vmatprep.subr.bf16.mxu0 0
        %3854 = vmatpush1.bf16.msra.mxu0 %v3786
        %3855 = vmatprep.subr.bf16.mxu0 0
        %3856 = vmatpush2.bf16.msra.mxu0 0
        %3857 = vmatprep.subr.bf16.mxu0 0
        %3858 = vmatpush2.bf16.msra.mxu0 0
        %3859 = vmatprep.subr.bf16.mxu0 0
        %3860 = vmatpush2.bf16.msra.mxu0 0
        %3861 = vmatprep.subr.bf16.mxu0 0
        %3862 = vmatpush2.bf16.msra.mxu0 0
        %3863 = vmatprep.subr.bf16.mxu0 0
        %3864 = vmatpush2.bf16.msra.mxu0 0
        %3865 = vmatprep.subr.bf16.mxu0 0
        %3866 = vmatpush2.bf16.msra.mxu0 0
        %3867 = vmatprep.subr.bf16.mxu0 0
        %3868 = vmatpush2.bf16.msra.mxu0 0
        %3869 = vmatprep.subr.bf16.mxu0 0
        %3870 = vmatpush2.bf16.msra.mxu0 0
        %3871 = vmatprep.mubr.bf16.mxu0 0
        %3872 = vmatmul.mubr.bf16.gmra.mxu0 %v3789
        %v3873 = vpop.f32.mrf.mxu0
        %v3874 = vadd.f32 0.0, %v3873
        %v3875 = vpop.f32.mrf.mxu0
        %v3876 = vpop.f32.mrf.mxu0
        %v3877 = vpop.f32.mrf.mxu0
        %3878 = vmatprep.mubr.bf16.mxu0 0
        %3879 = vmatmul.mubr.bf16.gmra.mxu0 %v3792
        %v3880 = vpop.f32.mrf.mxu0
        %v3881 = vpop.f32.mrf.mxu0
        %v3882 = vpop.f32.mrf.mxu0
        %v3883 = vadd.f32 0.0, %v3882
        %v3884 = vpop.f32.mrf.mxu0
        %3885 = vmatprep.mubr.bf16.mxu0 0
        %3886 = vmatmul.mubr.bf16.gmra.mxu0 %v3795
        %v3887 = vpop.f32.mrf.mxu0
        %v3888 = vpop.f32.mrf.mxu0
        %v3889 = vpop.f32.mrf.mxu0
        %v3890 = vpop.f32.mrf.mxu0
        %3891 = vmatprep.mubr.bf16.mxu0 0
        %3892 = vmatmul.mubr.bf16.gmra.mxu0 %v3798
        %v3893 = vpop.f32.mrf.mxu0
        %v3894 = vadd.f32 0.0, %v3893
        %v3895 = vpop.f32.mrf.mxu0
        %v3896 = vpop.f32.mrf.mxu0
        %v3897 = vpop.f32.mrf.mxu0
        %3898 = vmatprep.mubr.bf16.mxu0 0
        %3899 = vmatmul.mubr.bf16.gmra.mxu0 %v3801
        %v3900 = vpop.f32.mrf.mxu0
        %v3901 = vpop.f32.mrf.mxu0
        %v3902 = vpop.f32.mrf.mxu0
        %v3903 = vadd.f32 0.0, %v3902
        %v3904 = vpop.f32.mrf.mxu0
        %3905 = vmatprep.mubr.bf16.mxu0 0
        %3906 = vmatmul.mubr.bf16.gmra.mxu0 %v3804
        %v3907 = vpop.f32.mrf.mxu0
        %v3908 = vpop.f32.mrf.mxu0
        %v3909 = vpop.f32.mrf.mxu0
        %v3910 = vpop.f32.mrf.mxu0
        %3911 = vmatprep.mubr.bf16.mxu0 0
        %3912 = vmatmul.mubr.bf16.gmra.mxu0 %v3807
        %v3913 = vpop.f32.mrf.mxu0
        %v3914 = vadd.f32 0.0, %v3913
        %v3915 = vpop.f32.mrf.mxu0
        %v3916 = vpop.f32.mrf.mxu0
        %v3917 = vpop.f32.mrf.mxu0
        %3918 = vmatprep.mubr.bf16.mxu0 0
        %3919 = vmatmul.mubr.bf16.gmra.mxu0 %v3810
        %v3920 = vpop.f32.mrf.mxu0
        %v3921 = vpop.f32.mrf.mxu0
        %v3922 = vpop.f32.mrf.mxu0
        %v3923 = vadd.f32 0.0, %v3922
        %v3924 = vpop.f32.mrf.mxu0
        %3925 = vmatprep.mubr.bf16.mxu0 0
        %3926 = vmatmul.mubr.bf16.gmra.mxu0 %v3813
        %v3927 = vpop.f32.mrf.mxu0
        %v3928 = vpop.f32.mrf.mxu0
        %v3929 = vpop.f32.mrf.mxu0
        %v3930 = vpop.f32.mrf.mxu0
        %3931 = vmatprep.mubr.bf16.mxu0 0
        %3932 = vmatmul.mubr.bf16.gmra.mxu0 %v3816
        %v3933 = vpop.f32.mrf.mxu0
        %v3934 = vadd.f32 0.0, %v3933
        %v3935 = vpop.f32.mrf.mxu0
        %v3936 = vpop.f32.mrf.mxu0
        %v3937 = vpop.f32.mrf.mxu0
        %3938 = vmatprep.mubr.bf16.mxu0 0
        %3939 = vmatmul.mubr.bf16.gmra.mxu0 %v3819
        %v3940 = vpop.f32.mrf.mxu0
        %v3941 = vpop.f32.mrf.mxu0
        %v3942 = vpop.f32.mrf.mxu0
        %v3943 = vadd.f32 0.0, %v3942
        %v3944 = vpop.f32.mrf.mxu0
        %3945 = vmatprep.mubr.bf16.mxu0 0
        %3946 = vmatmul.mubr.bf16.gmra.mxu0 %v3822
        %v3947 = vpop.f32.mrf.mxu0
        %v3948 = vpop.f32.mrf.mxu0
        %v3949 = vpop.f32.mrf.mxu0
        %v3950 = vpop.f32.mrf.mxu0
        %3951 = vmatprep.mubr.bf16.mxu0 0
        %3952 = vmatmul.mubr.bf16.gmra.mxu0 %v3825
        %v3953 = vpop.f32.mrf.mxu0
        %v3954 = vpop.f32.mrf.mxu0
        %v3955 = vpop.f32.mrf.mxu0
        %v3956 = vpop.f32.mrf.mxu0
        %3957 = vmatprep.mubr.bf16.mxu0 0
        %3958 = vmatmul.mubr.bf16.gmra.mxu0 %v3828
        %v3959 = vpop.f32.mrf.mxu0
        %v3960 = vpop.f32.mrf.mxu0
        %v3961 = vpop.f32.mrf.mxu0
        %v3962 = vpop.f32.mrf.mxu0
        %3963 = vmatprep.mubr.bf16.mxu0 0
        %3964 = vmatmul.mubr.bf16.gmra.mxu0 %v3831
        %v3965 = vpop.f32.mrf.mxu0
        %v3966 = vpop.f32.mrf.mxu0
        %v3967 = vpop.f32.mrf.mxu0
        %v3968 = vpop.f32.mrf.mxu0
        %3969 = vmatprep.mubr.bf16.mxu0 0
        %3970 = vmatmul.mubr.bf16.gmra.mxu0 %v3834
        %v3971 = vpop.f32.mrf.mxu0
        %v3972 = vpop.f32.mrf.mxu0
        %v3973 = vpop.f32.mrf.mxu0
        %v3974 = vpop.f32.mrf.mxu0
        %3975 = vmatprep.mubr.bf16.mxu0 0
        %3976 = vmatmul.mubr.bf16.gmra.mxu0 %v3837
        %v3977 = vpop.f32.mrf.mxu0
        %v3978 = vpop.f32.mrf.mxu0
        %v3979 = vpop.f32.mrf.mxu0
        %v3980 = vpop.f32.mrf.mxu0
        %3981 = vdwg.mxu0
        %v3982 = vadd.f32 %v3549, %v3874
        %v3983 = vadd.f32 %v3558, %v3883
        %v3984 = vadd.f32 %v3569, %v3894
        %v3985 = vadd.f32 %v3578, %v3903
        %v3986 = vadd.f32 %v3589, %v3914
        %v3987 = vadd.f32 %v3598, %v3923
        %v3988 = vadd.f32 %v3609, %v3934
        %v3989 = vadd.f32 %v3618, %v3943
        %s3990 = scalar_lea.vmem [#allocation10], 24
        %v3991 = vld [vmem:[%s3990] sm:$0xf]
        %v3992 = vld [vmem:[%s3990 + $0x4] sm:$0xf]
        %v3995 = vunpack.c.l.b16 %v2991
        %v3996 = vunpack.c.l.b16 %v2992
        %v3997 = vpack.c.b16 %v3996, %v3995
        %v3998 = vrot.slane %v3673, 3
        %v3999 = vrot.slane %v3669, 4
        %v4000 = vor.u32 %v3998, %v3999
        %v4001 = vrot.slane %v3680, 3
        %v4002 = vrot.slane %v3676, 4
        %v4003 = vor.u32 %v4001, %v4002
        %v4004 = vsel %vm863, %v4000, %v4003
        %v4005 = vrot.slane %v3687, 3
        %v4006 = vrot.slane %v3683, 4
        %v4007 = vor.u32 %v4005, %v4006
        %v4008 = vsel %vm863, %v4003, %v4007
        %v4009 = vrot.slane %v3694, 3
        %v4010 = vrot.slane %v3690, 4
        %v4011 = vor.u32 %v4009, %v4010
        %v4012 = vsel %vm863, %v4007, %v4011
        %v4013 = vrot.slane %v3701, 3
        %v4014 = vrot.slane %v3697, 4
        %v4015 = vor.u32 %v4013, %v4014
        %v4016 = vsel %vm863, %v4011, %v4015
        %v4017 = vrot.slane %v3708, 3
        %v4018 = vrot.slane %v3704, 4
        %v4019 = vor.u32 %v4017, %v4018
        %v4020 = vsel %vm863, %v4015, %v4019
        %v4021 = vrot.slane %v3715, 3
        %v4022 = vrot.slane %v3711, 4
        %v4023 = vor.u32 %v4021, %v4022
        %v4024 = vsel %vm863, %v4019, %v4023
        %v4025 = vrot.slane %v3722, 3
        %v4026 = vrot.slane %v3718, 4
        %v4027 = vor.u32 %v4025, %v4026
        %v4028 = vsel %vm863, %v4023, %v4027
        %v4029 = vrot.slane %v3729, 3
        %v4030 = vrot.slane %v3725, 4
        %v4031 = vor.u32 %v4029, %v4030
        %v4032 = vsel %vm863, %v4027, %v4031
        %v4033 = vrot.slane %v3736, 3
        %v4034 = vrot.slane %v3732, 4
        %v4035 = vor.u32 %v4033, %v4034
        %v4036 = vsel %vm863, %v4031, %v4035
        %v4037 = vrot.slane %v3743, 3
        %v4038 = vrot.slane %v3739, 4
        %v4039 = vor.u32 %v4037, %v4038
        %v4040 = vsel %vm863, %v4035, %v4039
        %v4041 = vrot.slane %v3750, 3
        %v4042 = vrot.slane %v3746, 4
        %v4043 = vor.u32 %v4041, %v4042
        %v4044 = vsel %vm863, %v4039, %v4043
        %v4045 = vrot.slane %v3757, 3
        %v4046 = vrot.slane %v3753, 4
        %v4047 = vor.u32 %v4045, %v4046
        %v4048 = vsel %vm863, %v4043, %v4047
        %v4049 = vrot.slane %v3764, 3
        %v4050 = vrot.slane %v3760, 4
        %v4051 = vor.u32 %v4049, %v4050
        %v4052 = vsel %vm863, %v4047, %v4051
        %v4053 = vrot.slane %v3771, 3
        %v4054 = vrot.slane %v3767, 4
        %v4055 = vor.u32 %v4053, %v4054
        %v4056 = vsel %vm863, %v4051, %v4055
        %v4057 = vrot.slane %v3779, 3
        %v4058 = vrot.slane %v3775, 4
        %v4059 = vor.u32 %v4057, %v4058
        %v4060 = vsel %vm863, %v4055, %v4059
        %v4062 = vshrl.u32 %v3997, 16
        %v4064 = vrot.slane %v4062, 3
        %v4065 = vshll.u32 %v3997, 16
        %v4067 = vrot.slane %v4065, 4
        %v4068 = vor.u32 %v4064, %v4067
        %v4069 = vsel %vm863, %v4059, %v4068
        %v4072 = vunpack.c.l.b16 %v3991
        %v4073 = vunpack.c.l.b16 %v3992
        %v4074 = vpack.c.b16 %v4073, %v4072
        %v4077 = vsel %vm3091, %v4004, 0
        %v4080 = vsel %vm3091, %v4008, 0
        %v4083 = vsel %vm3091, %v4012, 0
        %v4086 = vsel %vm3091, %v4016, 0
        %v4089 = vsel %vm3091, %v4020, 0
        %v4092 = vsel %vm3091, %v4024, 0
        %v4095 = vsel %vm3091, %v4028, 0
        %v4098 = vsel %vm3091, %v4032, 0
        %v4101 = vsel %vm3091, %v4036, 0
        %v4104 = vsel %vm3091, %v4040, 0
        %v4107 = vsel %vm3091, %v4044, 0
        %v4110 = vsel %vm3091, %v4048, 0
        %v4113 = vsel %vm3091, %v4052, 0
        %v4116 = vsel %vm3091, %v4056, 0
        %v4119 = vsel %vm3091, %v4060, 0
        %v4122 = vsel %vm3091, %v4069, 0
        %v4125 = vsel %vm3091, %v4068, 0
        %4127 = vmatprep.subr.bf16.mxu0 0
        %4128 = vmatpush1.bf16.msra.mxu0 0
        %4129 = vmatprep.subr.bf16.mxu0 0
        %4130 = vmatpush1.bf16.msra.mxu0 0
        %4131 = vmatprep.subr.bf16.mxu0 0
        %4132 = vmatpush1.bf16.msra.mxu0 0
        %4133 = vmatprep.subr.bf16.mxu0 0
        %4134 = vmatpush1.bf16.msra.mxu0 0
        %4135 = vmatprep.subr.bf16.mxu0 0
        %4136 = vmatpush1.bf16.msra.mxu0 0
        %4137 = vmatprep.subr.bf16.mxu0 0
        %4138 = vmatpush1.bf16.msra.mxu0 0
        %4139 = vmatprep.subr.bf16.mxu0 0
        %4140 = vmatpush1.bf16.msra.mxu0 0
        %4141 = vmatprep.subr.bf16.mxu0 0
        %4142 = vmatpush1.bf16.msra.mxu0 %v4074
        %4143 = vmatprep.subr.bf16.mxu0 0
        %4144 = vmatpush2.bf16.msra.mxu0 0
        %4145 = vmatprep.subr.bf16.mxu0 0
        %4146 = vmatpush2.bf16.msra.mxu0 0
        %4147 = vmatprep.subr.bf16.mxu0 0
        %4148 = vmatpush2.bf16.msra.mxu0 0
        %4149 = vmatprep.subr.bf16.mxu0 0
        %4150 = vmatpush2.bf16.msra.mxu0 0
        %4151 = vmatprep.subr.bf16.mxu0 0
        %4152 = vmatpush2.bf16.msra.mxu0 0
        %4153 = vmatprep.subr.bf16.mxu0 0
        %4154 = vmatpush2.bf16.msra.mxu0 0
        %4155 = vmatprep.subr.bf16.mxu0 0
        %4156 = vmatpush2.bf16.msra.mxu0 0
        %4157 = vmatprep.subr.bf16.mxu0 0
        %4158 = vmatpush2.bf16.msra.mxu0 0
        %4159 = vmatprep.mubr.bf16.mxu0 0
        %4160 = vmatmul.mubr.bf16.gmra.mxu0 %v4077
        %v4161 = vpop.f32.mrf.mxu0
        %v4162 = vadd.f32 0.0, %v4161
        %v4163 = vpop.f32.mrf.mxu0
        %v4164 = vpop.f32.mrf.mxu0
        %v4165 = vpop.f32.mrf.mxu0
        %4166 = vmatprep.mubr.bf16.mxu0 0
        %4167 = vmatmul.mubr.bf16.gmra.mxu0 %v4080
        %v4168 = vpop.f32.mrf.mxu0
        %v4169 = vpop.f32.mrf.mxu0
        %v4170 = vpop.f32.mrf.mxu0
        %v4171 = vadd.f32 0.0, %v4170
        %v4172 = vpop.f32.mrf.mxu0
        %4173 = vmatprep.mubr.bf16.mxu0 0
        %4174 = vmatmul.mubr.bf16.gmra.mxu0 %v4083
        %v4175 = vpop.f32.mrf.mxu0
        %v4176 = vpop.f32.mrf.mxu0
        %v4177 = vpop.f32.mrf.mxu0
        %v4178 = vpop.f32.mrf.mxu0
        %4179 = vmatprep.mubr.bf16.mxu0 0
        %4180 = vmatmul.mubr.bf16.gmra.mxu0 %v4086
        %v4181 = vpop.f32.mrf.mxu0
        %v4182 = vadd.f32 0.0, %v4181
        %v4183 = vpop.f32.mrf.mxu0
        %v4184 = vpop.f32.mrf.mxu0
        %v4185 = vpop.f32.mrf.mxu0
        %4186 = vmatprep.mubr.bf16.mxu0 0
        %4187 = vmatmul.mubr.bf16.gmra.mxu0 %v4089
        %v4188 = vpop.f32.mrf.mxu0
        %v4189 = vpop.f32.mrf.mxu0
        %v4190 = vpop.f32.mrf.mxu0
        %v4191 = vadd.f32 0.0, %v4190
        %v4192 = vpop.f32.mrf.mxu0
        %4193 = vmatprep.mubr.bf16.mxu0 0
        %4194 = vmatmul.mubr.bf16.gmra.mxu0 %v4092
        %v4195 = vpop.f32.mrf.mxu0
        %v4196 = vpop.f32.mrf.mxu0
        %v4197 = vpop.f32.mrf.mxu0
        %v4198 = vpop.f32.mrf.mxu0
        %4199 = vmatprep.mubr.bf16.mxu0 0
        %4200 = vmatmul.mubr.bf16.gmra.mxu0 %v4095
        %v4201 = vpop.f32.mrf.mxu0
        %v4202 = vadd.f32 0.0, %v4201
        %v4203 = vpop.f32.mrf.mxu0
        %v4204 = vpop.f32.mrf.mxu0
        %v4205 = vpop.f32.mrf.mxu0
        %4206 = vmatprep.mubr.bf16.mxu0 0
        %4207 = vmatmul.mubr.bf16.gmra.mxu0 %v4098
        %v4208 = vpop.f32.mrf.mxu0
        %v4209 = vpop.f32.mrf.mxu0
        %v4210 = vpop.f32.mrf.mxu0
        %v4211 = vadd.f32 0.0, %v4210
        %v4212 = vpop.f32.mrf.mxu0
        %4213 = vmatprep.mubr.bf16.mxu0 0
        %4214 = vmatmul.mubr.bf16.gmra.mxu0 %v4101
        %v4215 = vpop.f32.mrf.mxu0
        %v4216 = vpop.f32.mrf.mxu0
        %v4217 = vpop.f32.mrf.mxu0
        %v4218 = vpop.f32.mrf.mxu0
        %4219 = vmatprep.mubr.bf16.mxu0 0
        %4220 = vmatmul.mubr.bf16.gmra.mxu0 %v4104
        %v4221 = vpop.f32.mrf.mxu0
        %v4222 = vadd.f32 0.0, %v4221
        %v4223 = vpop.f32.mrf.mxu0
        %v4224 = vpop.f32.mrf.mxu0
        %v4225 = vpop.f32.mrf.mxu0
        %4226 = vmatprep.mubr.bf16.mxu0 0
        %4227 = vmatmul.mubr.bf16.gmra.mxu0 %v4107
        %v4228 = vpop.f32.mrf.mxu0
        %v4229 = vpop.f32.mrf.mxu0
        %v4230 = vpop.f32.mrf.mxu0
        %v4231 = vadd.f32 0.0, %v4230
        %v4232 = vpop.f32.mrf.mxu0
        %4233 = vmatprep.mubr.bf16.mxu0 0
        %4234 = vmatmul.mubr.bf16.gmra.mxu0 %v4110
        %v4235 = vpop.f32.mrf.mxu0
        %v4236 = vpop.f32.mrf.mxu0
        %v4237 = vpop.f32.mrf.mxu0
        %v4238 = vpop.f32.mrf.mxu0
        %4239 = vmatprep.mubr.bf16.mxu0 0
        %4240 = vmatmul.mubr.bf16.gmra.mxu0 %v4113
        %v4241 = vpop.f32.mrf.mxu0
        %v4242 = vpop.f32.mrf.mxu0
        %v4243 = vpop.f32.mrf.mxu0
        %v4244 = vpop.f32.mrf.mxu0
        %4245 = vmatprep.mubr.bf16.mxu0 0
        %4246 = vmatmul.mubr.bf16.gmra.mxu0 %v4116
        %v4247 = vpop.f32.mrf.mxu0
        %v4248 = vpop.f32.mrf.mxu0
        %v4249 = vpop.f32.mrf.mxu0
        %v4250 = vpop.f32.mrf.mxu0
        %4251 = vmatprep.mubr.bf16.mxu0 0
        %4252 = vmatmul.mubr.bf16.gmra.mxu0 %v4119
        %v4253 = vpop.f32.mrf.mxu0
        %v4254 = vpop.f32.mrf.mxu0
        %v4255 = vpop.f32.mrf.mxu0
        %v4256 = vpop.f32.mrf.mxu0
        %4257 = vmatprep.mubr.bf16.mxu0 0
        %4258 = vmatmul.mubr.bf16.gmra.mxu0 %v4122
        %v4259 = vpop.f32.mrf.mxu0
        %v4260 = vpop.f32.mrf.mxu0
        %v4261 = vpop.f32.mrf.mxu0
        %v4262 = vpop.f32.mrf.mxu0
        %4263 = vmatprep.mubr.bf16.mxu0 0
        %4264 = vmatmul.mubr.bf16.gmra.mxu0 %v4125
        %v4265 = vpop.f32.mrf.mxu0
        %v4266 = vpop.f32.mrf.mxu0
        %v4267 = vpop.f32.mrf.mxu0
        %v4268 = vpop.f32.mrf.mxu0
        %4269 = vdwg.mxu0
        %v4270 = vadd.f32 %v3982, %v4162
        %v4271 = vadd.f32 %v3983, %v4171
        %v4272 = vadd.f32 %v3984, %v4182
        %v4273 = vadd.f32 %v3985, %v4191
        %v4274 = vadd.f32 %v3986, %v4202
        %v4275 = vadd.f32 %v3987, %v4211
        %v4276 = vadd.f32 %v3988, %v4222
        %v4277 = vadd.f32 %v3989, %v4231
        %s4278 = scalar_lea.vmem [#allocation10], 32
        %v4279 = vld [vmem:[%s4278] sm:$0xf]
        %v4280 = vld [vmem:[%s4278 + $0x4] sm:$0xf]
        %v4281 = vpack.c.b16 %v3995, %v3661
        %v4282 = vpack.c.b16 %v3996, %v3996
        %v4285 = vunpack.c.l.b16 %v4279
        %v4286 = vunpack.c.l.b16 %v4280
        %v4287 = vpack.c.b16 %v4286, %v4285
        %v4289 = vsel %vm3091, %v3290, 0
        %v4291 = vsel %vm3091, %v3291, 0
        %v4293 = vsel %vm3091, %v3292, 0
        %v4295 = vsel %vm3091, %v3293, 0
        %v4297 = vsel %vm3091, %v3294, 0
        %v4299 = vsel %vm3091, %v3295, 0
        %v4301 = vsel %vm3091, %v3296, 0
        %v4303 = vsel %vm3091, %v3297, 0
        %v4305 = vsel %vm3091, %v3298, 0
        %v4307 = vsel %vm3091, %v3299, 0
        %v4309 = vsel %vm3091, %v3300, 0
        %v4311 = vsel %vm3091, %v3301, 0
        %v4313 = vsel %vm3091, %v3302, 0
        %v4315 = vsel %vm3091, %v3303, 0
        %v4317 = vsel %vm3091, %v3304, 0
        %v4320 = vsel %vm3091, %v4281, 0
        %v4323 = vsel %vm3091, %v4282, 0
        %4325 = vmatprep.subr.bf16.mxu0 0
        %4326 = vmatpush1.bf16.msra.mxu0 0
        %4327 = vmatprep.subr.bf16.mxu0 0
        %4328 = vmatpush1.bf16.msra.mxu0 0
        %4329 = vmatprep.subr.bf16.mxu0 0
        %4330 = vmatpush1.bf16.msra.mxu0 0
        %4331 = vmatprep.subr.bf16.mxu0 0
        %4332 = vmatpush1.bf16.msra.mxu0 0
        %4333 = vmatprep.subr.bf16.mxu0 0
        %4334 = vmatpush1.bf16.msra.mxu0 0
        %4335 = vmatprep.subr.bf16.mxu0 0
        %4336 = vmatpush1.bf16.msra.mxu0 0
        %4337 = vmatprep.subr.bf16.mxu0 0
        %4338 = vmatpush1.bf16.msra.mxu0 0
        %4339 = vmatprep.subr.bf16.mxu0 0
        %4340 = vmatpush1.bf16.msra.mxu0 %v4287
        %4341 = vmatprep.subr.bf16.mxu0 0
        %4342 = vmatpush2.bf16.msra.mxu0 0
        %4343 = vmatprep.subr.bf16.mxu0 0
        %4344 = vmatpush2.bf16.msra.mxu0 0
        %4345 = vmatprep.subr.bf16.mxu0 0
        %4346 = vmatpush2.bf16.msra.mxu0 0
        %4347 = vmatprep.subr.bf16.mxu0 0
        %4348 = vmatpush2.bf16.msra.mxu0 0
        %4349 = vmatprep.subr.bf16.mxu0 0
        %4350 = vmatpush2.bf16.msra.mxu0 0
        %4351 = vmatprep.subr.bf16.mxu0 0
        %4352 = vmatpush2.bf16.msra.mxu0 0
        %4353 = vmatprep.subr.bf16.mxu0 0
        %4354 = vmatpush2.bf16.msra.mxu0 0
        %4355 = vmatprep.subr.bf16.mxu0 0
        %4356 = vmatpush2.bf16.msra.mxu0 0
        %4357 = vmatprep.mubr.bf16.mxu0 0
        %4358 = vmatmul.mubr.bf16.gmra.mxu0 %v4289
        %v4359 = vpop.f32.mrf.mxu0
        %v4360 = vadd.f32 0.0, %v4359
        %v4361 = vpop.f32.mrf.mxu0
        %v4362 = vpop.f32.mrf.mxu0
        %v4363 = vpop.f32.mrf.mxu0
        %4364 = vmatprep.mubr.bf16.mxu0 0
        %4365 = vmatmul.mubr.bf16.gmra.mxu0 %v4291
        %v4366 = vpop.f32.mrf.mxu0
        %v4367 = vpop.f32.mrf.mxu0
        %v4368 = vpop.f32.mrf.mxu0
        %v4369 = vadd.f32 0.0, %v4368
        %v4370 = vpop.f32.mrf.mxu0
        %4371 = vmatprep.mubr.bf16.mxu0 0
        %4372 = vmatmul.mubr.bf16.gmra.mxu0 %v4293
        %v4373 = vpop.f32.mrf.mxu0
        %v4374 = vpop.f32.mrf.mxu0
        %v4375 = vpop.f32.mrf.mxu0
        %v4376 = vpop.f32.mrf.mxu0
        %4377 = vmatprep.mubr.bf16.mxu0 0
        %4378 = vmatmul.mubr.bf16.gmra.mxu0 %v4295
        %v4379 = vpop.f32.mrf.mxu0
        %v4380 = vadd.f32 0.0, %v4379
        %v4381 = vpop.f32.mrf.mxu0
        %v4382 = vpop.f32.mrf.mxu0
        %v4383 = vpop.f32.mrf.mxu0
        %4384 = vmatprep.mubr.bf16.mxu0 0
        %4385 = vmatmul.mubr.bf16.gmra.mxu0 %v4297
        %v4386 = vpop.f32.mrf.mxu0
        %v4387 = vpop.f32.mrf.mxu0
        %v4388 = vpop.f32.mrf.mxu0
        %v4389 = vadd.f32 0.0, %v4388
        %v4390 = vpop.f32.mrf.mxu0
        %4391 = vmatprep.mubr.bf16.mxu0 0
        %4392 = vmatmul.mubr.bf16.gmra.mxu0 %v4299
        %v4393 = vpop.f32.mrf.mxu0
        %v4394 = vpop.f32.mrf.mxu0
        %v4395 = vpop.f32.mrf.mxu0
        %v4396 = vpop.f32.mrf.mxu0
        %4397 = vmatprep.mubr.bf16.mxu0 0
        %4398 = vmatmul.mubr.bf16.gmra.mxu0 %v4301
        %v4399 = vpop.f32.mrf.mxu0
        %v4400 = vadd.f32 0.0, %v4399
        %v4401 = vpop.f32.mrf.mxu0
        %v4402 = vpop.f32.mrf.mxu0
        %v4403 = vpop.f32.mrf.mxu0
        %4404 = vmatprep.mubr.bf16.mxu0 0
        %4405 = vmatmul.mubr.bf16.gmra.mxu0 %v4303
        %v4406 = vpop.f32.mrf.mxu0
        %v4407 = vpop.f32.mrf.mxu0
        %v4408 = vpop.f32.mrf.mxu0
        %v4409 = vadd.f32 0.0, %v4408
        %v4410 = vpop.f32.mrf.mxu0
        %4411 = vmatprep.mubr.bf16.mxu0 0
        %4412 = vmatmul.mubr.bf16.gmra.mxu0 %v4305
        %v4413 = vpop.f32.mrf.mxu0
        %v4414 = vpop.f32.mrf.mxu0
        %v4415 = vpop.f32.mrf.mxu0
        %v4416 = vpop.f32.mrf.mxu0
        %4417 = vmatprep.mubr.bf16.mxu0 0
        %4418 = vmatmul.mubr.bf16.gmra.mxu0 %v4307
        %v4419 = vpop.f32.mrf.mxu0
        %v4420 = vadd.f32 0.0, %v4419
        %v4421 = vpop.f32.mrf.mxu0
        %v4422 = vpop.f32.mrf.mxu0
        %v4423 = vpop.f32.mrf.mxu0
        %4424 = vmatprep.mubr.bf16.mxu0 0
        %4425 = vmatmul.mubr.bf16.gmra.mxu0 %v4309
        %v4426 = vpop.f32.mrf.mxu0
        %v4427 = vpop.f32.mrf.mxu0
        %v4428 = vpop.f32.mrf.mxu0
        %v4429 = vadd.f32 0.0, %v4428
        %v4430 = vpop.f32.mrf.mxu0
        %4431 = vmatprep.mubr.bf16.mxu0 0
        %4432 = vmatmul.mubr.bf16.gmra.mxu0 %v4311
        %v4433 = vpop.f32.mrf.mxu0
        %v4434 = vpop.f32.mrf.mxu0
        %v4435 = vpop.f32.mrf.mxu0
        %v4436 = vpop.f32.mrf.mxu0
        %4437 = vmatprep.mubr.bf16.mxu0 0
        %4438 = vmatmul.mubr.bf16.gmra.mxu0 %v4313
        %v4439 = vpop.f32.mrf.mxu0
        %v4440 = vpop.f32.mrf.mxu0
        %v4441 = vpop.f32.mrf.mxu0
        %v4442 = vpop.f32.mrf.mxu0
        %4443 = vmatprep.mubr.bf16.mxu0 0
        %4444 = vmatmul.mubr.bf16.gmra.mxu0 %v4315
        %v4445 = vpop.f32.mrf.mxu0
        %v4446 = vpop.f32.mrf.mxu0
        %v4447 = vpop.f32.mrf.mxu0
        %v4448 = vpop.f32.mrf.mxu0
        %4449 = vmatprep.mubr.bf16.mxu0 0
        %4450 = vmatmul.mubr.bf16.gmra.mxu0 %v4317
        %v4451 = vpop.f32.mrf.mxu0
        %v4452 = vpop.f32.mrf.mxu0
        %v4453 = vpop.f32.mrf.mxu0
        %v4454 = vpop.f32.mrf.mxu0
        %4455 = vmatprep.mubr.bf16.mxu0 0
        %4456 = vmatmul.mubr.bf16.gmra.mxu0 %v4320
        %v4457 = vpop.f32.mrf.mxu0
        %v4458 = vpop.f32.mrf.mxu0
        %v4459 = vpop.f32.mrf.mxu0
        %v4460 = vpop.f32.mrf.mxu0
        %4461 = vmatprep.mubr.bf16.mxu0 0
        %4462 = vmatmul.mubr.bf16.gmra.mxu0 %v4323
        %v4463 = vpop.f32.mrf.mxu0
        %v4464 = vpop.f32.mrf.mxu0
        %v4465 = vpop.f32.mrf.mxu0
        %v4466 = vpop.f32.mrf.mxu0
        %4467 = vdwg.mxu0
        %v4468 = vadd.f32 %v4270, %v4360
        %v4469 = vadd.f32 %v4271, %v4369
        %v4470 = vadd.f32 %v4272, %v4380
        %v4471 = vadd.f32 %v4273, %v4389
        %v4472 = vadd.f32 %v4274, %v4400
        %v4473 = vadd.f32 %v4275, %v4409
        %v4474 = vadd.f32 %v4276, %v4420
        %v4475 = vadd.f32 %v4277, %v4429
        %s4476 = scalar_lea.vmem [#allocation10], 40
        %v4477 = vld [vmem:[%s4476] sm:$0xf]
        %v4478 = vld [vmem:[%s4476 + $0x4] sm:$0xf]
        %v4480 = vunpack.c.l.b16 %v2993
        %v4481 = vpack.c.b16 %v4480, %v3996
        %v4482 = vrot.slane %v3326, 1
        %v4483 = vor.u32 %v3323, %v4482
        %v4484 = vrot.slane %v3335, 1
        %v4485 = vsel %vm1230, %v4483, %v4484
        %v4486 = vor.u32 %v3332, %v4484
        %v4487 = vrot.slane %v3344, 1
        %v4488 = vsel %vm1230, %v4486, %v4487
        %v4489 = vor.u32 %v3341, %v4487
        %v4490 = vrot.slane %v3353, 1
        %v4491 = vsel %vm1230, %v4489, %v4490
        %v4492 = vor.u32 %v3350, %v4490
        %v4493 = vrot.slane %v3362, 1
        %v4494 = vsel %vm1230, %v4492, %v4493
        %v4495 = vor.u32 %v3359, %v4493
        %v4496 = vrot.slane %v3371, 1
        %v4497 = vsel %vm1230, %v4495, %v4496
        %v4498 = vor.u32 %v3368, %v4496
        %v4499 = vrot.slane %v3380, 1
        %v4500 = vsel %vm1230, %v4498, %v4499
        %v4501 = vor.u32 %v3377, %v4499
        %v4502 = vrot.slane %v3389, 1
        %v4503 = vsel %vm1230, %v4501, %v4502
        %v4504 = vor.u32 %v3386, %v4502
        %v4505 = vrot.slane %v3398, 1
        %v4506 = vsel %vm1230, %v4504, %v4505
        %v4507 = vor.u32 %v3395, %v4505
        %v4508 = vrot.slane %v3407, 1
        %v4509 = vsel %vm1230, %v4507, %v4508
        %v4510 = vor.u32 %v3404, %v4508
        %v4511 = vrot.slane %v3416, 1
        %v4512 = vsel %vm1230, %v4510, %v4511
        %v4513 = vor.u32 %v3413, %v4511
        %v4514 = vrot.slane %v3425, 1
        %v4515 = vsel %vm1230, %v4513, %v4514
        %v4516 = vor.u32 %v3422, %v4514
        %v4517 = vrot.slane %v3434, 1
        %v4518 = vsel %vm1230, %v4516, %v4517
        %v4519 = vor.u32 %v3431, %v4517
        %v4520 = vrot.slane %v3443, 1
        %v4521 = vsel %vm1230, %v4519, %v4520
        %v4522 = vor.u32 %v3440, %v4520
        %v4523 = vrot.slane %v3452, 1
        %v4524 = vsel %vm1230, %v4522, %v4523
        %v4525 = vor.u32 %v3449, %v4523
        %v4526 = vshll.u32 %v4281, 16
        %v4528 = vrot.slane %v4526, 1
        %v4529 = vsel %vm1230, %v4525, %v4528
        %v4530 = vshrl.u32 %v4281, 16
        %v4532 = vor.u32 %v4530, %v4528
        %v4534 = vshll.u32 %v4481, 16
        %v4536 = vrot.slane %v4534, 1
        %v4537 = vsel %vm1230, %v4532, %v4536
        %v4538 = vshrl.u32 %v4481, 16
        %v4540 = vor.u32 %v4538, %v4536
        %v4543 = vunpack.c.l.b16 %v4477
        %v4544 = vunpack.c.l.b16 %v4478
        %v4545 = vpack.c.b16 %v4544, %v4543
        %v4548 = vsel %vm3091, %v4485, 0
        %v4551 = vsel %vm3091, %v4488, 0
        %v4554 = vsel %vm3091, %v4491, 0
        %v4557 = vsel %vm3091, %v4494, 0
        %v4560 = vsel %vm3091, %v4497, 0
        %v4563 = vsel %vm3091, %v4500, 0
        %v4566 = vsel %vm3091, %v4503, 0
        %v4569 = vsel %vm3091, %v4506, 0
        %v4572 = vsel %vm3091, %v4509, 0
        %v4575 = vsel %vm3091, %v4512, 0
        %v4578 = vsel %vm3091, %v4515, 0
        %v4581 = vsel %vm3091, %v4518, 0
        %v4584 = vsel %vm3091, %v4521, 0
        %v4587 = vsel %vm3091, %v4524, 0
        %v4590 = vsel %vm3091, %v4529, 0
        %v4593 = vsel %vm3091, %v4537, 0
        %v4596 = vsel %vm3091, %v4540, 0
        %4598 = vmatprep.subr.bf16.mxu0 0
        %4599 = vmatpush1.bf16.msra.mxu0 0
        %4600 = vmatprep.subr.bf16.mxu0 0
        %4601 = vmatpush1.bf16.msra.mxu0 0
        %4602 = vmatprep.subr.bf16.mxu0 0
        %4603 = vmatpush1.bf16.msra.mxu0 0
        %4604 = vmatprep.subr.bf16.mxu0 0
        %4605 = vmatpush1.bf16.msra.mxu0 0
        %4606 = vmatprep.subr.bf16.mxu0 0
        %4607 = vmatpush1.bf16.msra.mxu0 0
        %4608 = vmatprep.subr.bf16.mxu0 0
        %4609 = vmatpush1.bf16.msra.mxu0 0
        %4610 = vmatprep.subr.bf16.mxu0 0
        %4611 = vmatpush1.bf16.msra.mxu0 0
        %4612 = vmatprep.subr.bf16.mxu0 0
        %4613 = vmatpush1.bf16.msra.mxu0 %v4545
        %4614 = vmatprep.subr.bf16.mxu0 0
        %4615 = vmatpush2.bf16.msra.mxu0 0
        %4616 = vmatprep.subr.bf16.mxu0 0
        %4617 = vmatpush2.bf16.msra.mxu0 0
        %4618 = vmatprep.subr.bf16.mxu0 0
        %4619 = vmatpush2.bf16.msra.mxu0 0
        %4620 = vmatprep.subr.bf16.mxu0 0
        %4621 = vmatpush2.bf16.msra.mxu0 0
        %4622 = vmatprep.subr.bf16.mxu0 0
        %4623 = vmatpush2.bf16.msra.mxu0 0
        %4624 = vmatprep.subr.bf16.mxu0 0
        %4625 = vmatpush2.bf16.msra.mxu0 0
        %4626 = vmatprep.subr.bf16.mxu0 0
        %4627 = vmatpush2.bf16.msra.mxu0 0
        %4628 = vmatprep.subr.bf16.mxu0 0
        %4629 = vmatpush2.bf16.msra.mxu0 0
        %4630 = vmatprep.mubr.bf16.mxu0 0
        %4631 = vmatmul.mubr.bf16.gmra.mxu0 %v4548
        %v4632 = vpop.f32.mrf.mxu0
        %v4633 = vadd.f32 0.0, %v4632
        %v4634 = vpop.f32.mrf.mxu0
        %v4635 = vpop.f32.mrf.mxu0
        %v4636 = vpop.f32.mrf.mxu0
        %4637 = vmatprep.mubr.bf16.mxu0 0
        %4638 = vmatmul.mubr.bf16.gmra.mxu0 %v4551
        %v4639 = vpop.f32.mrf.mxu0
        %v4640 = vpop.f32.mrf.mxu0
        %v4641 = vpop.f32.mrf.mxu0
        %v4642 = vadd.f32 0.0, %v4641
        %v4643 = vpop.f32.mrf.mxu0
        %4644 = vmatprep.mubr.bf16.mxu0 0
        %4645 = vmatmul.mubr.bf16.gmra.mxu0 %v4554
        %v4646 = vpop.f32.mrf.mxu0
        %v4647 = vpop.f32.mrf.mxu0
        %v4648 = vpop.f32.mrf.mxu0
        %v4649 = vpop.f32.mrf.mxu0
        %4650 = vmatprep.mubr.bf16.mxu0 0
        %4651 = vmatmul.mubr.bf16.gmra.mxu0 %v4557
        %v4652 = vpop.f32.mrf.mxu0
        %v4653 = vadd.f32 0.0, %v4652
        %v4654 = vpop.f32.mrf.mxu0
        %v4655 = vpop.f32.mrf.mxu0
        %v4656 = vpop.f32.mrf.mxu0
        %4657 = vmatprep.mubr.bf16.mxu0 0
        %4658 = vmatmul.mubr.bf16.gmra.mxu0 %v4560
        %v4659 = vpop.f32.mrf.mxu0
        %v4660 = vpop.f32.mrf.mxu0
        %v4661 = vpop.f32.mrf.mxu0
        %v4662 = vadd.f32 0.0, %v4661
        %v4663 = vpop.f32.mrf.mxu0
        %4664 = vmatprep.mubr.bf16.mxu0 0
        %4665 = vmatmul.mubr.bf16.gmra.mxu0 %v4563
        %v4666 = vpop.f32.mrf.mxu0
        %v4667 = vpop.f32.mrf.mxu0
        %v4668 = vpop.f32.mrf.mxu0
        %v4669 = vpop.f32.mrf.mxu0
        %4670 = vmatprep.mubr.bf16.mxu0 0
        %4671 = vmatmul.mubr.bf16.gmra.mxu0 %v4566
        %v4672 = vpop.f32.mrf.mxu0
        %v4673 = vadd.f32 0.0, %v4672
        %v4674 = vpop.f32.mrf.mxu0
        %v4675 = vpop.f32.mrf.mxu0
        %v4676 = vpop.f32.mrf.mxu0
        %4677 = vmatprep.mubr.bf16.mxu0 0
        %4678 = vmatmul.mubr.bf16.gmra.mxu0 %v4569
        %v4679 = vpop.f32.mrf.mxu0
        %v4680 = vpop.f32.mrf.mxu0
        %v4681 = vpop.f32.mrf.mxu0
        %v4682 = vadd.f32 0.0, %v4681
        %v4683 = vpop.f32.mrf.mxu0
        %4684 = vmatprep.mubr.bf16.mxu0 0
        %4685 = vmatmul.mubr.bf16.gmra.mxu0 %v4572
        %v4686 = vpop.f32.mrf.mxu0
        %v4687 = vpop.f32.mrf.mxu0
        %v4688 = vpop.f32.mrf.mxu0
        %v4689 = vpop.f32.mrf.mxu0
        %4690 = vmatprep.mubr.bf16.mxu0 0
        %4691 = vmatmul.mubr.bf16.gmra.mxu0 %v4575
        %v4692 = vpop.f32.mrf.mxu0
        %v4693 = vadd.f32 0.0, %v4692
        %v4694 = vpop.f32.mrf.mxu0
        %v4695 = vpop.f32.mrf.mxu0
        %v4696 = vpop.f32.mrf.mxu0
        %4697 = vmatprep.mubr.bf16.mxu0 0
        %4698 = vmatmul.mubr.bf16.gmra.mxu0 %v4578
        %v4699 = vpop.f32.mrf.mxu0
        %v4700 = vpop.f32.mrf.mxu0
        %v4701 = vpop.f32.mrf.mxu0
        %v4702 = vadd.f32 0.0, %v4701
        %v4703 = vpop.f32.mrf.mxu0
        %4704 = vmatprep.mubr.bf16.mxu0 0
        %4705 = vmatmul.mubr.bf16.gmra.mxu0 %v4581
        %v4706 = vpop.f32.mrf.mxu0
        %v4707 = vpop.f32.mrf.mxu0
        %v4708 = vpop.f32.mrf.mxu0
        %v4709 = vpop.f32.mrf.mxu0
        %4710 = vmatprep.mubr.bf16.mxu0 0
        %4711 = vmatmul.mubr.bf16.gmra.mxu0 %v4584
        %v4712 = vpop.f32.mrf.mxu0
        %v4713 = vpop.f32.mrf.mxu0
        %v4714 = vpop.f32.mrf.mxu0
        %v4715 = vpop.f32.mrf.mxu0
        %4716 = vmatprep.mubr.bf16.mxu0 0
        %4717 = vmatmul.mubr.bf16.gmra.mxu0 %v4587
        %v4718 = vpop.f32.mrf.mxu0
        %v4719 = vpop.f32.mrf.mxu0
        %v4720 = vpop.f32.mrf.mxu0
        %v4721 = vpop.f32.mrf.mxu0
        %4722 = vmatprep.mubr.bf16.mxu0 0
        %4723 = vmatmul.mubr.bf16.gmra.mxu0 %v4590
        %v4724 = vpop.f32.mrf.mxu0
        %v4725 = vpop.f32.mrf.mxu0
        %v4726 = vpop.f32.mrf.mxu0
        %v4727 = vpop.f32.mrf.mxu0
        %4728 = vmatprep.mubr.bf16.mxu0 0
        %4729 = vmatmul.mubr.bf16.gmra.mxu0 %v4593
        %v4730 = vpop.f32.mrf.mxu0
        %v4731 = vpop.f32.mrf.mxu0
        %v4732 = vpop.f32.mrf.mxu0
        %v4733 = vpop.f32.mrf.mxu0
        %4734 = vmatprep.mubr.bf16.mxu0 0
        %4735 = vmatmul.mubr.bf16.gmra.mxu0 %v4596
        %v4736 = vpop.f32.mrf.mxu0
        %v4737 = vpop.f32.mrf.mxu0
        %v4738 = vpop.f32.mrf.mxu0
        %v4739 = vpop.f32.mrf.mxu0
        %4740 = vdwg.mxu0
        %v4741 = vadd.f32 %v4468, %v4633
        %v4742 = vadd.f32 %v4469, %v4642
        %v4743 = vadd.f32 %v4470, %v4653
        %v4744 = vadd.f32 %v4471, %v4662
        %v4745 = vadd.f32 %v4472, %v4673
        %v4746 = vadd.f32 %v4473, %v4682
        %v4747 = vadd.f32 %v4474, %v4693
        %v4748 = vadd.f32 %v4475, %v4702
        %s4749 = scalar_lea.vmem [#allocation10], 48
        %v4750 = vld [vmem:[%s4749] sm:$0xf]
        %v4751 = vld [vmem:[%s4749 + $0x4] sm:$0xf]
        %v4754 = vunpack.c.l.b16 %v2994
        %v4755 = vunpack.c.l.b16 %v2995
        %v4756 = vpack.c.b16 %v4755, %v4754
        %v4757 = vrot.slane %v4530, 3
        %v4758 = vrot.slane %v4526, 4
        %v4759 = vor.u32 %v4757, %v4758
        %v4760 = vsel %vm863, %v3455, %v4759
        %v4761 = vrot.slane %v4538, 3
        %v4762 = vrot.slane %v4534, 4
        %v4763 = vor.u32 %v4761, %v4762
        %v4764 = vsel %vm863, %v4759, %v4763
        %v4766 = vshrl.u32 %v4756, 16
        %v4768 = vrot.slane %v4766, 3
        %v4769 = vshll.u32 %v4756, 16
        %v4771 = vrot.slane %v4769, 4
        %v4772 = vor.u32 %v4768, %v4771
        %v4773 = vsel %vm863, %v4763, %v4772
        %v4776 = vunpack.c.l.b16 %v4750
        %v4777 = vunpack.c.l.b16 %v4751
        %v4778 = vpack.c.b16 %v4777, %v4776
        %v4781 = vsel %vm3091, %v4760, 0
        %v4784 = vsel %vm3091, %v4764, 0
        %v4787 = vsel %vm3091, %v4773, 0
        %v4790 = vsel %vm3091, %v4772, 0
        %4792 = vmatprep.subr.bf16.mxu0 0
        %4793 = vmatpush1.bf16.msra.mxu0 0
        %4794 = vmatprep.subr.bf16.mxu0 0
        %4795 = vmatpush1.bf16.msra.mxu0 0
        %4796 = vmatprep.subr.bf16.mxu0 0
        %4797 = vmatpush1.bf16.msra.mxu0 0
        %4798 = vmatprep.subr.bf16.mxu0 0
        %4799 = vmatpush1.bf16.msra.mxu0 0
        %4800 = vmatprep.subr.bf16.mxu0 0
        %4801 = vmatpush1.bf16.msra.mxu0 0
        %4802 = vmatprep.subr.bf16.mxu0 0
        %4803 = vmatpush1.bf16.msra.mxu0 0
        %4804 = vmatprep.subr.bf16.mxu0 0
        %4805 = vmatpush1.bf16.msra.mxu0 0
        %4806 = vmatprep.subr.bf16.mxu0 0
        %4807 = vmatpush1.bf16.msra.mxu0 %v4778
        %4808 = vmatprep.subr.bf16.mxu0 0
        %4809 = vmatpush2.bf16.msra.mxu0 0
        %4810 = vmatprep.subr.bf16.mxu0 0
        %4811 = vmatpush2.bf16.msra.mxu0 0
        %4812 = vmatprep.subr.bf16.mxu0 0
        %4813 = vmatpush2.bf16.msra.mxu0 0
        %4814 = vmatprep.subr.bf16.mxu0 0
        %4815 = vmatpush2.bf16.msra.mxu0 0
        %4816 = vmatprep.subr.bf16.mxu0 0
        %4817 = vmatpush2.bf16.msra.mxu0 0
        %4818 = vmatprep.subr.bf16.mxu0 0
        %4819 = vmatpush2.bf16.msra.mxu0 0
        %4820 = vmatprep.subr.bf16.mxu0 0
        %4821 = vmatpush2.bf16.msra.mxu0 0
        %4822 = vmatprep.subr.bf16.mxu0 0
        %4823 = vmatpush2.bf16.msra.mxu0 0
        %4824 = vmatprep.mubr.bf16.mxu0 0
        %4825 = vmatmul.mubr.bf16.gmra.mxu0 %v3473
        %v4826 = vpop.f32.mrf.mxu0
        %v4827 = vadd.f32 0.0, %v4826
        %v4828 = vpop.f32.mrf.mxu0
        %v4829 = vpop.f32.mrf.mxu0
        %v4830 = vpop.f32.mrf.mxu0
        %4831 = vmatprep.mubr.bf16.mxu0 0
        %4832 = vmatmul.mubr.bf16.gmra.mxu0 %v3476
        %v4833 = vpop.f32.mrf.mxu0
        %v4834 = vpop.f32.mrf.mxu0
        %v4835 = vpop.f32.mrf.mxu0
        %v4836 = vadd.f32 0.0, %v4835
        %v4837 = vpop.f32.mrf.mxu0
        %4838 = vmatprep.mubr.bf16.mxu0 0
        %4839 = vmatmul.mubr.bf16.gmra.mxu0 %v3479
        %v4840 = vpop.f32.mrf.mxu0
        %v4841 = vpop.f32.mrf.mxu0
        %v4842 = vpop.f32.mrf.mxu0
        %v4843 = vpop.f32.mrf.mxu0
        %4844 = vmatprep.mubr.bf16.mxu0 0
        %4845 = vmatmul.mubr.bf16.gmra.mxu0 %v3482
        %v4846 = vpop.f32.mrf.mxu0
        %v4847 = vadd.f32 0.0, %v4846
        %v4848 = vpop.f32.mrf.mxu0
        %v4849 = vpop.f32.mrf.mxu0
        %v4850 = vpop.f32.mrf.mxu0
        %4851 = vmatprep.mubr.bf16.mxu0 0
        %4852 = vmatmul.mubr.bf16.gmra.mxu0 %v3485
        %v4853 = vpop.f32.mrf.mxu0
        %v4854 = vpop.f32.mrf.mxu0
        %v4855 = vpop.f32.mrf.mxu0
        %v4856 = vadd.f32 0.0, %v4855
        %v4857 = vpop.f32.mrf.mxu0
        %4858 = vmatprep.mubr.bf16.mxu0 0
        %4859 = vmatmul.mubr.bf16.gmra.mxu0 %v3488
        %v4860 = vpop.f32.mrf.mxu0
        %v4861 = vpop.f32.mrf.mxu0
        %v4862 = vpop.f32.mrf.mxu0
        %v4863 = vpop.f32.mrf.mxu0
        %4864 = vmatprep.mubr.bf16.mxu0 0
        %4865 = vmatmul.mubr.bf16.gmra.mxu0 %v3491
        %v4866 = vpop.f32.mrf.mxu0
        %v4867 = vadd.f32 0.0, %v4866
        %v4868 = vpop.f32.mrf.mxu0
        %v4869 = vpop.f32.mrf.mxu0
        %v4870 = vpop.f32.mrf.mxu0
        %4871 = vmatprep.mubr.bf16.mxu0 0
        %4872 = vmatmul.mubr.bf16.gmra.mxu0 %v3494
        %v4873 = vpop.f32.mrf.mxu0
        %v4874 = vpop.f32.mrf.mxu0
        %v4875 = vpop.f32.mrf.mxu0
        %v4876 = vadd.f32 0.0, %v4875
        %v4877 = vpop.f32.mrf.mxu0
        %4878 = vmatprep.mubr.bf16.mxu0 0
        %4879 = vmatmul.mubr.bf16.gmra.mxu0 %v3497
        %v4880 = vpop.f32.mrf.mxu0
        %v4881 = vpop.f32.mrf.mxu0
        %v4882 = vpop.f32.mrf.mxu0
        %v4883 = vpop.f32.mrf.mxu0
        %4884 = vmatprep.mubr.bf16.mxu0 0
        %4885 = vmatmul.mubr.bf16.gmra.mxu0 %v3500
        %v4886 = vpop.f32.mrf.mxu0
        %v4887 = vadd.f32 0.0, %v4886
        %v4888 = vpop.f32.mrf.mxu0
        %v4889 = vpop.f32.mrf.mxu0
        %v4890 = vpop.f32.mrf.mxu0
        %4891 = vmatprep.mubr.bf16.mxu0 0
        %4892 = vmatmul.mubr.bf16.gmra.mxu0 %v3503
        %v4893 = vpop.f32.mrf.mxu0
        %v4894 = vpop.f32.mrf.mxu0
        %v4895 = vpop.f32.mrf.mxu0
        %v4896 = vadd.f32 0.0, %v4895
        %v4897 = vpop.f32.mrf.mxu0
        %4898 = vmatprep.mubr.bf16.mxu0 0
        %4899 = vmatmul.mubr.bf16.gmra.mxu0 %v3506
        %v4900 = vpop.f32.mrf.mxu0
        %v4901 = vpop.f32.mrf.mxu0
        %v4902 = vpop.f32.mrf.mxu0
        %v4903 = vpop.f32.mrf.mxu0
        %4904 = vmatprep.mubr.bf16.mxu0 0
        %4905 = vmatmul.mubr.bf16.gmra.mxu0 %v3509
        %v4906 = vpop.f32.mrf.mxu0
        %v4907 = vpop.f32.mrf.mxu0
        %v4908 = vpop.f32.mrf.mxu0
        %v4909 = vpop.f32.mrf.mxu0
        %4910 = vmatprep.mubr.bf16.mxu0 0
        %4911 = vmatmul.mubr.bf16.gmra.mxu0 %v4781
        %v4912 = vpop.f32.mrf.mxu0
        %v4913 = vpop.f32.mrf.mxu0
        %v4914 = vpop.f32.mrf.mxu0
        %v4915 = vpop.f32.mrf.mxu0
        %4916 = vmatprep.mubr.bf16.mxu0 0
        %4917 = vmatmul.mubr.bf16.gmra.mxu0 %v4784
        %v4918 = vpop.f32.mrf.mxu0
        %v4919 = vpop.f32.mrf.mxu0
        %v4920 = vpop.f32.mrf.mxu0
        %v4921 = vpop.f32.mrf.mxu0
        %4922 = vmatprep.mubr.bf16.mxu0 0
        %4923 = vmatmul.mubr.bf16.gmra.mxu0 %v4787
        %v4924 = vpop.f32.mrf.mxu0
        %v4925 = vpop.f32.mrf.mxu0
        %v4926 = vpop.f32.mrf.mxu0
        %v4927 = vpop.f32.mrf.mxu0
        %4928 = vmatprep.mubr.bf16.mxu0 0
        %4929 = vmatmul.mubr.bf16.gmra.mxu0 %v4790
        %v4930 = vpop.f32.mrf.mxu0
        %v4931 = vpop.f32.mrf.mxu0
        %v4932 = vpop.f32.mrf.mxu0
        %v4933 = vpop.f32.mrf.mxu0
        %4934 = vdwg.mxu0
        %v4935 = vadd.f32 %v4741, %v4827
        %v4936 = vadd.f32 %v4742, %v4836
        %v4937 = vadd.f32 %v4743, %v4847
        %v4938 = vadd.f32 %v4744, %v4856
        %v4939 = vadd.f32 %v4745, %v4867
        %v4940 = vadd.f32 %v4746, %v4876
        %v4941 = vadd.f32 %v4747, %v4887
        %v4942 = vadd.f32 %v4748, %v4896
        %s4943 = scalar_lea.vmem [#allocation10], 56
        %v4944 = vld [vmem:[%s4943] sm:$0xf]
        %v4945 = vld [vmem:[%s4943 + $0x4] sm:$0xf]
        %v4946 = vpack.c.b16 %v4754, %v4480
        %v4947 = vpack.c.b16 %v4755, %v4755
        %v4950 = vunpack.c.l.b16 %v4944
        %v4951 = vunpack.c.l.b16 %v4945
        %v4952 = vpack.c.b16 %v4951, %v4950
        %v4954 = vsel %vm3091, %v3662, 0
        %v4956 = vsel %vm3091, %v3997, 0
        %v4959 = vsel %vm3091, %v4946, 0
        %v4962 = vsel %vm3091, %v4947, 0
        %4964 = vmatprep.subr.bf16.mxu0 0
        %4965 = vmatpush1.bf16.msra.mxu0 0
        %4966 = vmatprep.subr.bf16.mxu0 0
        %4967 = vmatpush1.bf16.msra.mxu0 0
        %4968 = vmatprep.subr.bf16.mxu0 0
        %4969 = vmatpush1.bf16.msra.mxu0 0
        %4970 = vmatprep.subr.bf16.mxu0 0
        %4971 = vmatpush1.bf16.msra.mxu0 0
        %4972 = vmatprep.subr.bf16.mxu0 0
        %4973 = vmatpush1.bf16.msra.mxu0 0
        %4974 = vmatprep.subr.bf16.mxu0 0
        %4975 = vmatpush1.bf16.msra.mxu0 0
        %4976 = vmatprep.subr.bf16.mxu0 0
        %4977 = vmatpush1.bf16.msra.mxu0 0
        %4978 = vmatprep.subr.bf16.mxu0 0
        %4979 = vmatpush1.bf16.msra.mxu0 %v4952
        %4980 = vmatprep.subr.bf16.mxu0 0
        %4981 = vmatpush2.bf16.msra.mxu0 0
        %4982 = vmatprep.subr.bf16.mxu0 0
        %4983 = vmatpush2.bf16.msra.mxu0 0
        %4984 = vmatprep.subr.bf16.mxu0 0
        %4985 = vmatpush2.bf16.msra.mxu0 0
        %4986 = vmatprep.subr.bf16.mxu0 0
        %4987 = vmatpush2.bf16.msra.mxu0 0
        %4988 = vmatprep.subr.bf16.mxu0 0
        %4989 = vmatpush2.bf16.msra.mxu0 0
        %4990 = vmatprep.subr.bf16.mxu0 0
        %4991 = vmatpush2.bf16.msra.mxu0 0
        %4992 = vmatprep.subr.bf16.mxu0 0
        %4993 = vmatpush2.bf16.msra.mxu0 0
        %4994 = vmatprep.subr.bf16.mxu0 0
        %4995 = vmatpush2.bf16.msra.mxu0 0
        %4996 = vmatprep.mubr.bf16.mxu0 0
        %4997 = vmatmul.mubr.bf16.gmra.mxu0 %v3102
        %v4998 = vpop.f32.mrf.mxu0
        %v4999 = vadd.f32 0.0, %v4998
        %v5000 = vpop.f32.mrf.mxu0
        %v5001 = vpop.f32.mrf.mxu0
        %v5002 = vpop.f32.mrf.mxu0
        %5003 = vmatprep.mubr.bf16.mxu0 0
        %5004 = vmatmul.mubr.bf16.gmra.mxu0 %v3105
        %v5005 = vpop.f32.mrf.mxu0
        %v5006 = vpop.f32.mrf.mxu0
        %v5007 = vpop.f32.mrf.mxu0
        %v5008 = vadd.f32 0.0, %v5007
        %v5009 = vpop.f32.mrf.mxu0
        %5010 = vmatprep.mubr.bf16.mxu0 0
        %5011 = vmatmul.mubr.bf16.gmra.mxu0 %v3108
        %v5012 = vpop.f32.mrf.mxu0
        %v5013 = vpop.f32.mrf.mxu0
        %v5014 = vpop.f32.mrf.mxu0
        %v5015 = vpop.f32.mrf.mxu0
        %5016 = vmatprep.mubr.bf16.mxu0 0
        %5017 = vmatmul.mubr.bf16.gmra.mxu0 %v3111
        %v5018 = vpop.f32.mrf.mxu0
        %v5019 = vadd.f32 0.0, %v5018
        %v5020 = vpop.f32.mrf.mxu0
        %v5021 = vpop.f32.mrf.mxu0
        %v5022 = vpop.f32.mrf.mxu0
        %5023 = vmatprep.mubr.bf16.mxu0 0
        %5024 = vmatmul.mubr.bf16.gmra.mxu0 %v3114
        %v5025 = vpop.f32.mrf.mxu0
        %v5026 = vpop.f32.mrf.mxu0
        %v5027 = vpop.f32.mrf.mxu0
        %v5028 = vadd.f32 0.0, %v5027
        %v5029 = vpop.f32.mrf.mxu0
        %5030 = vmatprep.mubr.bf16.mxu0 0
        %5031 = vmatmul.mubr.bf16.gmra.mxu0 %v3117
        %v5032 = vpop.f32.mrf.mxu0
        %v5033 = vpop.f32.mrf.mxu0
        %v5034 = vpop.f32.mrf.mxu0
        %v5035 = vpop.f32.mrf.mxu0
        %5036 = vmatprep.mubr.bf16.mxu0 0
        %5037 = vmatmul.mubr.bf16.gmra.mxu0 %v3120
        %v5038 = vpop.f32.mrf.mxu0
        %v5039 = vadd.f32 0.0, %v5038
        %v5040 = vpop.f32.mrf.mxu0
        %v5041 = vpop.f32.mrf.mxu0
        %v5042 = vpop.f32.mrf.mxu0
        %5043 = vmatprep.mubr.bf16.mxu0 0
        %5044 = vmatmul.mubr.bf16.gmra.mxu0 %v3123
        %v5045 = vpop.f32.mrf.mxu0
        %v5046 = vpop.f32.mrf.mxu0
        %v5047 = vpop.f32.mrf.mxu0
        %v5048 = vadd.f32 0.0, %v5047
        %v5049 = vpop.f32.mrf.mxu0
        %5050 = vmatprep.mubr.bf16.mxu0 0
        %5051 = vmatmul.mubr.bf16.gmra.mxu0 %v3126
        %v5052 = vpop.f32.mrf.mxu0
        %v5053 = vpop.f32.mrf.mxu0
        %v5054 = vpop.f32.mrf.mxu0
        %v5055 = vpop.f32.mrf.mxu0
        %5056 = vmatprep.mubr.bf16.mxu0 0
        %5057 = vmatmul.mubr.bf16.gmra.mxu0 %v3129
        %v5058 = vpop.f32.mrf.mxu0
        %v5059 = vadd.f32 0.0, %v5058
        %v5060 = vpop.f32.mrf.mxu0
        %v5061 = vpop.f32.mrf.mxu0
        %v5062 = vpop.f32.mrf.mxu0
        %5063 = vmatprep.mubr.bf16.mxu0 0
        %5064 = vmatmul.mubr.bf16.gmra.mxu0 %v3132
        %v5065 = vpop.f32.mrf.mxu0
        %v5066 = vpop.f32.mrf.mxu0
        %v5067 = vpop.f32.mrf.mxu0
        %v5068 = vadd.f32 0.0, %v5067
        %v5069 = vpop.f32.mrf.mxu0
        %5070 = vmatprep.mubr.bf16.mxu0 0
        %5071 = vmatmul.mubr.bf16.gmra.mxu0 %v3135
        %v5072 = vpop.f32.mrf.mxu0
        %v5073 = vpop.f32.mrf.mxu0
        %v5074 = vpop.f32.mrf.mxu0
        %v5075 = vpop.f32.mrf.mxu0
        %5076 = vmatprep.mubr.bf16.mxu0 0
        %5077 = vmatmul.mubr.bf16.gmra.mxu0 %v3138
        %v5078 = vpop.f32.mrf.mxu0
        %v5079 = vpop.f32.mrf.mxu0
        %v5080 = vpop.f32.mrf.mxu0
        %v5081 = vpop.f32.mrf.mxu0
        %5082 = vmatprep.mubr.bf16.mxu0 0
        %5083 = vmatmul.mubr.bf16.gmra.mxu0 %v4954
        %v5084 = vpop.f32.mrf.mxu0
        %v5085 = vpop.f32.mrf.mxu0
        %v5086 = vpop.f32.mrf.mxu0
        %v5087 = vpop.f32.mrf.mxu0
        %5088 = vmatprep.mubr.bf16.mxu0 0
        %5089 = vmatmul.mubr.bf16.gmra.mxu0 %v4956
        %v5090 = vpop.f32.mrf.mxu0
        %v5091 = vpop.f32.mrf.mxu0
        %v5092 = vpop.f32.mrf.mxu0
        %v5093 = vpop.f32.mrf.mxu0
        %5094 = vmatprep.mubr.bf16.mxu0 0
        %5095 = vmatmul.mubr.bf16.gmra.mxu0 %v4959
        %v5096 = vpop.f32.mrf.mxu0
        %v5097 = vpop.f32.mrf.mxu0
        %v5098 = vpop.f32.mrf.mxu0
        %v5099 = vpop.f32.mrf.mxu0
        %5100 = vmatprep.mubr.bf16.mxu0 0
        %5101 = vmatmul.mubr.bf16.gmra.mxu0 %v4962
        %v5102 = vpop.f32.mrf.mxu0
        %v5103 = vpop.f32.mrf.mxu0
        %v5104 = vpop.f32.mrf.mxu0
        %v5105 = vpop.f32.mrf.mxu0
        %5106 = vdwg.mxu0
        %v5107 = vadd.f32 %v4935, %v4999
        %v5108 = vadd.f32 %v4936, %v5008
        %v5109 = vadd.f32 %v4937, %v5019
        %v5110 = vadd.f32 %v4938, %v5028
        %v5111 = vadd.f32 %v4939, %v5039
        %v5112 = vadd.f32 %v4940, %v5048
        %v5113 = vadd.f32 %v4941, %v5059
        %v5114 = vadd.f32 %v4942, %v5068
        %s5115 = scalar_lea.vmem [#allocation10], 64
        %v5116 = vld [vmem:[%s5115] sm:$0xf]
        %v5117 = vld [vmem:[%s5115 + $0x4] sm:$0xf]
        %v5119 = vunpack.c.l.b16 %v2996
        %v5120 = vpack.c.b16 %v5119, %v4755
        %v5121 = vrot.slane %v4065, 1
        %v5122 = vsel %vm1230, %v3781, %v5121
        %v5123 = vor.u32 %v4062, %v5121
        %v5124 = vshll.u32 %v4946, 16
        %v5126 = vrot.slane %v5124, 1
        %v5127 = vsel %vm1230, %v5123, %v5126
        %v5128 = vshrl.u32 %v4946, 16
        %v5130 = vor.u32 %v5128, %v5126
        %v5132 = vshll.u32 %v5120, 16
        %v5134 = vrot.slane %v5132, 1
        %v5135 = vsel %vm1230, %v5130, %v5134
        %v5136 = vshrl.u32 %v5120, 16
        %v5138 = vor.u32 %v5136, %v5134
        %v5141 = vunpack.c.l.b16 %v5116
        %v5142 = vunpack.c.l.b16 %v5117
        %v5143 = vpack.c.b16 %v5142, %v5141
        %v5146 = vsel %vm3091, %v5122, 0
        %v5149 = vsel %vm3091, %v5127, 0
        %v5152 = vsel %vm3091, %v5135, 0
        %v5155 = vsel %vm3091, %v5138, 0
        %5157 = vmatprep.subr.bf16.mxu0 0
        %5158 = vmatpush1.bf16.msra.mxu0 0
        %5159 = vmatprep.subr.bf16.mxu0 0
        %5160 = vmatpush1.bf16.msra.mxu0 0
        %5161 = vmatprep.subr.bf16.mxu0 0
        %5162 = vmatpush1.bf16.msra.mxu0 0
        %5163 = vmatprep.subr.bf16.mxu0 0
        %5164 = vmatpush1.bf16.msra.mxu0 0
        %5165 = vmatprep.subr.bf16.mxu0 0
        %5166 = vmatpush1.bf16.msra.mxu0 0
        %5167 = vmatprep.subr.bf16.mxu0 0
        %5168 = vmatpush1.bf16.msra.mxu0 0
        %5169 = vmatprep.subr.bf16.mxu0 0
        %5170 = vmatpush1.bf16.msra.mxu0 0
        %5171 = vmatprep.subr.bf16.mxu0 0
        %5172 = vmatpush1.bf16.msra.mxu0 %v5143
        %5173 = vmatprep.subr.bf16.mxu0 0
        %5174 = vmatpush2.bf16.msra.mxu0 0
        %5175 = vmatprep.subr.bf16.mxu0 0
        %5176 = vmatpush2.bf16.msra.mxu0 0
        %5177 = vmatprep.subr.bf16.mxu0 0
        %5178 = vmatpush2.bf16.msra.mxu0 0
        %5179 = vmatprep.subr.bf16.mxu0 0
        %5180 = vmatpush2.bf16.msra.mxu0 0
        %5181 = vmatprep.subr.bf16.mxu0 0
        %5182 = vmatpush2.bf16.msra.mxu0 0
        %5183 = vmatprep.subr.bf16.mxu0 0
        %5184 = vmatpush2.bf16.msra.mxu0 0
        %5185 = vmatprep.subr.bf16.mxu0 0
        %5186 = vmatpush2.bf16.msra.mxu0 0
        %5187 = vmatprep.subr.bf16.mxu0 0
        %5188 = vmatpush2.bf16.msra.mxu0 0
        %5189 = vmatprep.mubr.bf16.mxu0 0
        %5190 = vmatmul.mubr.bf16.gmra.mxu0 %v3798
        %v5191 = vpop.f32.mrf.mxu0
        %v5192 = vadd.f32 0.0, %v5191
        %v5193 = vpop.f32.mrf.mxu0
        %v5194 = vpop.f32.mrf.mxu0
        %v5195 = vpop.f32.mrf.mxu0
        %5196 = vmatprep.mubr.bf16.mxu0 0
        %5197 = vmatmul.mubr.bf16.gmra.mxu0 %v3801
        %v5198 = vpop.f32.mrf.mxu0
        %v5199 = vpop.f32.mrf.mxu0
        %v5200 = vpop.f32.mrf.mxu0
        %v5201 = vadd.f32 0.0, %v5200
        %v5202 = vpop.f32.mrf.mxu0
        %5203 = vmatprep.mubr.bf16.mxu0 0
        %5204 = vmatmul.mubr.bf16.gmra.mxu0 %v3804
        %v5205 = vpop.f32.mrf.mxu0
        %v5206 = vpop.f32.mrf.mxu0
        %v5207 = vpop.f32.mrf.mxu0
        %v5208 = vpop.f32.mrf.mxu0
        %5209 = vmatprep.mubr.bf16.mxu0 0
        %5210 = vmatmul.mubr.bf16.gmra.mxu0 %v3807
        %v5211 = vpop.f32.mrf.mxu0
        %v5212 = vadd.f32 0.0, %v5211
        %v5213 = vpop.f32.mrf.mxu0
        %v5214 = vpop.f32.mrf.mxu0
        %v5215 = vpop.f32.mrf.mxu0
        %5216 = vmatprep.mubr.bf16.mxu0 0
        %5217 = vmatmul.mubr.bf16.gmra.mxu0 %v3810
        %v5218 = vpop.f32.mrf.mxu0
        %v5219 = vpop.f32.mrf.mxu0
        %v5220 = vpop.f32.mrf.mxu0
        %v5221 = vadd.f32 0.0, %v5220
        %v5222 = vpop.f32.mrf.mxu0
        %5223 = vmatprep.mubr.bf16.mxu0 0
        %5224 = vmatmul.mubr.bf16.gmra.mxu0 %v3813
        %v5225 = vpop.f32.mrf.mxu0
        %v5226 = vpop.f32.mrf.mxu0
        %v5227 = vpop.f32.mrf.mxu0
        %v5228 = vpop.f32.mrf.mxu0
        %5229 = vmatprep.mubr.bf16.mxu0 0
        %5230 = vmatmul.mubr.bf16.gmra.mxu0 %v3816
        %v5231 = vpop.f32.mrf.mxu0
        %v5232 = vadd.f32 0.0, %v5231
        %v5233 = vpop.f32.mrf.mxu0
        %v5234 = vpop.f32.mrf.mxu0
        %v5235 = vpop.f32.mrf.mxu0
        %5236 = vmatprep.mubr.bf16.mxu0 0
        %5237 = vmatmul.mubr.bf16.gmra.mxu0 %v3819
        %v5238 = vpop.f32.mrf.mxu0
        %v5239 = vpop.f32.mrf.mxu0
        %v5240 = vpop.f32.mrf.mxu0
        %v5241 = vadd.f32 0.0, %v5240
        %v5242 = vpop.f32.mrf.mxu0
        %5243 = vmatprep.mubr.bf16.mxu0 0
        %5244 = vmatmul.mubr.bf16.gmra.mxu0 %v3822
        %v5245 = vpop.f32.mrf.mxu0
        %v5246 = vpop.f32.mrf.mxu0
        %v5247 = vpop.f32.mrf.mxu0
        %v5248 = vpop.f32.mrf.mxu0
        %5249 = vmatprep.mubr.bf16.mxu0 0
        %5250 = vmatmul.mubr.bf16.gmra.mxu0 %v3825
        %v5251 = vpop.f32.mrf.mxu0
        %v5252 = vadd.f32 0.0, %v5251
        %v5253 = vpop.f32.mrf.mxu0
        %v5254 = vpop.f32.mrf.mxu0
        %v5255 = vpop.f32.mrf.mxu0
        %5256 = vmatprep.mubr.bf16.mxu0 0
        %5257 = vmatmul.mubr.bf16.gmra.mxu0 %v3828
        %v5258 = vpop.f32.mrf.mxu0
        %v5259 = vpop.f32.mrf.mxu0
        %v5260 = vpop.f32.mrf.mxu0
        %v5261 = vadd.f32 0.0, %v5260
        %v5262 = vpop.f32.mrf.mxu0
        %5263 = vmatprep.mubr.bf16.mxu0 0
        %5264 = vmatmul.mubr.bf16.gmra.mxu0 %v3831
        %v5265 = vpop.f32.mrf.mxu0
        %v5266 = vpop.f32.mrf.mxu0
        %v5267 = vpop.f32.mrf.mxu0
        %v5268 = vpop.f32.mrf.mxu0
        %5269 = vmatprep.mubr.bf16.mxu0 0
        %5270 = vmatmul.mubr.bf16.gmra.mxu0 %v3834
        %v5271 = vpop.f32.mrf.mxu0
        %v5272 = vpop.f32.mrf.mxu0
        %v5273 = vpop.f32.mrf.mxu0
        %v5274 = vpop.f32.mrf.mxu0
        %5275 = vmatprep.mubr.bf16.mxu0 0
        %5276 = vmatmul.mubr.bf16.gmra.mxu0 %v5146
        %v5277 = vpop.f32.mrf.mxu0
        %v5278 = vpop.f32.mrf.mxu0
        %v5279 = vpop.f32.mrf.mxu0
        %v5280 = vpop.f32.mrf.mxu0
        %5281 = vmatprep.mubr.bf16.mxu0 0
        %5282 = vmatmul.mubr.bf16.gmra.mxu0 %v5149
        %v5283 = vpop.f32.mrf.mxu0
        %v5284 = vpop.f32.mrf.mxu0
        %v5285 = vpop.f32.mrf.mxu0
        %v5286 = vpop.f32.mrf.mxu0
        %5287 = vmatprep.mubr.bf16.mxu0 0
        %5288 = vmatmul.mubr.bf16.gmra.mxu0 %v5152
        %v5289 = vpop.f32.mrf.mxu0
        %v5290 = vpop.f32.mrf.mxu0
        %v5291 = vpop.f32.mrf.mxu0
        %v5292 = vpop.f32.mrf.mxu0
        %5293 = vmatprep.mubr.bf16.mxu0 0
        %5294 = vmatmul.mubr.bf16.gmra.mxu0 %v5155
        %v5295 = vpop.f32.mrf.mxu0
        %v5296 = vpop.f32.mrf.mxu0
        %v5297 = vpop.f32.mrf.mxu0
        %v5298 = vpop.f32.mrf.mxu0
        %5299 = vdwg.mxu0
        %v5300 = vadd.f32 %v5107, %v5192
        %v5301 = vadd.f32 %v5108, %v5201
        %v5302 = vadd.f32 %v5109, %v5212
        %v5303 = vadd.f32 %v5110, %v5221
        %v5304 = vadd.f32 %v5111, %v5232
        %v5305 = vadd.f32 %v5112, %v5241
        %v5306 = vadd.f32 %v5113, %v5252
        %v5307 = vadd.f32 %v5114, %v5261
        %v5308 = vadd.f32 %v2922, %v5300
        %v5309 = vadd.f32 %v2923, %v5301
        %v5310 = vadd.f32 %v2924, %v5302
        %v5311 = vadd.f32 %v2925, %v5303
        %v5312 = vadd.f32 %v2926, %v5304
        %v5313 = vadd.f32 %v2927, %v5305
        %v5314 = vadd.f32 %v2928, %v5306
        %v5315 = vadd.f32 %v2929, %v5307
        %v5316 = vld [vmem:[#allocation13] sm:$0x1]
        %v5318 = vlaneseq
        %v5319 = vshrl.u32 %v5318, 7
        %v5320 = vsub.s32 0, %v5319
        %v5321 = vrot.slane %v5316, %v5320
        %v5323 = vadd.f32 %v5308, %v5321
        %v5324 = vadd.f32 %v5309, %v5321
        %v5325 = vadd.f32 %v5310, %v5321
        %v5326 = vadd.f32 %v5311, %v5321
        %v5327 = vadd.f32 %v5312, %v5321
        %v5328 = vadd.f32 %v5313, %v5321
        %v5329 = vadd.f32 %v5314, %v5321
        %v5330 = vadd.f32 %v5315, %v5321
        %v5331 = vxor.u32 %v5323, 2147483648
        %v5332 = vxor.u32 %v5324, 2147483648
        %v5333 = vxor.u32 %v5325, 2147483648
        %v5334 = vxor.u32 %v5326, 2147483648
        %v5335 = vxor.u32 %v5327, 2147483648
        %v5336 = vxor.u32 %v5328, 2147483648
        %v5337 = vxor.u32 %v5329, 2147483648
        %v5338 = vxor.u32 %v5330, 2147483648
        %v5339 = vmul.f32 %v5331, 1.442695
        %v5340 = vpow.pop %v5339
        %v5341 = vmul.f32 %v5332, 1.442695
        %v5342 = vpow.pop %v5341
        %v5343 = vmul.f32 %v5333, 1.442695
        %v5344 = vpow.pop %v5343
        %v5345 = vmul.f32 %v5334, 1.442695
        %v5346 = vpow.pop %v5345
        %v5347 = vmul.f32 %v5335, 1.442695
        %v5348 = vpow.pop %v5347
        %v5349 = vmul.f32 %v5336, 1.442695
        %v5350 = vpow.pop %v5349
        %v5351 = vmul.f32 %v5337, 1.442695
        %v5352 = vpow.pop %v5351
        %v5353 = vmul.f32 %v5338, 1.442695
        %v5354 = vpow.pop %v5353
        %v5355 = vadd.f32 %v5340, 1.0
        %v5356 = vadd.f32 %v5342, 1.0
        %v5357 = vadd.f32 %v5344, 1.0
        %v5358 = vadd.f32 %v5346, 1.0
        %v5359 = vadd.f32 %v5348, 1.0
        %v5360 = vadd.f32 %v5350, 1.0
        %v5361 = vadd.f32 %v5352, 1.0
        %v5362 = vadd.f32 %v5354, 1.0
        %v5363 = vrcp.pop %v5355
        %v5364 = vmul.f32 1.0, %v5363
        %v5365 = vrcp.pop %v5356
        %v5366 = vmul.f32 1.0, %v5365
        %v5367 = vrcp.pop %v5357
        %v5368 = vmul.f32 1.0, %v5367
        %v5369 = vrcp.pop %v5358
        %v5370 = vmul.f32 1.0, %v5369
        %v5371 = vrcp.pop %v5359
        %v5372 = vmul.f32 1.0, %v5371
        %v5373 = vrcp.pop %v5360
        %v5374 = vmul.f32 1.0, %v5373
        %v5375 = vrcp.pop %v5361
        %v5376 = vmul.f32 1.0, %v5375
        %v5377 = vrcp.pop %v5362
        %v5378 = vmul.f32 1.0, %v5377
        %v5379 = vmul.f32 %v5364, %v2930
        %v5380 = vmul.f32 %v5366, %v2931
        %v5381 = vmul.f32 %v5368, %v2932
        %v5382 = vmul.f32 %v5370, %v2933
        %v5383 = vmul.f32 %v5372, %v2934
        %v5384 = vmul.f32 %v5374, %v2935
        %v5385 = vmul.f32 %v5376, %v2936
        %v5386 = vmul.f32 %v5378, %v2937
        %v5387 = vpack.c.bf16 %v5379, %v5379
        %v5388 = vpack.c.bf16 %v5380, %v5380
        %v5389 = vpack.c.bf16 %v5381, %v5381
        %v5390 = vpack.c.bf16 %v5382, %v5382
        %v5391 = vpack.c.bf16 %v5383, %v5383
        %v5392 = vpack.c.bf16 %v5384, %v5384
        %v5393 = vpack.c.bf16 %v5385, %v5385
        %v5394 = vpack.c.bf16 %v5386, %v5386
        %5395 = vst.msk [vmem:[%s2946 + $0x4] sm:$0xf] %vm2947, %v5387
        %5396 = vst.msk [vmem:[%s2946 + $0x10] sm:$0xf] %vm2947, %v5388
        %5397 = vst.msk [vmem:[%s2946 + $0x1c] sm:$0xf] %vm2947, %v5389
        %5398 = vst.msk [vmem:[%s2946 + $0x28] sm:$0xf] %vm2947, %v5390
        %5399 = vst.msk [vmem:[%s2946 + $0x34] sm:$0xf] %vm2947, %v5391
        %5400 = vst.msk [vmem:[%s2946 + $0x40] sm:$0xf] %vm2947, %v5392
        %5401 = vst.msk [vmem:[%s2946 + $0x4c] sm:$0xf] %vm2947, %v5393
        %5402 = vst.msk [vmem:[%s2946 + $0x58] sm:$0xf] %vm2947, %v5394
        %v5403 = vld [vmem:[#allocation3] sm:$0xf]
        %v5404 = vld [vmem:[#allocation3 + $0x4] sm:$0xf]
        %v5405 = vld [vmem:[#allocation3 + $0x8] sm:$0xf]
        %v5406 = vld [vmem:[#allocation3 + $0xc] sm:$0xf]
        %v5407 = vld [vmem:[#allocation3 + $0x10] sm:$0xf]
        %v5408 = vld [vmem:[#allocation3 + $0x14] sm:$0xf]
        %v5409 = vld [vmem:[#allocation3 + $0x18] sm:$0xf]
        %v5410 = vld [vmem:[#allocation3 + $0x1c] sm:$0xf]
        %v5411 = vld [vmem:[#allocation3 + $0x20] sm:$0xf]
        %v5412 = vld [vmem:[#allocation3 + $0x24] sm:$0xf]
        %v5413 = vld [vmem:[#allocation3 + $0x28] sm:$0xf]
        %v5414 = vld [vmem:[#allocation3 + $0x2c] sm:$0xf]
        %v5415 = vld [vmem:[#allocation3 + $0x30] sm:$0xf]
        %v5416 = vld [vmem:[#allocation3 + $0x34] sm:$0xf]
        %v5417 = vld [vmem:[#allocation3 + $0x38] sm:$0xf]
        %v5418 = vld [vmem:[#allocation3 + $0x3c] sm:$0xf]
        %v5419 = vld [vmem:[#allocation3 + $0x40] sm:$0xf]
        %v5420 = vld [vmem:[#allocation3 + $0x44] sm:$0xf]
        %v5421 = vld [vmem:[#allocation3 + $0x48] sm:$0xf]
        %v5422 = vld [vmem:[#allocation3 + $0x4c] sm:$0xf]
        %v5423 = vld [vmem:[#allocation3 + $0x50] sm:$0xf]
        %v5424 = vld [vmem:[#allocation3 + $0x54] sm:$0xf]
        %v5425 = vld [vmem:[#allocation3 + $0x58] sm:$0xf]
        %v5426 = vld [vmem:[#allocation3 + $0x5c] sm:$0xf]
        %v5427 = vld [vmem:[#allocation3 + $0x60] sm:$0xf]
        %v5428 = vld [vmem:[#allocation3 + $0x64] sm:$0xf]
        %v5429 = vld [vmem:[#allocation3 + $0x68] sm:$0xf]
        %v5430 = vld [vmem:[#allocation3 + $0x6c] sm:$0xf]
        %v5431 = vld [vmem:[#allocation3 + $0x70] sm:$0xf]
        %v5432 = vld [vmem:[#allocation3 + $0x74] sm:$0xf]
        %v5433 = vld [vmem:[#allocation3 + $0x78] sm:$0xf]
        %v5434 = vld [vmem:[#allocation3 + $0x7c] sm:$0xf]
        %v5435 = vld [vmem:[#allocation3 + $0x80] sm:$0xf]
        %v5436 = vld [vmem:[#allocation3 + $0x84] sm:$0xf]
        %v5437 = vld [vmem:[#allocation3 + $0x88] sm:$0xf]
        %v5438 = vld [vmem:[#allocation3 + $0x8c] sm:$0xf]
        %v5439 = vld [vmem:[#allocation3 + $0x90] sm:$0xf]
        %v5440 = vld [vmem:[#allocation3 + $0x94] sm:$0xf]
        %v5441 = vld [vmem:[#allocation3 + $0x98] sm:$0xf]
        %v5442 = vld [vmem:[#allocation3 + $0x9c] sm:$0xf]
        %v5443 = vld [vmem:[#allocation3 + $0xa0] sm:$0xf]
        %v5444 = vld [vmem:[#allocation12] sm:$0xf]
        %v5445 = vld [vmem:[#allocation12 + $0x4] sm:$0xf]
        %s5446 = scalar_lea.vmem [#allocation12], 8
        %v5447 = vld [vmem:[%s5446] sm:$0xf]
        %v5448 = vld [vmem:[%s5446 + $0x4] sm:$0xf]
        %v5482 = vunpack.c.l.b16 %v5404
        %v5483 = vunpack.c.l.b16 %v5405
        %v5484 = vunpack.c.l.b16 %v5406
        %v5485 = vunpack.c.l.b16 %v5407
        %v5486 = vunpack.c.l.b16 %v5408
        %v5487 = vunpack.c.l.b16 %v5409
        %v5488 = vunpack.c.l.b16 %v5410
        %v5489 = vunpack.c.l.b16 %v5411
        %v5490 = vunpack.c.l.b16 %v5412
        %v5491 = vunpack.c.l.b16 %v5413
        %v5492 = vunpack.c.l.b16 %v5414
        %v5493 = vunpack.c.l.b16 %v5415
        %v5494 = vunpack.c.l.b16 %v5416
        %v5495 = vunpack.c.l.b16 %v5417
        %v5496 = vunpack.c.l.b16 %v5418
        %v5497 = vunpack.c.l.b16 %v5419
        %v5498 = vunpack.c.l.b16 %v5420
        %v5499 = vunpack.c.l.b16 %v5421
        %v5500 = vunpack.c.l.b16 %v5422
        %v5501 = vunpack.c.l.b16 %v5423
        %v5502 = vunpack.c.l.b16 %v5424
        %v5503 = vunpack.c.l.b16 %v5425
        %v5504 = vunpack.c.l.b16 %v5426
        %v5505 = vunpack.c.l.b16 %v5427
        %v5506 = vunpack.c.l.b16 %v5428
        %v5507 = vunpack.c.l.b16 %v5429
        %v5508 = vunpack.c.l.b16 %v5430
        %v5509 = vunpack.c.l.b16 %v5431
        %v5510 = vunpack.c.l.b16 %v5432
        %v5511 = vunpack.c.l.b16 %v5433
        %v5512 = vunpack.c.l.b16 %v5434
        %v5513 = vunpack.c.l.b16 %v5435
        %v5514 = vunpack.c.l.b16 %v5436
        %v5515 = vpack.c.b16 %v5483, %v5482
        %v5516 = vpack.c.b16 %v5485, %v5484
        %v5517 = vpack.c.b16 %v5487, %v5486
        %v5518 = vpack.c.b16 %v5489, %v5488
        %v5519 = vpack.c.b16 %v5491, %v5490
        %v5520 = vpack.c.b16 %v5493, %v5492
        %v5521 = vpack.c.b16 %v5495, %v5494
        %v5522 = vpack.c.b16 %v5497, %v5496
        %v5523 = vpack.c.b16 %v5499, %v5498
        %v5524 = vpack.c.b16 %v5501, %v5500
        %v5525 = vpack.c.b16 %v5503, %v5502
        %v5526 = vpack.c.b16 %v5505, %v5504
        %v5527 = vpack.c.b16 %v5507, %v5506
        %v5528 = vpack.c.b16 %v5509, %v5508
        %v5529 = vpack.c.b16 %v5511, %v5510
        %v5530 = vpack.c.b16 %v5513, %v5512
        %v5531 = vpack.c.b16 %v5514, %v5514
        %v5534 = vunpack.c.l.b16 %v5447
        %v5535 = vunpack.c.l.b16 %v5448
        %v5536 = vpack.c.b16 %v5535, %v5534
        %v5539 = vsel %vm3091, %v5515, 0
        %v5542 = vsel %vm3091, %v5516, 0
        %v5545 = vsel %vm3091, %v5517, 0
        %v5548 = vsel %vm3091, %v5518, 0
        %v5551 = vsel %vm3091, %v5519, 0
        %v5554 = vsel %vm3091, %v5520, 0
        %v5557 = vsel %vm3091, %v5521, 0
        %v5560 = vsel %vm3091, %v5522, 0
        %v5563 = vsel %vm3091, %v5523, 0
        %v5566 = vsel %vm3091, %v5524, 0
        %v5569 = vsel %vm3091, %v5525, 0
        %v5572 = vsel %vm3091, %v5526, 0
        %v5575 = vsel %vm3091, %v5527, 0
        %v5578 = vsel %vm3091, %v5528, 0
        %v5581 = vsel %vm3091, %v5529, 0
        %v5584 = vsel %vm3091, %v5530, 0
        %v5587 = vsel %vm3091, %v5531, 0
        %5589 = vmatprep.subr.bf16.mxu0 0
        %5590 = vmatpush1.bf16.msra.mxu0 0
        %5591 = vmatprep.subr.bf16.mxu0 0
        %5592 = vmatpush1.bf16.msra.mxu0 0
        %5593 = vmatprep.subr.bf16.mxu0 0
        %5594 = vmatpush1.bf16.msra.mxu0 0
        %5595 = vmatprep.subr.bf16.mxu0 0
        %5596 = vmatpush1.bf16.msra.mxu0 0
        %5597 = vmatprep.subr.bf16.mxu0 0
        %5598 = vmatpush1.bf16.msra.mxu0 0
        %5599 = vmatprep.subr.bf16.mxu0 0
        %5600 = vmatpush1.bf16.msra.mxu0 0
        %5601 = vmatprep.subr.bf16.mxu0 0
        %5602 = vmatpush1.bf16.msra.mxu0 0
        %5603 = vmatprep.subr.bf16.mxu0 0
        %5604 = vmatpush1.bf16.msra.mxu0 %v5536
        %5605 = vmatprep.subr.bf16.mxu0 0
        %5606 = vmatpush2.bf16.msra.mxu0 0
        %5607 = vmatprep.subr.bf16.mxu0 0
        %5608 = vmatpush2.bf16.msra.mxu0 0
        %5609 = vmatprep.subr.bf16.mxu0 0
        %5610 = vmatpush2.bf16.msra.mxu0 0
        %5611 = vmatprep.subr.bf16.mxu0 0
        %5612 = vmatpush2.bf16.msra.mxu0 0
        %5613 = vmatprep.subr.bf16.mxu0 0
        %5614 = vmatpush2.bf16.msra.mxu0 0
        %5615 = vmatprep.subr.bf16.mxu0 0
        %5616 = vmatpush2.bf16.msra.mxu0 0
        %5617 = vmatprep.subr.bf16.mxu0 0
        %5618 = vmatpush2.bf16.msra.mxu0 0
        %5619 = vmatprep.subr.bf16.mxu0 0
        %5620 = vmatpush2.bf16.msra.mxu0 0
        %5621 = vmatprep.mubr.bf16.mxu0 0
        %5622 = vmatmul.mubr.bf16.gmra.mxu0 %v5539
        %v5623 = vpop.f32.mrf.mxu0
        %v5624 = vadd.f32 0.0, %v5623
        %v5625 = vpop.f32.mrf.mxu0
        %v5626 = vpop.f32.mrf.mxu0
        %v5627 = vpop.f32.mrf.mxu0
        %5628 = vmatprep.mubr.bf16.mxu0 0
        %5629 = vmatmul.mubr.bf16.gmra.mxu0 %v5542
        %v5630 = vpop.f32.mrf.mxu0
        %v5631 = vpop.f32.mrf.mxu0
        %v5632 = vpop.f32.mrf.mxu0
        %v5633 = vadd.f32 0.0, %v5632
        %v5634 = vpop.f32.mrf.mxu0
        %5635 = vmatprep.mubr.bf16.mxu0 0
        %5636 = vmatmul.mubr.bf16.gmra.mxu0 %v5545
        %v5637 = vpop.f32.mrf.mxu0
        %v5638 = vpop.f32.mrf.mxu0
        %v5639 = vpop.f32.mrf.mxu0
        %v5640 = vpop.f32.mrf.mxu0
        %5641 = vmatprep.mubr.bf16.mxu0 0
        %5642 = vmatmul.mubr.bf16.gmra.mxu0 %v5548
        %v5643 = vpop.f32.mrf.mxu0
        %v5644 = vadd.f32 0.0, %v5643
        %v5645 = vpop.f32.mrf.mxu0
        %v5646 = vpop.f32.mrf.mxu0
        %v5647 = vpop.f32.mrf.mxu0
        %5648 = vmatprep.mubr.bf16.mxu0 0
        %5649 = vmatmul.mubr.bf16.gmra.mxu0 %v5551
        %v5650 = vpop.f32.mrf.mxu0
        %v5651 = vpop.f32.mrf.mxu0
        %v5652 = vpop.f32.mrf.mxu0
        %v5653 = vadd.f32 0.0, %v5652
        %v5654 = vpop.f32.mrf.mxu0
        %5655 = vmatprep.mubr.bf16.mxu0 0
        %5656 = vmatmul.mubr.bf16.gmra.mxu0 %v5554
        %v5657 = vpop.f32.mrf.mxu0
        %v5658 = vpop.f32.mrf.mxu0
        %v5659 = vpop.f32.mrf.mxu0
        %v5660 = vpop.f32.mrf.mxu0
        %5661 = vmatprep.mubr.bf16.mxu0 0
        %5662 = vmatmul.mubr.bf16.gmra.mxu0 %v5557
        %v5663 = vpop.f32.mrf.mxu0
        %v5664 = vadd.f32 0.0, %v5663
        %v5665 = vpop.f32.mrf.mxu0
        %v5666 = vpop.f32.mrf.mxu0
        %v5667 = vpop.f32.mrf.mxu0
        %5668 = vmatprep.mubr.bf16.mxu0 0
        %5669 = vmatmul.mubr.bf16.gmra.mxu0 %v5560
        %v5670 = vpop.f32.mrf.mxu0
        %v5671 = vpop.f32.mrf.mxu0
        %v5672 = vpop.f32.mrf.mxu0
        %v5673 = vadd.f32 0.0, %v5672
        %v5674 = vpop.f32.mrf.mxu0
        %5675 = vmatprep.mubr.bf16.mxu0 0
        %5676 = vmatmul.mubr.bf16.gmra.mxu0 %v5563
        %v5677 = vpop.f32.mrf.mxu0
        %v5678 = vpop.f32.mrf.mxu0
        %v5679 = vpop.f32.mrf.mxu0
        %v5680 = vpop.f32.mrf.mxu0
        %5681 = vmatprep.mubr.bf16.mxu0 0
        %5682 = vmatmul.mubr.bf16.gmra.mxu0 %v5566
        %v5683 = vpop.f32.mrf.mxu0
        %v5684 = vadd.f32 0.0, %v5683
        %v5685 = vpop.f32.mrf.mxu0
        %v5686 = vpop.f32.mrf.mxu0
        %v5687 = vpop.f32.mrf.mxu0
        %5688 = vmatprep.mubr.bf16.mxu0 0
        %5689 = vmatmul.mubr.bf16.gmra.mxu0 %v5569
        %v5690 = vpop.f32.mrf.mxu0
        %v5691 = vpop.f32.mrf.mxu0
        %v5692 = vpop.f32.mrf.mxu0
        %v5693 = vadd.f32 0.0, %v5692
        %v5694 = vpop.f32.mrf.mxu0
        %5695 = vmatprep.mubr.bf16.mxu0 0
        %5696 = vmatmul.mubr.bf16.gmra.mxu0 %v5572
        %v5697 = vpop.f32.mrf.mxu0
        %v5698 = vpop.f32.mrf.mxu0
        %v5699 = vpop.f32.mrf.mxu0
        %v5700 = vpop.f32.mrf.mxu0
        %5701 = vmatprep.mubr.bf16.mxu0 0
        %5702 = vmatmul.mubr.bf16.gmra.mxu0 %v5575
        %v5703 = vpop.f32.mrf.mxu0
        %v5704 = vpop.f32.mrf.mxu0
        %v5705 = vpop.f32.mrf.mxu0
        %v5706 = vpop.f32.mrf.mxu0
        %5707 = vmatprep.mubr.bf16.mxu0 0
        %5708 = vmatmul.mubr.bf16.gmra.mxu0 %v5578
        %v5709 = vpop.f32.mrf.mxu0
        %v5710 = vpop.f32.mrf.mxu0
        %v5711 = vpop.f32.mrf.mxu0
        %v5712 = vpop.f32.mrf.mxu0
        %5713 = vmatprep.mubr.bf16.mxu0 0
        %5714 = vmatmul.mubr.bf16.gmra.mxu0 %v5581
        %v5715 = vpop.f32.mrf.mxu0
        %v5716 = vpop.f32.mrf.mxu0
        %v5717 = vpop.f32.mrf.mxu0
        %v5718 = vpop.f32.mrf.mxu0
        %5719 = vmatprep.mubr.bf16.mxu0 0
        %5720 = vmatmul.mubr.bf16.gmra.mxu0 %v5584
        %v5721 = vpop.f32.mrf.mxu0
        %v5722 = vpop.f32.mrf.mxu0
        %v5723 = vpop.f32.mrf.mxu0
        %v5724 = vpop.f32.mrf.mxu0
        %5725 = vmatprep.mubr.bf16.mxu0 0
        %5726 = vmatmul.mubr.bf16.gmra.mxu0 %v5587
        %v5727 = vpop.f32.mrf.mxu0
        %v5728 = vpop.f32.mrf.mxu0
        %v5729 = vpop.f32.mrf.mxu0
        %v5730 = vpop.f32.mrf.mxu0
        %5731 = vdwg.mxu0
        %v5733 = vunpack.c.l.b16 %v5403
        %v5734 = vpack.c.b16 %v5482, %v5733
        %v5735 = vpack.c.b16 %v5484, %v5483
        %v5736 = vpack.c.b16 %v5486, %v5485
        %v5737 = vpack.c.b16 %v5488, %v5487
        %v5738 = vpack.c.b16 %v5490, %v5489
        %v5739 = vpack.c.b16 %v5492, %v5491
        %v5740 = vpack.c.b16 %v5494, %v5493
        %v5741 = vpack.c.b16 %v5496, %v5495
        %v5742 = vpack.c.b16 %v5498, %v5497
        %v5743 = vpack.c.b16 %v5500, %v5499
        %v5744 = vpack.c.b16 %v5502, %v5501
        %v5745 = vpack.c.b16 %v5504, %v5503
        %v5746 = vpack.c.b16 %v5506, %v5505
        %v5747 = vpack.c.b16 %v5508, %v5507
        %v5748 = vpack.c.b16 %v5510, %v5509
        %v5749 = vpack.c.b16 %v5512, %v5511
        %v5750 = vpack.c.b16 %v5514, %v5513
        %v5752 = vshrl.u32 %v5734, 16
        %v5754 = vrot.slane %v5752, 3
        %v5755 = vshll.u32 %v5734, 16
        %v5757 = vrot.slane %v5755, 4
        %v5758 = vor.u32 %v5754, %v5757
        %v5760 = vshrl.u32 %v5735, 16
        %v5762 = vrot.slane %v5760, 3
        %v5763 = vshll.u32 %v5735, 16
        %v5765 = vrot.slane %v5763, 4
        %v5766 = vor.u32 %v5762, %v5765
        %v5767 = vsel %vm863, %v5758, %v5766
        %v5769 = vshrl.u32 %v5736, 16
        %v5771 = vrot.slane %v5769, 3
        %v5772 = vshll.u32 %v5736, 16
        %v5774 = vrot.slane %v5772, 4
        %v5775 = vor.u32 %v5771, %v5774
        %v5776 = vsel %vm863, %v5766, %v5775
        %v5778 = vshrl.u32 %v5737, 16
        %v5780 = vrot.slane %v5778, 3
        %v5781 = vshll.u32 %v5737, 16
        %v5783 = vrot.slane %v5781, 4
        %v5784 = vor.u32 %v5780, %v5783
        %v5785 = vsel %vm863, %v5775, %v5784
        %v5787 = vshrl.u32 %v5738, 16
        %v5789 = vrot.slane %v5787, 3
        %v5790 = vshll.u32 %v5738, 16
        %v5792 = vrot.slane %v5790, 4
        %v5793 = vor.u32 %v5789, %v5792
        %v5794 = vsel %vm863, %v5784, %v5793
        %v5796 = vshrl.u32 %v5739, 16
        %v5798 = vrot.slane %v5796, 3
        %v5799 = vshll.u32 %v5739, 16
        %v5801 = vrot.slane %v5799, 4
        %v5802 = vor.u32 %v5798, %v5801
        %v5803 = vsel %vm863, %v5793, %v5802
        %v5805 = vshrl.u32 %v5740, 16
        %v5807 = vrot.slane %v5805, 3
        %v5808 = vshll.u32 %v5740, 16
        %v5810 = vrot.slane %v5808, 4
        %v5811 = vor.u32 %v5807, %v5810
        %v5812 = vsel %vm863, %v5802, %v5811
        %v5814 = vshrl.u32 %v5741, 16
        %v5816 = vrot.slane %v5814, 3
        %v5817 = vshll.u32 %v5741, 16
        %v5819 = vrot.slane %v5817, 4
        %v5820 = vor.u32 %v5816, %v5819
        %v5821 = vsel %vm863, %v5811, %v5820
        %v5823 = vshrl.u32 %v5742, 16
        %v5825 = vrot.slane %v5823, 3
        %v5826 = vshll.u32 %v5742, 16
        %v5828 = vrot.slane %v5826, 4
        %v5829 = vor.u32 %v5825, %v5828
        %v5830 = vsel %vm863, %v5820, %v5829
        %v5832 = vshrl.u32 %v5743, 16
        %v5834 = vrot.slane %v5832, 3
        %v5835 = vshll.u32 %v5743, 16
        %v5837 = vrot.slane %v5835, 4
        %v5838 = vor.u32 %v5834, %v5837
        %v5839 = vsel %vm863, %v5829, %v5838
        %v5841 = vshrl.u32 %v5744, 16
        %v5843 = vrot.slane %v5841, 3
        %v5844 = vshll.u32 %v5744, 16
        %v5846 = vrot.slane %v5844, 4
        %v5847 = vor.u32 %v5843, %v5846
        %v5848 = vsel %vm863, %v5838, %v5847
        %v5850 = vshrl.u32 %v5745, 16
        %v5852 = vrot.slane %v5850, 3
        %v5853 = vshll.u32 %v5745, 16
        %v5855 = vrot.slane %v5853, 4
        %v5856 = vor.u32 %v5852, %v5855
        %v5857 = vsel %vm863, %v5847, %v5856
        %v5859 = vshrl.u32 %v5746, 16
        %v5861 = vrot.slane %v5859, 3
        %v5862 = vshll.u32 %v5746, 16
        %v5864 = vrot.slane %v5862, 4
        %v5865 = vor.u32 %v5861, %v5864
        %v5866 = vsel %vm863, %v5856, %v5865
        %v5868 = vshrl.u32 %v5747, 16
        %v5870 = vrot.slane %v5868, 3
        %v5871 = vshll.u32 %v5747, 16
        %v5873 = vrot.slane %v5871, 4
        %v5874 = vor.u32 %v5870, %v5873
        %v5875 = vsel %vm863, %v5865, %v5874
        %v5877 = vshrl.u32 %v5748, 16
        %v5879 = vrot.slane %v5877, 3
        %v5880 = vshll.u32 %v5748, 16
        %v5882 = vrot.slane %v5880, 4
        %v5883 = vor.u32 %v5879, %v5882
        %v5884 = vsel %vm863, %v5874, %v5883
        %v5886 = vshrl.u32 %v5749, 16
        %v5888 = vrot.slane %v5886, 3
        %v5889 = vshll.u32 %v5749, 16
        %v5891 = vrot.slane %v5889, 4
        %v5892 = vor.u32 %v5888, %v5891
        %v5893 = vsel %vm863, %v5883, %v5892
        %v5895 = vshrl.u32 %v5750, 16
        %v5897 = vrot.slane %v5895, 3
        %v5898 = vshll.u32 %v5750, 16
        %v5900 = vrot.slane %v5898, 4
        %v5901 = vor.u32 %v5897, %v5900
        %v5902 = vsel %vm863, %v5892, %v5901
        %v5905 = vunpack.c.l.b16 %v5444
        %v5906 = vunpack.c.l.b16 %v5445
        %v5907 = vpack.c.b16 %v5906, %v5905
        %v5910 = vsel %vm3091, %v5767, 0
        %v5913 = vsel %vm3091, %v5776, 0
        %v5916 = vsel %vm3091, %v5785, 0
        %v5919 = vsel %vm3091, %v5794, 0
        %v5922 = vsel %vm3091, %v5803, 0
        %v5925 = vsel %vm3091, %v5812, 0
        %v5928 = vsel %vm3091, %v5821, 0
        %v5931 = vsel %vm3091, %v5830, 0
        %v5934 = vsel %vm3091, %v5839, 0
        %v5937 = vsel %vm3091, %v5848, 0
        %v5940 = vsel %vm3091, %v5857, 0
        %v5943 = vsel %vm3091, %v5866, 0
        %v5946 = vsel %vm3091, %v5875, 0
        %v5949 = vsel %vm3091, %v5884, 0
        %v5952 = vsel %vm3091, %v5893, 0
        %v5955 = vsel %vm3091, %v5902, 0
        %v5958 = vsel %vm3091, %v5901, 0
        %5960 = vmatprep.subr.bf16.mxu0 0
        %5961 = vmatpush1.bf16.msra.mxu0 0
        %5962 = vmatprep.subr.bf16.mxu0 0
        %5963 = vmatpush1.bf16.msra.mxu0 0
        %5964 = vmatprep.subr.bf16.mxu0 0
        %5965 = vmatpush1.bf16.msra.mxu0 0
        %5966 = vmatprep.subr.bf16.mxu0 0
        %5967 = vmatpush1.bf16.msra.mxu0 0
        %5968 = vmatprep.subr.bf16.mxu0 0
        %5969 = vmatpush1.bf16.msra.mxu0 0
        %5970 = vmatprep.subr.bf16.mxu0 0
        %5971 = vmatpush1.bf16.msra.mxu0 0
        %5972 = vmatprep.subr.bf16.mxu0 0
        %5973 = vmatpush1.bf16.msra.mxu0 0
        %5974 = vmatprep.subr.bf16.mxu0 0
        %5975 = vmatpush1.bf16.msra.mxu0 %v5907
        %5976 = vmatprep.subr.bf16.mxu0 0
        %5977 = vmatpush2.bf16.msra.mxu0 0
        %5978 = vmatprep.subr.bf16.mxu0 0
        %5979 = vmatpush2.bf16.msra.mxu0 0
        %5980 = vmatprep.subr.bf16.mxu0 0
        %5981 = vmatpush2.bf16.msra.mxu0 0
        %5982 = vmatprep.subr.bf16.mxu0 0
        %5983 = vmatpush2.bf16.msra.mxu0 0
        %5984 = vmatprep.subr.bf16.mxu0 0
        %5985 = vmatpush2.bf16.msra.mxu0 0
        %5986 = vmatprep.subr.bf16.mxu0 0
        %5987 = vmatpush2.bf16.msra.mxu0 0
        %5988 = vmatprep.subr.bf16.mxu0 0
        %5989 = vmatpush2.bf16.msra.mxu0 0
        %5990 = vmatprep.subr.bf16.mxu0 0
        %5991 = vmatpush2.bf16.msra.mxu0 0
        %5992 = vmatprep.mubr.bf16.mxu0 0
        %5993 = vmatmul.mubr.bf16.gmra.mxu0 %v5910
        %v5994 = vpop.f32.mrf.mxu0
        %v5995 = vadd.f32 %v5624, %v5994
        %v5996 = vpop.f32.mrf.mxu0
        %v5997 = vpop.f32.mrf.mxu0
        %v5998 = vpop.f32.mrf.mxu0
        %5999 = vmatprep.mubr.bf16.mxu0 0
        %6000 = vmatmul.mubr.bf16.gmra.mxu0 %v5913
        %v6001 = vpop.f32.mrf.mxu0
        %v6002 = vpop.f32.mrf.mxu0
        %v6003 = vpop.f32.mrf.mxu0
        %v6004 = vadd.f32 %v5633, %v6003
        %v6005 = vpop.f32.mrf.mxu0
        %6006 = vmatprep.mubr.bf16.mxu0 0
        %6007 = vmatmul.mubr.bf16.gmra.mxu0 %v5916
        %v6008 = vpop.f32.mrf.mxu0
        %v6009 = vpop.f32.mrf.mxu0
        %v6010 = vpop.f32.mrf.mxu0
        %v6011 = vpop.f32.mrf.mxu0
        %6012 = vmatprep.mubr.bf16.mxu0 0
        %6013 = vmatmul.mubr.bf16.gmra.mxu0 %v5919
        %v6014 = vpop.f32.mrf.mxu0
        %v6015 = vadd.f32 %v5644, %v6014
        %v6016 = vpop.f32.mrf.mxu0
        %v6017 = vpop.f32.mrf.mxu0
        %v6018 = vpop.f32.mrf.mxu0
        %6019 = vmatprep.mubr.bf16.mxu0 0
        %6020 = vmatmul.mubr.bf16.gmra.mxu0 %v5922
        %v6021 = vpop.f32.mrf.mxu0
        %v6022 = vpop.f32.mrf.mxu0
        %v6023 = vpop.f32.mrf.mxu0
        %v6024 = vadd.f32 %v5653, %v6023
        %v6025 = vpop.f32.mrf.mxu0
        %6026 = vmatprep.mubr.bf16.mxu0 0
        %6027 = vmatmul.mubr.bf16.gmra.mxu0 %v5925
        %v6028 = vpop.f32.mrf.mxu0
        %v6029 = vpop.f32.mrf.mxu0
        %v6030 = vpop.f32.mrf.mxu0
        %v6031 = vpop.f32.mrf.mxu0
        %6032 = vmatprep.mubr.bf16.mxu0 0
        %6033 = vmatmul.mubr.bf16.gmra.mxu0 %v5928
        %v6034 = vpop.f32.mrf.mxu0
        %v6035 = vadd.f32 %v5664, %v6034
        %v6036 = vpop.f32.mrf.mxu0
        %v6037 = vpop.f32.mrf.mxu0
        %v6038 = vpop.f32.mrf.mxu0
        %6039 = vmatprep.mubr.bf16.mxu0 0
        %6040 = vmatmul.mubr.bf16.gmra.mxu0 %v5931
        %v6041 = vpop.f32.mrf.mxu0
        %v6042 = vpop.f32.mrf.mxu0
        %v6043 = vpop.f32.mrf.mxu0
        %v6044 = vadd.f32 %v5673, %v6043
        %v6045 = vpop.f32.mrf.mxu0
        %6046 = vmatprep.mubr.bf16.mxu0 0
        %6047 = vmatmul.mubr.bf16.gmra.mxu0 %v5934
        %v6048 = vpop.f32.mrf.mxu0
        %v6049 = vpop.f32.mrf.mxu0
        %v6050 = vpop.f32.mrf.mxu0
        %v6051 = vpop.f32.mrf.mxu0
        %6052 = vmatprep.mubr.bf16.mxu0 0
        %6053 = vmatmul.mubr.bf16.gmra.mxu0 %v5937
        %v6054 = vpop.f32.mrf.mxu0
        %v6055 = vadd.f32 %v5684, %v6054
        %v6056 = vpop.f32.mrf.mxu0
        %v6057 = vpop.f32.mrf.mxu0
        %v6058 = vpop.f32.mrf.mxu0
        %6059 = vmatprep.mubr.bf16.mxu0 0
        %6060 = vmatmul.mubr.bf16.gmra.mxu0 %v5940
        %v6061 = vpop.f32.mrf.mxu0
        %v6062 = vpop.f32.mrf.mxu0
        %v6063 = vpop.f32.mrf.mxu0
        %v6064 = vadd.f32 %v5693, %v6063
        %v6065 = vpop.f32.mrf.mxu0
        %6066 = vmatprep.mubr.bf16.mxu0 0
        %6067 = vmatmul.mubr.bf16.gmra.mxu0 %v5943
        %v6068 = vpop.f32.mrf.mxu0
        %v6069 = vpop.f32.mrf.mxu0
        %v6070 = vpop.f32.mrf.mxu0
        %v6071 = vpop.f32.mrf.mxu0
        %6072 = vmatprep.mubr.bf16.mxu0 0
        %6073 = vmatmul.mubr.bf16.gmra.mxu0 %v5946
        %v6074 = vpop.f32.mrf.mxu0
        %v6075 = vpop.f32.mrf.mxu0
        %v6076 = vpop.f32.mrf.mxu0
        %v6077 = vpop.f32.mrf.mxu0
        %6078 = vmatprep.mubr.bf16.mxu0 0
        %6079 = vmatmul.mubr.bf16.gmra.mxu0 %v5949
        %v6080 = vpop.f32.mrf.mxu0
        %v6081 = vpop.f32.mrf.mxu0
        %v6082 = vpop.f32.mrf.mxu0
        %v6083 = vpop.f32.mrf.mxu0
        %6084 = vmatprep.mubr.bf16.mxu0 0
        %6085 = vmatmul.mubr.bf16.gmra.mxu0 %v5952
        %v6086 = vpop.f32.mrf.mxu0
        %v6087 = vpop.f32.mrf.mxu0
        %v6088 = vpop.f32.mrf.mxu0
        %v6089 = vpop.f32.mrf.mxu0
        %6090 = vmatprep.mubr.bf16.mxu0 0
        %6091 = vmatmul.mubr.bf16.gmra.mxu0 %v5955
        %v6092 = vpop.f32.mrf.mxu0
        %v6093 = vpop.f32.mrf.mxu0
        %v6094 = vpop.f32.mrf.mxu0
        %v6095 = vpop.f32.mrf.mxu0
        %6096 = vmatprep.mubr.bf16.mxu0 0
        %6097 = vmatmul.mubr.bf16.gmra.mxu0 %v5958
        %v6098 = vpop.f32.mrf.mxu0
        %v6099 = vpop.f32.mrf.mxu0
        %v6100 = vpop.f32.mrf.mxu0
        %v6101 = vpop.f32.mrf.mxu0
        %6102 = vdwg.mxu0
        %s6103 = scalar_lea.vmem [#allocation12], 16
        %v6104 = vld [vmem:[%s6103] sm:$0xf]
        %v6105 = vld [vmem:[%s6103 + $0x4] sm:$0xf]
        %v6107 = vunpack.c.l.b16 %v5437
        %v6108 = vpack.c.b16 %v6107, %v5514
        %v6109 = vshrl.u32 %v5515, 16
        %v6111 = vshll.u32 %v5515, 16
        %v6113 = vrot.slane %v6111, 1
        %v6114 = vor.u32 %v6109, %v6113
        %v6115 = vshll.u32 %v5516, 16
        %v6117 = vrot.slane %v6115, 1
        %v6118 = vsel %vm1230, %v6114, %v6117
        %v6119 = vshrl.u32 %v5516, 16
        %v6121 = vor.u32 %v6119, %v6117
        %v6122 = vshll.u32 %v5517, 16
        %v6124 = vrot.slane %v6122, 1
        %v6125 = vsel %vm1230, %v6121, %v6124
        %v6126 = vshrl.u32 %v5517, 16
        %v6128 = vor.u32 %v6126, %v6124
        %v6129 = vshll.u32 %v5518, 16
        %v6131 = vrot.slane %v6129, 1
        %v6132 = vsel %vm1230, %v6128, %v6131
        %v6133 = vshrl.u32 %v5518, 16
        %v6135 = vor.u32 %v6133, %v6131
        %v6136 = vshll.u32 %v5519, 16
        %v6138 = vrot.slane %v6136, 1
        %v6139 = vsel %vm1230, %v6135, %v6138
        %v6140 = vshrl.u32 %v5519, 16
        %v6142 = vor.u32 %v6140, %v6138
        %v6143 = vshll.u32 %v5520, 16
        %v6145 = vrot.slane %v6143, 1
        %v6146 = vsel %vm1230, %v6142, %v6145
        %v6147 = vshrl.u32 %v5520, 16
        %v6149 = vor.u32 %v6147, %v6145
        %v6150 = vshll.u32 %v5521, 16
        %v6152 = vrot.slane %v6150, 1
        %v6153 = vsel %vm1230, %v6149, %v6152
        %v6154 = vshrl.u32 %v5521, 16
        %v6156 = vor.u32 %v6154, %v6152
        %v6157 = vshll.u32 %v5522, 16
        %v6159 = vrot.slane %v6157, 1
        %v6160 = vsel %vm1230, %v6156, %v6159
        %v6161 = vshrl.u32 %v5522, 16
        %v6163 = vor.u32 %v6161, %v6159
        %v6164 = vshll.u32 %v5523, 16
        %v6166 = vrot.slane %v6164, 1
        %v6167 = vsel %vm1230, %v6163, %v6166
        %v6168 = vshrl.u32 %v5523, 16
        %v6170 = vor.u32 %v6168, %v6166
        %v6171 = vshll.u32 %v5524, 16
        %v6173 = vrot.slane %v6171, 1
        %v6174 = vsel %vm1230, %v6170, %v6173
        %v6175 = vshrl.u32 %v5524, 16
        %v6177 = vor.u32 %v6175, %v6173
        %v6178 = vshll.u32 %v5525, 16
        %v6180 = vrot.slane %v6178, 1
        %v6181 = vsel %vm1230, %v6177, %v6180
        %v6182 = vshrl.u32 %v5525, 16
        %v6184 = vor.u32 %v6182, %v6180
        %v6185 = vshll.u32 %v5526, 16
        %v6187 = vrot.slane %v6185, 1
        %v6188 = vsel %vm1230, %v6184, %v6187
        %v6189 = vshrl.u32 %v5526, 16
        %v6191 = vor.u32 %v6189, %v6187
        %v6192 = vshll.u32 %v5527, 16
        %v6194 = vrot.slane %v6192, 1
        %v6195 = vsel %vm1230, %v6191, %v6194
        %v6196 = vshrl.u32 %v5527, 16
        %v6198 = vor.u32 %v6196, %v6194
        %v6199 = vshll.u32 %v5528, 16
        %v6201 = vrot.slane %v6199, 1
        %v6202 = vsel %vm1230, %v6198, %v6201
        %v6203 = vshrl.u32 %v5528, 16
        %v6205 = vor.u32 %v6203, %v6201
        %v6206 = vshll.u32 %v5529, 16
        %v6208 = vrot.slane %v6206, 1
        %v6209 = vsel %vm1230, %v6205, %v6208
        %v6210 = vshrl.u32 %v5529, 16
        %v6212 = vor.u32 %v6210, %v6208
        %v6213 = vshll.u32 %v5530, 16
        %v6215 = vrot.slane %v6213, 1
        %v6216 = vsel %vm1230, %v6212, %v6215
        %v6217 = vshrl.u32 %v5530, 16
        %v6219 = vor.u32 %v6217, %v6215
        %v6221 = vshll.u32 %v6108, 16
        %v6223 = vrot.slane %v6221, 1
        %v6224 = vsel %vm1230, %v6219, %v6223
        %v6225 = vshrl.u32 %v6108, 16
        %v6227 = vor.u32 %v6225, %v6223
        %v6230 = vunpack.c.l.b16 %v6104
        %v6231 = vunpack.c.l.b16 %v6105
        %v6232 = vpack.c.b16 %v6231, %v6230
        %v6235 = vsel %vm3091, %v6118, 0
        %v6238 = vsel %vm3091, %v6125, 0
        %v6241 = vsel %vm3091, %v6132, 0
        %v6244 = vsel %vm3091, %v6139, 0
        %v6247 = vsel %vm3091, %v6146, 0
        %v6250 = vsel %vm3091, %v6153, 0
        %v6253 = vsel %vm3091, %v6160, 0
        %v6256 = vsel %vm3091, %v6167, 0
        %v6259 = vsel %vm3091, %v6174, 0
        %v6262 = vsel %vm3091, %v6181, 0
        %v6265 = vsel %vm3091, %v6188, 0
        %v6268 = vsel %vm3091, %v6195, 0
        %v6271 = vsel %vm3091, %v6202, 0
        %v6274 = vsel %vm3091, %v6209, 0
        %v6277 = vsel %vm3091, %v6216, 0
        %v6280 = vsel %vm3091, %v6224, 0
        %v6283 = vsel %vm3091, %v6227, 0
        %6285 = vmatprep.subr.bf16.mxu0 0
        %6286 = vmatpush1.bf16.msra.mxu0 0
        %6287 = vmatprep.subr.bf16.mxu0 0
        %6288 = vmatpush1.bf16.msra.mxu0 0
        %6289 = vmatprep.subr.bf16.mxu0 0
        %6290 = vmatpush1.bf16.msra.mxu0 0
        %6291 = vmatprep.subr.bf16.mxu0 0
        %6292 = vmatpush1.bf16.msra.mxu0 0
        %6293 = vmatprep.subr.bf16.mxu0 0
        %6294 = vmatpush1.bf16.msra.mxu0 0
        %6295 = vmatprep.subr.bf16.mxu0 0
        %6296 = vmatpush1.bf16.msra.mxu0 0
        %6297 = vmatprep.subr.bf16.mxu0 0
        %6298 = vmatpush1.bf16.msra.mxu0 0
        %6299 = vmatprep.subr.bf16.mxu0 0
        %6300 = vmatpush1.bf16.msra.mxu0 %v6232
        %6301 = vmatprep.subr.bf16.mxu0 0
        %6302 = vmatpush2.bf16.msra.mxu0 0
        %6303 = vmatprep.subr.bf16.mxu0 0
        %6304 = vmatpush2.bf16.msra.mxu0 0
        %6305 = vmatprep.subr.bf16.mxu0 0
        %6306 = vmatpush2.bf16.msra.mxu0 0
        %6307 = vmatprep.subr.bf16.mxu0 0
        %6308 = vmatpush2.bf16.msra.mxu0 0
        %6309 = vmatprep.subr.bf16.mxu0 0
        %6310 = vmatpush2.bf16.msra.mxu0 0
        %6311 = vmatprep.subr.bf16.mxu0 0
        %6312 = vmatpush2.bf16.msra.mxu0 0
        %6313 = vmatprep.subr.bf16.mxu0 0
        %6314 = vmatpush2.bf16.msra.mxu0 0
        %6315 = vmatprep.subr.bf16.mxu0 0
        %6316 = vmatpush2.bf16.msra.mxu0 0
        %6317 = vmatprep.mubr.bf16.mxu0 0
        %6318 = vmatmul.mubr.bf16.gmra.mxu0 %v6235
        %v6319 = vpop.f32.mrf.mxu0
        %v6320 = vadd.f32 0.0, %v6319
        %v6321 = vpop.f32.mrf.mxu0
        %v6322 = vpop.f32.mrf.mxu0
        %v6323 = vpop.f32.mrf.mxu0
        %6324 = vmatprep.mubr.bf16.mxu0 0
        %6325 = vmatmul.mubr.bf16.gmra.mxu0 %v6238
        %v6326 = vpop.f32.mrf.mxu0
        %v6327 = vpop.f32.mrf.mxu0
        %v6328 = vpop.f32.mrf.mxu0
        %v6329 = vadd.f32 0.0, %v6328
        %v6330 = vpop.f32.mrf.mxu0
        %6331 = vmatprep.mubr.bf16.mxu0 0
        %6332 = vmatmul.mubr.bf16.gmra.mxu0 %v6241
        %v6333 = vpop.f32.mrf.mxu0
        %v6334 = vpop.f32.mrf.mxu0
        %v6335 = vpop.f32.mrf.mxu0
        %v6336 = vpop.f32.mrf.mxu0
        %6337 = vmatprep.mubr.bf16.mxu0 0
        %6338 = vmatmul.mubr.bf16.gmra.mxu0 %v6244
        %v6339 = vpop.f32.mrf.mxu0
        %v6340 = vadd.f32 0.0, %v6339
        %v6341 = vpop.f32.mrf.mxu0
        %v6342 = vpop.f32.mrf.mxu0
        %v6343 = vpop.f32.mrf.mxu0
        %6344 = vmatprep.mubr.bf16.mxu0 0
        %6345 = vmatmul.mubr.bf16.gmra.mxu0 %v6247
        %v6346 = vpop.f32.mrf.mxu0
        %v6347 = vpop.f32.mrf.mxu0
        %v6348 = vpop.f32.mrf.mxu0
        %v6349 = vadd.f32 0.0, %v6348
        %v6350 = vpop.f32.mrf.mxu0
        %6351 = vmatprep.mubr.bf16.mxu0 0
        %6352 = vmatmul.mubr.bf16.gmra.mxu0 %v6250
        %v6353 = vpop.f32.mrf.mxu0
        %v6354 = vpop.f32.mrf.mxu0
        %v6355 = vpop.f32.mrf.mxu0
        %v6356 = vpop.f32.mrf.mxu0
        %6357 = vmatprep.mubr.bf16.mxu0 0
        %6358 = vmatmul.mubr.bf16.gmra.mxu0 %v6253
        %v6359 = vpop.f32.mrf.mxu0
        %v6360 = vadd.f32 0.0, %v6359
        %v6361 = vpop.f32.mrf.mxu0
        %v6362 = vpop.f32.mrf.mxu0
        %v6363 = vpop.f32.mrf.mxu0
        %6364 = vmatprep.mubr.bf16.mxu0 0
        %6365 = vmatmul.mubr.bf16.gmra.mxu0 %v6256
        %v6366 = vpop.f32.mrf.mxu0
        %v6367 = vpop.f32.mrf.mxu0
        %v6368 = vpop.f32.mrf.mxu0
        %v6369 = vadd.f32 0.0, %v6368
        %v6370 = vpop.f32.mrf.mxu0
        %6371 = vmatprep.mubr.bf16.mxu0 0
        %6372 = vmatmul.mubr.bf16.gmra.mxu0 %v6259
        %v6373 = vpop.f32.mrf.mxu0
        %v6374 = vpop.f32.mrf.mxu0
        %v6375 = vpop.f32.mrf.mxu0
        %v6376 = vpop.f32.mrf.mxu0
        %6377 = vmatprep.mubr.bf16.mxu0 0
        %6378 = vmatmul.mubr.bf16.gmra.mxu0 %v6262
        %v6379 = vpop.f32.mrf.mxu0
        %v6380 = vadd.f32 0.0, %v6379
        %v6381 = vpop.f32.mrf.mxu0
        %v6382 = vpop.f32.mrf.mxu0
        %v6383 = vpop.f32.mrf.mxu0
        %6384 = vmatprep.mubr.bf16.mxu0 0
        %6385 = vmatmul.mubr.bf16.gmra.mxu0 %v6265
        %v6386 = vpop.f32.mrf.mxu0
        %v6387 = vpop.f32.mrf.mxu0
        %v6388 = vpop.f32.mrf.mxu0
        %v6389 = vadd.f32 0.0, %v6388
        %v6390 = vpop.f32.mrf.mxu0
        %6391 = vmatprep.mubr.bf16.mxu0 0
        %6392 = vmatmul.mubr.bf16.gmra.mxu0 %v6268
        %v6393 = vpop.f32.mrf.mxu0
        %v6394 = vpop.f32.mrf.mxu0
        %v6395 = vpop.f32.mrf.mxu0
        %v6396 = vpop.f32.mrf.mxu0
        %6397 = vmatprep.mubr.bf16.mxu0 0
        %6398 = vmatmul.mubr.bf16.gmra.mxu0 %v6271
        %v6399 = vpop.f32.mrf.mxu0
        %v6400 = vpop.f32.mrf.mxu0
        %v6401 = vpop.f32.mrf.mxu0
        %v6402 = vpop.f32.mrf.mxu0
        %6403 = vmatprep.mubr.bf16.mxu0 0
        %6404 = vmatmul.mubr.bf16.gmra.mxu0 %v6274
        %v6405 = vpop.f32.mrf.mxu0
        %v6406 = vpop.f32.mrf.mxu0
        %v6407 = vpop.f32.mrf.mxu0
        %v6408 = vpop.f32.mrf.mxu0
        %6409 = vmatprep.mubr.bf16.mxu0 0
        %6410 = vmatmul.mubr.bf16.gmra.mxu0 %v6277
        %v6411 = vpop.f32.mrf.mxu0
        %v6412 = vpop.f32.mrf.mxu0
        %v6413 = vpop.f32.mrf.mxu0
        %v6414 = vpop.f32.mrf.mxu0
        %6415 = vmatprep.mubr.bf16.mxu0 0
        %6416 = vmatmul.mubr.bf16.gmra.mxu0 %v6280
        %v6417 = vpop.f32.mrf.mxu0
        %v6418 = vpop.f32.mrf.mxu0
        %v6419 = vpop.f32.mrf.mxu0
        %v6420 = vpop.f32.mrf.mxu0
        %6421 = vmatprep.mubr.bf16.mxu0 0
        %6422 = vmatmul.mubr.bf16.gmra.mxu0 %v6283
        %v6423 = vpop.f32.mrf.mxu0
        %v6424 = vpop.f32.mrf.mxu0
        %v6425 = vpop.f32.mrf.mxu0
        %v6426 = vpop.f32.mrf.mxu0
        %6427 = vdwg.mxu0
        %v6428 = vadd.f32 %v5995, %v6320
        %v6429 = vadd.f32 %v6004, %v6329
        %v6430 = vadd.f32 %v6015, %v6340
        %v6431 = vadd.f32 %v6024, %v6349
        %v6432 = vadd.f32 %v6035, %v6360
        %v6433 = vadd.f32 %v6044, %v6369
        %v6434 = vadd.f32 %v6055, %v6380
        %v6435 = vadd.f32 %v6064, %v6389
        %s6436 = scalar_lea.vmem [#allocation12], 24
        %v6437 = vld [vmem:[%s6436] sm:$0xf]
        %v6438 = vld [vmem:[%s6436 + $0x4] sm:$0xf]
        %v6441 = vunpack.c.l.b16 %v5438
        %v6442 = vunpack.c.l.b16 %v5439
        %v6443 = vpack.c.b16 %v6442, %v6441
        %v6444 = vrot.slane %v6119, 3
        %v6445 = vrot.slane %v6115, 4
        %v6446 = vor.u32 %v6444, %v6445
        %v6447 = vrot.slane %v6126, 3
        %v6448 = vrot.slane %v6122, 4
        %v6449 = vor.u32 %v6447, %v6448
        %v6450 = vsel %vm863, %v6446, %v6449
        %v6451 = vrot.slane %v6133, 3
        %v6452 = vrot.slane %v6129, 4
        %v6453 = vor.u32 %v6451, %v6452
        %v6454 = vsel %vm863, %v6449, %v6453
        %v6455 = vrot.slane %v6140, 3
        %v6456 = vrot.slane %v6136, 4
        %v6457 = vor.u32 %v6455, %v6456
        %v6458 = vsel %vm863, %v6453, %v6457
        %v6459 = vrot.slane %v6147, 3
        %v6460 = vrot.slane %v6143, 4
        %v6461 = vor.u32 %v6459, %v6460
        %v6462 = vsel %vm863, %v6457, %v6461
        %v6463 = vrot.slane %v6154, 3
        %v6464 = vrot.slane %v6150, 4
        %v6465 = vor.u32 %v6463, %v6464
        %v6466 = vsel %vm863, %v6461, %v6465
        %v6467 = vrot.slane %v6161, 3
        %v6468 = vrot.slane %v6157, 4
        %v6469 = vor.u32 %v6467, %v6468
        %v6470 = vsel %vm863, %v6465, %v6469
        %v6471 = vrot.slane %v6168, 3
        %v6472 = vrot.slane %v6164, 4
        %v6473 = vor.u32 %v6471, %v6472
        %v6474 = vsel %vm863, %v6469, %v6473
        %v6475 = vrot.slane %v6175, 3
        %v6476 = vrot.slane %v6171, 4
        %v6477 = vor.u32 %v6475, %v6476
        %v6478 = vsel %vm863, %v6473, %v6477
        %v6479 = vrot.slane %v6182, 3
        %v6480 = vrot.slane %v6178, 4
        %v6481 = vor.u32 %v6479, %v6480
        %v6482 = vsel %vm863, %v6477, %v6481
        %v6483 = vrot.slane %v6189, 3
        %v6484 = vrot.slane %v6185, 4
        %v6485 = vor.u32 %v6483, %v6484
        %v6486 = vsel %vm863, %v6481, %v6485
        %v6487 = vrot.slane %v6196, 3
        %v6488 = vrot.slane %v6192, 4
        %v6489 = vor.u32 %v6487, %v6488
        %v6490 = vsel %vm863, %v6485, %v6489
        %v6491 = vrot.slane %v6203, 3
        %v6492 = vrot.slane %v6199, 4
        %v6493 = vor.u32 %v6491, %v6492
        %v6494 = vsel %vm863, %v6489, %v6493
        %v6495 = vrot.slane %v6210, 3
        %v6496 = vrot.slane %v6206, 4
        %v6497 = vor.u32 %v6495, %v6496
        %v6498 = vsel %vm863, %v6493, %v6497
        %v6499 = vrot.slane %v6217, 3
        %v6500 = vrot.slane %v6213, 4
        %v6501 = vor.u32 %v6499, %v6500
        %v6502 = vsel %vm863, %v6497, %v6501
        %v6503 = vrot.slane %v6225, 3
        %v6504 = vrot.slane %v6221, 4
        %v6505 = vor.u32 %v6503, %v6504
        %v6506 = vsel %vm863, %v6501, %v6505
        %v6508 = vshrl.u32 %v6443, 16
        %v6510 = vrot.slane %v6508, 3
        %v6511 = vshll.u32 %v6443, 16
        %v6513 = vrot.slane %v6511, 4
        %v6514 = vor.u32 %v6510, %v6513
        %v6515 = vsel %vm863, %v6505, %v6514
        %v6518 = vunpack.c.l.b16 %v6437
        %v6519 = vunpack.c.l.b16 %v6438
        %v6520 = vpack.c.b16 %v6519, %v6518
        %v6523 = vsel %vm3091, %v6450, 0
        %v6526 = vsel %vm3091, %v6454, 0
        %v6529 = vsel %vm3091, %v6458, 0
        %v6532 = vsel %vm3091, %v6462, 0
        %v6535 = vsel %vm3091, %v6466, 0
        %v6538 = vsel %vm3091, %v6470, 0
        %v6541 = vsel %vm3091, %v6474, 0
        %v6544 = vsel %vm3091, %v6478, 0
        %v6547 = vsel %vm3091, %v6482, 0
        %v6550 = vsel %vm3091, %v6486, 0
        %v6553 = vsel %vm3091, %v6490, 0
        %v6556 = vsel %vm3091, %v6494, 0
        %v6559 = vsel %vm3091, %v6498, 0
        %v6562 = vsel %vm3091, %v6502, 0
        %v6565 = vsel %vm3091, %v6506, 0
        %v6568 = vsel %vm3091, %v6515, 0
        %v6571 = vsel %vm3091, %v6514, 0
        %6573 = vmatprep.subr.bf16.mxu0 0
        %6574 = vmatpush1.bf16.msra.mxu0 0
        %6575 = vmatprep.subr.bf16.mxu0 0
        %6576 = vmatpush1.bf16.msra.mxu0 0
        %6577 = vmatprep.subr.bf16.mxu0 0
        %6578 = vmatpush1.bf16.msra.mxu0 0
        %6579 = vmatprep.subr.bf16.mxu0 0
        %6580 = vmatpush1.bf16.msra.mxu0 0
        %6581 = vmatprep.subr.bf16.mxu0 0
        %6582 = vmatpush1.bf16.msra.mxu0 0
        %6583 = vmatprep.subr.bf16.mxu0 0
        %6584 = vmatpush1.bf16.msra.mxu0 0
        %6585 = vmatprep.subr.bf16.mxu0 0
        %6586 = vmatpush1.bf16.msra.mxu0 0
        %6587 = vmatprep.subr.bf16.mxu0 0
        %6588 = vmatpush1.bf16.msra.mxu0 %v6520
        %6589 = vmatprep.subr.bf16.mxu0 0
        %6590 = vmatpush2.bf16.msra.mxu0 0
        %6591 = vmatprep.subr.bf16.mxu0 0
        %6592 = vmatpush2.bf16.msra.mxu0 0
        %6593 = vmatprep.subr.bf16.mxu0 0
        %6594 = vmatpush2.bf16.msra.mxu0 0
        %6595 = vmatprep.subr.bf16.mxu0 0
        %6596 = vmatpush2.bf16.msra.mxu0 0
        %6597 = vmatprep.subr.bf16.mxu0 0
        %6598 = vmatpush2.bf16.msra.mxu0 0
        %6599 = vmatprep.subr.bf16.mxu0 0
        %6600 = vmatpush2.bf16.msra.mxu0 0
        %6601 = vmatprep.subr.bf16.mxu0 0
        %6602 = vmatpush2.bf16.msra.mxu0 0
        %6603 = vmatprep.subr.bf16.mxu0 0
        %6604 = vmatpush2.bf16.msra.mxu0 0
        %6605 = vmatprep.mubr.bf16.mxu0 0
        %6606 = vmatmul.mubr.bf16.gmra.mxu0 %v6523
        %v6607 = vpop.f32.mrf.mxu0
        %v6608 = vadd.f32 0.0, %v6607
        %v6609 = vpop.f32.mrf.mxu0
        %v6610 = vpop.f32.mrf.mxu0
        %v6611 = vpop.f32.mrf.mxu0
        %6612 = vmatprep.mubr.bf16.mxu0 0
        %6613 = vmatmul.mubr.bf16.gmra.mxu0 %v6526
        %v6614 = vpop.f32.mrf.mxu0
        %v6615 = vpop.f32.mrf.mxu0
        %v6616 = vpop.f32.mrf.mxu0
        %v6617 = vadd.f32 0.0, %v6616
        %v6618 = vpop.f32.mrf.mxu0
        %6619 = vmatprep.mubr.bf16.mxu0 0
        %6620 = vmatmul.mubr.bf16.gmra.mxu0 %v6529
        %v6621 = vpop.f32.mrf.mxu0
        %v6622 = vpop.f32.mrf.mxu0
        %v6623 = vpop.f32.mrf.mxu0
        %v6624 = vpop.f32.mrf.mxu0
        %6625 = vmatprep.mubr.bf16.mxu0 0
        %6626 = vmatmul.mubr.bf16.gmra.mxu0 %v6532
        %v6627 = vpop.f32.mrf.mxu0
        %v6628 = vadd.f32 0.0, %v6627
        %v6629 = vpop.f32.mrf.mxu0
        %v6630 = vpop.f32.mrf.mxu0
        %v6631 = vpop.f32.mrf.mxu0
        %6632 = vmatprep.mubr.bf16.mxu0 0
        %6633 = vmatmul.mubr.bf16.gmra.mxu0 %v6535
        %v6634 = vpop.f32.mrf.mxu0
        %v6635 = vpop.f32.mrf.mxu0
        %v6636 = vpop.f32.mrf.mxu0
        %v6637 = vadd.f32 0.0, %v6636
        %v6638 = vpop.f32.mrf.mxu0
        %6639 = vmatprep.mubr.bf16.mxu0 0
        %6640 = vmatmul.mubr.bf16.gmra.mxu0 %v6538
        %v6641 = vpop.f32.mrf.mxu0
        %v6642 = vpop.f32.mrf.mxu0
        %v6643 = vpop.f32.mrf.mxu0
        %v6644 = vpop.f32.mrf.mxu0
        %6645 = vmatprep.mubr.bf16.mxu0 0
        %6646 = vmatmul.mubr.bf16.gmra.mxu0 %v6541
        %v6647 = vpop.f32.mrf.mxu0
        %v6648 = vadd.f32 0.0, %v6647
        %v6649 = vpop.f32.mrf.mxu0
        %v6650 = vpop.f32.mrf.mxu0
        %v6651 = vpop.f32.mrf.mxu0
        %6652 = vmatprep.mubr.bf16.mxu0 0
        %6653 = vmatmul.mubr.bf16.gmra.mxu0 %v6544
        %v6654 = vpop.f32.mrf.mxu0
        %v6655 = vpop.f32.mrf.mxu0
        %v6656 = vpop.f32.mrf.mxu0
        %v6657 = vadd.f32 0.0, %v6656
        %v6658 = vpop.f32.mrf.mxu0
        %6659 = vmatprep.mubr.bf16.mxu0 0
        %6660 = vmatmul.mubr.bf16.gmra.mxu0 %v6547
        %v6661 = vpop.f32.mrf.mxu0
        %v6662 = vpop.f32.mrf.mxu0
        %v6663 = vpop.f32.mrf.mxu0
        %v6664 = vpop.f32.mrf.mxu0
        %6665 = vmatprep.mubr.bf16.mxu0 0
        %6666 = vmatmul.mubr.bf16.gmra.mxu0 %v6550
        %v6667 = vpop.f32.mrf.mxu0
        %v6668 = vadd.f32 0.0, %v6667
        %v6669 = vpop.f32.mrf.mxu0
        %v6670 = vpop.f32.mrf.mxu0
        %v6671 = vpop.f32.mrf.mxu0
        %6672 = vmatprep.mubr.bf16.mxu0 0
        %6673 = vmatmul.mubr.bf16.gmra.mxu0 %v6553
        %v6674 = vpop.f32.mrf.mxu0
        %v6675 = vpop.f32.mrf.mxu0
        %v6676 = vpop.f32.mrf.mxu0
        %v6677 = vadd.f32 0.0, %v6676
        %v6678 = vpop.f32.mrf.mxu0
        %6679 = vmatprep.mubr.bf16.mxu0 0
        %6680 = vmatmul.mubr.bf16.gmra.mxu0 %v6556
        %v6681 = vpop.f32.mrf.mxu0
        %v6682 = vpop.f32.mrf.mxu0
        %v6683 = vpop.f32.mrf.mxu0
        %v6684 = vpop.f32.mrf.mxu0
        %6685 = vmatprep.mubr.bf16.mxu0 0
        %6686 = vmatmul.mubr.bf16.gmra.mxu0 %v6559
        %v6687 = vpop.f32.mrf.mxu0
        %v6688 = vpop.f32.mrf.mxu0
        %v6689 = vpop.f32.mrf.mxu0
        %v6690 = vpop.f32.mrf.mxu0
        %6691 = vmatprep.mubr.bf16.mxu0 0
        %6692 = vmatmul.mubr.bf16.gmra.mxu0 %v6562
        %v6693 = vpop.f32.mrf.mxu0
        %v6694 = vpop.f32.mrf.mxu0
        %v6695 = vpop.f32.mrf.mxu0
        %v6696 = vpop.f32.mrf.mxu0
        %6697 = vmatprep.mubr.bf16.mxu0 0
        %6698 = vmatmul.mubr.bf16.gmra.mxu0 %v6565
        %v6699 = vpop.f32.mrf.mxu0
        %v6700 = vpop.f32.mrf.mxu0
        %v6701 = vpop.f32.mrf.mxu0
        %v6702 = vpop.f32.mrf.mxu0
        %6703 = vmatprep.mubr.bf16.mxu0 0
        %6704 = vmatmul.mubr.bf16.gmra.mxu0 %v6568
        %v6705 = vpop.f32.mrf.mxu0
        %v6706 = vpop.f32.mrf.mxu0
        %v6707 = vpop.f32.mrf.mxu0
        %v6708 = vpop.f32.mrf.mxu0
        %6709 = vmatprep.mubr.bf16.mxu0 0
        %6710 = vmatmul.mubr.bf16.gmra.mxu0 %v6571
        %v6711 = vpop.f32.mrf.mxu0
        %v6712 = vpop.f32.mrf.mxu0
        %v6713 = vpop.f32.mrf.mxu0
        %v6714 = vpop.f32.mrf.mxu0
        %6715 = vdwg.mxu0
        %v6716 = vadd.f32 %v6428, %v6608
        %v6717 = vadd.f32 %v6429, %v6617
        %v6718 = vadd.f32 %v6430, %v6628
        %v6719 = vadd.f32 %v6431, %v6637
        %v6720 = vadd.f32 %v6432, %v6648
        %v6721 = vadd.f32 %v6433, %v6657
        %v6722 = vadd.f32 %v6434, %v6668
        %v6723 = vadd.f32 %v6435, %v6677
        %s6724 = scalar_lea.vmem [#allocation12], 32
        %v6725 = vld [vmem:[%s6724] sm:$0xf]
        %v6726 = vld [vmem:[%s6724 + $0x4] sm:$0xf]
        %v6727 = vpack.c.b16 %v6441, %v6107
        %v6728 = vpack.c.b16 %v6442, %v6442
        %v6731 = vunpack.c.l.b16 %v6725
        %v6732 = vunpack.c.l.b16 %v6726
        %v6733 = vpack.c.b16 %v6732, %v6731
        %v6735 = vsel %vm3091, %v5736, 0
        %v6737 = vsel %vm3091, %v5737, 0
        %v6739 = vsel %vm3091, %v5738, 0
        %v6741 = vsel %vm3091, %v5739, 0
        %v6743 = vsel %vm3091, %v5740, 0
        %v6745 = vsel %vm3091, %v5741, 0
        %v6747 = vsel %vm3091, %v5742, 0
        %v6749 = vsel %vm3091, %v5743, 0
        %v6751 = vsel %vm3091, %v5744, 0
        %v6753 = vsel %vm3091, %v5745, 0
        %v6755 = vsel %vm3091, %v5746, 0
        %v6757 = vsel %vm3091, %v5747, 0
        %v6759 = vsel %vm3091, %v5748, 0
        %v6761 = vsel %vm3091, %v5749, 0
        %v6763 = vsel %vm3091, %v5750, 0
        %v6766 = vsel %vm3091, %v6727, 0
        %v6769 = vsel %vm3091, %v6728, 0
        %6771 = vmatprep.subr.bf16.mxu0 0
        %6772 = vmatpush1.bf16.msra.mxu0 0
        %6773 = vmatprep.subr.bf16.mxu0 0
        %6774 = vmatpush1.bf16.msra.mxu0 0
        %6775 = vmatprep.subr.bf16.mxu0 0
        %6776 = vmatpush1.bf16.msra.mxu0 0
        %6777 = vmatprep.subr.bf16.mxu0 0
        %6778 = vmatpush1.bf16.msra.mxu0 0
        %6779 = vmatprep.subr.bf16.mxu0 0
        %6780 = vmatpush1.bf16.msra.mxu0 0
        %6781 = vmatprep.subr.bf16.mxu0 0
        %6782 = vmatpush1.bf16.msra.mxu0 0
        %6783 = vmatprep.subr.bf16.mxu0 0
        %6784 = vmatpush1.bf16.msra.mxu0 0
        %6785 = vmatprep.subr.bf16.mxu0 0
        %6786 = vmatpush1.bf16.msra.mxu0 %v6733
        %6787 = vmatprep.subr.bf16.mxu0 0
        %6788 = vmatpush2.bf16.msra.mxu0 0
        %6789 = vmatprep.subr.bf16.mxu0 0
        %6790 = vmatpush2.bf16.msra.mxu0 0
        %6791 = vmatprep.subr.bf16.mxu0 0
        %6792 = vmatpush2.bf16.msra.mxu0 0
        %6793 = vmatprep.subr.bf16.mxu0 0
        %6794 = vmatpush2.bf16.msra.mxu0 0
        %6795 = vmatprep.subr.bf16.mxu0 0
        %6796 = vmatpush2.bf16.msra.mxu0 0
        %6797 = vmatprep.subr.bf16.mxu0 0
        %6798 = vmatpush2.bf16.msra.mxu0 0
        %6799 = vmatprep.subr.bf16.mxu0 0
        %6800 = vmatpush2.bf16.msra.mxu0 0
        %6801 = vmatprep.subr.bf16.mxu0 0
        %6802 = vmatpush2.bf16.msra.mxu0 0
        %6803 = vmatprep.mubr.bf16.mxu0 0
        %6804 = vmatmul.mubr.bf16.gmra.mxu0 %v6735
        %v6805 = vpop.f32.mrf.mxu0
        %v6806 = vadd.f32 0.0, %v6805
        %v6807 = vpop.f32.mrf.mxu0
        %v6808 = vpop.f32.mrf.mxu0
        %v6809 = vpop.f32.mrf.mxu0
        %6810 = vmatprep.mubr.bf16.mxu0 0
        %6811 = vmatmul.mubr.bf16.gmra.mxu0 %v6737
        %v6812 = vpop.f32.mrf.mxu0
        %v6813 = vpop.f32.mrf.mxu0
        %v6814 = vpop.f32.mrf.mxu0
        %v6815 = vadd.f32 0.0, %v6814
        %v6816 = vpop.f32.mrf.mxu0
        %6817 = vmatprep.mubr.bf16.mxu0 0
        %6818 = vmatmul.mubr.bf16.gmra.mxu0 %v6739
        %v6819 = vpop.f32.mrf.mxu0
        %v6820 = vpop.f32.mrf.mxu0
        %v6821 = vpop.f32.mrf.mxu0
        %v6822 = vpop.f32.mrf.mxu0
        %6823 = vmatprep.mubr.bf16.mxu0 0
        %6824 = vmatmul.mubr.bf16.gmra.mxu0 %v6741
        %v6825 = vpop.f32.mrf.mxu0
        %v6826 = vadd.f32 0.0, %v6825
        %v6827 = vpop.f32.mrf.mxu0
        %v6828 = vpop.f32.mrf.mxu0
        %v6829 = vpop.f32.mrf.mxu0
        %6830 = vmatprep.mubr.bf16.mxu0 0
        %6831 = vmatmul.mubr.bf16.gmra.mxu0 %v6743
        %v6832 = vpop.f32.mrf.mxu0
        %v6833 = vpop.f32.mrf.mxu0
        %v6834 = vpop.f32.mrf.mxu0
        %v6835 = vadd.f32 0.0, %v6834
        %v6836 = vpop.f32.mrf.mxu0
        %6837 = vmatprep.mubr.bf16.mxu0 0
        %6838 = vmatmul.mubr.bf16.gmra.mxu0 %v6745
        %v6839 = vpop.f32.mrf.mxu0
        %v6840 = vpop.f32.mrf.mxu0
        %v6841 = vpop.f32.mrf.mxu0
        %v6842 = vpop.f32.mrf.mxu0
        %6843 = vmatprep.mubr.bf16.mxu0 0
        %6844 = vmatmul.mubr.bf16.gmra.mxu0 %v6747
        %v6845 = vpop.f32.mrf.mxu0
        %v6846 = vadd.f32 0.0, %v6845
        %v6847 = vpop.f32.mrf.mxu0
        %v6848 = vpop.f32.mrf.mxu0
        %v6849 = vpop.f32.mrf.mxu0
        %6850 = vmatprep.mubr.bf16.mxu0 0
        %6851 = vmatmul.mubr.bf16.gmra.mxu0 %v6749
        %v6852 = vpop.f32.mrf.mxu0
        %v6853 = vpop.f32.mrf.mxu0
        %v6854 = vpop.f32.mrf.mxu0
        %v6855 = vadd.f32 0.0, %v6854
        %v6856 = vpop.f32.mrf.mxu0
        %6857 = vmatprep.mubr.bf16.mxu0 0
        %6858 = vmatmul.mubr.bf16.gmra.mxu0 %v6751
        %v6859 = vpop.f32.mrf.mxu0
        %v6860 = vpop.f32.mrf.mxu0
        %v6861 = vpop.f32.mrf.mxu0
        %v6862 = vpop.f32.mrf.mxu0
        %6863 = vmatprep.mubr.bf16.mxu0 0
        %6864 = vmatmul.mubr.bf16.gmra.mxu0 %v6753
        %v6865 = vpop.f32.mrf.mxu0
        %v6866 = vadd.f32 0.0, %v6865
        %v6867 = vpop.f32.mrf.mxu0
        %v6868 = vpop.f32.mrf.mxu0
        %v6869 = vpop.f32.mrf.mxu0
        %6870 = vmatprep.mubr.bf16.mxu0 0
        %6871 = vmatmul.mubr.bf16.gmra.mxu0 %v6755
        %v6872 = vpop.f32.mrf.mxu0
        %v6873 = vpop.f32.mrf.mxu0
        %v6874 = vpop.f32.mrf.mxu0
        %v6875 = vadd.f32 0.0, %v6874
        %v6876 = vpop.f32.mrf.mxu0
        %6877 = vmatprep.mubr.bf16.mxu0 0
        %6878 = vmatmul.mubr.bf16.gmra.mxu0 %v6757
        %v6879 = vpop.f32.mrf.mxu0
        %v6880 = vpop.f32.mrf.mxu0
        %v6881 = vpop.f32.mrf.mxu0
        %v6882 = vpop.f32.mrf.mxu0
        %6883 = vmatprep.mubr.bf16.mxu0 0
        %6884 = vmatmul.mubr.bf16.gmra.mxu0 %v6759
        %v6885 = vpop.f32.mrf.mxu0
        %v6886 = vpop.f32.mrf.mxu0
        %v6887 = vpop.f32.mrf.mxu0
        %v6888 = vpop.f32.mrf.mxu0
        %6889 = vmatprep.mubr.bf16.mxu0 0
        %6890 = vmatmul.mubr.bf16.gmra.mxu0 %v6761
        %v6891 = vpop.f32.mrf.mxu0
        %v6892 = vpop.f32.mrf.mxu0
        %v6893 = vpop.f32.mrf.mxu0
        %v6894 = vpop.f32.mrf.mxu0
        %6895 = vmatprep.mubr.bf16.mxu0 0
        %6896 = vmatmul.mubr.bf16.gmra.mxu0 %v6763
        %v6897 = vpop.f32.mrf.mxu0
        %v6898 = vpop.f32.mrf.mxu0
        %v6899 = vpop.f32.mrf.mxu0
        %v6900 = vpop.f32.mrf.mxu0
        %6901 = vmatprep.mubr.bf16.mxu0 0
        %6902 = vmatmul.mubr.bf16.gmra.mxu0 %v6766
        %v6903 = vpop.f32.mrf.mxu0
        %v6904 = vpop.f32.mrf.mxu0
        %v6905 = vpop.f32.mrf.mxu0
        %v6906 = vpop.f32.mrf.mxu0
        %6907 = vmatprep.mubr.bf16.mxu0 0
        %6908 = vmatmul.mubr.bf16.gmra.mxu0 %v6769
        %v6909 = vpop.f32.mrf.mxu0
        %v6910 = vpop.f32.mrf.mxu0
        %v6911 = vpop.f32.mrf.mxu0
        %v6912 = vpop.f32.mrf.mxu0
        %6913 = vdwg.mxu0
        %v6914 = vadd.f32 %v6716, %v6806
        %v6915 = vadd.f32 %v6717, %v6815
        %v6916 = vadd.f32 %v6718, %v6826
        %v6917 = vadd.f32 %v6719, %v6835
        %v6918 = vadd.f32 %v6720, %v6846
        %v6919 = vadd.f32 %v6721, %v6855
        %v6920 = vadd.f32 %v6722, %v6866
        %v6921 = vadd.f32 %v6723, %v6875
        %s6922 = scalar_lea.vmem [#allocation12], 40
        %v6923 = vld [vmem:[%s6922] sm:$0xf]
        %v6924 = vld [vmem:[%s6922 + $0x4] sm:$0xf]
        %v6926 = vunpack.c.l.b16 %v5440
        %v6927 = vpack.c.b16 %v6926, %v6442
        %v6928 = vrot.slane %v5772, 1
        %v6929 = vor.u32 %v5769, %v6928
        %v6930 = vrot.slane %v5781, 1
        %v6931 = vsel %vm1230, %v6929, %v6930
        %v6932 = vor.u32 %v5778, %v6930
        %v6933 = vrot.slane %v5790, 1
        %v6934 = vsel %vm1230, %v6932, %v6933
        %v6935 = vor.u32 %v5787, %v6933
        %v6936 = vrot.slane %v5799, 1
        %v6937 = vsel %vm1230, %v6935, %v6936
        %v6938 = vor.u32 %v5796, %v6936
        %v6939 = vrot.slane %v5808, 1
        %v6940 = vsel %vm1230, %v6938, %v6939
        %v6941 = vor.u32 %v5805, %v6939
        %v6942 = vrot.slane %v5817, 1
        %v6943 = vsel %vm1230, %v6941, %v6942
        %v6944 = vor.u32 %v5814, %v6942
        %v6945 = vrot.slane %v5826, 1
        %v6946 = vsel %vm1230, %v6944, %v6945
        %v6947 = vor.u32 %v5823, %v6945
        %v6948 = vrot.slane %v5835, 1
        %v6949 = vsel %vm1230, %v6947, %v6948
        %v6950 = vor.u32 %v5832, %v6948
        %v6951 = vrot.slane %v5844, 1
        %v6952 = vsel %vm1230, %v6950, %v6951
        %v6953 = vor.u32 %v5841, %v6951
        %v6954 = vrot.slane %v5853, 1
        %v6955 = vsel %vm1230, %v6953, %v6954
        %v6956 = vor.u32 %v5850, %v6954
        %v6957 = vrot.slane %v5862, 1
        %v6958 = vsel %vm1230, %v6956, %v6957
        %v6959 = vor.u32 %v5859, %v6957
        %v6960 = vrot.slane %v5871, 1
        %v6961 = vsel %vm1230, %v6959, %v6960
        %v6962 = vor.u32 %v5868, %v6960
        %v6963 = vrot.slane %v5880, 1
        %v6964 = vsel %vm1230, %v6962, %v6963
        %v6965 = vor.u32 %v5877, %v6963
        %v6966 = vrot.slane %v5889, 1
        %v6967 = vsel %vm1230, %v6965, %v6966
        %v6968 = vor.u32 %v5886, %v6966
        %v6969 = vrot.slane %v5898, 1
        %v6970 = vsel %vm1230, %v6968, %v6969
        %v6971 = vor.u32 %v5895, %v6969
        %v6972 = vshll.u32 %v6727, 16
        %v6974 = vrot.slane %v6972, 1
        %v6975 = vsel %vm1230, %v6971, %v6974
        %v6976 = vshrl.u32 %v6727, 16
        %v6978 = vor.u32 %v6976, %v6974
        %v6980 = vshll.u32 %v6927, 16
        %v6982 = vrot.slane %v6980, 1
        %v6983 = vsel %vm1230, %v6978, %v6982
        %v6984 = vshrl.u32 %v6927, 16
        %v6986 = vor.u32 %v6984, %v6982
        %v6989 = vunpack.c.l.b16 %v6923
        %v6990 = vunpack.c.l.b16 %v6924
        %v6991 = vpack.c.b16 %v6990, %v6989
        %v6994 = vsel %vm3091, %v6931, 0
        %v6997 = vsel %vm3091, %v6934, 0
        %v7000 = vsel %vm3091, %v6937, 0
        %v7003 = vsel %vm3091, %v6940, 0
        %v7006 = vsel %vm3091, %v6943, 0
        %v7009 = vsel %vm3091, %v6946, 0
        %v7012 = vsel %vm3091, %v6949, 0
        %v7015 = vsel %vm3091, %v6952, 0
        %v7018 = vsel %vm3091, %v6955, 0
        %v7021 = vsel %vm3091, %v6958, 0
        %v7024 = vsel %vm3091, %v6961, 0
        %v7027 = vsel %vm3091, %v6964, 0
        %v7030 = vsel %vm3091, %v6967, 0
        %v7033 = vsel %vm3091, %v6970, 0
        %v7036 = vsel %vm3091, %v6975, 0
        %v7039 = vsel %vm3091, %v6983, 0
        %v7042 = vsel %vm3091, %v6986, 0
        %7044 = vmatprep.subr.bf16.mxu0 0
        %7045 = vmatpush1.bf16.msra.mxu0 0
        %7046 = vmatprep.subr.bf16.mxu0 0
        %7047 = vmatpush1.bf16.msra.mxu0 0
        %7048 = vmatprep.subr.bf16.mxu0 0
        %7049 = vmatpush1.bf16.msra.mxu0 0
        %7050 = vmatprep.subr.bf16.mxu0 0
        %7051 = vmatpush1.bf16.msra.mxu0 0
        %7052 = vmatprep.subr.bf16.mxu0 0
        %7053 = vmatpush1.bf16.msra.mxu0 0
        %7054 = vmatprep.subr.bf16.mxu0 0
        %7055 = vmatpush1.bf16.msra.mxu0 0
        %7056 = vmatprep.subr.bf16.mxu0 0
        %7057 = vmatpush1.bf16.msra.mxu0 0
        %7058 = vmatprep.subr.bf16.mxu0 0
        %7059 = vmatpush1.bf16.msra.mxu0 %v6991
        %7060 = vmatprep.subr.bf16.mxu0 0
        %7061 = vmatpush2.bf16.msra.mxu0 0
        %7062 = vmatprep.subr.bf16.mxu0 0
        %7063 = vmatpush2.bf16.msra.mxu0 0
        %7064 = vmatprep.subr.bf16.mxu0 0
        %7065 = vmatpush2.bf16.msra.mxu0 0
        %7066 = vmatprep.subr.bf16.mxu0 0
        %7067 = vmatpush2.bf16.msra.mxu0 0
        %7068 = vmatprep.subr.bf16.mxu0 0
        %7069 = vmatpush2.bf16.msra.mxu0 0
        %7070 = vmatprep.subr.bf16.mxu0 0
        %7071 = vmatpush2.bf16.msra.mxu0 0
        %7072 = vmatprep.subr.bf16.mxu0 0
        %7073 = vmatpush2.bf16.msra.mxu0 0
        %7074 = vmatprep.subr.bf16.mxu0 0
        %7075 = vmatpush2.bf16.msra.mxu0 0
        %7076 = vmatprep.mubr.bf16.mxu0 0
        %7077 = vmatmul.mubr.bf16.gmra.mxu0 %v6994
        %v7078 = vpop.f32.mrf.mxu0
        %v7079 = vadd.f32 0.0, %v7078
        %v7080 = vpop.f32.mrf.mxu0
        %v7081 = vpop.f32.mrf.mxu0
        %v7082 = vpop.f32.mrf.mxu0
        %7083 = vmatprep.mubr.bf16.mxu0 0
        %7084 = vmatmul.mubr.bf16.gmra.mxu0 %v6997
        %v7085 = vpop.f32.mrf.mxu0
        %v7086 = vpop.f32.mrf.mxu0
        %v7087 = vpop.f32.mrf.mxu0
        %v7088 = vadd.f32 0.0, %v7087
        %v7089 = vpop.f32.mrf.mxu0
        %7090 = vmatprep.mubr.bf16.mxu0 0
        %7091 = vmatmul.mubr.bf16.gmra.mxu0 %v7000
        %v7092 = vpop.f32.mrf.mxu0
        %v7093 = vpop.f32.mrf.mxu0
        %v7094 = vpop.f32.mrf.mxu0
        %v7095 = vpop.f32.mrf.mxu0
        %7096 = vmatprep.mubr.bf16.mxu0 0
        %7097 = vmatmul.mubr.bf16.gmra.mxu0 %v7003
        %v7098 = vpop.f32.mrf.mxu0
        %v7099 = vadd.f32 0.0, %v7098
        %v7100 = vpop.f32.mrf.mxu0
        %v7101 = vpop.f32.mrf.mxu0
        %v7102 = vpop.f32.mrf.mxu0
        %7103 = vmatprep.mubr.bf16.mxu0 0
        %7104 = vmatmul.mubr.bf16.gmra.mxu0 %v7006
        %v7105 = vpop.f32.mrf.mxu0
        %v7106 = vpop.f32.mrf.mxu0
        %v7107 = vpop.f32.mrf.mxu0
        %v7108 = vadd.f32 0.0, %v7107
        %v7109 = vpop.f32.mrf.mxu0
        %7110 = vmatprep.mubr.bf16.mxu0 0
        %7111 = vmatmul.mubr.bf16.gmra.mxu0 %v7009
        %v7112 = vpop.f32.mrf.mxu0
        %v7113 = vpop.f32.mrf.mxu0
        %v7114 = vpop.f32.mrf.mxu0
        %v7115 = vpop.f32.mrf.mxu0
        %7116 = vmatprep.mubr.bf16.mxu0 0
        %7117 = vmatmul.mubr.bf16.gmra.mxu0 %v7012
        %v7118 = vpop.f32.mrf.mxu0
        %v7119 = vadd.f32 0.0, %v7118
        %v7120 = vpop.f32.mrf.mxu0
        %v7121 = vpop.f32.mrf.mxu0
        %v7122 = vpop.f32.mrf.mxu0
        %7123 = vmatprep.mubr.bf16.mxu0 0
        %7124 = vmatmul.mubr.bf16.gmra.mxu0 %v7015
        %v7125 = vpop.f32.mrf.mxu0
        %v7126 = vpop.f32.mrf.mxu0
        %v7127 = vpop.f32.mrf.mxu0
        %v7128 = vadd.f32 0.0, %v7127
        %v7129 = vpop.f32.mrf.mxu0
        %7130 = vmatprep.mubr.bf16.mxu0 0
        %7131 = vmatmul.mubr.bf16.gmra.mxu0 %v7018
        %v7132 = vpop.f32.mrf.mxu0
        %v7133 = vpop.f32.mrf.mxu0
        %v7134 = vpop.f32.mrf.mxu0
        %v7135 = vpop.f32.mrf.mxu0
        %7136 = vmatprep.mubr.bf16.mxu0 0
        %7137 = vmatmul.mubr.bf16.gmra.mxu0 %v7021
        %v7138 = vpop.f32.mrf.mxu0
        %v7139 = vadd.f32 0.0, %v7138
        %v7140 = vpop.f32.mrf.mxu0
        %v7141 = vpop.f32.mrf.mxu0
        %v7142 = vpop.f32.mrf.mxu0
        %7143 = vmatprep.mubr.bf16.mxu0 0
        %7144 = vmatmul.mubr.bf16.gmra.mxu0 %v7024
        %v7145 = vpop.f32.mrf.mxu0
        %v7146 = vpop.f32.mrf.mxu0
        %v7147 = vpop.f32.mrf.mxu0
        %v7148 = vadd.f32 0.0, %v7147
        %v7149 = vpop.f32.mrf.mxu0
        %7150 = vmatprep.mubr.bf16.mxu0 0
        %7151 = vmatmul.mubr.bf16.gmra.mxu0 %v7027
        %v7152 = vpop.f32.mrf.mxu0
        %v7153 = vpop.f32.mrf.mxu0
        %v7154 = vpop.f32.mrf.mxu0
        %v7155 = vpop.f32.mrf.mxu0
        %7156 = vmatprep.mubr.bf16.mxu0 0
        %7157 = vmatmul.mubr.bf16.gmra.mxu0 %v7030
        %v7158 = vpop.f32.mrf.mxu0
        %v7159 = vpop.f32.mrf.mxu0
        %v7160 = vpop.f32.mrf.mxu0
        %v7161 = vpop.f32.mrf.mxu0
        %7162 = vmatprep.mubr.bf16.mxu0 0
        %7163 = vmatmul.mubr.bf16.gmra.mxu0 %v7033
        %v7164 = vpop.f32.mrf.mxu0
        %v7165 = vpop.f32.mrf.mxu0
        %v7166 = vpop.f32.mrf.mxu0
        %v7167 = vpop.f32.mrf.mxu0
        %7168 = vmatprep.mubr.bf16.mxu0 0
        %7169 = vmatmul.mubr.bf16.gmra.mxu0 %v7036
        %v7170 = vpop.f32.mrf.mxu0
        %v7171 = vpop.f32.mrf.mxu0
        %v7172 = vpop.f32.mrf.mxu0
        %v7173 = vpop.f32.mrf.mxu0
        %7174 = vmatprep.mubr.bf16.mxu0 0
        %7175 = vmatmul.mubr.bf16.gmra.mxu0 %v7039
        %v7176 = vpop.f32.mrf.mxu0
        %v7177 = vpop.f32.mrf.mxu0
        %v7178 = vpop.f32.mrf.mxu0
        %v7179 = vpop.f32.mrf.mxu0
        %7180 = vmatprep.mubr.bf16.mxu0 0
        %7181 = vmatmul.mubr.bf16.gmra.mxu0 %v7042
        %v7182 = vpop.f32.mrf.mxu0
        %v7183 = vpop.f32.mrf.mxu0
        %v7184 = vpop.f32.mrf.mxu0
        %v7185 = vpop.f32.mrf.mxu0
        %7186 = vdwg.mxu0
        %v7187 = vadd.f32 %v6914, %v7079
        %v7188 = vadd.f32 %v6915, %v7088
        %v7189 = vadd.f32 %v6916, %v7099
        %v7190 = vadd.f32 %v6917, %v7108
        %v7191 = vadd.f32 %v6918, %v7119
        %v7192 = vadd.f32 %v6919, %v7128
        %v7193 = vadd.f32 %v6920, %v7139
        %v7194 = vadd.f32 %v6921, %v7148
        %s7195 = scalar_lea.vmem [#allocation12], 48
        %v7196 = vld [vmem:[%s7195] sm:$0xf]
        %v7197 = vld [vmem:[%s7195 + $0x4] sm:$0xf]
        %v7200 = vunpack.c.l.b16 %v5441
        %v7201 = vunpack.c.l.b16 %v5442
        %v7202 = vpack.c.b16 %v7201, %v7200
        %v7203 = vrot.slane %v6976, 3
        %v7204 = vrot.slane %v6972, 4
        %v7205 = vor.u32 %v7203, %v7204
        %v7206 = vsel %vm863, %v5901, %v7205
        %v7207 = vrot.slane %v6984, 3
        %v7208 = vrot.slane %v6980, 4
        %v7209 = vor.u32 %v7207, %v7208
        %v7210 = vsel %vm863, %v7205, %v7209
        %v7212 = vshrl.u32 %v7202, 16
        %v7214 = vrot.slane %v7212, 3
        %v7215 = vshll.u32 %v7202, 16
        %v7217 = vrot.slane %v7215, 4
        %v7218 = vor.u32 %v7214, %v7217
        %v7219 = vsel %vm863, %v7209, %v7218
        %v7222 = vunpack.c.l.b16 %v7196
        %v7223 = vunpack.c.l.b16 %v7197
        %v7224 = vpack.c.b16 %v7223, %v7222
        %v7227 = vsel %vm3091, %v7206, 0
        %v7230 = vsel %vm3091, %v7210, 0
        %v7233 = vsel %vm3091, %v7219, 0
        %v7236 = vsel %vm3091, %v7218, 0
        %7238 = vmatprep.subr.bf16.mxu0 0
        %7239 = vmatpush1.bf16.msra.mxu0 0
        %7240 = vmatprep.subr.bf16.mxu0 0
        %7241 = vmatpush1.bf16.msra.mxu0 0
        %7242 = vmatprep.subr.bf16.mxu0 0
        %7243 = vmatpush1.bf16.msra.mxu0 0
        %7244 = vmatprep.subr.bf16.mxu0 0
        %7245 = vmatpush1.bf16.msra.mxu0 0
        %7246 = vmatprep.subr.bf16.mxu0 0
        %7247 = vmatpush1.bf16.msra.mxu0 0
        %7248 = vmatprep.subr.bf16.mxu0 0
        %7249 = vmatpush1.bf16.msra.mxu0 0
        %7250 = vmatprep.subr.bf16.mxu0 0
        %7251 = vmatpush1.bf16.msra.mxu0 0
        %7252 = vmatprep.subr.bf16.mxu0 0
        %7253 = vmatpush1.bf16.msra.mxu0 %v7224
        %7254 = vmatprep.subr.bf16.mxu0 0
        %7255 = vmatpush2.bf16.msra.mxu0 0
        %7256 = vmatprep.subr.bf16.mxu0 0
        %7257 = vmatpush2.bf16.msra.mxu0 0
        %7258 = vmatprep.subr.bf16.mxu0 0
        %7259 = vmatpush2.bf16.msra.mxu0 0
        %7260 = vmatprep.subr.bf16.mxu0 0
        %7261 = vmatpush2.bf16.msra.mxu0 0
        %7262 = vmatprep.subr.bf16.mxu0 0
        %7263 = vmatpush2.bf16.msra.mxu0 0
        %7264 = vmatprep.subr.bf16.mxu0 0
        %7265 = vmatpush2.bf16.msra.mxu0 0
        %7266 = vmatprep.subr.bf16.mxu0 0
        %7267 = vmatpush2.bf16.msra.mxu0 0
        %7268 = vmatprep.subr.bf16.mxu0 0
        %7269 = vmatpush2.bf16.msra.mxu0 0
        %7270 = vmatprep.mubr.bf16.mxu0 0
        %7271 = vmatmul.mubr.bf16.gmra.mxu0 %v5919
        %v7272 = vpop.f32.mrf.mxu0
        %v7273 = vadd.f32 0.0, %v7272
        %v7274 = vpop.f32.mrf.mxu0
        %v7275 = vpop.f32.mrf.mxu0
        %v7276 = vpop.f32.mrf.mxu0
        %7277 = vmatprep.mubr.bf16.mxu0 0
        %7278 = vmatmul.mubr.bf16.gmra.mxu0 %v5922
        %v7279 = vpop.f32.mrf.mxu0
        %v7280 = vpop.f32.mrf.mxu0
        %v7281 = vpop.f32.mrf.mxu0
        %v7282 = vadd.f32 0.0, %v7281
        %v7283 = vpop.f32.mrf.mxu0
        %7284 = vmatprep.mubr.bf16.mxu0 0
        %7285 = vmatmul.mubr.bf16.gmra.mxu0 %v5925
        %v7286 = vpop.f32.mrf.mxu0
        %v7287 = vpop.f32.mrf.mxu0
        %v7288 = vpop.f32.mrf.mxu0
        %v7289 = vpop.f32.mrf.mxu0
        %7290 = vmatprep.mubr.bf16.mxu0 0
        %7291 = vmatmul.mubr.bf16.gmra.mxu0 %v5928
        %v7292 = vpop.f32.mrf.mxu0
        %v7293 = vadd.f32 0.0, %v7292
        %v7294 = vpop.f32.mrf.mxu0
        %v7295 = vpop.f32.mrf.mxu0
        %v7296 = vpop.f32.mrf.mxu0
        %7297 = vmatprep.mubr.bf16.mxu0 0
        %7298 = vmatmul.mubr.bf16.gmra.mxu0 %v5931
        %v7299 = vpop.f32.mrf.mxu0
        %v7300 = vpop.f32.mrf.mxu0
        %v7301 = vpop.f32.mrf.mxu0
        %v7302 = vadd.f32 0.0, %v7301
        %v7303 = vpop.f32.mrf.mxu0
        %7304 = vmatprep.mubr.bf16.mxu0 0
        %7305 = vmatmul.mubr.bf16.gmra.mxu0 %v5934
        %v7306 = vpop.f32.mrf.mxu0
        %v7307 = vpop.f32.mrf.mxu0
        %v7308 = vpop.f32.mrf.mxu0
        %v7309 = vpop.f32.mrf.mxu0
        %7310 = vmatprep.mubr.bf16.mxu0 0
        %7311 = vmatmul.mubr.bf16.gmra.mxu0 %v5937
        %v7312 = vpop.f32.mrf.mxu0
        %v7313 = vadd.f32 0.0, %v7312
        %v7314 = vpop.f32.mrf.mxu0
        %v7315 = vpop.f32.mrf.mxu0
        %v7316 = vpop.f32.mrf.mxu0
        %7317 = vmatprep.mubr.bf16.mxu0 0
        %7318 = vmatmul.mubr.bf16.gmra.mxu0 %v5940
        %v7319 = vpop.f32.mrf.mxu0
        %v7320 = vpop.f32.mrf.mxu0
        %v7321 = vpop.f32.mrf.mxu0
        %v7322 = vadd.f32 0.0, %v7321
        %v7323 = vpop.f32.mrf.mxu0
        %7324 = vmatprep.mubr.bf16.mxu0 0
        %7325 = vmatmul.mubr.bf16.gmra.mxu0 %v5943
        %v7326 = vpop.f32.mrf.mxu0
        %v7327 = vpop.f32.mrf.mxu0
        %v7328 = vpop.f32.mrf.mxu0
        %v7329 = vpop.f32.mrf.mxu0
        %7330 = vmatprep.mubr.bf16.mxu0 0
        %7331 = vmatmul.mubr.bf16.gmra.mxu0 %v5946
        %v7332 = vpop.f32.mrf.mxu0
        %v7333 = vadd.f32 0.0, %v7332
        %v7334 = vpop.f32.mrf.mxu0
        %v7335 = vpop.f32.mrf.mxu0
        %v7336 = vpop.f32.mrf.mxu0
        %7337 = vmatprep.mubr.bf16.mxu0 0
        %7338 = vmatmul.mubr.bf16.gmra.mxu0 %v5949
        %v7339 = vpop.f32.mrf.mxu0
        %v7340 = vpop.f32.mrf.mxu0
        %v7341 = vpop.f32.mrf.mxu0
        %v7342 = vadd.f32 0.0, %v7341
        %v7343 = vpop.f32.mrf.mxu0
        %7344 = vmatprep.mubr.bf16.mxu0 0
        %7345 = vmatmul.mubr.bf16.gmra.mxu0 %v5952
        %v7346 = vpop.f32.mrf.mxu0
        %v7347 = vpop.f32.mrf.mxu0
        %v7348 = vpop.f32.mrf.mxu0
        %v7349 = vpop.f32.mrf.mxu0
        %7350 = vmatprep.mubr.bf16.mxu0 0
        %7351 = vmatmul.mubr.bf16.gmra.mxu0 %v5955
        %v7352 = vpop.f32.mrf.mxu0
        %v7353 = vpop.f32.mrf.mxu0
        %v7354 = vpop.f32.mrf.mxu0
        %v7355 = vpop.f32.mrf.mxu0
        %7356 = vmatprep.mubr.bf16.mxu0 0
        %7357 = vmatmul.mubr.bf16.gmra.mxu0 %v7227
        %v7358 = vpop.f32.mrf.mxu0
        %v7359 = vpop.f32.mrf.mxu0
        %v7360 = vpop.f32.mrf.mxu0
        %v7361 = vpop.f32.mrf.mxu0
        %7362 = vmatprep.mubr.bf16.mxu0 0
        %7363 = vmatmul.mubr.bf16.gmra.mxu0 %v7230
        %v7364 = vpop.f32.mrf.mxu0
        %v7365 = vpop.f32.mrf.mxu0
        %v7366 = vpop.f32.mrf.mxu0
        %v7367 = vpop.f32.mrf.mxu0
        %7368 = vmatprep.mubr.bf16.mxu0 0
        %7369 = vmatmul.mubr.bf16.gmra.mxu0 %v7233
        %v7370 = vpop.f32.mrf.mxu0
        %v7371 = vpop.f32.mrf.mxu0
        %v7372 = vpop.f32.mrf.mxu0
        %v7373 = vpop.f32.mrf.mxu0
        %7374 = vmatprep.mubr.bf16.mxu0 0
        %7375 = vmatmul.mubr.bf16.gmra.mxu0 %v7236
        %v7376 = vpop.f32.mrf.mxu0
        %v7377 = vpop.f32.mrf.mxu0
        %v7378 = vpop.f32.mrf.mxu0
        %v7379 = vpop.f32.mrf.mxu0
        %7380 = vdwg.mxu0
        %v7381 = vadd.f32 %v7187, %v7273
        %v7382 = vadd.f32 %v7188, %v7282
        %v7383 = vadd.f32 %v7189, %v7293
        %v7384 = vadd.f32 %v7190, %v7302
        %v7385 = vadd.f32 %v7191, %v7313
        %v7386 = vadd.f32 %v7192, %v7322
        %v7387 = vadd.f32 %v7193, %v7333
        %v7388 = vadd.f32 %v7194, %v7342
        %s7389 = scalar_lea.vmem [#allocation12], 56
        %v7390 = vld [vmem:[%s7389] sm:$0xf]
        %v7391 = vld [vmem:[%s7389 + $0x4] sm:$0xf]
        %v7392 = vpack.c.b16 %v7200, %v6926
        %v7393 = vpack.c.b16 %v7201, %v7201
        %v7396 = vunpack.c.l.b16 %v7390
        %v7397 = vunpack.c.l.b16 %v7391
        %v7398 = vpack.c.b16 %v7397, %v7396
        %v7400 = vsel %vm3091, %v6108, 0
        %v7402 = vsel %vm3091, %v6443, 0
        %v7405 = vsel %vm3091, %v7392, 0
        %v7408 = vsel %vm3091, %v7393, 0
        %7410 = vmatprep.subr.bf16.mxu0 0
        %7411 = vmatpush1.bf16.msra.mxu0 0
        %7412 = vmatprep.subr.bf16.mxu0 0
        %7413 = vmatpush1.bf16.msra.mxu0 0
        %7414 = vmatprep.subr.bf16.mxu0 0
        %7415 = vmatpush1.bf16.msra.mxu0 0
        %7416 = vmatprep.subr.bf16.mxu0 0
        %7417 = vmatpush1.bf16.msra.mxu0 0
        %7418 = vmatprep.subr.bf16.mxu0 0
        %7419 = vmatpush1.bf16.msra.mxu0 0
        %7420 = vmatprep.subr.bf16.mxu0 0
        %7421 = vmatpush1.bf16.msra.mxu0 0
        %7422 = vmatprep.subr.bf16.mxu0 0
        %7423 = vmatpush1.bf16.msra.mxu0 0
        %7424 = vmatprep.subr.bf16.mxu0 0
        %7425 = vmatpush1.bf16.msra.mxu0 %v7398
        %7426 = vmatprep.subr.bf16.mxu0 0
        %7427 = vmatpush2.bf16.msra.mxu0 0
        %7428 = vmatprep.subr.bf16.mxu0 0
        %7429 = vmatpush2.bf16.msra.mxu0 0
        %7430 = vmatprep.subr.bf16.mxu0 0
        %7431 = vmatpush2.bf16.msra.mxu0 0
        %7432 = vmatprep.subr.bf16.mxu0 0
        %7433 = vmatpush2.bf16.msra.mxu0 0
        %7434 = vmatprep.subr.bf16.mxu0 0
        %7435 = vmatpush2.bf16.msra.mxu0 0
        %7436 = vmatprep.subr.bf16.mxu0 0
        %7437 = vmatpush2.bf16.msra.mxu0 0
        %7438 = vmatprep.subr.bf16.mxu0 0
        %7439 = vmatpush2.bf16.msra.mxu0 0
        %7440 = vmatprep.subr.bf16.mxu0 0
        %7441 = vmatpush2.bf16.msra.mxu0 0
        %7442 = vmatprep.mubr.bf16.mxu0 0
        %7443 = vmatmul.mubr.bf16.gmra.mxu0 %v5548
        %v7444 = vpop.f32.mrf.mxu0
        %v7445 = vadd.f32 0.0, %v7444
        %v7446 = vpop.f32.mrf.mxu0
        %v7447 = vpop.f32.mrf.mxu0
        %v7448 = vpop.f32.mrf.mxu0
        %7449 = vmatprep.mubr.bf16.mxu0 0
        %7450 = vmatmul.mubr.bf16.gmra.mxu0 %v5551
        %v7451 = vpop.f32.mrf.mxu0
        %v7452 = vpop.f32.mrf.mxu0
        %v7453 = vpop.f32.mrf.mxu0
        %v7454 = vadd.f32 0.0, %v7453
        %v7455 = vpop.f32.mrf.mxu0
        %7456 = vmatprep.mubr.bf16.mxu0 0
        %7457 = vmatmul.mubr.bf16.gmra.mxu0 %v5554
        %v7458 = vpop.f32.mrf.mxu0
        %v7459 = vpop.f32.mrf.mxu0
        %v7460 = vpop.f32.mrf.mxu0
        %v7461 = vpop.f32.mrf.mxu0
        %7462 = vmatprep.mubr.bf16.mxu0 0
        %7463 = vmatmul.mubr.bf16.gmra.mxu0 %v5557
        %v7464 = vpop.f32.mrf.mxu0
        %v7465 = vadd.f32 0.0, %v7464
        %v7466 = vpop.f32.mrf.mxu0
        %v7467 = vpop.f32.mrf.mxu0
        %v7468 = vpop.f32.mrf.mxu0
        %7469 = vmatprep.mubr.bf16.mxu0 0
        %7470 = vmatmul.mubr.bf16.gmra.mxu0 %v5560
        %v7471 = vpop.f32.mrf.mxu0
        %v7472 = vpop.f32.mrf.mxu0
        %v7473 = vpop.f32.mrf.mxu0
        %v7474 = vadd.f32 0.0, %v7473
        %v7475 = vpop.f32.mrf.mxu0
        %7476 = vmatprep.mubr.bf16.mxu0 0
        %7477 = vmatmul.mubr.bf16.gmra.mxu0 %v5563
        %v7478 = vpop.f32.mrf.mxu0
        %v7479 = vpop.f32.mrf.mxu0
        %v7480 = vpop.f32.mrf.mxu0
        %v7481 = vpop.f32.mrf.mxu0
        %7482 = vmatprep.mubr.bf16.mxu0 0
        %7483 = vmatmul.mubr.bf16.gmra.mxu0 %v5566
        %v7484 = vpop.f32.mrf.mxu0
        %v7485 = vadd.f32 0.0, %v7484
        %v7486 = vpop.f32.mrf.mxu0
        %v7487 = vpop.f32.mrf.mxu0
        %v7488 = vpop.f32.mrf.mxu0
        %7489 = vmatprep.mubr.bf16.mxu0 0
        %7490 = vmatmul.mubr.bf16.gmra.mxu0 %v5569
        %v7491 = vpop.f32.mrf.mxu0
        %v7492 = vpop.f32.mrf.mxu0
        %v7493 = vpop.f32.mrf.mxu0
        %v7494 = vadd.f32 0.0, %v7493
        %v7495 = vpop.f32.mrf.mxu0
        %7496 = vmatprep.mubr.bf16.mxu0 0
        %7497 = vmatmul.mubr.bf16.gmra.mxu0 %v5572
        %v7498 = vpop.f32.mrf.mxu0
        %v7499 = vpop.f32.mrf.mxu0
        %v7500 = vpop.f32.mrf.mxu0
        %v7501 = vpop.f32.mrf.mxu0
        %7502 = vmatprep.mubr.bf16.mxu0 0
        %7503 = vmatmul.mubr.bf16.gmra.mxu0 %v5575
        %v7504 = vpop.f32.mrf.mxu0
        %v7505 = vadd.f32 0.0, %v7504
        %v7506 = vpop.f32.mrf.mxu0
        %v7507 = vpop.f32.mrf.mxu0
        %v7508 = vpop.f32.mrf.mxu0
        %7509 = vmatprep.mubr.bf16.mxu0 0
        %7510 = vmatmul.mubr.bf16.gmra.mxu0 %v5578
        %v7511 = vpop.f32.mrf.mxu0
        %v7512 = vpop.f32.mrf.mxu0
        %v7513 = vpop.f32.mrf.mxu0
        %v7514 = vadd.f32 0.0, %v7513
        %v7515 = vpop.f32.mrf.mxu0
        %7516 = vmatprep.mubr.bf16.mxu0 0
        %7517 = vmatmul.mubr.bf16.gmra.mxu0 %v5581
        %v7518 = vpop.f32.mrf.mxu0
        %v7519 = vpop.f32.mrf.mxu0
        %v7520 = vpop.f32.mrf.mxu0
        %v7521 = vpop.f32.mrf.mxu0
        %7522 = vmatprep.mubr.bf16.mxu0 0
        %7523 = vmatmul.mubr.bf16.gmra.mxu0 %v5584
        %v7524 = vpop.f32.mrf.mxu0
        %v7525 = vpop.f32.mrf.mxu0
        %v7526 = vpop.f32.mrf.mxu0
        %v7527 = vpop.f32.mrf.mxu0
        %7528 = vmatprep.mubr.bf16.mxu0 0
        %7529 = vmatmul.mubr.bf16.gmra.mxu0 %v7400
        %v7530 = vpop.f32.mrf.mxu0
        %v7531 = vpop.f32.mrf.mxu0
        %v7532 = vpop.f32.mrf.mxu0
        %v7533 = vpop.f32.mrf.mxu0
        %7534 = vmatprep.mubr.bf16.mxu0 0
        %7535 = vmatmul.mubr.bf16.gmra.mxu0 %v7402
        %v7536 = vpop.f32.mrf.mxu0
        %v7537 = vpop.f32.mrf.mxu0
        %v7538 = vpop.f32.mrf.mxu0
        %v7539 = vpop.f32.mrf.mxu0
        %7540 = vmatprep.mubr.bf16.mxu0 0
        %7541 = vmatmul.mubr.bf16.gmra.mxu0 %v7405
        %v7542 = vpop.f32.mrf.mxu0
        %v7543 = vpop.f32.mrf.mxu0
        %v7544 = vpop.f32.mrf.mxu0
        %v7545 = vpop.f32.mrf.mxu0
        %7546 = vmatprep.mubr.bf16.mxu0 0
        %7547 = vmatmul.mubr.bf16.gmra.mxu0 %v7408
        %v7548 = vpop.f32.mrf.mxu0
        %v7549 = vpop.f32.mrf.mxu0
        %v7550 = vpop.f32.mrf.mxu0
        %v7551 = vpop.f32.mrf.mxu0
        %7552 = vdwg.mxu0
        %v7553 = vadd.f32 %v7381, %v7445
        %v7554 = vadd.f32 %v7382, %v7454
        %v7555 = vadd.f32 %v7383, %v7465
        %v7556 = vadd.f32 %v7384, %v7474
        %v7557 = vadd.f32 %v7385, %v7485
        %v7558 = vadd.f32 %v7386, %v7494
        %v7559 = vadd.f32 %v7387, %v7505
        %v7560 = vadd.f32 %v7388, %v7514
        %s7561 = scalar_lea.vmem [#allocation12], 64
        %v7562 = vld [vmem:[%s7561] sm:$0xf]
        %v7563 = vld [vmem:[%s7561 + $0x4] sm:$0xf]
        %v7565 = vunpack.c.l.b16 %v5443
        %v7566 = vpack.c.b16 %v7565, %v7201
        %v7567 = vrot.slane %v6511, 1
        %v7568 = vsel %vm1230, %v6227, %v7567
        %v7569 = vor.u32 %v6508, %v7567
        %v7570 = vshll.u32 %v7392, 16
        %v7572 = vrot.slane %v7570, 1
        %v7573 = vsel %vm1230, %v7569, %v7572
        %v7574 = vshrl.u32 %v7392, 16
        %v7576 = vor.u32 %v7574, %v7572
        %v7578 = vshll.u32 %v7566, 16
        %v7580 = vrot.slane %v7578, 1
        %v7581 = vsel %vm1230, %v7576, %v7580
        %v7582 = vshrl.u32 %v7566, 16
        %v7584 = vor.u32 %v7582, %v7580
        %v7587 = vunpack.c.l.b16 %v7562
        %v7588 = vunpack.c.l.b16 %v7563
        %v7589 = vpack.c.b16 %v7588, %v7587
        %v7592 = vsel %vm3091, %v7568, 0
        %v7595 = vsel %vm3091, %v7573, 0
        %v7598 = vsel %vm3091, %v7581, 0
        %v7601 = vsel %vm3091, %v7584, 0
        %7603 = vmatprep.subr.bf16.mxu0 0
        %7604 = vmatpush1.bf16.msra.mxu0 0
        %7605 = vmatprep.subr.bf16.mxu0 0
        %7606 = vmatpush1.bf16.msra.mxu0 0
        %7607 = vmatprep.subr.bf16.mxu0 0
        %7608 = vmatpush1.bf16.msra.mxu0 0
        %7609 = vmatprep.subr.bf16.mxu0 0
        %7610 = vmatpush1.bf16.msra.mxu0 0
        %7611 = vmatprep.subr.bf16.mxu0 0
        %7612 = vmatpush1.bf16.msra.mxu0 0
        %7613 = vmatprep.subr.bf16.mxu0 0
        %7614 = vmatpush1.bf16.msra.mxu0 0
        %7615 = vmatprep.subr.bf16.mxu0 0
        %7616 = vmatpush1.bf16.msra.mxu0 0
        %7617 = vmatprep.subr.bf16.mxu0 0
        %7618 = vmatpush1.bf16.msra.mxu0 %v7589
        %7619 = vmatprep.subr.bf16.mxu0 0
        %7620 = vmatpush2.bf16.msra.mxu0 0
        %7621 = vmatprep.subr.bf16.mxu0 0
        %7622 = vmatpush2.bf16.msra.mxu0 0
        %7623 = vmatprep.subr.bf16.mxu0 0
        %7624 = vmatpush2.bf16.msra.mxu0 0
        %7625 = vmatprep.subr.bf16.mxu0 0
        %7626 = vmatpush2.bf16.msra.mxu0 0
        %7627 = vmatprep.subr.bf16.mxu0 0
        %7628 = vmatpush2.bf16.msra.mxu0 0
        %7629 = vmatprep.subr.bf16.mxu0 0
        %7630 = vmatpush2.bf16.msra.mxu0 0
        %7631 = vmatprep.subr.bf16.mxu0 0
        %7632 = vmatpush2.bf16.msra.mxu0 0
        %7633 = vmatprep.subr.bf16.mxu0 0
        %7634 = vmatpush2.bf16.msra.mxu0 0
        %7635 = vmatprep.mubr.bf16.mxu0 0
        %7636 = vmatmul.mubr.bf16.gmra.mxu0 %v6244
        %v7637 = vpop.f32.mrf.mxu0
        %v7638 = vadd.f32 0.0, %v7637
        %v7639 = vpop.f32.mrf.mxu0
        %v7640 = vpop.f32.mrf.mxu0
        %v7641 = vpop.f32.mrf.mxu0
        %7642 = vmatprep.mubr.bf16.mxu0 0
        %7643 = vmatmul.mubr.bf16.gmra.mxu0 %v6247
        %v7644 = vpop.f32.mrf.mxu0
        %v7645 = vpop.f32.mrf.mxu0
        %v7646 = vpop.f32.mrf.mxu0
        %v7647 = vadd.f32 0.0, %v7646
        %v7648 = vpop.f32.mrf.mxu0
        %7649 = vmatprep.mubr.bf16.mxu0 0
        %7650 = vmatmul.mubr.bf16.gmra.mxu0 %v6250
        %v7651 = vpop.f32.mrf.mxu0
        %v7652 = vpop.f32.mrf.mxu0
        %v7653 = vpop.f32.mrf.mxu0
        %v7654 = vpop.f32.mrf.mxu0
        %7655 = vmatprep.mubr.bf16.mxu0 0
        %7656 = vmatmul.mubr.bf16.gmra.mxu0 %v6253
        %v7657 = vpop.f32.mrf.mxu0
        %v7658 = vadd.f32 0.0, %v7657
        %v7659 = vpop.f32.mrf.mxu0
        %v7660 = vpop.f32.mrf.mxu0
        %v7661 = vpop.f32.mrf.mxu0
        %7662 = vmatprep.mubr.bf16.mxu0 0
        %7663 = vmatmul.mubr.bf16.gmra.mxu0 %v6256
        %v7664 = vpop.f32.mrf.mxu0
        %v7665 = vpop.f32.mrf.mxu0
        %v7666 = vpop.f32.mrf.mxu0
        %v7667 = vadd.f32 0.0, %v7666
        %v7668 = vpop.f32.mrf.mxu0
        %7669 = vmatprep.mubr.bf16.mxu0 0
        %7670 = vmatmul.mubr.bf16.gmra.mxu0 %v6259
        %v7671 = vpop.f32.mrf.mxu0
        %v7672 = vpop.f32.mrf.mxu0
        %v7673 = vpop.f32.mrf.mxu0
        %v7674 = vpop.f32.mrf.mxu0
        %7675 = vmatprep.mubr.bf16.mxu0 0
        %7676 = vmatmul.mubr.bf16.gmra.mxu0 %v6262
        %v7677 = vpop.f32.mrf.mxu0
        %v7678 = vadd.f32 0.0, %v7677
        %v7679 = vpop.f32.mrf.mxu0
        %v7680 = vpop.f32.mrf.mxu0
        %v7681 = vpop.f32.mrf.mxu0
        %7682 = vmatprep.mubr.bf16.mxu0 0
        %7683 = vmatmul.mubr.bf16.gmra.mxu0 %v6265
        %v7684 = vpop.f32.mrf.mxu0
        %v7685 = vpop.f32.mrf.mxu0
        %v7686 = vpop.f32.mrf.mxu0
        %v7687 = vadd.f32 0.0, %v7686
        %v7688 = vpop.f32.mrf.mxu0
        %7689 = vmatprep.mubr.bf16.mxu0 0
        %7690 = vmatmul.mubr.bf16.gmra.mxu0 %v6268
        %v7691 = vpop.f32.mrf.mxu0
        %v7692 = vpop.f32.mrf.mxu0
        %v7693 = vpop.f32.mrf.mxu0
        %v7694 = vpop.f32.mrf.mxu0
        %7695 = vmatprep.mubr.bf16.mxu0 0
        %7696 = vmatmul.mubr.bf16.gmra.mxu0 %v6271
        %v7697 = vpop.f32.mrf.mxu0
        %v7698 = vadd.f32 0.0, %v7697
        %v7699 = vpop.f32.mrf.mxu0
        %v7700 = vpop.f32.mrf.mxu0
        %v7701 = vpop.f32.mrf.mxu0
        %7702 = vmatprep.mubr.bf16.mxu0 0
        %7703 = vmatmul.mubr.bf16.gmra.mxu0 %v6274
        %v7704 = vpop.f32.mrf.mxu0
        %v7705 = vpop.f32.mrf.mxu0
        %v7706 = vpop.f32.mrf.mxu0
        %v7707 = vadd.f32 0.0, %v7706
        %v7708 = vpop.f32.mrf.mxu0
        %7709 = vmatprep.mubr.bf16.mxu0 0
        %7710 = vmatmul.mubr.bf16.gmra.mxu0 %v6277
        %v7711 = vpop.f32.mrf.mxu0
        %v7712 = vpop.f32.mrf.mxu0
        %v7713 = vpop.f32.mrf.mxu0
        %v7714 = vpop.f32.mrf.mxu0
        %7715 = vmatprep.mubr.bf16.mxu0 0
        %7716 = vmatmul.mubr.bf16.gmra.mxu0 %v6280
        %v7717 = vpop.f32.mrf.mxu0
        %v7718 = vpop.f32.mrf.mxu0
        %v7719 = vpop.f32.mrf.mxu0
        %v7720 = vpop.f32.mrf.mxu0
        %7721 = vmatprep.mubr.bf16.mxu0 0
        %7722 = vmatmul.mubr.bf16.gmra.mxu0 %v7592
        %v7723 = vpop.f32.mrf.mxu0
        %v7724 = vpop.f32.mrf.mxu0
        %v7725 = vpop.f32.mrf.mxu0
        %v7726 = vpop.f32.mrf.mxu0
        %7727 = vmatprep.mubr.bf16.mxu0 0
        %7728 = vmatmul.mubr.bf16.gmra.mxu0 %v7595
        %v7729 = vpop.f32.mrf.mxu0
        %v7730 = vpop.f32.mrf.mxu0
        %v7731 = vpop.f32.mrf.mxu0
        %v7732 = vpop.f32.mrf.mxu0
        %7733 = vmatprep.mubr.bf16.mxu0 0
        %7734 = vmatmul.mubr.bf16.gmra.mxu0 %v7598
        %v7735 = vpop.f32.mrf.mxu0
        %v7736 = vpop.f32.mrf.mxu0
        %v7737 = vpop.f32.mrf.mxu0
        %v7738 = vpop.f32.mrf.mxu0
        %7739 = vmatprep.mubr.bf16.mxu0 0
        %7740 = vmatmul.mubr.bf16.gmra.mxu0 %v7601
        %v7741 = vpop.f32.mrf.mxu0
        %v7742 = vpop.f32.mrf.mxu0
        %v7743 = vpop.f32.mrf.mxu0
        %v7744 = vpop.f32.mrf.mxu0
        %7745 = vdwg.mxu0
        %v7746 = vadd.f32 %v7553, %v7638
        %v7747 = vadd.f32 %v7554, %v7647
        %v7748 = vadd.f32 %v7555, %v7658
        %v7749 = vadd.f32 %v7556, %v7667
        %v7750 = vadd.f32 %v7557, %v7678
        %v7751 = vadd.f32 %v7558, %v7687
        %v7752 = vadd.f32 %v7559, %v7698
        %v7753 = vadd.f32 %v7560, %v7707
        %7762 = vrot.lane.b32.xlu0 %v7746, 32
        %v7763 = vpop.permute.xlu0 %7762
        %7764 = vrot.lane.b32.xlu0 %v7747, 32
        %v7765 = vpop.permute.xlu0 %7764
        %7766 = vrot.lane.b32.xlu0 %v7748, 32
        %v7767 = vpop.permute.xlu0 %7766
        %7768 = vrot.lane.b32.xlu0 %v7749, 32
        %v7769 = vpop.permute.xlu0 %7768
        %7770 = vrot.lane.b32.xlu0 %v7750, 32
        %v7771 = vpop.permute.xlu0 %7770
        %7772 = vrot.lane.b32.xlu0 %v7751, 32
        %v7773 = vpop.permute.xlu0 %7772
        %7774 = vrot.lane.b32.xlu0 %v7752, 32
        %v7775 = vpop.permute.xlu0 %7774
        %7776 = vrot.lane.b32.xlu0 %v7753, 32
        %v7777 = vpop.permute.xlu0 %7776
        %v7786 = vadd.f32 %v2922, %v7763
        %v7787 = vadd.f32 %v2923, %v7765
        %v7788 = vadd.f32 %v2924, %v7767
        %v7789 = vadd.f32 %v2925, %v7769
        %v7790 = vadd.f32 %v2926, %v7771
        %v7791 = vadd.f32 %v2927, %v7773
        %v7792 = vadd.f32 %v2928, %v7775
        %v7793 = vadd.f32 %v2929, %v7777
        %v7794 = vld [vmem:[#allocation15] sm:$0x1]
        %v7796 = vlaneseq
        %v7797 = vshrl.u32 %v7796, 7
        %v7798 = vsub.s32 0, %v7797
        %v7799 = vrot.slane %v7794, %v7798
        %7800 = vrot.lane.b32.xlu0 %v7799, 32
        %v7801 = vpop.permute.xlu0 %7800
        %v7803 = vadd.f32 %v7786, %v7801
        %v7804 = vadd.f32 %v7787, %v7801
        %v7805 = vadd.f32 %v7788, %v7801
        %v7806 = vadd.f32 %v7789, %v7801
        %v7807 = vadd.f32 %v7790, %v7801
        %v7808 = vadd.f32 %v7791, %v7801
        %v7809 = vadd.f32 %v7792, %v7801
        %v7810 = vadd.f32 %v7793, %v7801
        %v7811 = vmax.f32 %v7803, 0.0
        %v7812 = vmax.f32 %v7804, 0.0
        %v7813 = vmax.f32 %v7805, 0.0
        %v7814 = vmax.f32 %v7806, 0.0
        %v7815 = vmax.f32 %v7807, 0.0
        %v7816 = vmax.f32 %v7808, 0.0
        %v7817 = vmax.f32 %v7809, 0.0
        %v7818 = vmax.f32 %v7810, 0.0
        %7827 = vrot.lane.b32.xlu0 %v2930, 16
        %v7828 = vpop.permute.xlu0 %7827
        %7829 = vrot.lane.b32.xlu0 %v2931, 16
        %v7830 = vpop.permute.xlu0 %7829
        %7831 = vrot.lane.b32.xlu0 %v2932, 16
        %v7832 = vpop.permute.xlu0 %7831
        %7833 = vrot.lane.b32.xlu0 %v2933, 16
        %v7834 = vpop.permute.xlu0 %7833
        %7835 = vrot.lane.b32.xlu0 %v2934, 16
        %v7836 = vpop.permute.xlu0 %7835
        %7837 = vrot.lane.b32.xlu0 %v2935, 16
        %v7838 = vpop.permute.xlu0 %7837
        %7839 = vrot.lane.b32.xlu0 %v2936, 16
        %v7840 = vpop.permute.xlu0 %7839
        %7841 = vrot.lane.b32.xlu0 %v2937, 16
        %v7842 = vpop.permute.xlu0 %7841
        %v7851 = vmul.f32 %v5364, %v7828
        %v7852 = vmul.f32 %v5366, %v7830
        %v7853 = vmul.f32 %v5368, %v7832
        %v7854 = vmul.f32 %v5370, %v7834
        %v7855 = vmul.f32 %v5372, %v7836
        %v7856 = vmul.f32 %v5374, %v7838
        %v7857 = vmul.f32 %v5376, %v7840
        %v7858 = vmul.f32 %v5378, %v7842
        %v7859 = vsub.f32 1.0, %v5364
        %v7860 = vsub.f32 1.0, %v5366
        %v7861 = vsub.f32 1.0, %v5368
        %v7862 = vsub.f32 1.0, %v5370
        %v7863 = vsub.f32 1.0, %v5372
        %v7864 = vsub.f32 1.0, %v5374
        %v7865 = vsub.f32 1.0, %v5376
        %v7866 = vsub.f32 1.0, %v5378
        %7875 = vrot.lane.b32.xlu0 %v7811, 112
        %v7876 = vpop.permute.xlu0 %7875
        %7877 = vrot.lane.b32.xlu0 %v7812, 112
        %v7878 = vpop.permute.xlu0 %7877
        %7879 = vrot.lane.b32.xlu0 %v7813, 112
        %v7880 = vpop.permute.xlu0 %7879
        %7881 = vrot.lane.b32.xlu0 %v7814, 112
        %v7882 = vpop.permute.xlu0 %7881
        %7883 = vrot.lane.b32.xlu0 %v7815, 112
        %v7884 = vpop.permute.xlu0 %7883
        %7885 = vrot.lane.b32.xlu0 %v7816, 112
        %v7886 = vpop.permute.xlu0 %7885
        %7887 = vrot.lane.b32.xlu0 %v7817, 112
        %v7888 = vpop.permute.xlu0 %7887
        %7889 = vrot.lane.b32.xlu0 %v7818, 112
        %v7890 = vpop.permute.xlu0 %7889
        %v7899 = vmul.f32 %v7859, %v7876
        %v7900 = vmul.f32 %v7860, %v7878
        %v7901 = vmul.f32 %v7861, %v7880
        %v7902 = vmul.f32 %v7862, %v7882
        %v7903 = vmul.f32 %v7863, %v7884
        %v7904 = vmul.f32 %v7864, %v7886
        %v7905 = vmul.f32 %v7865, %v7888
        %v7906 = vmul.f32 %v7866, %v7890
        %v7907 = vadd.f32 %v7851, %v7899
        %v7908 = vadd.f32 %v7852, %v7900
        %v7909 = vadd.f32 %v7853, %v7901
        %v7910 = vadd.f32 %v7854, %v7902
        %v7911 = vadd.f32 %v7855, %v7903
        %v7912 = vadd.f32 %v7856, %v7904
        %v7913 = vadd.f32 %v7857, %v7905
        %v7914 = vadd.f32 %v7858, %v7906
        %7923 = vrot.lane.b32.xlu0 %v7907, 112
        %v7924 = vpop.permute.xlu0 %7923
        %7925 = vrot.lane.b32.xlu0 %v7908, 112
        %v7926 = vpop.permute.xlu0 %7925
        %7927 = vrot.lane.b32.xlu0 %v7909, 112
        %v7928 = vpop.permute.xlu0 %7927
        %7929 = vrot.lane.b32.xlu0 %v7910, 112
        %v7930 = vpop.permute.xlu0 %7929
        %7931 = vrot.lane.b32.xlu0 %v7911, 112
        %v7932 = vpop.permute.xlu0 %7931
        %7933 = vrot.lane.b32.xlu0 %v7912, 112
        %v7934 = vpop.permute.xlu0 %7933
        %7935 = vrot.lane.b32.xlu0 %v7913, 112
        %v7936 = vpop.permute.xlu0 %7935
        %7937 = vrot.lane.b32.xlu0 %v7914, 112
        %v7938 = vpop.permute.xlu0 %7937
        %7947 = vst.msk [vmem:[#allocation2] sm:$0xff] %vm3091, %v7924
        %7948 = vst.msk [vmem:[#allocation2 + $0x8] sm:$0xff] %vm3091, %v7926
        %7949 = vst.msk [vmem:[#allocation2 + $0x10] sm:$0xff] %vm3091, %v7928
        %7950 = vst.msk [vmem:[#allocation2 + $0x18] sm:$0xff] %vm3091, %v7930
        %7951 = vst.msk [vmem:[#allocation2 + $0x20] sm:$0xff] %vm3091, %v7932
        %7952 = vst.msk [vmem:[#allocation2 + $0x28] sm:$0xff] %vm3091, %v7934
        %7953 = vst.msk [vmem:[#allocation2 + $0x30] sm:$0xff] %vm3091, %v7936
        %7954 = vst.msk [vmem:[#allocation2 + $0x38] sm:$0xff] %vm3091, %v7938
        %v7955 = vpack.c.bf16 %v7907, %v7907
        %v7956 = vpack.c.bf16 %v7908, %v7908
        %v7957 = vpack.c.bf16 %v7909, %v7909
        %v7958 = vpack.c.bf16 %v7910, %v7910
        %v7959 = vpack.c.bf16 %v7911, %v7911
        %v7960 = vpack.c.bf16 %v7912, %v7912
        %v7961 = vpack.c.bf16 %v7913, %v7913
        %v7962 = vpack.c.bf16 %v7914, %v7914
        %v7971 = vunpack.c.l.b16 %v7955
        %v7972 = vunpack.c.l.b16 %v7956
        %v7973 = vunpack.c.l.b16 %v7957
        %v7974 = vunpack.c.l.b16 %v7958
        %v7975 = vunpack.c.l.b16 %v7959
        %v7976 = vunpack.c.l.b16 %v7960
        %v7977 = vunpack.c.l.b16 %v7961
        %v7978 = vunpack.c.l.b16 %v7962
        %v7979 = vpack.c.b16 %v7971, %v7971
        %v7980 = vpack.c.b16 %v7972, %v7972
        %v7981 = vpack.c.b16 %v7973, %v7973
        %v7982 = vpack.c.b16 %v7974, %v7974
        %v7983 = vpack.c.b16 %v7975, %v7975
        %v7984 = vpack.c.b16 %v7976, %v7976
        %v7985 = vpack.c.b16 %v7977, %v7977
        %v7986 = vpack.c.b16 %v7978, %v7978
        %7987 = vrot.lane.b32.xlu0 %v7979, 112
        %v7988 = vpop.permute.xlu0 %7987
        %7989 = vrot.lane.b32.xlu0 %v7980, 112
        %v7990 = vpop.permute.xlu0 %7989
        %7991 = vrot.lane.b32.xlu0 %v7981, 112
        %v7992 = vpop.permute.xlu0 %7991
        %7993 = vrot.lane.b32.xlu0 %v7982, 112
        %v7994 = vpop.permute.xlu0 %7993
        %7995 = vrot.lane.b32.xlu0 %v7983, 112
        %v7996 = vpop.permute.xlu0 %7995
        %7997 = vrot.lane.b32.xlu0 %v7984, 112
        %v7998 = vpop.permute.xlu0 %7997
        %7999 = vrot.lane.b32.xlu0 %v7985, 112
        %v8000 = vpop.permute.xlu0 %7999
        %8001 = vrot.lane.b32.xlu0 %v7986, 112
        %v8002 = vpop.permute.xlu0 %8001
        %8011 = vst.msk [vmem:[%s426] sm:$0xf] %vm2947, %v7988
        %8012 = vst.msk [vmem:[%s426 + $0x4] sm:$0xf] %vm2947, %v7990
        %8013 = vst.msk [vmem:[%s426 + $0x8] sm:$0xf] %vm2947, %v7992
        %8014 = vst.msk [vmem:[%s426 + $0xc] sm:$0xf] %vm2947, %v7994
        %8015 = vst.msk [vmem:[%s426 + $0x10] sm:$0xf] %vm2947, %v7996
        %8016 = vst.msk [vmem:[%s426 + $0x14] sm:$0xf] %vm2947, %v7998
        %8017 = vst.msk [vmem:[%s426 + $0x18] sm:$0xf] %vm2947, %v8000
        %8018 = vst.msk [vmem:[%s426 + $0x1c] sm:$0xf] %vm2947, %v8002
        %s8019 = sand.u32 %s214, 1
        %s8020 = scalar_lea.sflag [#allocation6], %s8019
        %s8021 = sand.u32 %s214, 1
        %s8022 = smul.addr %s8021, 32
        %s8023 = scalar_lea.vmem [#allocation16], %s8022
        // Predicated region
        $region81: #{tpu_custom_call.1} parent=47 // pred_check
          %p8024 = pneg %p224
        $region82: #{tpu_custom_call.1} parent=47 // pred_check_branch
          %8026 = sbr.rel (%p8024) target = $region84
        $region83: #{tpu_custom_call.1} parent=47 // pred_region
          %s8027 = smul.u32 %s34, 2
          %s8028 = sadd.s32 %s8027, %s33
          %s8030 = ssub.s32 512, 512
          %8031 = vsyncadd %s8020, %s8030
          %s8032 = smul.addr %s8028, 8
          %s8033 = smul.addr %s8032, 64
          %s8034 = scalar_lea.hbm %s7, %s8033
          %s8035 = sshll.u32 %s8023, 4
          %s8036 = int_to_ptr.vmem [resolvable:$true] %s8035
          %8041 = dma.vmem_to_hbm [thread:$0]  %s8036, 512, %s8034, %s8020, 64, 64, 4
        $region84: #{tpu_custom_call.1} parent=47 // pred_fallthru
          _
      $region48: #{tpu_custom_call.1} parent=5 // pred_fallthru
        _
      %p8042 = scmp.le.s32.totalorder 2, %s24
      // Predicated region
      $region85: #{tpu_custom_call.1} parent=5 // pred_check
        %p8043 = pneg %p8042
      $region86: #{tpu_custom_call.1} parent=5 // pred_check_branch
        %8045 = sbr.rel (%p8043) target = $region88
      $region87: #{tpu_custom_call.1} parent=5 // pred_region
        %s8046 = ssub.s32 %s24, 2
        // Predicated region
        $region89: #{tpu_custom_call.1} parent=87 // pred_check
          %p8047 = pneg %p230
        $region90: #{tpu_custom_call.1} parent=87 // pred_check_branch
          %8049 = sbr.rel (%p8047) target = $region92
        $region91: #{tpu_custom_call.1} parent=87 // pred_region
          %s8050 = sand.u32 %s215, 1
          %s8051 = scalar_lea.sflag [#allocation6], %s8050
          %s8052 = sand.u32 %s215, 1
          %s8053 = smul.addr %s8052, 32
          %s8054 = scalar_lea.vmem [#allocation16], %s8053
          %8055 = dma.done %s8051, 512
        $region92: #{tpu_custom_call.1} parent=87 // pred_fallthru
          _
      $region88: #{tpu_custom_call.1} parent=5 // pred_fallthru
        _
    $region6: #{tpu_custom_call.1} parent=1 // loop_footer
      %s28 = sadd.s32 1, %s24
    $region7: #{tpu_custom_call.1} parent=1 // loop_footer_branch
      %23 = sbr.rel target = $region3
    $region8: #{tpu_custom_call.1} parent=1 // loop_exit
      _
    %8056 = vsyncpa [#allocation5], 1
    %s8057 = scalar_lea.sflag [#allocation5], 1
    %8058 = vsyncpa %s8057, 1
    %8059 = vsyncpa [#allocation8], 1
    %s8060 = scalar_lea.sflag [#allocation8], 1
    %8061 = vsyncpa %s8060, 1
    %8062 = vsyncpa [#allocation11], 1
    %8063 = vsyncpa [#allocation14], 1
    %8064 = vsyncpa [#allocation6], 1
    %s8065 = scalar_lea.sflag [#allocation6], 1
    %8066 = vsyncpa %s8065, 1

</llo_original>
